<compile_context>
chip_gen: v7x
topology: tpu7x:2x2x1
jax: 0.10.0
libtpu: 0.0.40
codegen_flags: <defaults>
</compile_context>

<pallas_src>
import functools

import jax
import jax.numpy as jnp
from jax.experimental import pallas as pl
from jax.experimental.pallas import tpu as pltpu

EPS = 1e-5
LANE = 128
MATMUL_DTYPE = jnp.bfloat16   # MXU / intermediate-storage dtype


# ------------------------- in-kernel helpers -------------------------

def _conv3x3_taps(load_tap, w_ref, H, W):
    """3x3 'same' conv as 9 contiguous-slice matmuls over a flattened padded slab.

    load_tap(off) -> (H*(W+2), Cin) bf16 slice starting at flat row `off` of the padded slab.
    w_ref: (9, Cin, Cout) bf16.  Returns (H*(W+2), Cout) f32; the last 2 columns of every
    (W+2)-wide output row are garbage and must be masked by the caller.
    """
    Wp = W + 2
    cout = w_ref.shape[-1]
    acc = jnp.zeros((H * Wp, cout), jnp.float32)
    for tap in range(9):                       # static unroll: 9 MXU calls
        dy, dx = tap // 3, tap % 3
        x_tap = load_tap(dy * Wp + dx)
        acc = acc + jnp.dot(x_tap, w_ref[tap], preferred_element_type=jnp.float32)
    return acc


def _masked_stats(acc, valid):
    """Per-channel sum / sum-of-squares over the valid rows only (NaN-safe via where)."""
    m = jnp.where(valid, acc, 0.0)
    return jnp.sum(m, axis=0, keepdims=True), jnp.sum(m * m, axis=0, keepdims=True)


# ------------------------- Pallas kernels -------------------------

def pass1_id_kernel(xp_ref, mask_ref, w1_ref, y1_ref, s1_ref, q1_ref, *, B, H, W):
    # pass 1 (identity shortcut): conv1 via contiguous-tap im2col + per-block BN1 stats.
    Wp = W + 2
    L = H * Wp
    valid = mask_ref[...] > 0.5
    C = w1_ref.shape[-1]
    s1 = jnp.zeros((1, C), jnp.float32)
    q1 = jnp.zeros((1, C), jnp.float32)
    for b in range(B):
        acc = _conv3x3_taps(lambda off, _b=b: xp_ref[_b, off:off + L, :], w1_ref, H, W)
        y1_ref[b] = acc.astype(y1_ref.dtype)          # bf16 store, stats from f32 acc
        ds, dq = _masked_stats(acc, valid)
        s1 += ds
        q1 += dq
    s1_ref[0] = s1
    q1_ref[0] = q1


def pass1_proj_kernel(xp_ref, mask_ref, w1_ref, ws_ref,
                      y1_ref, s1_ref, q1_ref, sp_ref, ss_ref, qs_ref, *, B, H, W):
    # pass 1 (projection shortcut): conv1 + fused 1x1 shortcut matmul, both with BN stats.
    Wp = W + 2
    L = H * Wp
    valid = mask_ref[...] > 0.5
    C = w1_ref.shape[-1]
    s1 = jnp.zeros((1, C), jnp.float32)
    q1 = jnp.zeros((1, C), jnp.float32)
    ss = jnp.zeros((1, C), jnp.float32)
    qs = jnp.zeros((1, C), jnp.float32)
    for b in range(B):
        acc = _conv3x3_taps(lambda off, _b=b: xp_ref[_b, off:off + L, :], w1_ref, H, W)
        y1_ref[b] = acc.astype(y1_ref.dtype)
        ds, dq = _masked_stats(acc, valid)
        s1 += ds
        q1 += dq
        # fused 1x1 projection shortcut: the interior slice of xp is already in VMEM
        sp = jnp.dot(xp_ref[b, Wp + 1:Wp + 1 + L, :], ws_ref[...],
                     preferred_element_type=jnp.float32)
        sp_ref[b] = sp.astype(sp_ref.dtype)
        ds, dq = _masked_stats(sp, valid)
        ss += ds
        qs += dq
    s1_ref[0] = s1
    q1_ref[0] = q1
    ss_ref[0] = ss
    qs_ref[0] = qs


def pass2_kernel(y1_ref, mask_ref, sc1_ref, sh1_ref, w2_ref,
                 y2_ref, s2_ref, q2_ref, pad_ref, *, B, H, W, lead):
    # pass 2: BN1 + ReLU1 (hoisted scale/shift) -> bf16 pad scratch -> conv2 + BN2 stats.
    Wp = W + 2
    L = H * Wp
    P = (H + 2) * Wp
    PS = pad_ref.shape[0]
    i0 = lead + Wp + 1                        # 16-row-aligned interior start (lead chosen so)
    b0 = ((lead + P - Wp + 1) // 16) * 16     # 16-row-aligned start of the bottom halo zero
    valid = mask_ref[...] > 0.5
    scale1 = sc1_ref[...]
    shift1 = sh1_ref[...]
    C = w2_ref.shape[-1]
    s2 = jnp.zeros((1, C), jnp.float32)
    q2 = jnp.zeros((1, C), jnp.float32)
    # zero only the halo strips once; the interior is fully overwritten for every image
    pad_ref[0:i0, :] = jnp.zeros((i0, C), pad_ref.dtype)
    pad_ref[b0:PS, :] = jnp.zeros((PS - b0, C), pad_ref.dtype)
    for b in range(B):
        y1 = y1_ref[b].astype(jnp.float32)
        y1 = jnp.maximum(y1 * scale1 + shift1, 0.0)
        y1 = jnp.where(valid, y1, 0.0)        # zero the 2 garbage cols -> conv2's side halo
        pad_ref[i0:i0 + L, :] = y1.astype(pad_ref.dtype)     # single contiguous aligned store
        acc = _conv3x3_taps(lambda off: pad_ref[lead + off:lead + off + L, :], w2_ref, H, W)
        y2_ref[b] = acc.astype(y2_ref.dtype)
        ds, dq = _masked_stats(acc, valid)
        s2 += ds
        q2 += dq
    s2_ref[0] = s2
    q2_ref[0] = q2


def pass3_proj_kernel(y2_ref, sp_ref, sc2_ref, sh2_ref, scs_ref, shs_ref, out_ref, *, B):
    # pass 3 (projection): BN2 + BN_shortcut (hoisted scale/shift) + add + ReLU.
    sc2 = sc2_ref[...]
    sh2 = sh2_ref[...]
    scs = scs_ref[...]
    shs = shs_ref[...]
    for b in range(B):
        y2 = y2_ref[b].astype(jnp.float32)
        sp = sp_ref[b].astype(jnp.float32)
        out_ref[b] = jnp.maximum(y2 * sc2 + sh2 + sp * scs + shs, 0.0)


def pass3_id_kernel(y2_ref, xp_ref, sc2_ref, sh2_ref, out_ref, *, B, H, W):
    # pass 3 (identity): BN2 + raw residual add (interior slice of the x slab) + ReLU.
    Wp = W + 2
    L = H * Wp
    sc2 = sc2_ref[...]
    sh2 = sh2_ref[...]
    for b in range(B):
        y2 = y2_ref[b].astype(jnp.float32)
        res = xp_ref[b, Wp + 1:Wp + 1 + L, :].astype(jnp.float32)
        out_ref[b] = jnp.maximum(y2 * sc2 + sh2 + res, 0.0)


# ------------------------- spec / layout helpers -------------------------

def _round_up(x, m):
    return ((x + m - 1) // m) * m


def _pad_last(a, target):
    pad = target - a.shape[-1]
    if pad == 0:
        return a
    return jnp.pad(a, [(0, 0)] * (a.ndim - 1) + [(0, pad)])


def _prep_conv_w(w_hwio, cin_p, cout_p):
    kh, kw, cin, cout = w_hwio.shape
    w = jnp.pad(w_hwio, ((0, 0), (0, 0), (0, cin_p - cin), (0, cout_p - cout)))
    return w.reshape(kh * kw, cin_p, cout_p).astype(MATMUL_DTYPE)


def _prep_vec(v, cp):
    return _pad_last(v.reshape(1, -1).astype(jnp.float32), cp)


def _bn_coeffs(s, q, g, b, count):
    # hoisted between passes: per-block partial stats -> per-channel scale / shift (tiny op)
    mean = jnp.sum(s, axis=0) / count          # (1, C)
    ex2 = jnp.sum(q, axis=0) / count
    var = ex2 - mean * mean                    # biased (training-mode) variance
    scale = g * jax.lax.rsqrt(var + EPS)
    shift = b - mean * scale
    return scale, shift


def _images_per_block(n, rows):
    # aim for >=512 output rows per grid step while keeping grid length >= 2 (megacore)
    b = min(n, max(1, n // 2), max(1, -(-512 // max(rows, 1))))
    while n % b:
        b -= 1
    return max(b, 1)


def _cparams():
    return pltpu.CompilerParams(
        dimension_semantics=("parallel",),           # independent per-image blocks
        vmem_limit_bytes=40 * 1024 * 1024,           # ~1/3 headroom under v7x's 64 MiB VMEM
    )


# ------------------------- forward -------------------------

def resblock_forward(x_nchw, params):
    N, Cin, H, W = x_nchw.shape
    Cout = params["w1"].shape[-1]
    Cin_p = _round_up(Cin, LANE)     # lane-dense channel padding
    Cout_p = _round_up(Cout, LANE)
    Wp = W + 2
    L = H * Wp                       # rows of a conv-output slab (W+2-wide rows, 2 junk cols)
    P = (H + 2) * Wp                 # rows of the flattened zero-padded input slab
    PA = P + 2                       # +2 so the last tap's contiguous slice stays in bounds
    lead = (-(Wp + 1)) % 16          # makes the pad-scratch interior store 16-row aligned
    PS = _round_up(lead + PA, 16)    # pad-scratch rows
    count = float(N * H * W)         # BN statistics over all valid N*H*W pixels
    B = _images_per_block(N, H * W)
    G = N // B
    grid = (G,)

    # NHWC, lane-padded channels, spatial halo, flattened to (N, PA, Cin_p), bf16
    x = jnp.transpose(x_nchw, (0, 2, 3, 1)).astype(jnp.float32)
    x_cp = _pad_last(x, Cin_p)
    xp = jnp.pad(x_cp, ((0, 0), (1, 1), (1, 1), (0, 0))).reshape(N, P, Cin_p)
    xp = jnp.pad(xp, ((0, 0), (0, PA - P), (0, 0))).astype(MATMUL_DTYPE)

    # validity mask over the W+2-wide output rows (last 2 columns of each row are garbage)
    col = jnp.arange(L, dtype=jnp.int32) % Wp
    mask = (col < W).astype(jnp.float32).reshape(L, 1)

    w1 = _prep_conv_w(params["w1"], Cin_p, Cout_p)
    w2 = _prep_conv_w(params["w2"], Cout_p, Cout_p)
    g1, be1 = _prep_vec(params["g1"], Cout_p), _prep_vec(params["be1"], Cout_p)
    g2, be2 = _prep_vec(params["g2"], Cout_p), _prep_vec(params["be2"], Cout_p)
    # NOTE: conv biases b1/b2/bs are intentionally NOT used in the kernels — a per-channel
    # bias right before training-mode BatchNorm is cancelled exactly by the mean subtraction.

    slab = jax.ShapeDtypeStruct((N, L, Cout_p), MATMUL_DTYPE)       # bf16 intermediates
    stats = jax.ShapeDtypeStruct((G, 1, Cout_p), jnp.float32)
    out_slab = jax.ShapeDtypeStruct((N, L, Cout_p), jnp.float32)

    def img_spec(rows, c):
        return pl.BlockSpec((B, rows, c), lambda g: (g, 0, 0))

    def stat_spec():
        return pl.BlockSpec((1, 1, Cout_p), lambda g: (g, 0, 0))

    mask_spec = pl.BlockSpec((L, 1), lambda g: (0, 0))
    vec_spec = pl.BlockSpec((1, Cout_p), lambda g: (0, 0))

    def w_spec(cin):
        return pl.BlockSpec((9, cin, Cout_p), lambda g: (0, 0, 0))

    proj = Cin != Cout

    # ---- pass 1: conv1 (+ fused 1x1 projection shortcut) + per-block BN partial stats ----
    if proj:
        ws = jnp.pad(params["ws"],
                     ((0, Cin_p - Cin), (0, Cout_p - Cout))).astype(MATMUL_DTYPE)
        gs, bes = _prep_vec(params["gs"], Cout_p), _prep_vec(params["bes"], Cout_p)
        y1pre, s1, q1, spre, ss, qs = pl.pallas_call(
            functools.partial(pass1_proj_kernel, B=B, H=H, W=W),
            grid=grid,
            in_specs=[img_spec(PA, Cin_p), mask_spec, w_spec(Cin_p),
                      pl.BlockSpec((Cin_p, Cout_p), lambda g: (0, 0))],
            out_specs=[img_spec(L, Cout_p), stat_spec(), stat_spec(),
                       img_spec(L, Cout_p), stat_spec(), stat_spec()],
            out_shape=[slab, stats, stats, slab, stats, stats],
            compiler_params=_cparams(),
        )(xp, mask, w1, ws)
    else:
        y1pre, s1, q1 = pl.pallas_call(
            functools.partial(pass1_id_kernel, B=B, H=H, W=W),
            grid=grid,
            in_specs=[img_spec(PA, Cin_p), mask_spec, w_spec(Cin_p)],
            out_specs=[img_spec(L, Cout_p), stat_spec(), stat_spec()],
            out_shape=[slab, stats, stats],
            compiler_params=_cparams(),
        )(xp, mask, w1)

    sc1, sh1 = _bn_coeffs(s1, q1, g1, be1, count)     # hoisted BN1 coefficients

    # ---- pass 2: BN1+ReLU1 -> conv2 + per-block BN2 partial stats ----
    y2pre, s2, q2 = pl.pallas_call(
        functools.partial(pass2_kernel, B=B, H=H, W=W, lead=lead),
        grid=grid,
        in_specs=[img_spec(L, Cout_p), mask_spec, vec_spec, vec_spec, w_spec(Cout_p)],
        out_specs=[img_spec(L, Cout_p), stat_spec(), stat_spec()],
        out_shape=[slab, stats, stats],
        scratch_shapes=[pltpu.VMEM((PS, Cout_p), MATMUL_DTYPE)],
        compiler_params=_cparams(),
    )(y1pre, mask, sc1, sh1, w2)

    sc2, sh2 = _bn_coeffs(s2, q2, g2, be2, count)     # hoisted BN2 coefficients

    # ---- pass 3: BN2 (+ shortcut) + add + ReLU ----
    if proj:
        scs, shs = _bn_coeffs(ss, qs, gs, bes, count)
        out = pl.pallas_call(
            functools.partial(pass3_proj_kernel, B=B),
            grid=grid,
            in_specs=[img_spec(L, Cout_p), img_spec(L, Cout_p),
                      vec_spec, vec_spec, vec_spec, vec_spec],
            out_specs=img_spec(L, Cout_p),
            out_shape=out_slab,
            compiler_params=_cparams(),
        )(y2pre, spre, sc2, sh2, scs, shs)
    else:
        out = pl.pallas_call(
            functools.partial(pass3_id_kernel, B=B, H=H, W=W),
            grid=grid,
            in_specs=[img_spec(L, Cout_p), img_spec(PA, Cin_p), vec_spec, vec_spec],
            out_specs=img_spec(L, Cout_p),
            out_shape=out_slab,
            compiler_params=_cparams(),
        )(y2pre, xp, sc2, sh2)

    # drop the 2 garbage columns per row and the channel padding (plain XLA, outside kernels)
    out = out.reshape(N, H, Wp, Cout_p)[:, :, :W, :Cout]
    return jnp.transpose(out, (0, 3, 1, 2))   # back to NCHW


# ------------------------- deterministic param init -------------------------

def init_params(key, cin, cout):
    ks = jax.random.split(key, 14)
    p = {
        "w1": 0.1 * jax.random.normal(ks[0], (3, 3, cin, cout), jnp.float32),   # HWIO
        "b1": 0.1 * jax.random.normal(ks[1], (cout,), jnp.float32),
        "g1": 1.0 + 0.1 * jax.random.normal(ks[2], (cout,), jnp.float32),
        "be1": 0.1 * jax.random.normal(ks[3], (cout,), jnp.float32),
        "w2": 0.1 * jax.random.normal(ks[4], (3, 3, cout, cout), jnp.float32),
        "b2": 0.1 * jax.random.normal(ks[5], (cout,), jnp.float32),
        "g2": 1.0 + 0.1 * jax.random.normal(ks[6], (cout,), jnp.float32),
        "be2": 0.1 * jax.random.normal(ks[7], (cout,), jnp.float32),
    }
    if cin != cout:
        p.update({
            "ws": 0.1 * jax.random.normal(ks[8], (cin, cout), jnp.float32),     # 1x1 conv
            "bs": 0.1 * jax.random.normal(ks[9], (cout,), jnp.float32),
            "gs": 1.0 + 0.1 * jax.random.normal(ks[10], (cout,), jnp.float32),
            "bes": 0.1 * jax.random.normal(ks[11], (cout,), jnp.float32),
        })
    return p


# ------------------------- pure-JAX reference (f32, with conv biases) -------------------------

def resblock_ref(x_nchw, params):
    x = jnp.transpose(x_nchw, (0, 2, 3, 1)).astype(jnp.float32)

    def conv3(inp, w, b):
        y = jax.lax.conv_general_dilated(
            inp, w, (1, 1), ((1, 1), (1, 1)),
            dimension_numbers=("NHWC", "HWIO", "NHWC"),
            precision=jax.lax.Precision.HIGHEST)
        return y + b

    def bn(y, g, be):
        m = jnp.mean(y, axis=(0, 1, 2), keepdims=True)
        v = jnp.mean((y - m) ** 2, axis=(0, 1, 2), keepdims=True)
        return (y - m) * jax.lax.rsqrt(v + EPS) * g + be

    y = jnp.maximum(bn(conv3(x, params["w1"], params["b1"]), params["g1"], params["be1"]), 0.0)
    y = bn(conv3(y, params["w2"], params["b2"]), params["g2"], params["be2"])
    if "ws" in params:
        s = jnp.einsum("nhwc,co->nhwo", x, params["ws"],
                       precision=jax.lax.Precision.HIGHEST) + params["bs"]
        s = bn(s, params["gs"], params["bes"])
    else:
        s = x
    return jnp.transpose(jnp.maximum(y + s, 0.0), (0, 3, 1, 2))


# ------------------------- main -------------------------

if __name__ == "__main__":
    key = jax.random.PRNGKey(0)
    k_x, k_p, k_x2, k_p2 = jax.random.split(key, 4)

    # projection-shortcut case (in_channels != out_channels); 1 image per grid step
    N, Cin, Cout, H, W = 2, 4, 8, 16, 16
    x = jax.random.normal(k_x, (N, Cin, H, W), jnp.float32)
    params = init_params(k_p, Cin, Cout)
    out = jax.block_until_ready(jax.jit(resblock_forward)(x, params))
    ref = resblock_ref(x, params)
    assert out.shape == (N, Cout, H, W), out.shape
    # bf16 MXU inputs + bf16 cross-pass intermediates (f32 accumulation / BN stats).
    assert jnp.allclose(out, ref, atol=6e-2, rtol=6e-2), float(jnp.max(jnp.abs(out - ref)))

    # identity-shortcut case (in_channels == out_channels); 2 images per grid step (B=2 path)
    N2 = 4
    x2 = jax.random.normal(k_x2, (N2, Cout, H, W), jnp.float32)
    params2 = init_params(k_p2, Cout, Cout)
    out2 = jax.block_until_ready(jax.jit(resblock_forward)(x2, params2))
    ref2 = resblock_ref(x2, params2)
    assert out2.shape == (N2, Cout, H, W), out2.shape
    assert jnp.allclose(out2, ref2, atol=6e-2, rtol=6e-2), float(jnp.max(jnp.abs(out2 - ref2)))

    print("KERNEL_OK")
</pallas_src>

<mosaic_0001>
module attributes {stable_mosaic.version = 11 : i64} {
  func.func @pass1_proj_kernel(%arg0: i32, %arg1: memref<1x326x128xbf16, #tpu.memory_space<vmem>>, %arg2: memref<288x1xf32, #tpu.memory_space<vmem>>, %arg3: memref<9x128x128xbf16, #tpu.memory_space<vmem>>, %arg4: memref<128x128xbf16, #tpu.memory_space<vmem>>, %arg5: memref<1x288x128xbf16, #tpu.memory_space<vmem>>, %arg6: memref<1x1x128xf32, #tpu.memory_space<vmem>>, %arg7: memref<1x1x128xf32, #tpu.memory_space<vmem>>, %arg8: memref<1x288x128xbf16, #tpu.memory_space<vmem>>, %arg9: memref<1x1x128xf32, #tpu.memory_space<vmem>>, %arg10: memref<1x1x128xf32, #tpu.memory_space<vmem>>) attributes {dimension_semantics = [#tpu.dimension_semantics<parallel>], iteration_bounds = array<i64: 2>, scalar_prefetch = 0 : i64, scratch_operands = 0 : i64, tpu.core_type = #tpu.core_type<tc>, window_params = [{transform_indices = @transform_0, window_bounds = array<i64: 1, 326, 128>}, {pipeline_mode = #tpu.pipeline_mode<synchronous>, transform_indices = @transform_1, window_bounds = array<i64: 288, 1>}, {pipeline_mode = #tpu.pipeline_mode<synchronous>, transform_indices = @transform_2, window_bounds = array<i64: 9, 128, 128>}, {pipeline_mode = #tpu.pipeline_mode<synchronous>, transform_indices = @transform_3, window_bounds = array<i64: 128, 128>}, {transform_indices = @transform_4, window_bounds = array<i64: 1, 288, 128>}, {transform_indices = @transform_5, window_bounds = array<i64: 1, 1, 128>}, {transform_indices = @transform_6, window_bounds = array<i64: 1, 1, 128>}, {transform_indices = @transform_7, window_bounds = array<i64: 1, 288, 128>}, {transform_indices = @transform_8, window_bounds = array<i64: 1, 1, 128>}, {transform_indices = @transform_9, window_bounds = array<i64: 1, 1, 128>}]} {
    %c0 = arith.constant 0 : index
    %c0_0 = arith.constant 0 : index
    %0 = vector.load %arg2[%c0, %c0_0] : memref<288x1xf32, #tpu.memory_space<vmem>>, vector<288x1xf32>
    %cst = arith.constant 5.000000e-01 : f32
    %1 = vector.broadcast %cst : f32 to vector<288x1xf32>
    %2 = arith.cmpf ogt, %0, %1 : vector<288x1xf32>
    %cst_1 = arith.constant 0.000000e+00 : f32
    %3 = vector.broadcast %cst_1 : f32 to vector<1x128xf32>
    %cst_2 = arith.constant 0.000000e+00 : f32
    %4 = vector.broadcast %cst_2 : f32 to vector<1x128xf32>
    %cst_3 = arith.constant 0.000000e+00 : f32
    %5 = vector.broadcast %cst_3 : f32 to vector<1x128xf32>
    %cst_4 = arith.constant 0.000000e+00 : f32
    %6 = vector.broadcast %cst_4 : f32 to vector<1x128xf32>
    %cst_5 = arith.constant 0.000000e+00 : f32
    %7 = vector.broadcast %cst_5 : f32 to vector<288x128xf32>
    %c0_6 = arith.constant 0 : index
    %c0_7 = arith.constant 0 : index
    %c0_8 = arith.constant 0 : index
    %8 = vector.load %arg1[%c0_6, %c0_7, %c0_8] : memref<1x326x128xbf16, #tpu.memory_space<vmem>>, vector<1x288x128xbf16>
    %9 = vector.shape_cast %8 : vector<1x288x128xbf16> to vector<288x128xbf16>
    %c0_9 = arith.constant 0 : index
    %c0_10 = arith.constant 0 : index
    %c0_11 = arith.constant 0 : index
    %10 = vector.load %arg3[%c0_9, %c0_10, %c0_11] : memref<9x128x128xbf16, #tpu.memory_space<vmem>>, vector<1x128x128xbf16>
    %11 = vector.shape_cast %10 : vector<1x128x128xbf16> to vector<128x128xbf16>
    %cst_12 = arith.constant dense<0.000000e+00> : vector<288x128xf32>
    %12 = tpu.matmul %9, %11, %cst_12 {dimension_numbers = #tpu.dot_dimension_numbers<[1], [0], [0], [1], [0, 0, 1, 1], [], []>} : vector<288x128xbf16>, vector<128x128xbf16>, vector<288x128xf32> -> vector<288x128xf32>
    %13 = arith.addf %7, %12 : vector<288x128xf32>
    %c0_13 = arith.constant 0 : index
    %c1 = arith.constant 1 : index
    %c0_14 = arith.constant 0 : index
    %14 = vector.load %arg1[%c0_13, %c1, %c0_14] : memref<1x326x128xbf16, #tpu.memory_space<vmem>>, vector<1x288x128xbf16>
    %15 = vector.shape_cast %14 : vector<1x288x128xbf16> to vector<288x128xbf16>
    %c1_15 = arith.constant 1 : index
    %c0_16 = arith.constant 0 : index
    %c0_17 = arith.constant 0 : index
    %16 = vector.load %arg3[%c1_15, %c0_16, %c0_17] : memref<9x128x128xbf16, #tpu.memory_space<vmem>>, vector<1x128x128xbf16>
    %17 = vector.shape_cast %16 : vector<1x128x128xbf16> to vector<128x128xbf16>
    %cst_18 = arith.constant dense<0.000000e+00> : vector<288x128xf32>
    %18 = tpu.matmul %15, %17, %cst_18 {dimension_numbers = #tpu.dot_dimension_numbers<[1], [0], [0], [1], [0, 0, 1, 1], [], []>} : vector<288x128xbf16>, vector<128x128xbf16>, vector<288x128xf32> -> vector<288x128xf32>
    %19 = arith.addf %13, %18 : vector<288x128xf32>
    %c0_19 = arith.constant 0 : index
    %c2 = arith.constant 2 : index
    %c0_20 = arith.constant 0 : index
    %20 = vector.load %arg1[%c0_19, %c2, %c0_20] : memref<1x326x128xbf16, #tpu.memory_space<vmem>>, vector<1x288x128xbf16>
    %21 = vector.shape_cast %20 : vector<1x288x128xbf16> to vector<288x128xbf16>
    %c2_21 = arith.constant 2 : index
    %c0_22 = arith.constant 0 : index
    %c0_23 = arith.constant 0 : index
    %22 = vector.load %arg3[%c2_21, %c0_22, %c0_23] : memref<9x128x128xbf16, #tpu.memory_space<vmem>>, vector<1x128x128xbf16>
    %23 = vector.shape_cast %22 : vector<1x128x128xbf16> to vector<128x128xbf16>
    %cst_24 = arith.constant dense<0.000000e+00> : vector<288x128xf32>
    %24 = tpu.matmul %21, %23, %cst_24 {dimension_numbers = #tpu.dot_dimension_numbers<[1], [0], [0], [1], [0, 0, 1, 1], [], []>} : vector<288x128xbf16>, vector<128x128xbf16>, vector<288x128xf32> -> vector<288x128xf32>
    %25 = arith.addf %19, %24 : vector<288x128xf32>
    %c0_25 = arith.constant 0 : index
    %c18 = arith.constant 18 : index
    %c0_26 = arith.constant 0 : index
    %26 = vector.load %arg1[%c0_25, %c18, %c0_26] : memref<1x326x128xbf16, #tpu.memory_space<vmem>>, vector<1x288x128xbf16>
    %27 = vector.shape_cast %26 : vector<1x288x128xbf16> to vector<288x128xbf16>
    %c3 = arith.constant 3 : index
    %c0_27 = arith.constant 0 : index
    %c0_28 = arith.constant 0 : index
    %28 = vector.load %arg3[%c3, %c0_27, %c0_28] : memref<9x128x128xbf16, #tpu.memory_space<vmem>>, vector<1x128x128xbf16>
    %29 = vector.shape_cast %28 : vector<1x128x128xbf16> to vector<128x128xbf16>
    %cst_29 = arith.constant dense<0.000000e+00> : vector<288x128xf32>
    %30 = tpu.matmul %27, %29, %cst_29 {dimension_numbers = #tpu.dot_dimension_numbers<[1], [0], [0], [1], [0, 0, 1, 1], [], []>} : vector<288x128xbf16>, vector<128x128xbf16>, vector<288x128xf32> -> vector<288x128xf32>
    %31 = arith.addf %25, %30 : vector<288x128xf32>
    %c0_30 = arith.constant 0 : index
    %c19 = arith.constant 19 : index
    %c0_31 = arith.constant 0 : index
    %32 = vector.load %arg1[%c0_30, %c19, %c0_31] : memref<1x326x128xbf16, #tpu.memory_space<vmem>>, vector<1x288x128xbf16>
    %33 = vector.shape_cast %32 : vector<1x288x128xbf16> to vector<288x128xbf16>
    %c4 = arith.constant 4 : index
    %c0_32 = arith.constant 0 : index
    %c0_33 = arith.constant 0 : index
    %34 = vector.load %arg3[%c4, %c0_32, %c0_33] : memref<9x128x128xbf16, #tpu.memory_space<vmem>>, vector<1x128x128xbf16>
    %35 = vector.shape_cast %34 : vector<1x128x128xbf16> to vector<128x128xbf16>
    %cst_34 = arith.constant dense<0.000000e+00> : vector<288x128xf32>
    %36 = tpu.matmul %33, %35, %cst_34 {dimension_numbers = #tpu.dot_dimension_numbers<[1], [0], [0], [1], [0, 0, 1, 1], [], []>} : vector<288x128xbf16>, vector<128x128xbf16>, vector<288x128xf32> -> vector<288x128xf32>
    %37 = arith.addf %31, %36 : vector<288x128xf32>
    %c0_35 = arith.constant 0 : index
    %c20 = arith.constant 20 : index
    %c0_36 = arith.constant 0 : index
    %38 = vector.load %arg1[%c0_35, %c20, %c0_36] : memref<1x326x128xbf16, #tpu.memory_space<vmem>>, vector<1x288x128xbf16>
    %39 = vector.shape_cast %38 : vector<1x288x128xbf16> to vector<288x128xbf16>
    %c5 = arith.constant 5 : index
    %c0_37 = arith.constant 0 : index
    %c0_38 = arith.constant 0 : index
    %40 = vector.load %arg3[%c5, %c0_37, %c0_38] : memref<9x128x128xbf16, #tpu.memory_space<vmem>>, vector<1x128x128xbf16>
    %41 = vector.shape_cast %40 : vector<1x128x128xbf16> to vector<128x128xbf16>
    %cst_39 = arith.constant dense<0.000000e+00> : vector<288x128xf32>
    %42 = tpu.matmul %39, %41, %cst_39 {dimension_numbers = #tpu.dot_dimension_numbers<[1], [0], [0], [1], [0, 0, 1, 1], [], []>} : vector<288x128xbf16>, vector<128x128xbf16>, vector<288x128xf32> -> vector<288x128xf32>
    %43 = arith.addf %37, %42 : vector<288x128xf32>
    %c0_40 = arith.constant 0 : index
    %c36 = arith.constant 36 : index
    %c0_41 = arith.constant 0 : index
    %44 = vector.load %arg1[%c0_40, %c36, %c0_41] : memref<1x326x128xbf16, #tpu.memory_space<vmem>>, vector<1x288x128xbf16>
    %45 = vector.shape_cast %44 : vector<1x288x128xbf16> to vector<288x128xbf16>
    %c6 = arith.constant 6 : index
    %c0_42 = arith.constant 0 : index
    %c0_43 = arith.constant 0 : index
    %46 = vector.load %arg3[%c6, %c0_42, %c0_43] : memref<9x128x128xbf16, #tpu.memory_space<vmem>>, vector<1x128x128xbf16>
    %47 = vector.shape_cast %46 : vector<1x128x128xbf16> to vector<128x128xbf16>
    %cst_44 = arith.constant dense<0.000000e+00> : vector<288x128xf32>
    %48 = tpu.matmul %45, %47, %cst_44 {dimension_numbers = #tpu.dot_dimension_numbers<[1], [0], [0], [1], [0, 0, 1, 1], [], []>} : vector<288x128xbf16>, vector<128x128xbf16>, vector<288x128xf32> -> vector<288x128xf32>
    %49 = arith.addf %43, %48 : vector<288x128xf32>
    %c0_45 = arith.constant 0 : index
    %c37 = arith.constant 37 : index
    %c0_46 = arith.constant 0 : index
    %50 = vector.load %arg1[%c0_45, %c37, %c0_46] : memref<1x326x128xbf16, #tpu.memory_space<vmem>>, vector<1x288x128xbf16>
    %51 = vector.shape_cast %50 : vector<1x288x128xbf16> to vector<288x128xbf16>
    %c7 = arith.constant 7 : index
    %c0_47 = arith.constant 0 : index
    %c0_48 = arith.constant 0 : index
    %52 = vector.load %arg3[%c7, %c0_47, %c0_48] : memref<9x128x128xbf16, #tpu.memory_space<vmem>>, vector<1x128x128xbf16>
    %53 = vector.shape_cast %52 : vector<1x128x128xbf16> to vector<128x128xbf16>
    %cst_49 = arith.constant dense<0.000000e+00> : vector<288x128xf32>
    %54 = tpu.matmul %51, %53, %cst_49 {dimension_numbers = #tpu.dot_dimension_numbers<[1], [0], [0], [1], [0, 0, 1, 1], [], []>} : vector<288x128xbf16>, vector<128x128xbf16>, vector<288x128xf32> -> vector<288x128xf32>
    %55 = arith.addf %49, %54 : vector<288x128xf32>
    %c0_50 = arith.constant 0 : index
    %c38 = arith.constant 38 : index
    %c0_51 = arith.constant 0 : index
    %56 = vector.load %arg1[%c0_50, %c38, %c0_51] : memref<1x326x128xbf16, #tpu.memory_space<vmem>>, vector<1x288x128xbf16>
    %57 = vector.shape_cast %56 : vector<1x288x128xbf16> to vector<288x128xbf16>
    %c8 = arith.constant 8 : index
    %c0_52 = arith.constant 0 : index
    %c0_53 = arith.constant 0 : index
    %58 = vector.load %arg3[%c8, %c0_52, %c0_53] : memref<9x128x128xbf16, #tpu.memory_space<vmem>>, vector<1x128x128xbf16>
    %59 = vector.shape_cast %58 : vector<1x128x128xbf16> to vector<128x128xbf16>
    %cst_54 = arith.constant dense<0.000000e+00> : vector<288x128xf32>
    %60 = tpu.matmul %57, %59, %cst_54 {dimension_numbers = #tpu.dot_dimension_numbers<[1], [0], [0], [1], [0, 0, 1, 1], [], []>} : vector<288x128xbf16>, vector<128x128xbf16>, vector<288x128xf32> -> vector<288x128xf32>
    %61 = arith.addf %55, %60 : vector<288x128xf32>
    %62 = arith.truncf %61 : vector<288x128xf32> to vector<288x128xbf16>
    %c0_55 = arith.constant 0 : index
    %c0_56 = arith.constant 0 : index
    %c0_57 = arith.constant 0 : index
    %63 = vector.load %arg5[%c0_55, %c0_56, %c0_57] : memref<1x288x128xbf16, #tpu.memory_space<vmem>>, vector<1x288x128xbf16>
    %64 = vector.shape_cast %63 : vector<1x288x128xbf16> to vector<288x128xbf16>
    %65 = vector.shape_cast %62 : vector<288x128xbf16> to vector<1x288x128xbf16>
    tpu.vector_store %arg5[%c0_55, %c0_56, %c0_57], %65 {strides = array<i32>} : memref<1x288x128xbf16, #tpu.memory_space<vmem>>, vector<1x288x128xbf16>,
    %cst_58 = arith.constant 0.000000e+00 : f32
    %66 = vector.shape_cast %2 : vector<288x1xi1> to vector<288x1xi1>
    %67 = vector.broadcast %66 : vector<288x1xi1> to vector<288x128xi1>
    %68 = vector.broadcast %cst_58 : f32 to vector<288x128xf32>
    %69 = arith.select %67, %61, %68 : vector<288x128xi1>, vector<288x128xf32>
    %cst_59 = arith.constant dense<0.000000e+00> : vector<128xf32>
    %70 = vector.multi_reduction <add>, %69, %cst_59 [0] : vector<288x128xf32> to vector<128xf32>
    %71 = vector.shape_cast %70 : vector<128xf32> to vector<1x128xf32>
    %72 = arith.mulf %69, %69 : vector<288x128xf32>
    %cst_60 = arith.constant dense<0.000000e+00> : vector<128xf32>
    %73 = vector.multi_reduction <add>, %72, %cst_60 [0] : vector<288x128xf32> to vector<128xf32>
    %74 = vector.shape_cast %73 : vector<128xf32> to vector<1x128xf32>
    %75 = arith.addf %3, %71 : vector<1x128xf32>
    %76 = arith.addf %4, %74 : vector<1x128xf32>
    %c0_61 = arith.constant 0 : index
    %c19_62 = arith.constant 19 : index
    %c0_63 = arith.constant 0 : index
    %77 = vector.load %arg1[%c0_61, %c19_62, %c0_63] : memref<1x326x128xbf16, #tpu.memory_space<vmem>>, vector<1x288x128xbf16>
    %78 = vector.shape_cast %77 : vector<1x288x128xbf16> to vector<288x128xbf16>
    %c0_64 = arith.constant 0 : index
    %c0_65 = arith.constant 0 : index
    %79 = vector.load %arg4[%c0_64, %c0_65] : memref<128x128xbf16, #tpu.memory_space<vmem>>, vector<128x128xbf16>
    %cst_66 = arith.constant dense<0.000000e+00> : vector<288x128xf32>
    %80 = tpu.matmul %78, %79, %cst_66 {dimension_numbers = #tpu.dot_dimension_numbers<[1], [0], [0], [1], [0, 0, 1, 1], [], []>} : vector<288x128xbf16>, vector<128x128xbf16>, vector<288x128xf32> -> vector<288x128xf32>
    %81 = arith.truncf %80 : vector<288x128xf32> to vector<288x128xbf16>
    %c0_67 = arith.constant 0 : index
    %c0_68 = arith.constant 0 : index
    %c0_69 = arith.constant 0 : index
    %82 = vector.load %arg8[%c0_67, %c0_68, %c0_69] : memref<1x288x128xbf16, #tpu.memory_space<vmem>>, vector<1x288x128xbf16>
    %83 = vector.shape_cast %82 : vector<1x288x128xbf16> to vector<288x128xbf16>
    %84 = vector.shape_cast %81 : vector<288x128xbf16> to vector<1x288x128xbf16>
    tpu.vector_store %arg8[%c0_67, %c0_68, %c0_69], %84 {strides = array<i32>} : memref<1x288x128xbf16, #tpu.memory_space<vmem>>, vector<1x288x128xbf16>,
    %cst_70 = arith.constant 0.000000e+00 : f32
    %85 = vector.shape_cast %2 : vector<288x1xi1> to vector<288x1xi1>
    %86 = vector.broadcast %85 : vector<288x1xi1> to vector<288x128xi1>
    %87 = vector.broadcast %cst_70 : f32 to vector<288x128xf32>
    %88 = arith.select %86, %80, %87 : vector<288x128xi1>, vector<288x128xf32>
    %cst_71 = arith.constant dense<0.000000e+00> : vector<128xf32>
    %89 = vector.multi_reduction <add>, %88, %cst_71 [0] : vector<288x128xf32> to vector<128xf32>
    %90 = vector.shape_cast %89 : vector<128xf32> to vector<1x128xf32>
    %91 = arith.mulf %88, %88 : vector<288x128xf32>
    %cst_72 = arith.constant dense<0.000000e+00> : vector<128xf32>
    %92 = vector.multi_reduction <add>, %91, %cst_72 [0] : vector<288x128xf32> to vector<128xf32>
    %93 = vector.shape_cast %92 : vector<128xf32> to vector<1x128xf32>
    %94 = arith.addf %5, %90 : vector<1x128xf32>
    %95 = arith.addf %6, %93 : vector<1x128xf32>
    %c0_73 = arith.constant 0 : index
    %c0_74 = arith.constant 0 : index
    %c0_75 = arith.constant 0 : index
    %96 = vector.load %arg6[%c0_73, %c0_74, %c0_75] : memref<1x1x128xf32, #tpu.memory_space<vmem>>, vector<1x1x128xf32>
    %97 = vector.shape_cast %96 : vector<1x1x128xf32> to vector<1x128xf32>
    %98 = vector.shape_cast %75 : vector<1x128xf32> to vector<1x1x128xf32>
    tpu.vector_store %arg6[%c0_73, %c0_74, %c0_75], %98 {strides = array<i32>} : memref<1x1x128xf32, #tpu.memory_space<vmem>>, vector<1x1x128xf32>,
    %c0_76 = arith.constant 0 : index
    %c0_77 = arith.constant 0 : index
    %c0_78 = arith.constant 0 : index
    %99 = vector.load %arg7[%c0_76, %c0_77, %c0_78] : memref<1x1x128xf32, #tpu.memory_space<vmem>>, vector<1x1x128xf32>
    %100 = vector.shape_cast %99 : vector<1x1x128xf32> to vector<1x128xf32>
    %101 = vector.shape_cast %76 : vector<1x128xf32> to vector<1x1x128xf32>
    tpu.vector_store %arg7[%c0_76, %c0_77, %c0_78], %101 {strides = array<i32>} : memref<1x1x128xf32, #tpu.memory_space<vmem>>, vector<1x1x128xf32>,
    %c0_79 = arith.constant 0 : index
    %c0_80 = arith.constant 0 : index
    %c0_81 = arith.constant 0 : index
    %102 = vector.load %arg9[%c0_79, %c0_80, %c0_81] : memref<1x1x128xf32, #tpu.memory_space<vmem>>, vector<1x1x128xf32>
    %103 = vector.shape_cast %102 : vector<1x1x128xf32> to vector<1x128xf32>
    %104 = vector.shape_cast %94 : vector<1x128xf32> to vector<1x1x128xf32>
    tpu.vector_store %arg9[%c0_79, %c0_80, %c0_81], %104 {strides = array<i32>} : memref<1x1x128xf32, #tpu.memory_space<vmem>>, vector<1x1x128xf32>,
    %c0_82 = arith.constant 0 : index
    %c0_83 = arith.constant 0 : index
    %c0_84 = arith.constant 0 : index
    %105 = vector.load %arg10[%c0_82, %c0_83, %c0_84] : memref<1x1x128xf32, #tpu.memory_space<vmem>>, vector<1x1x128xf32>
    %106 = vector.shape_cast %105 : vector<1x1x128xf32> to vector<1x128xf32>
    %107 = vector.shape_cast %95 : vector<1x128xf32> to vector<1x1x128xf32>
    tpu.vector_store %arg10[%c0_82, %c0_83, %c0_84], %107 {strides = array<i32>} : memref<1x1x128xf32, #tpu.memory_space<vmem>>, vector<1x1x128xf32>,
    return
  }
  func.func @transform_0(%arg0: i32) -> (i32, i32, i32) {
    %c0_i32 = arith.constant 0 : i32
    %c0_i32_0 = arith.constant 0 : i32
    %c0_i32_1 = arith.constant 0 : i32
    return %arg0, %c0_i32, %c0_i32_0 : i32, i32, i32
  }
  func.func @transform_1(%arg0: i32) -> (i32, i32) {
    %c0_i32 = arith.constant 0 : i32
    %c0_i32_0 = arith.constant 0 : i32
    %c0_i32_1 = arith.constant 0 : i32
    return %c0_i32, %c0_i32_0 : i32, i32
  }
  func.func @transform_2(%arg0: i32) -> (i32, i32, i32) {
    %c0_i32 = arith.constant 0 : i32
    %c0_i32_0 = arith.constant 0 : i32
    %c0_i32_1 = arith.constant 0 : i32
    %c0_i32_2 = arith.constant 0 : i32
    return %c0_i32, %c0_i32_0, %c0_i32_1 : i32, i32, i32
  }
  func.func @transform_3(%arg0: i32) -> (i32, i32) {
    %c0_i32 = arith.constant 0 : i32
    %c0_i32_0 = arith.constant 0 : i32
    %c0_i32_1 = arith.constant 0 : i32
    return %c0_i32, %c0_i32_0 : i32, i32
  }
  func.func @transform_4(%arg0: i32) -> (i32, i32, i32) {
    %c0_i32 = arith.constant 0 : i32
    %c0_i32_0 = arith.constant 0 : i32
    %c0_i32_1 = arith.constant 0 : i32
    return %arg0, %c0_i32, %c0_i32_0 : i32, i32, i32
  }
  func.func @transform_5(%arg0: i32) -> (i32, i32, i32) {
    %c0_i32 = arith.constant 0 : i32
    %c0_i32_0 = arith.constant 0 : i32
    %c0_i32_1 = arith.constant 0 : i32
    return %arg0, %c0_i32, %c0_i32_0 : i32, i32, i32
  }
  func.func @transform_6(%arg0: i32) -> (i32, i32, i32) {
    %c0_i32 = arith.constant 0 : i32
    %c0_i32_0 = arith.constant 0 : i32
    %c0_i32_1 = arith.constant 0 : i32
    return %arg0, %c0_i32, %c0_i32_0 : i32, i32, i32
  }
  func.func @transform_7(%arg0: i32) -> (i32, i32, i32) {
    %c0_i32 = arith.constant 0 : i32
    %c0_i32_0 = arith.constant 0 : i32
    %c0_i32_1 = arith.constant 0 : i32
    return %arg0, %c0_i32, %c0_i32_0 : i32, i32, i32
  }
  func.func @transform_8(%arg0: i32) -> (i32, i32, i32) {
    %c0_i32 = arith.constant 0 : i32
    %c0_i32_0 = arith.constant 0 : i32
    %c0_i32_1 = arith.constant 0 : i32
    return %arg0, %c0_i32, %c0_i32_0 : i32, i32, i32
  }
  func.func @transform_9(%arg0: i32) -> (i32, i32, i32) {
    %c0_i32 = arith.constant 0 : i32
    %c0_i32_0 = arith.constant 0 : i32
    %c0_i32_1 = arith.constant 0 : i32
    return %arg0, %c0_i32, %c0_i32_0 : i32, i32, i32
  }
}

module attributes {stable_mosaic.version = 11 : i64} {
  func.func @pass2_kernel(%arg0: i32, %arg1: memref<1x288x128xbf16, #tpu.memory_space<vmem>>, %arg2: memref<288x1xf32, #tpu.memory_space<vmem>>, %arg3: memref<1x128xf32, #tpu.memory_space<vmem>>, %arg4: memref<1x128xf32, #tpu.memory_space<vmem>>, %arg5: memref<9x128x128xbf16, #tpu.memory_space<vmem>>, %arg6: memref<1x288x128xbf16, #tpu.memory_space<vmem>>, %arg7: memref<1x1x128xf32, #tpu.memory_space<vmem>>, %arg8: memref<1x1x128xf32, #tpu.memory_space<vmem>>, %arg9: memref<352x128xbf16, #tpu.memory_space<vmem>>) attributes {dimension_semantics = [#tpu.dimension_semantics<parallel>], iteration_bounds = array<i64: 2>, scalar_prefetch = 0 : i64, scratch_operands = 1 : i64, tpu.core_type = #tpu.core_type<tc>, window_params = [{transform_indices = @transform_0, window_bounds = array<i64: 1, 288, 128>}, {pipeline_mode = #tpu.pipeline_mode<synchronous>, transform_indices = @transform_1, window_bounds = array<i64: 288, 1>}, {pipeline_mode = #tpu.pipeline_mode<synchronous>, transform_indices = @transform_2, window_bounds = array<i64: 1, 128>}, {pipeline_mode = #tpu.pipeline_mode<synchronous>, transform_indices = @transform_3, window_bounds = array<i64: 1, 128>}, {pipeline_mode = #tpu.pipeline_mode<synchronous>, transform_indices = @transform_4, window_bounds = array<i64: 9, 128, 128>}, {transform_indices = @transform_5, window_bounds = array<i64: 1, 288, 128>}, {transform_indices = @transform_6, window_bounds = array<i64: 1, 1, 128>}, {transform_indices = @transform_7, window_bounds = array<i64: 1, 1, 128>}]} {
    %c0 = arith.constant 0 : index
    %c0_0 = arith.constant 0 : index
    %0 = vector.load %arg2[%c0, %c0_0] : memref<288x1xf32, #tpu.memory_space<vmem>>, vector<288x1xf32>
    %cst = arith.constant 5.000000e-01 : f32
    %1 = vector.broadcast %cst : f32 to vector<288x1xf32>
    %2 = arith.cmpf ogt, %0, %1 : vector<288x1xf32>
    %c0_1 = arith.constant 0 : index
    %c0_2 = arith.constant 0 : index
    %3 = vector.load %arg3[%c0_1, %c0_2] : memref<1x128xf32, #tpu.memory_space<vmem>>, vector<1x128xf32>
    %c0_3 = arith.constant 0 : index
    %c0_4 = arith.constant 0 : index
    %4 = vector.load %arg4[%c0_3, %c0_4] : memref<1x128xf32, #tpu.memory_space<vmem>>, vector<1x128xf32>
    %cst_5 = arith.constant 0.000000e+00 : f32
    %5 = vector.broadcast %cst_5 : f32 to vector<1x128xf32>
    %cst_6 = arith.constant 0.000000e+00 : f32
    %6 = vector.broadcast %cst_6 : f32 to vector<1x128xf32>
    %cst_7 = arith.constant 0.000000e+00 : bf16
    %7 = vector.broadcast %cst_7 : bf16 to vector<32x128xbf16>
    %c0_8 = arith.constant 0 : index
    %c0_9 = arith.constant 0 : index
    %8 = vector.load %arg9[%c0_8, %c0_9] : memref<352x128xbf16, #tpu.memory_space<vmem>>, vector<32x128xbf16>
    tpu.vector_store %arg9[%c0_8, %c0_9], %7 {strides = array<i32>} : memref<352x128xbf16, #tpu.memory_space<vmem>>, vector<32x128xbf16>,
    %cst_10 = arith.constant 0.000000e+00 : bf16
    %9 = vector.broadcast %cst_10 : bf16 to vector<32x128xbf16>
    %c320 = arith.constant 320 : index
    %c0_11 = arith.constant 0 : index
    %10 = vector.load %arg9[%c320, %c0_11] : memref<352x128xbf16, #tpu.memory_space<vmem>>, vector<32x128xbf16>
    tpu.vector_store %arg9[%c320, %c0_11], %9 {strides = array<i32>} : memref<352x128xbf16, #tpu.memory_space<vmem>>, vector<32x128xbf16>,
    %c0_12 = arith.constant 0 : index
    %c0_13 = arith.constant 0 : index
    %c0_14 = arith.constant 0 : index
    %11 = vector.load %arg1[%c0_12, %c0_13, %c0_14] : memref<1x288x128xbf16, #tpu.memory_space<vmem>>, vector<1x288x128xbf16>
    %12 = vector.shape_cast %11 : vector<1x288x128xbf16> to vector<288x128xbf16>
    %13 = arith.extf %12 : vector<288x128xbf16> to vector<288x128xf32>
    %14 = vector.broadcast %3 : vector<1x128xf32> to vector<288x128xf32>
    %15 = arith.mulf %13, %14 : vector<288x128xf32>
    %16 = vector.broadcast %4 : vector<1x128xf32> to vector<288x128xf32>
    %17 = arith.addf %15, %16 : vector<288x128xf32>
    %cst_15 = arith.constant 0.000000e+00 : f32
    %18 = vector.broadcast %cst_15 : f32 to vector<288x128xf32>
    %19 = arith.maximumf %17, %18 : vector<288x128xf32>
    %cst_16 = arith.constant 0.000000e+00 : f32
    %20 = vector.shape_cast %2 : vector<288x1xi1> to vector<288x1xi1>
    %21 = vector.broadcast %20 : vector<288x1xi1> to vector<288x128xi1>
    %22 = vector.broadcast %cst_16 : f32 to vector<288x128xf32>
    %23 = arith.select %21, %19, %22 : vector<288x128xi1>, vector<288x128xf32>
    %24 = arith.truncf %23 : vector<288x128xf32> to vector<288x128xbf16>
    %c32 = arith.constant 32 : index
    %c0_17 = arith.constant 0 : index
    %25 = vector.load %arg9[%c32, %c0_17] : memref<352x128xbf16, #tpu.memory_space<vmem>>, vector<288x128xbf16>
    tpu.vector_store %arg9[%c32, %c0_17], %24 {strides = array<i32>} : memref<352x128xbf16, #tpu.memory_space<vmem>>, vector<288x128xbf16>,
    %cst_18 = arith.constant 0.000000e+00 : f32
    %26 = vector.broadcast %cst_18 : f32 to vector<288x128xf32>
    %c13 = arith.constant 13 : index
    %c0_19 = arith.constant 0 : index
    %27 = vector.load %arg9[%c13, %c0_19] : memref<352x128xbf16, #tpu.memory_space<vmem>>, vector<288x128xbf16>
    %c0_20 = arith.constant 0 : index
    %c0_21 = arith.constant 0 : index
    %c0_22 = arith.constant 0 : index
    %28 = vector.load %arg5[%c0_20, %c0_21, %c0_22] : memref<9x128x128xbf16, #tpu.memory_space<vmem>>, vector<1x128x128xbf16>
    %29 = vector.shape_cast %28 : vector<1x128x128xbf16> to vector<128x128xbf16>
    %cst_23 = arith.constant dense<0.000000e+00> : vector<288x128xf32>
    %30 = tpu.matmul %27, %29, %cst_23 {dimension_numbers = #tpu.dot_dimension_numbers<[1], [0], [0], [1], [0, 0, 1, 1], [], []>} : vector<288x128xbf16>, vector<128x128xbf16>, vector<288x128xf32> -> vector<288x128xf32>
    %31 = arith.addf %26, %30 : vector<288x128xf32>
    %c14 = arith.constant 14 : index
    %c0_24 = arith.constant 0 : index
    %32 = vector.load %arg9[%c14, %c0_24] : memref<352x128xbf16, #tpu.memory_space<vmem>>, vector<288x128xbf16>
    %c1 = arith.constant 1 : index
    %c0_25 = arith.constant 0 : index
    %c0_26 = arith.constant 0 : index
    %33 = vector.load %arg5[%c1, %c0_25, %c0_26] : memref<9x128x128xbf16, #tpu.memory_space<vmem>>, vector<1x128x128xbf16>
    %34 = vector.shape_cast %33 : vector<1x128x128xbf16> to vector<128x128xbf16>
    %cst_27 = arith.constant dense<0.000000e+00> : vector<288x128xf32>
    %35 = tpu.matmul %32, %34, %cst_27 {dimension_numbers = #tpu.dot_dimension_numbers<[1], [0], [0], [1], [0, 0, 1, 1], [], []>} : vector<288x128xbf16>, vector<128x128xbf16>, vector<288x128xf32> -> vector<288x128xf32>
    %36 = arith.addf %31, %35 : vector<288x128xf32>
    %c15 = arith.constant 15 : index
    %c0_28 = arith.constant 0 : index
    %37 = vector.load %arg9[%c15, %c0_28] : memref<352x128xbf16, #tpu.memory_space<vmem>>, vector<288x128xbf16>
    %c2 = arith.constant 2 : index
    %c0_29 = arith.constant 0 : index
    %c0_30 = arith.constant 0 : index
    %38 = vector.load %arg5[%c2, %c0_29, %c0_30] : memref<9x128x128xbf16, #tpu.memory_space<vmem>>, vector<1x128x128xbf16>
    %39 = vector.shape_cast %38 : vector<1x128x128xbf16> to vector<128x128xbf16>
    %cst_31 = arith.constant dense<0.000000e+00> : vector<288x128xf32>
    %40 = tpu.matmul %37, %39, %cst_31 {dimension_numbers = #tpu.dot_dimension_numbers<[1], [0], [0], [1], [0, 0, 1, 1], [], []>} : vector<288x128xbf16>, vector<128x128xbf16>, vector<288x128xf32> -> vector<288x128xf32>
    %41 = arith.addf %36, %40 : vector<288x128xf32>
    %c31 = arith.constant 31 : index
    %c0_32 = arith.constant 0 : index
    %42 = vector.load %arg9[%c31, %c0_32] : memref<352x128xbf16, #tpu.memory_space<vmem>>, vector<288x128xbf16>
    %c3 = arith.constant 3 : index
    %c0_33 = arith.constant 0 : index
    %c0_34 = arith.constant 0 : index
    %43 = vector.load %arg5[%c3, %c0_33, %c0_34] : memref<9x128x128xbf16, #tpu.memory_space<vmem>>, vector<1x128x128xbf16>
    %44 = vector.shape_cast %43 : vector<1x128x128xbf16> to vector<128x128xbf16>
    %cst_35 = arith.constant dense<0.000000e+00> : vector<288x128xf32>
    %45 = tpu.matmul %42, %44, %cst_35 {dimension_numbers = #tpu.dot_dimension_numbers<[1], [0], [0], [1], [0, 0, 1, 1], [], []>} : vector<288x128xbf16>, vector<128x128xbf16>, vector<288x128xf32> -> vector<288x128xf32>
    %46 = arith.addf %41, %45 : vector<288x128xf32>
    %c32_36 = arith.constant 32 : index
    %c0_37 = arith.constant 0 : index
    %47 = vector.load %arg9[%c32_36, %c0_37] : memref<352x128xbf16, #tpu.memory_space<vmem>>, vector<288x128xbf16>
    %c4 = arith.constant 4 : index
    %c0_38 = arith.constant 0 : index
    %c0_39 = arith.constant 0 : index
    %48 = vector.load %arg5[%c4, %c0_38, %c0_39] : memref<9x128x128xbf16, #tpu.memory_space<vmem>>, vector<1x128x128xbf16>
    %49 = vector.shape_cast %48 : vector<1x128x128xbf16> to vector<128x128xbf16>
    %cst_40 = arith.constant dense<0.000000e+00> : vector<288x128xf32>
    %50 = tpu.matmul %47, %49, %cst_40 {dimension_numbers = #tpu.dot_dimension_numbers<[1], [0], [0], [1], [0, 0, 1, 1], [], []>} : vector<288x128xbf16>, vector<128x128xbf16>, vector<288x128xf32> -> vector<288x128xf32>
    %51 = arith.addf %46, %50 : vector<288x128xf32>
    %c33 = arith.constant 33 : index
    %c0_41 = arith.constant 0 : index
    %52 = vector.load %arg9[%c33, %c0_41] : memref<352x128xbf16, #tpu.memory_space<vmem>>, vector<288x128xbf16>
    %c5 = arith.constant 5 : index
    %c0_42 = arith.constant 0 : index
    %c0_43 = arith.constant 0 : index
    %53 = vector.load %arg5[%c5, %c0_42, %c0_43] : memref<9x128x128xbf16, #tpu.memory_space<vmem>>, vector<1x128x128xbf16>
    %54 = vector.shape_cast %53 : vector<1x128x128xbf16> to vector<128x128xbf16>
    %cst_44 = arith.constant dense<0.000000e+00> : vector<288x128xf32>
    %55 = tpu.matmul %52, %54, %cst_44 {dimension_numbers = #tpu.dot_dimension_numbers<[1], [0], [0], [1], [0, 0, 1, 1], [], []>} : vector<288x128xbf16>, vector<128x128xbf16>, vector<288x128xf32> -> vector<288x128xf32>
    %56 = arith.addf %51, %55 : vector<288x128xf32>
    %c49 = arith.constant 49 : index
    %c0_45 = arith.constant 0 : index
    %57 = vector.load %arg9[%c49, %c0_45] : memref<352x128xbf16, #tpu.memory_space<vmem>>, vector<288x128xbf16>
    %c6 = arith.constant 6 : index
    %c0_46 = arith.constant 0 : index
    %c0_47 = arith.constant 0 : index
    %58 = vector.load %arg5[%c6, %c0_46, %c0_47] : memref<9x128x128xbf16, #tpu.memory_space<vmem>>, vector<1x128x128xbf16>
    %59 = vector.shape_cast %58 : vector<1x128x128xbf16> to vector<128x128xbf16>
    %cst_48 = arith.constant dense<0.000000e+00> : vector<288x128xf32>
    %60 = tpu.matmul %57, %59, %cst_48 {dimension_numbers = #tpu.dot_dimension_numbers<[1], [0], [0], [1], [0, 0, 1, 1], [], []>} : vector<288x128xbf16>, vector<128x128xbf16>, vector<288x128xf32> -> vector<288x128xf32>
    %61 = arith.addf %56, %60 : vector<288x128xf32>
    %c50 = arith.constant 50 : index
    %c0_49 = arith.constant 0 : index
    %62 = vector.load %arg9[%c50, %c0_49] : memref<352x128xbf16, #tpu.memory_space<vmem>>, vector<288x128xbf16>
    %c7 = arith.constant 7 : index
    %c0_50 = arith.constant 0 : index
    %c0_51 = arith.constant 0 : index
    %63 = vector.load %arg5[%c7, %c0_50, %c0_51] : memref<9x128x128xbf16, #tpu.memory_space<vmem>>, vector<1x128x128xbf16>
    %64 = vector.shape_cast %63 : vector<1x128x128xbf16> to vector<128x128xbf16>
    %cst_52 = arith.constant dense<0.000000e+00> : vector<288x128xf32>
    %65 = tpu.matmul %62, %64, %cst_52 {dimension_numbers = #tpu.dot_dimension_numbers<[1], [0], [0], [1], [0, 0, 1, 1], [], []>} : vector<288x128xbf16>, vector<128x128xbf16>, vector<288x128xf32> -> vector<288x128xf32>
    %66 = arith.addf %61, %65 : vector<288x128xf32>
    %c51 = arith.constant 51 : index
    %c0_53 = arith.constant 0 : index
    %67 = vector.load %arg9[%c51, %c0_53] : memref<352x128xbf16, #tpu.memory_space<vmem>>, vector<288x128xbf16>
    %c8 = arith.constant 8 : index
    %c0_54 = arith.constant 0 : index
    %c0_55 = arith.constant 0 : index
    %68 = vector.load %arg5[%c8, %c0_54, %c0_55] : memref<9x128x128xbf16, #tpu.memory_space<vmem>>, vector<1x128x128xbf16>
    %69 = vector.shape_cast %68 : vector<1x128x128xbf16> to vector<128x128xbf16>
    %cst_56 = arith.constant dense<0.000000e+00> : vector<288x128xf32>
    %70 = tpu.matmul %67, %69, %cst_56 {dimension_numbers = #tpu.dot_dimension_numbers<[1], [0], [0], [1], [0, 0, 1, 1], [], []>} : vector<288x128xbf16>, vector<128x128xbf16>, vector<288x128xf32> -> vector<288x128xf32>
    %71 = arith.addf %66, %70 : vector<288x128xf32>
    %72 = arith.truncf %71 : vector<288x128xf32> to vector<288x128xbf16>
    %c0_57 = arith.constant 0 : index
    %c0_58 = arith.constant 0 : index
    %c0_59 = arith.constant 0 : index
    %73 = vector.load %arg6[%c0_57, %c0_58, %c0_59] : memref<1x288x128xbf16, #tpu.memory_space<vmem>>, vector<1x288x128xbf16>
    %74 = vector.shape_cast %73 : vector<1x288x128xbf16> to vector<288x128xbf16>
    %75 = vector.shape_cast %72 : vector<288x128xbf16> to vector<1x288x128xbf16>
    tpu.vector_store %arg6[%c0_57, %c0_58, %c0_59], %75 {strides = array<i32>} : memref<1x288x128xbf16, #tpu.memory_space<vmem>>, vector<1x288x128xbf16>,
    %cst_60 = arith.constant 0.000000e+00 : f32
    %76 = vector.shape_cast %2 : vector<288x1xi1> to vector<288x1xi1>
    %77 = vector.broadcast %76 : vector<288x1xi1> to vector<288x128xi1>
    %78 = vector.broadcast %cst_60 : f32 to vector<288x128xf32>
    %79 = arith.select %77, %71, %78 : vector<288x128xi1>, vector<288x128xf32>
    %cst_61 = arith.constant dense<0.000000e+00> : vector<128xf32>
    %80 = vector.multi_reduction <add>, %79, %cst_61 [0] : vector<288x128xf32> to vector<128xf32>
    %81 = vector.shape_cast %80 : vector<128xf32> to vector<1x128xf32>
    %82 = arith.mulf %79, %79 : vector<288x128xf32>
    %cst_62 = arith.constant dense<0.000000e+00> : vector<128xf32>
    %83 = vector.multi_reduction <add>, %82, %cst_62 [0] : vector<288x128xf32> to vector<128xf32>
    %84 = vector.shape_cast %83 : vector<128xf32> to vector<1x128xf32>
    %85 = arith.addf %5, %81 : vector<1x128xf32>
    %86 = arith.addf %6, %84 : vector<1x128xf32>
    %c0_63 = arith.constant 0 : index
    %c0_64 = arith.constant 0 : index
    %c0_65 = arith.constant 0 : index
    %87 = vector.load %arg7[%c0_63, %c0_64, %c0_65] : memref<1x1x128xf32, #tpu.memory_space<vmem>>, vector<1x1x128xf32>
    %88 = vector.shape_cast %87 : vector<1x1x128xf32> to vector<1x128xf32>
    %89 = vector.shape_cast %85 : vector<1x128xf32> to vector<1x1x128xf32>
    tpu.vector_store %arg7[%c0_63, %c0_64, %c0_65], %89 {strides = array<i32>} : memref<1x1x128xf32, #tpu.memory_space<vmem>>, vector<1x1x128xf32>,
    %c0_66 = arith.constant 0 : index
    %c0_67 = arith.constant 0 : index
    %c0_68 = arith.constant 0 : index
    %90 = vector.load %arg8[%c0_66, %c0_67, %c0_68] : memref<1x1x128xf32, #tpu.memory_space<vmem>>, vector<1x1x128xf32>
    %91 = vector.shape_cast %90 : vector<1x1x128xf32> to vector<1x128xf32>
    %92 = vector.shape_cast %86 : vector<1x128xf32> to vector<1x1x128xf32>
    tpu.vector_store %arg8[%c0_66, %c0_67, %c0_68], %92 {strides = array<i32>} : memref<1x1x128xf32, #tpu.memory_space<vmem>>, vector<1x1x128xf32>,
    return
  }
  func.func @transform_0(%arg0: i32) -> (i32, i32, i32) {
    %c0_i32 = arith.constant 0 : i32
    %c0_i32_0 = arith.constant 0 : i32
    %c0_i32_1 = arith.constant 0 : i32
    return %arg0, %c0_i32, %c0_i32_0 : i32, i32, i32
  }
  func.func @transform_1(%arg0: i32) -> (i32, i32) {
    %c0_i32 = arith.constant 0 : i32
    %c0_i32_0 = arith.constant 0 : i32
    %c0_i32_1 = arith.constant 0 : i32
    return %c0_i32, %c0_i32_0 : i32, i32
  }
  func.func @transform_2(%arg0: i32) -> (i32, i32) {
    %c0_i32 = arith.constant 0 : i32
    %c0_i32_0 = arith.constant 0 : i32
    %c0_i32_1 = arith.constant 0 : i32
    return %c0_i32, %c0_i32_0 : i32, i32
  }
  func.func @transform_3(%arg0: i32) -> (i32, i32) {
    %c0_i32 = arith.constant 0 : i32
    %c0_i32_0 = arith.constant 0 : i32
    %c0_i32_1 = arith.constant 0 : i32
    return %c0_i32, %c0_i32_0 : i32, i32
  }
  func.func @transform_4(%arg0: i32) -> (i32, i32, i32) {
    %c0_i32 = arith.constant 0 : i32
    %c0_i32_0 = arith.constant 0 : i32
    %c0_i32_1 = arith.constant 0 : i32
    %c0_i32_2 = arith.constant 0 : i32
    return %c0_i32, %c0_i32_0, %c0_i32_1 : i32, i32, i32
  }
  func.func @transform_5(%arg0: i32) -> (i32, i32, i32) {
    %c0_i32 = arith.constant 0 : i32
    %c0_i32_0 = arith.constant 0 : i32
    %c0_i32_1 = arith.constant 0 : i32
    return %arg0, %c0_i32, %c0_i32_0 : i32, i32, i32
  }
  func.func @transform_6(%arg0: i32) -> (i32, i32, i32) {
    %c0_i32 = arith.constant 0 : i32
    %c0_i32_0 = arith.constant 0 : i32
    %c0_i32_1 = arith.constant 0 : i32
    return %arg0, %c0_i32, %c0_i32_0 : i32, i32, i32
  }
  func.func @transform_7(%arg0: i32) -> (i32, i32, i32) {
    %c0_i32 = arith.constant 0 : i32
    %c0_i32_0 = arith.constant 0 : i32
    %c0_i32_1 = arith.constant 0 : i32
    return %arg0, %c0_i32, %c0_i32_0 : i32, i32, i32
  }
}

module attributes {stable_mosaic.version = 11 : i64} {
  func.func @pass3_proj_kernel(%arg0: i32, %arg1: memref<1x288x128xbf16, #tpu.memory_space<vmem>>, %arg2: memref<1x288x128xbf16, #tpu.memory_space<vmem>>, %arg3: memref<1x128xf32, #tpu.memory_space<vmem>>, %arg4: memref<1x128xf32, #tpu.memory_space<vmem>>, %arg5: memref<1x128xf32, #tpu.memory_space<vmem>>, %arg6: memref<1x128xf32, #tpu.memory_space<vmem>>, %arg7: memref<1x288x128xf32, #tpu.memory_space<vmem>>) attributes {dimension_semantics = [#tpu.dimension_semantics<parallel>], iteration_bounds = array<i64: 2>, scalar_prefetch = 0 : i64, scratch_operands = 0 : i64, tpu.core_type = #tpu.core_type<tc>, window_params = [{transform_indices = @transform_0, window_bounds = array<i64: 1, 288, 128>}, {transform_indices = @transform_1, window_bounds = array<i64: 1, 288, 128>}, {pipeline_mode = #tpu.pipeline_mode<synchronous>, transform_indices = @transform_2, window_bounds = array<i64: 1, 128>}, {pipeline_mode = #tpu.pipeline_mode<synchronous>, transform_indices = @transform_3, window_bounds = array<i64: 1, 128>}, {pipeline_mode = #tpu.pipeline_mode<synchronous>, transform_indices = @transform_4, window_bounds = array<i64: 1, 128>}, {pipeline_mode = #tpu.pipeline_mode<synchronous>, transform_indices = @transform_5, window_bounds = array<i64: 1, 128>}, {transform_indices = @transform_6, window_bounds = array<i64: 1, 288, 128>}]} {
    %c0 = arith.constant 0 : index
    %c0_0 = arith.constant 0 : index
    %0 = vector.load %arg3[%c0, %c0_0] : memref<1x128xf32, #tpu.memory_space<vmem>>, vector<1x128xf32>
    %c0_1 = arith.constant 0 : index
    %c0_2 = arith.constant 0 : index
    %1 = vector.load %arg4[%c0_1, %c0_2] : memref<1x128xf32, #tpu.memory_space<vmem>>, vector<1x128xf32>
    %c0_3 = arith.constant 0 : index
    %c0_4 = arith.constant 0 : index
    %2 = vector.load %arg5[%c0_3, %c0_4] : memref<1x128xf32, #tpu.memory_space<vmem>>, vector<1x128xf32>
    %c0_5 = arith.constant 0 : index
    %c0_6 = arith.constant 0 : index
    %3 = vector.load %arg6[%c0_5, %c0_6] : memref<1x128xf32, #tpu.memory_space<vmem>>, vector<1x128xf32>
    %c0_7 = arith.constant 0 : index
    %c0_8 = arith.constant 0 : index
    %c0_9 = arith.constant 0 : index
    %4 = vector.load %arg1[%c0_7, %c0_8, %c0_9] : memref<1x288x128xbf16, #tpu.memory_space<vmem>>, vector<1x288x128xbf16>
    %5 = vector.shape_cast %4 : vector<1x288x128xbf16> to vector<288x128xbf16>
    %6 = arith.extf %5 : vector<288x128xbf16> to vector<288x128xf32>
    %c0_10 = arith.constant 0 : index
    %c0_11 = arith.constant 0 : index
    %c0_12 = arith.constant 0 : index
    %7 = vector.load %arg2[%c0_10, %c0_11, %c0_12] : memref<1x288x128xbf16, #tpu.memory_space<vmem>>, vector<1x288x128xbf16>
    %8 = vector.shape_cast %7 : vector<1x288x128xbf16> to vector<288x128xbf16>
    %9 = arith.extf %8 : vector<288x128xbf16> to vector<288x128xf32>
    %10 = vector.broadcast %0 : vector<1x128xf32> to vector<288x128xf32>
    %11 = arith.mulf %6, %10 : vector<288x128xf32>
    %12 = vector.broadcast %1 : vector<1x128xf32> to vector<288x128xf32>
    %13 = arith.addf %11, %12 : vector<288x128xf32>
    %14 = vector.broadcast %2 : vector<1x128xf32> to vector<288x128xf32>
    %15 = arith.mulf %9, %14 : vector<288x128xf32>
    %16 = arith.addf %13, %15 : vector<288x128xf32>
    %17 = vector.broadcast %3 : vector<1x128xf32> to vector<288x128xf32>
    %18 = arith.addf %16, %17 : vector<288x128xf32>
    %cst = arith.constant 0.000000e+00 : f32
    %19 = vector.broadcast %cst : f32 to vector<288x128xf32>
    %20 = arith.maximumf %18, %19 : vector<288x128xf32>
    %c0_13 = arith.constant 0 : index
    %c0_14 = arith.constant 0 : index
    %c0_15 = arith.constant 0 : index
    %21 = vector.load %arg7[%c0_13, %c0_14, %c0_15] : memref<1x288x128xf32, #tpu.memory_space<vmem>>, vector<1x288x128xf32>
    %22 = vector.shape_cast %21 : vector<1x288x128xf32> to vector<288x128xf32>
    %23 = vector.shape_cast %20 : vector<288x128xf32> to vector<1x288x128xf32>
    tpu.vector_store %arg7[%c0_13, %c0_14, %c0_15], %23 {strides = array<i32>} : memref<1x288x128xf32, #tpu.memory_space<vmem>>, vector<1x288x128xf32>,
    return
  }
  func.func @transform_0(%arg0: i32) -> (i32, i32, i32) {
    %c0_i32 = arith.constant 0 : i32
    %c0_i32_0 = arith.constant 0 : i32
    %c0_i32_1 = arith.constant 0 : i32
    return %arg0, %c0_i32, %c0_i32_0 : i32, i32, i32
  }
  func.func @transform_1(%arg0: i32) -> (i32, i32, i32) {
    %c0_i32 = arith.constant 0 : i32
    %c0_i32_0 = arith.constant 0 : i32
    %c0_i32_1 = arith.constant 0 : i32
    return %arg0, %c0_i32, %c0_i32_0 : i32, i32, i32
  }
  func.func @transform_2(%arg0: i32) -> (i32, i32) {
    %c0_i32 = arith.constant 0 : i32
    %c0_i32_0 = arith.constant 0 : i32
    %c0_i32_1 = arith.constant 0 : i32
    return %c0_i32, %c0_i32_0 : i32, i32
  }
  func.func @transform_3(%arg0: i32) -> (i32, i32) {
    %c0_i32 = arith.constant 0 : i32
    %c0_i32_0 = arith.constant 0 : i32
    %c0_i32_1 = arith.constant 0 : i32
    return %c0_i32, %c0_i32_0 : i32, i32
  }
  func.func @transform_4(%arg0: i32) -> (i32, i32) {
    %c0_i32 = arith.constant 0 : i32
    %c0_i32_0 = arith.constant 0 : i32
    %c0_i32_1 = arith.constant 0 : i32
    return %c0_i32, %c0_i32_0 : i32, i32
  }
  func.func @transform_5(%arg0: i32) -> (i32, i32) {
    %c0_i32 = arith.constant 0 : i32
    %c0_i32_0 = arith.constant 0 : i32
    %c0_i32_1 = arith.constant 0 : i32
    return %c0_i32, %c0_i32_0 : i32, i32
  }
  func.func @transform_6(%arg0: i32) -> (i32, i32, i32) {
    %c0_i32 = arith.constant 0 : i32
    %c0_i32_0 = arith.constant 0 : i32
    %c0_i32_1 = arith.constant 0 : i32
    return %arg0, %c0_i32, %c0_i32_0 : i32, i32, i32
  }
}

</mosaic_0001>

<llo_original>
// kernel: resblock_forward.5
$region0: #{resblock_forward.5}
  #allocation0 [shape = 'u32[]', space=smem, size = 0x4, offset = 0x4, fixed_abs, tag = 'smem constant byte address 0x4 - core index']
  #allocation1 [shape = 'u32[144,128]{1,0:T(1,128)}', space=vmem, size = 0x12000, scoped, tag = 'internal scratch']
  %s0 = inlined_call_operand.vmem [shape: bf16[2,288,128], index: 0, kind: input, shape index: {}]
  %s1 = inlined_call_operand.vmem [shape: bf16[2,288,128], index: 1, kind: input, shape index: {}]
  %s2 = inlined_call_operand.vmem [shape: f32[1,128], index: 2, kind: input, shape index: {}]
  %s3 = inlined_call_operand.vmem [shape: f32[1,128], index: 3, kind: input, shape index: {}]
  %s4 = inlined_call_operand.vmem [shape: f32[1,128], index: 4, kind: input, shape index: {}]
  %s5 = inlined_call_operand.vmem [shape: f32[1,128], index: 5, kind: input, shape index: {}]
  %s6 = inlined_call_operand.vmem [shape: f32[2,288,128], index: 6, kind: output, shape index: {}]
  %s7 = sld [smem:[#allocation0]]
  $region57: #{resblock_forward.5} parent=0
    _
  %s9 = ssub.s32 1, %s7
  %s10 = scalar_select 0, %s9, %s7
  loop: start=0, step=1, limit=4
  $region2: #{resblock_forward.5} parent=0 // loop_pre_header
    _
  $region3: #{resblock_forward.5} parent=0 // loop_header
    %s12 = sphi 0, %s16
    %p13 = scmp.ge.s32.totalorder %s12, 4
    %s22 = sphi 0, %s24
    %s25 = sphi 0, %s22
    %s26 = sphi 0, %s25
    %s42 = sphi 0, %s26
    %s48 = sphi 0, %s50
    %s51 = sphi 0, %s48
    %s52 = sphi 0, %s51
    %s68 = sphi 0, %s52
    %s72 = sphi 0, %s72
    %s74 = sphi 0, %s72
    %s75 = sphi 0, %s74
    %s89 = sphi 0, %s75
    %s93 = sphi 0, %s93
    %s95 = sphi 0, %s93
    %s96 = sphi 0, %s95
    %s110 = sphi 0, %s96
    %s114 = sphi 0, %s114
    %s116 = sphi 0, %s114
    %s117 = sphi 0, %s116
    %s131 = sphi 0, %s117
    %s135 = sphi 0, %s135
    %s137 = sphi 0, %s135
    %s138 = sphi 0, %s137
    %s152 = sphi 0, %s138
    %s158 = sphi 0, %s160
    %s161 = sphi 0, %s158
    %s162 = sphi 0, %s161
    %s178 = sphi 0, %s162
  $region4: #{resblock_forward.5} parent=0 // loop_header_branch
    %15 = sbr.rel (%p13) target = $region8
  $region5: #{resblock_forward.5} parent=0 // loop_body
    %s17 = ssub.s32 %s12, 1
    %s18 = ssub.s32 %s12, 2
    %s19 = sadd.s32 %s12, 1
    %s20 = ssub.s32 %s12, %s19
    %p21 = scmp.eq.s32.totalorder %s20, 0
    %s23 = sadd.s32 %s22, 1
    %s24 = scalar_select %p21, %s22, %s23
    %p27 = pneg %p21
    %p28 = scmp.eq.s32.totalorder %s12, 1
    %p29 = por %p27, %p28
    %p30 = scmp.ne.s32.totalorder %s22, %s25
    %p31 = scmp.eq.s32.totalorder %s12, 0
    %p32 = por %p30, %p31
    %p33 = scmp.ne.s32.totalorder %s22, %s25
    %p34 = scmp.eq.s32.totalorder %s17, 1
    %p35 = por %p33, %p34
    %p36 = scmp.ne.s32.totalorder %s25, %s26
    %p37 = scmp.eq.s32.totalorder %s17, 0
    %p38 = por %p36, %p37
    %p39 = scmp.ne.s32.totalorder %s25, %s26
    %p40 = scmp.eq.s32.totalorder %s18, 1
    %p41 = por %p39, %p40
    %p43 = scmp.ne.s32.totalorder %s26, %s42
    %p44 = scmp.eq.s32.totalorder %s18, 0
    %p45 = por %p43, %p44
    %s46 = ssub.s32 %s12, %s19
    %p47 = scmp.eq.s32.totalorder %s46, 0
    %s49 = sadd.s32 %s48, 1
    %s50 = scalar_select %p47, %s48, %s49
    %p53 = pneg %p47
    %p54 = scmp.eq.s32.totalorder %s12, 1
    %p55 = por %p53, %p54
    %p56 = scmp.ne.s32.totalorder %s48, %s51
    %p57 = scmp.eq.s32.totalorder %s12, 0
    %p58 = por %p56, %p57
    %p59 = scmp.ne.s32.totalorder %s48, %s51
    %p60 = scmp.eq.s32.totalorder %s17, 1
    %p61 = por %p59, %p60
    %p62 = scmp.ne.s32.totalorder %s51, %s52
    %p63 = scmp.eq.s32.totalorder %s17, 0
    %p64 = por %p62, %p63
    %p65 = scmp.ne.s32.totalorder %s51, %s52
    %p66 = scmp.eq.s32.totalorder %s18, 1
    %p67 = por %p65, %p66
    %p69 = scmp.ne.s32.totalorder %s52, %s68
    %p70 = scmp.eq.s32.totalorder %s18, 0
    %p71 = por %p69, %p70
    %s73 = sadd.s32 %s72, 1
    %p76 = scmp.eq.s32.totalorder %s12, 1
    %p77 = scmp.ne.s32.totalorder %s72, %s74
    %p78 = scmp.eq.s32.totalorder %s12, 0
    %p79 = por %p77, %p78
    %p80 = scmp.ne.s32.totalorder %s72, %s74
    %p81 = scmp.eq.s32.totalorder %s17, 1
    %p82 = por %p80, %p81
    %p83 = scmp.ne.s32.totalorder %s74, %s75
    %p84 = scmp.eq.s32.totalorder %s17, 0
    %p85 = por %p83, %p84
    %p86 = scmp.ne.s32.totalorder %s74, %s75
    %p87 = scmp.eq.s32.totalorder %s18, 1
    %p88 = por %p86, %p87
    %p90 = scmp.ne.s32.totalorder %s75, %s89
    %p91 = scmp.eq.s32.totalorder %s18, 0
    %p92 = por %p90, %p91
    %s94 = sadd.s32 %s93, 1
    %p97 = scmp.eq.s32.totalorder %s12, 1
    %p98 = scmp.ne.s32.totalorder %s93, %s95
    %p99 = scmp.eq.s32.totalorder %s12, 0
    %p100 = por %p98, %p99
    %p101 = scmp.ne.s32.totalorder %s93, %s95
    %p102 = scmp.eq.s32.totalorder %s17, 1
    %p103 = por %p101, %p102
    %p104 = scmp.ne.s32.totalorder %s95, %s96
    %p105 = scmp.eq.s32.totalorder %s17, 0
    %p106 = por %p104, %p105
    %p107 = scmp.ne.s32.totalorder %s95, %s96
    %p108 = scmp.eq.s32.totalorder %s18, 1
    %p109 = por %p107, %p108
    %p111 = scmp.ne.s32.totalorder %s96, %s110
    %p112 = scmp.eq.s32.totalorder %s18, 0
    %p113 = por %p111, %p112
    %s115 = sadd.s32 %s114, 1
    %p118 = scmp.eq.s32.totalorder %s12, 1
    %p119 = scmp.ne.s32.totalorder %s114, %s116
    %p120 = scmp.eq.s32.totalorder %s12, 0
    %p121 = por %p119, %p120
    %p122 = scmp.ne.s32.totalorder %s114, %s116
    %p123 = scmp.eq.s32.totalorder %s17, 1
    %p124 = por %p122, %p123
    %p125 = scmp.ne.s32.totalorder %s116, %s117
    %p126 = scmp.eq.s32.totalorder %s17, 0
    %p127 = por %p125, %p126
    %p128 = scmp.ne.s32.totalorder %s116, %s117
    %p129 = scmp.eq.s32.totalorder %s18, 1
    %p130 = por %p128, %p129
    %p132 = scmp.ne.s32.totalorder %s117, %s131
    %p133 = scmp.eq.s32.totalorder %s18, 0
    %p134 = por %p132, %p133
    %s136 = sadd.s32 %s135, 1
    %p139 = scmp.eq.s32.totalorder %s12, 1
    %p140 = scmp.ne.s32.totalorder %s135, %s137
    %p141 = scmp.eq.s32.totalorder %s12, 0
    %p142 = por %p140, %p141
    %p143 = scmp.ne.s32.totalorder %s135, %s137
    %p144 = scmp.eq.s32.totalorder %s17, 1
    %p145 = por %p143, %p144
    %p146 = scmp.ne.s32.totalorder %s137, %s138
    %p147 = scmp.eq.s32.totalorder %s17, 0
    %p148 = por %p146, %p147
    %p149 = scmp.ne.s32.totalorder %s137, %s138
    %p150 = scmp.eq.s32.totalorder %s18, 1
    %p151 = por %p149, %p150
    %p153 = scmp.ne.s32.totalorder %s138, %s152
    %p154 = scmp.eq.s32.totalorder %s18, 0
    %p155 = por %p153, %p154
    %s156 = ssub.s32 %s12, %s19
    %p157 = scmp.eq.s32.totalorder %s156, 0
    %s159 = sadd.s32 %s158, 1
    %s160 = scalar_select %p157, %s158, %s159
    %p163 = pneg %p157
    %p164 = scmp.eq.s32.totalorder %s12, 1
    %p165 = por %p163, %p164
    %p166 = scmp.ne.s32.totalorder %s158, %s161
    %p167 = scmp.eq.s32.totalorder %s12, 0
    %p168 = por %p166, %p167
    %p169 = scmp.ne.s32.totalorder %s158, %s161
    %p170 = scmp.eq.s32.totalorder %s17, 1
    %p171 = por %p169, %p170
    %p172 = scmp.ne.s32.totalorder %s161, %s162
    %p173 = scmp.eq.s32.totalorder %s17, 0
    %p174 = por %p172, %p173
    %p175 = scmp.ne.s32.totalorder %s161, %s162
    %p176 = scmp.eq.s32.totalorder %s18, 1
    %p177 = por %p175, %p176
    %p179 = scmp.ne.s32.totalorder %s162, %s178
    %p180 = scmp.eq.s32.totalorder %s18, 0
    %p181 = por %p179, %p180
    %p182 = scmp.le.s32.totalorder 1, %s12
    %p183 = scmp.lt.s32.totalorder %s12, 3
    %p184 = pnand %p182, %p183
    %p185 = pneg %p184
    // Predicated region
    $region9: #{resblock_forward.5} parent=5 // pred_check
      _
    $region10: #{resblock_forward.5} parent=5 // pred_check_branch
      %187 = sbr.rel (%p184) target = $region12
    $region11: #{resblock_forward.5} parent=5 // pred_region
      %s188 = ssub.s32 %s12, 1
      // Predicated region
      $region13: #{resblock_forward.5} parent=11 // pred_check
        %p189 = pneg %p85
      $region14: #{resblock_forward.5} parent=11 // pred_check_branch
        %191 = sbr.rel (%p189) target = $region16
      $region15: #{resblock_forward.5} parent=11 // pred_region
        _
      $region16: #{resblock_forward.5} parent=11 // pred_fallthru
        _
      // Predicated region
      $region17: #{resblock_forward.5} parent=11 // pred_check
        %p192 = pneg %p106
      $region18: #{resblock_forward.5} parent=11 // pred_check_branch
        %194 = sbr.rel (%p192) target = $region20
      $region19: #{resblock_forward.5} parent=11 // pred_region
        _
      $region20: #{resblock_forward.5} parent=11 // pred_fallthru
        _
      // Predicated region
      $region21: #{resblock_forward.5} parent=11 // pred_check
        %p195 = pneg %p127
      $region22: #{resblock_forward.5} parent=11 // pred_check_branch
        %197 = sbr.rel (%p195) target = $region24
      $region23: #{resblock_forward.5} parent=11 // pred_region
        _
      $region24: #{resblock_forward.5} parent=11 // pred_fallthru
        _
      // Predicated region
      $region25: #{resblock_forward.5} parent=11 // pred_check
        %p198 = pneg %p148
      $region26: #{resblock_forward.5} parent=11 // pred_check_branch
        %200 = sbr.rel (%p198) target = $region28
      $region27: #{resblock_forward.5} parent=11 // pred_region
        _
      $region28: #{resblock_forward.5} parent=11 // pred_fallthru
        _
    $region12: #{resblock_forward.5} parent=5 // pred_fallthru
      _
    %p201 = scmp.lt.s32.totalorder %s12, 2
    // Predicated region
    $region29: #{resblock_forward.5} parent=5 // pred_check
      %p202 = pneg %p201
    $region30: #{resblock_forward.5} parent=5 // pred_check_branch
      %204 = sbr.rel (%p202) target = $region32
    $region31: #{resblock_forward.5} parent=5 // pred_region
      // Predicated region
      $region33: #{resblock_forward.5} parent=31 // pred_check
        %p205 = pneg %p32
      $region34: #{resblock_forward.5} parent=31 // pred_check_branch
        %207 = sbr.rel (%p205) target = $region36
      $region35: #{resblock_forward.5} parent=31 // pred_region
        %p208 = scmp.lt.s32.totalorder %s12, 1
        %s209 = scalar_select %p208, %s12, 1
        %s210 = smul.addr %s209, 36
        %s211 = smul.addr %s210, 4
        %s212 = scalar_lea.vmem %s0, %s211
      $region36: #{resblock_forward.5} parent=31 // pred_fallthru
        _
      // Predicated region
      $region37: #{resblock_forward.5} parent=31 // pred_check
        %p213 = pneg %p58
      $region38: #{resblock_forward.5} parent=31 // pred_check_branch
        %215 = sbr.rel (%p213) target = $region40
      $region39: #{resblock_forward.5} parent=31 // pred_region
        %p216 = scmp.lt.s32.totalorder %s12, 1
        %s217 = scalar_select %p216, %s12, 1
        %s218 = smul.addr %s217, 36
        %s219 = smul.addr %s218, 4
        %s220 = scalar_lea.vmem %s1, %s219
      $region40: #{resblock_forward.5} parent=31 // pred_fallthru
        _
    $region32: #{resblock_forward.5} parent=5 // pred_fallthru
      _
    %p221 = scmp.le.s32.totalorder 1, %s12
    %p222 = scmp.lt.s32.totalorder %s12, 3
    %p223 = pnand %p221, %p222
    %p224 = pneg %p223
    // Predicated region
    $region41: #{resblock_forward.5} parent=5 // pred_check
      _
    $region42: #{resblock_forward.5} parent=5 // pred_check_branch
      %226 = sbr.rel (%p223) target = $region44
    $region43: #{resblock_forward.5} parent=5 // pred_region
      %s227 = ssub.s32 %s12, 1
      %p228 = scmp.lt.s32.totalorder %s17, 1
      %s229 = scalar_select %p228, %s17, 1
      %s230 = smul.addr %s229, 36
      %s231 = smul.addr %s230, 4
      %s232 = scalar_lea.vmem %s0, %s231
      %p233 = pneg %p38
      %p234 = pneg %p35
      %p235 = scmp.lt.s32.totalorder %s17, 1
      %s236 = scalar_select %p235, %s17, 1
      %s237 = smul.addr %s236, 36
      %s238 = smul.addr %s237, 4
      %s239 = scalar_lea.vmem %s1, %s238
      %p240 = pneg %p64
      %p241 = pneg %p61
      %p242 = pneg %p85
      %p243 = pneg %p82
      %p244 = pneg %p106
      %p245 = pneg %p103
      %p246 = pneg %p127
      %p247 = pneg %p124
      %p248 = pneg %p148
      %p249 = pneg %p145
      %p250 = pneg %p174
      %p251 = pneg %p171
      %p252 = scmp.lt.s32.totalorder %s17, 1
      %s253 = scalar_select %p252, %s17, 1
      %s254 = smul.addr %s253, 36
      %s255 = smul.addr %s254, 8
      %s256 = scalar_lea.vmem %s6, %s255
      %p257 = scmp.lt.s32.totalorder %s17, 1
      %s258 = scalar_select %p257, %s17, 1
      %s259 = smul.addr %s258, 36
      %s260 = smul.addr %s259, 4
      %s261 = scalar_lea.vmem %s0, %s260
      %p262 = scmp.lt.s32.totalorder %s17, 1
      %s263 = scalar_select %p262, %s17, 1
      %s264 = smul.addr %s263, 36
      %s265 = smul.addr %s264, 4
      %s266 = scalar_lea.vmem %s1, %s265
      %p267 = scmp.lt.s32.totalorder %s17, 1
      %s268 = scalar_select %p267, %s17, 1
      %s269 = smul.addr %s268, 36
      %s270 = smul.addr %s269, 8
      %s271 = scalar_lea.vmem %s6, %s270
      %v272 = vld [vmem:[%s2] sm:$0x1]
      %v273 = vld [vmem:[%s3] sm:$0x1]
      %v274 = vld [vmem:[%s4] sm:$0x1]
      %v275 = vld [vmem:[%s5] sm:$0x1]
      %v276 = vld [vmem:[%s261] sm:$0xf]
      %v277 = vld [vmem:[%s261 + $0x4] sm:$0xf]
      %v278 = vld [vmem:[%s261 + $0x8] sm:$0xf]
      %v279 = vld [vmem:[%s261 + $0xc] sm:$0xf]
      %v280 = vld [vmem:[%s261 + $0x10] sm:$0xf]
      %v281 = vld [vmem:[%s261 + $0x14] sm:$0xf]
      %v282 = vld [vmem:[%s261 + $0x18] sm:$0xf]
      %v283 = vld [vmem:[%s261 + $0x1c] sm:$0xf]
      %v284 = vld [vmem:[%s261 + $0x20] sm:$0xf]
      %v285 = vld [vmem:[%s261 + $0x24] sm:$0xf]
      %v286 = vld [vmem:[%s261 + $0x28] sm:$0xf]
      %v287 = vld [vmem:[%s261 + $0x2c] sm:$0xf]
      %v288 = vld [vmem:[%s261 + $0x30] sm:$0xf]
      %v289 = vld [vmem:[%s261 + $0x34] sm:$0xf]
      %v290 = vld [vmem:[%s261 + $0x38] sm:$0xf]
      %v291 = vld [vmem:[%s261 + $0x3c] sm:$0xf]
      %v292 = vld [vmem:[%s261 + $0x40] sm:$0xf]
      %v293 = vld [vmem:[%s261 + $0x44] sm:$0xf]
      %v294 = vld [vmem:[%s261 + $0x48] sm:$0xf]
      %v295 = vld [vmem:[%s261 + $0x4c] sm:$0xf]
      %v296 = vld [vmem:[%s261 + $0x50] sm:$0xf]
      %v297 = vld [vmem:[%s261 + $0x54] sm:$0xf]
      %v298 = vld [vmem:[%s261 + $0x58] sm:$0xf]
      %v299 = vld [vmem:[%s261 + $0x5c] sm:$0xf]
      %v300 = vld [vmem:[%s261 + $0x60] sm:$0xf]
      %v301 = vld [vmem:[%s261 + $0x64] sm:$0xf]
      %v302 = vld [vmem:[%s261 + $0x68] sm:$0xf]
      %v303 = vld [vmem:[%s261 + $0x6c] sm:$0xf]
      %v304 = vld [vmem:[%s261 + $0x70] sm:$0xf]
      %v305 = vld [vmem:[%s261 + $0x74] sm:$0xf]
      %v306 = vld [vmem:[%s261 + $0x78] sm:$0xf]
      %v307 = vld [vmem:[%s261 + $0x7c] sm:$0xf]
      %v308 = vld [vmem:[%s261 + $0x80] sm:$0xf]
      %v309 = vld [vmem:[%s261 + $0x84] sm:$0xf]
      %v310 = vld [vmem:[%s261 + $0x88] sm:$0xf]
      %v311 = vld [vmem:[%s261 + $0x8c] sm:$0xf]
      %v312 = vunpack.c.l.bf16 %v276
      %v313 = vunpack.c.l.bf16 %v277
      %v314 = vunpack.c.l.bf16 %v278
      %v315 = vunpack.c.l.bf16 %v279
      %v316 = vunpack.c.l.bf16 %v280
      %v317 = vunpack.c.l.bf16 %v281
      %v318 = vunpack.c.l.bf16 %v282
      %v319 = vunpack.c.l.bf16 %v283
      %v320 = vunpack.c.l.bf16 %v284
      %v321 = vunpack.c.l.bf16 %v285
      %v322 = vunpack.c.l.bf16 %v286
      %v323 = vunpack.c.l.bf16 %v287
      %v324 = vunpack.c.l.bf16 %v288
      %v325 = vunpack.c.l.bf16 %v289
      %v326 = vunpack.c.l.bf16 %v290
      %v327 = vunpack.c.l.bf16 %v291
      %v328 = vunpack.c.l.bf16 %v292
      %v329 = vunpack.c.l.bf16 %v293
      %v330 = vunpack.c.l.bf16 %v294
      %v331 = vunpack.c.l.bf16 %v295
      %v332 = vunpack.c.l.bf16 %v296
      %v333 = vunpack.c.l.bf16 %v297
      %v334 = vunpack.c.l.bf16 %v298
      %v335 = vunpack.c.l.bf16 %v299
      %v336 = vunpack.c.l.bf16 %v300
      %v337 = vunpack.c.l.bf16 %v301
      %v338 = vunpack.c.l.bf16 %v302
      %v339 = vunpack.c.l.bf16 %v303
      %v340 = vunpack.c.l.bf16 %v304
      %v341 = vunpack.c.l.bf16 %v305
      %v342 = vunpack.c.l.bf16 %v306
      %v343 = vunpack.c.l.bf16 %v307
      %v344 = vunpack.c.l.bf16 %v308
      %v345 = vunpack.c.l.bf16 %v309
      %v346 = vunpack.c.l.bf16 %v310
      %v347 = vunpack.c.l.bf16 %v311
      %v348 = vld [vmem:[%s266] sm:$0xf]
      %v349 = vld [vmem:[%s266 + $0x4] sm:$0xf]
      %v350 = vld [vmem:[%s266 + $0x8] sm:$0xf]
      %v351 = vld [vmem:[%s266 + $0xc] sm:$0xf]
      %v352 = vld [vmem:[%s266 + $0x10] sm:$0xf]
      %v353 = vld [vmem:[%s266 + $0x14] sm:$0xf]
      %v354 = vld [vmem:[%s266 + $0x18] sm:$0xf]
      %v355 = vld [vmem:[%s266 + $0x1c] sm:$0xf]
      %v356 = vld [vmem:[%s266 + $0x20] sm:$0xf]
      %v357 = vld [vmem:[%s266 + $0x24] sm:$0xf]
      %v358 = vld [vmem:[%s266 + $0x28] sm:$0xf]
      %v359 = vld [vmem:[%s266 + $0x2c] sm:$0xf]
      %v360 = vld [vmem:[%s266 + $0x30] sm:$0xf]
      %v361 = vld [vmem:[%s266 + $0x34] sm:$0xf]
      %v362 = vld [vmem:[%s266 + $0x38] sm:$0xf]
      %v363 = vld [vmem:[%s266 + $0x3c] sm:$0xf]
      %v364 = vld [vmem:[%s266 + $0x40] sm:$0xf]
      %v365 = vld [vmem:[%s266 + $0x44] sm:$0xf]
      %v366 = vld [vmem:[%s266 + $0x48] sm:$0xf]
      %v367 = vld [vmem:[%s266 + $0x4c] sm:$0xf]
      %v368 = vld [vmem:[%s266 + $0x50] sm:$0xf]
      %v369 = vld [vmem:[%s266 + $0x54] sm:$0xf]
      %v370 = vld [vmem:[%s266 + $0x58] sm:$0xf]
      %v371 = vld [vmem:[%s266 + $0x5c] sm:$0xf]
      %v372 = vld [vmem:[%s266 + $0x60] sm:$0xf]
      %v373 = vld [vmem:[%s266 + $0x64] sm:$0xf]
      %v374 = vld [vmem:[%s266 + $0x68] sm:$0xf]
      %v375 = vld [vmem:[%s266 + $0x6c] sm:$0xf]
      %v376 = vld [vmem:[%s266 + $0x70] sm:$0xf]
      %v377 = vld [vmem:[%s266 + $0x74] sm:$0xf]
      %v378 = vld [vmem:[%s266 + $0x78] sm:$0xf]
      %v379 = vld [vmem:[%s266 + $0x7c] sm:$0xf]
      %v380 = vld [vmem:[%s266 + $0x80] sm:$0xf]
      %v381 = vld [vmem:[%s266 + $0x84] sm:$0xf]
      %v382 = vld [vmem:[%s266 + $0x88] sm:$0xf]
      %v383 = vld [vmem:[%s266 + $0x8c] sm:$0xf]
      %v384 = vunpack.c.l.bf16 %v348
      %v385 = vunpack.c.l.bf16 %v349
      %v386 = vunpack.c.l.bf16 %v350
      %v387 = vunpack.c.l.bf16 %v351
      %v388 = vunpack.c.l.bf16 %v352
      %v389 = vunpack.c.l.bf16 %v353
      %v390 = vunpack.c.l.bf16 %v354
      %v391 = vunpack.c.l.bf16 %v355
      %v392 = vunpack.c.l.bf16 %v356
      %v393 = vunpack.c.l.bf16 %v357
      %v394 = vunpack.c.l.bf16 %v358
      %v395 = vunpack.c.l.bf16 %v359
      %v396 = vunpack.c.l.bf16 %v360
      %v397 = vunpack.c.l.bf16 %v361
      %v398 = vunpack.c.l.bf16 %v362
      %v399 = vunpack.c.l.bf16 %v363
      %v400 = vunpack.c.l.bf16 %v364
      %v401 = vunpack.c.l.bf16 %v365
      %v402 = vunpack.c.l.bf16 %v366
      %v403 = vunpack.c.l.bf16 %v367
      %v404 = vunpack.c.l.bf16 %v368
      %v405 = vunpack.c.l.bf16 %v369
      %v406 = vunpack.c.l.bf16 %v370
      %v407 = vunpack.c.l.bf16 %v371
      %v408 = vunpack.c.l.bf16 %v372
      %v409 = vunpack.c.l.bf16 %v373
      %v410 = vunpack.c.l.bf16 %v374
      %v411 = vunpack.c.l.bf16 %v375
      %v412 = vunpack.c.l.bf16 %v376
      %v413 = vunpack.c.l.bf16 %v377
      %v414 = vunpack.c.l.bf16 %v378
      %v415 = vunpack.c.l.bf16 %v379
      %v416 = vunpack.c.l.bf16 %v380
      %v417 = vunpack.c.l.bf16 %v381
      %v418 = vunpack.c.l.bf16 %v382
      %v419 = vunpack.c.l.bf16 %v383
      %v421 = vlaneseq
      %v422 = vshrl.u32 %v421, 7
      %v423 = vsub.s32 0, %v422
      %v424 = vrot.slane %v272, %v423
      %v426 = vmul.f32 %v312, %v424
      %v427 = vmul.f32 %v313, %v424
      %v428 = vmul.f32 %v314, %v424
      %v429 = vmul.f32 %v315, %v424
      %v430 = vmul.f32 %v316, %v424
      %v431 = vmul.f32 %v317, %v424
      %v432 = vmul.f32 %v318, %v424
      %v433 = vmul.f32 %v319, %v424
      %v434 = vmul.f32 %v320, %v424
      %v435 = vmul.f32 %v321, %v424
      %v436 = vmul.f32 %v322, %v424
      %v437 = vmul.f32 %v323, %v424
      %v438 = vmul.f32 %v324, %v424
      %v439 = vmul.f32 %v325, %v424
      %v440 = vmul.f32 %v326, %v424
      %v441 = vmul.f32 %v327, %v424
      %v442 = vmul.f32 %v328, %v424
      %v443 = vmul.f32 %v329, %v424
      %v444 = vmul.f32 %v330, %v424
      %v445 = vmul.f32 %v331, %v424
      %v446 = vmul.f32 %v332, %v424
      %v447 = vmul.f32 %v333, %v424
      %v448 = vmul.f32 %v334, %v424
      %v449 = vmul.f32 %v335, %v424
      %v450 = vmul.f32 %v336, %v424
      %v451 = vmul.f32 %v337, %v424
      %v452 = vmul.f32 %v338, %v424
      %v453 = vmul.f32 %v339, %v424
      %v454 = vmul.f32 %v340, %v424
      %v455 = vmul.f32 %v341, %v424
      %v456 = vmul.f32 %v342, %v424
      %v457 = vmul.f32 %v343, %v424
      %v458 = vmul.f32 %v344, %v424
      %v459 = vmul.f32 %v345, %v424
      %v460 = vmul.f32 %v346, %v424
      %v461 = vmul.f32 %v347, %v424
      %v463 = vlaneseq
      %v464 = vshrl.u32 %v463, 7
      %v465 = vsub.s32 0, %v464
      %v466 = vrot.slane %v273, %v465
      %v468 = vadd.f32 %v426, %v466
      %v469 = vadd.f32 %v427, %v466
      %v470 = vadd.f32 %v428, %v466
      %v471 = vadd.f32 %v429, %v466
      %v472 = vadd.f32 %v430, %v466
      %v473 = vadd.f32 %v431, %v466
      %v474 = vadd.f32 %v432, %v466
      %v475 = vadd.f32 %v433, %v466
      %v476 = vadd.f32 %v434, %v466
      %v477 = vadd.f32 %v435, %v466
      %v478 = vadd.f32 %v436, %v466
      %v479 = vadd.f32 %v437, %v466
      %v480 = vadd.f32 %v438, %v466
      %v481 = vadd.f32 %v439, %v466
      %v482 = vadd.f32 %v440, %v466
      %v483 = vadd.f32 %v441, %v466
      %v484 = vadd.f32 %v442, %v466
      %v485 = vadd.f32 %v443, %v466
      %v486 = vadd.f32 %v444, %v466
      %v487 = vadd.f32 %v445, %v466
      %v488 = vadd.f32 %v446, %v466
      %v489 = vadd.f32 %v447, %v466
      %v490 = vadd.f32 %v448, %v466
      %v491 = vadd.f32 %v449, %v466
      %v492 = vadd.f32 %v450, %v466
      %v493 = vadd.f32 %v451, %v466
      %v494 = vadd.f32 %v452, %v466
      %v495 = vadd.f32 %v453, %v466
      %v496 = vadd.f32 %v454, %v466
      %v497 = vadd.f32 %v455, %v466
      %v498 = vadd.f32 %v456, %v466
      %v499 = vadd.f32 %v457, %v466
      %v500 = vadd.f32 %v458, %v466
      %v501 = vadd.f32 %v459, %v466
      %v502 = vadd.f32 %v460, %v466
      %v503 = vadd.f32 %v461, %v466
      %v505 = vlaneseq
      %v506 = vshrl.u32 %v505, 7
      %v507 = vsub.s32 0, %v506
      %v508 = vrot.slane %v274, %v507
      %v510 = vmul.f32 %v384, %v508
      %v511 = vmul.f32 %v385, %v508
      %v512 = vmul.f32 %v386, %v508
      %v513 = vmul.f32 %v387, %v508
      %v514 = vmul.f32 %v388, %v508
      %v515 = vmul.f32 %v389, %v508
      %v516 = vmul.f32 %v390, %v508
      %v517 = vmul.f32 %v391, %v508
      %v518 = vmul.f32 %v392, %v508
      %v519 = vmul.f32 %v393, %v508
      %v520 = vmul.f32 %v394, %v508
      %v521 = vmul.f32 %v395, %v508
      %v522 = vmul.f32 %v396, %v508
      %v523 = vmul.f32 %v397, %v508
      %v524 = vmul.f32 %v398, %v508
      %v525 = vmul.f32 %v399, %v508
      %v526 = vmul.f32 %v400, %v508
      %v527 = vmul.f32 %v401, %v508
      %v528 = vmul.f32 %v402, %v508
      %v529 = vmul.f32 %v403, %v508
      %v530 = vmul.f32 %v404, %v508
      %v531 = vmul.f32 %v405, %v508
      %v532 = vmul.f32 %v406, %v508
      %v533 = vmul.f32 %v407, %v508
      %v534 = vmul.f32 %v408, %v508
      %v535 = vmul.f32 %v409, %v508
      %v536 = vmul.f32 %v410, %v508
      %v537 = vmul.f32 %v411, %v508
      %v538 = vmul.f32 %v412, %v508
      %v539 = vmul.f32 %v413, %v508
      %v540 = vmul.f32 %v414, %v508
      %v541 = vmul.f32 %v415, %v508
      %v542 = vmul.f32 %v416, %v508
      %v543 = vmul.f32 %v417, %v508
      %v544 = vmul.f32 %v418, %v508
      %v545 = vmul.f32 %v419, %v508
      %v546 = vadd.f32 %v468, %v510
      %v547 = vadd.f32 %v469, %v511
      %v548 = vadd.f32 %v470, %v512
      %v549 = vadd.f32 %v471, %v513
      %v550 = vadd.f32 %v472, %v514
      %v551 = vadd.f32 %v473, %v515
      %v552 = vadd.f32 %v474, %v516
      %v553 = vadd.f32 %v475, %v517
      %v554 = vadd.f32 %v476, %v518
      %v555 = vadd.f32 %v477, %v519
      %v556 = vadd.f32 %v478, %v520
      %v557 = vadd.f32 %v479, %v521
      %v558 = vadd.f32 %v480, %v522
      %v559 = vadd.f32 %v481, %v523
      %v560 = vadd.f32 %v482, %v524
      %v561 = vadd.f32 %v483, %v525
      %v562 = vadd.f32 %v484, %v526
      %v563 = vadd.f32 %v485, %v527
      %v564 = vadd.f32 %v486, %v528
      %v565 = vadd.f32 %v487, %v529
      %v566 = vadd.f32 %v488, %v530
      %v567 = vadd.f32 %v489, %v531
      %v568 = vadd.f32 %v490, %v532
      %v569 = vadd.f32 %v491, %v533
      %v570 = vadd.f32 %v492, %v534
      %v571 = vadd.f32 %v493, %v535
      %v572 = vadd.f32 %v494, %v536
      %v573 = vadd.f32 %v495, %v537
      %v574 = vadd.f32 %v496, %v538
      %v575 = vadd.f32 %v497, %v539
      %v576 = vadd.f32 %v498, %v540
      %v577 = vadd.f32 %v499, %v541
      %v578 = vadd.f32 %v500, %v542
      %v579 = vadd.f32 %v501, %v543
      %v580 = vadd.f32 %v502, %v544
      %v581 = vadd.f32 %v503, %v545
      %v583 = vlaneseq
      %v584 = vshrl.u32 %v583, 7
      %v585 = vsub.s32 0, %v584
      %v586 = vrot.slane %v275, %v585
      %v588 = vadd.f32 %v546, %v586
      %v589 = vadd.f32 %v547, %v586
      %v590 = vadd.f32 %v548, %v586
      %v591 = vadd.f32 %v549, %v586
      %v592 = vadd.f32 %v550, %v586
      %v593 = vadd.f32 %v551, %v586
      %v594 = vadd.f32 %v552, %v586
      %v595 = vadd.f32 %v553, %v586
      %v596 = vadd.f32 %v554, %v586
      %v597 = vadd.f32 %v555, %v586
      %v598 = vadd.f32 %v556, %v586
      %v599 = vadd.f32 %v557, %v586
      %v600 = vadd.f32 %v558, %v586
      %v601 = vadd.f32 %v559, %v586
      %v602 = vadd.f32 %v560, %v586
      %v603 = vadd.f32 %v561, %v586
      %v604 = vadd.f32 %v562, %v586
      %v605 = vadd.f32 %v563, %v586
      %v606 = vadd.f32 %v564, %v586
      %v607 = vadd.f32 %v565, %v586
      %v608 = vadd.f32 %v566, %v586
      %v609 = vadd.f32 %v567, %v586
      %v610 = vadd.f32 %v568, %v586
      %v611 = vadd.f32 %v569, %v586
      %v612 = vadd.f32 %v570, %v586
      %v613 = vadd.f32 %v571, %v586
      %v614 = vadd.f32 %v572, %v586
      %v615 = vadd.f32 %v573, %v586
      %v616 = vadd.f32 %v574, %v586
      %v617 = vadd.f32 %v575, %v586
      %v618 = vadd.f32 %v576, %v586
      %v619 = vadd.f32 %v577, %v586
      %v620 = vadd.f32 %v578, %v586
      %v621 = vadd.f32 %v579, %v586
      %v622 = vadd.f32 %v580, %v586
      %v623 = vadd.f32 %v581, %v586
      %v624 = vmax.f32 %v588, 0.0
      %v625 = vmax.f32 %v589, 0.0
      %v626 = vmax.f32 %v590, 0.0
      %v627 = vmax.f32 %v591, 0.0
      %v628 = vmax.f32 %v592, 0.0
      %v629 = vmax.f32 %v593, 0.0
      %v630 = vmax.f32 %v594, 0.0
      %v631 = vmax.f32 %v595, 0.0
      %v632 = vmax.f32 %v596, 0.0
      %v633 = vmax.f32 %v597, 0.0
      %v634 = vmax.f32 %v598, 0.0
      %v635 = vmax.f32 %v599, 0.0
      %v636 = vmax.f32 %v600, 0.0
      %v637 = vmax.f32 %v601, 0.0
      %v638 = vmax.f32 %v602, 0.0
      %v639 = vmax.f32 %v603, 0.0
      %v640 = vmax.f32 %v604, 0.0
      %v641 = vmax.f32 %v605, 0.0
      %v642 = vmax.f32 %v606, 0.0
      %v643 = vmax.f32 %v607, 0.0
      %v644 = vmax.f32 %v608, 0.0
      %v645 = vmax.f32 %v609, 0.0
      %v646 = vmax.f32 %v610, 0.0
      %v647 = vmax.f32 %v611, 0.0
      %v648 = vmax.f32 %v612, 0.0
      %v649 = vmax.f32 %v613, 0.0
      %v650 = vmax.f32 %v614, 0.0
      %v651 = vmax.f32 %v615, 0.0
      %v652 = vmax.f32 %v616, 0.0
      %v653 = vmax.f32 %v617, 0.0
      %v654 = vmax.f32 %v618, 0.0
      %v655 = vmax.f32 %v619, 0.0
      %v656 = vmax.f32 %v620, 0.0
      %v657 = vmax.f32 %v621, 0.0
      %v658 = vmax.f32 %v622, 0.0
      %v659 = vmax.f32 %v623, 0.0
      %660 = vst [vmem:[%s271] sm:$0xff] %v624
      %661 = vst [vmem:[%s271 + $0x8] sm:$0xff] %v625
      %662 = vst [vmem:[%s271 + $0x10] sm:$0xff] %v626
      %663 = vst [vmem:[%s271 + $0x18] sm:$0xff] %v627
      %664 = vst [vmem:[%s271 + $0x20] sm:$0xff] %v628
      %665 = vst [vmem:[%s271 + $0x28] sm:$0xff] %v629
      %666 = vst [vmem:[%s271 + $0x30] sm:$0xff] %v630
      %667 = vst [vmem:[%s271 + $0x38] sm:$0xff] %v631
      %668 = vst [vmem:[%s271 + $0x40] sm:$0xff] %v632
      %669 = vst [vmem:[%s271 + $0x48] sm:$0xff] %v633
      %670 = vst [vmem:[%s271 + $0x50] sm:$0xff] %v634
      %671 = vst [vmem:[%s271 + $0x58] sm:$0xff] %v635
      %672 = vst [vmem:[%s271 + $0x60] sm:$0xff] %v636
      %673 = vst [vmem:[%s271 + $0x68] sm:$0xff] %v637
      %674 = vst [vmem:[%s271 + $0x70] sm:$0xff] %v638
      %675 = vst [vmem:[%s271 + $0x78] sm:$0xff] %v639
      %676 = vst [vmem:[%s271 + $0x80] sm:$0xff] %v640
      %677 = vst [vmem:[%s271 + $0x88] sm:$0xff] %v641
      %678 = vst [vmem:[%s271 + $0x90] sm:$0xff] %v642
      %679 = vst [vmem:[%s271 + $0x98] sm:$0xff] %v643
      %680 = vst [vmem:[%s271 + $0xa0] sm:$0xff] %v644
      %681 = vst [vmem:[%s271 + $0xa8] sm:$0xff] %v645
      %682 = vst [vmem:[%s271 + $0xb0] sm:$0xff] %v646
      %683 = vst [vmem:[%s271 + $0xb8] sm:$0xff] %v647
      %684 = vst [vmem:[%s271 + $0xc0] sm:$0xff] %v648
      %685 = vst [vmem:[%s271 + $0xc8] sm:$0xff] %v649
      %686 = vst [vmem:[%s271 + $0xd0] sm:$0xff] %v650
      %687 = vst [vmem:[%s271 + $0xd8] sm:$0xff] %v651
      %688 = vst [vmem:[%s271 + $0xe0] sm:$0xff] %v652
      %689 = vst [vmem:[%s271 + $0xe8] sm:$0xff] %v653
      %690 = vst [vmem:[%s271 + $0xf0] sm:$0xff] %v654
      %691 = vst [vmem:[%s271 + $0xf8] sm:$0xff] %v655
      %692 = vst [vmem:[%s271 + $0x100] sm:$0xff] %v656
      %693 = vst [vmem:[%s271 + $0x108] sm:$0xff] %v657
      %694 = vst [vmem:[%s271 + $0x110] sm:$0xff] %v658
      %695 = vst [vmem:[%s271 + $0x118] sm:$0xff] %v659
      %p696 = scmp.lt.s32.totalorder %s17, 1
      %s697 = scalar_select %p696, %s17, 1
      %s698 = smul.addr %s697, 36
      %s699 = smul.addr %s698, 8
      %s700 = scalar_lea.vmem %s6, %s699
      // Predicated region
      $region45: #{resblock_forward.5} parent=43 // pred_check
        %p701 = pneg %p171
      $region46: #{resblock_forward.5} parent=43 // pred_check_branch
        %703 = sbr.rel (%p701) target = $region48
      $region47: #{resblock_forward.5} parent=43 // pred_region
        _
      $region48: #{resblock_forward.5} parent=43 // pred_fallthru
        _
    $region44: #{resblock_forward.5} parent=5 // pred_fallthru
      _
    %p704 = scmp.le.s32.totalorder 2, %s12
    // Predicated region
    $region49: #{resblock_forward.5} parent=5 // pred_check
      %p705 = pneg %p704
    $region50: #{resblock_forward.5} parent=5 // pred_check_branch
      %707 = sbr.rel (%p705) target = $region52
    $region51: #{resblock_forward.5} parent=5 // pred_region
      %s708 = ssub.s32 %s12, 2
      // Predicated region
      $region53: #{resblock_forward.5} parent=51 // pred_check
        %p709 = pneg %p177
      $region54: #{resblock_forward.5} parent=51 // pred_check_branch
        %711 = sbr.rel (%p709) target = $region56
      $region55: #{resblock_forward.5} parent=51 // pred_region
        %p712 = scmp.lt.s32.totalorder %s18, 1
        %s713 = scalar_select %p712, %s18, 1
        %s714 = smul.addr %s713, 36
        %s715 = smul.addr %s714, 8
        %s716 = scalar_lea.vmem %s6, %s715
      $region56: #{resblock_forward.5} parent=51 // pred_fallthru
        _
    $region52: #{resblock_forward.5} parent=5 // pred_fallthru
      _
  $region6: #{resblock_forward.5} parent=0 // loop_footer
    %s16 = sadd.s32 1, %s12
  $region7: #{resblock_forward.5} parent=0 // loop_footer_branch
    %11 = sbr.rel target = $region3
  $region8: #{resblock_forward.5} parent=0 // loop_exit
    _

// kernel: resblock_forward.4
$region0: #{resblock_forward.4}
  #allocation0 [shape = 'u32[]', space=smem, size = 0x4, offset = 0x4, fixed_abs, tag = 'smem constant byte address 0x4 - core index']
  #allocation1 [shape = 'u32[144,128]{1,0:T(1,128)}', space=vmem, size = 0x12000, scoped, tag = 'internal scratch']
  #allocation2 [shape = 'bf16[352,128]{1,0:T(16,128)(2,1)}', space=vmem, size = 0x16000, scoped, tag = 'scratch operand']
  %s0 = inlined_call_operand.vmem [shape: bf16[2,288,128], index: 0, kind: input, shape index: {}]
  %s1 = inlined_call_operand.vmem [shape: f32[288,1], index: 1, kind: input, shape index: {}]
  %s2 = inlined_call_operand.vmem [shape: f32[1,128], index: 2, kind: input, shape index: {}]
  %s3 = inlined_call_operand.vmem [shape: f32[1,128], index: 3, kind: input, shape index: {}]
  %s4 = inlined_call_operand.vmem [shape: bf16[9,128,128], index: 4, kind: input, shape index: {}]
  %s5 = inlined_call_operand.vmem [shape: bf16[2,288,128], index: 5, kind: output, shape index: {0}]
  %s6 = inlined_call_operand.vmem [shape: f32[2,1,128], index: 6, kind: output, shape index: {1}]
  %s7 = inlined_call_operand.vmem [shape: f32[2,1,128], index: 7, kind: output, shape index: {2}]
  %8 = xla_tuple %s5, %s6, %s7
  %s9 = sld [smem:[#allocation0]]
  $region69: #{resblock_forward.4} parent=0
    _
  %s11 = ssub.s32 1, %s9
  %s12 = scalar_select 0, %s11, %s9
  loop: start=0, step=1, limit=4
  $region2: #{resblock_forward.4} parent=0 // loop_pre_header
    _
  $region3: #{resblock_forward.4} parent=0 // loop_header
    %s14 = sphi 0, %s18
    %p15 = scmp.ge.s32.totalorder %s14, 4
    %s24 = sphi 0, %s26
    %s27 = sphi 0, %s24
    %s28 = sphi 0, %s27
    %s44 = sphi 0, %s28
    %s48 = sphi 0, %s48
    %s50 = sphi 0, %s48
    %s51 = sphi 0, %s50
    %s65 = sphi 0, %s51
    %s69 = sphi 0, %s69
    %s71 = sphi 0, %s69
    %s72 = sphi 0, %s71
    %s86 = sphi 0, %s72
    %s90 = sphi 0, %s90
    %s92 = sphi 0, %s90
    %s93 = sphi 0, %s92
    %s107 = sphi 0, %s93
    %s111 = sphi 0, %s111
    %s113 = sphi 0, %s111
    %s114 = sphi 0, %s113
    %s128 = sphi 0, %s114
    %s134 = sphi 0, %s136
    %s137 = sphi 0, %s134
    %s138 = sphi 0, %s137
    %s154 = sphi 0, %s138
    %s160 = sphi 0, %s162
    %s163 = sphi 0, %s160
    %s164 = sphi 0, %s163
    %s180 = sphi 0, %s164
    %s186 = sphi 0, %s188
    %s189 = sphi 0, %s186
    %s190 = sphi 0, %s189
    %s206 = sphi 0, %s190
  $region4: #{resblock_forward.4} parent=0 // loop_header_branch
    %17 = sbr.rel (%p15) target = $region8
  $region5: #{resblock_forward.4} parent=0 // loop_body
    %s19 = ssub.s32 %s14, 1
    %s20 = ssub.s32 %s14, 2
    %s21 = sadd.s32 %s14, 1
    %s22 = ssub.s32 %s14, %s21
    %p23 = scmp.eq.s32.totalorder %s22, 0
    %s25 = sadd.s32 %s24, 1
    %s26 = scalar_select %p23, %s24, %s25
    %p29 = pneg %p23
    %p30 = scmp.eq.s32.totalorder %s14, 1
    %p31 = por %p29, %p30
    %p32 = scmp.ne.s32.totalorder %s24, %s27
    %p33 = scmp.eq.s32.totalorder %s14, 0
    %p34 = por %p32, %p33
    %p35 = scmp.ne.s32.totalorder %s24, %s27
    %p36 = scmp.eq.s32.totalorder %s19, 1
    %p37 = por %p35, %p36
    %p38 = scmp.ne.s32.totalorder %s27, %s28
    %p39 = scmp.eq.s32.totalorder %s19, 0
    %p40 = por %p38, %p39
    %p41 = scmp.ne.s32.totalorder %s27, %s28
    %p42 = scmp.eq.s32.totalorder %s20, 1
    %p43 = por %p41, %p42
    %p45 = scmp.ne.s32.totalorder %s28, %s44
    %p46 = scmp.eq.s32.totalorder %s20, 0
    %p47 = por %p45, %p46
    %s49 = sadd.s32 %s48, 1
    %p52 = scmp.eq.s32.totalorder %s14, 1
    %p53 = scmp.ne.s32.totalorder %s48, %s50
    %p54 = scmp.eq.s32.totalorder %s14, 0
    %p55 = por %p53, %p54
    %p56 = scmp.ne.s32.totalorder %s48, %s50
    %p57 = scmp.eq.s32.totalorder %s19, 1
    %p58 = por %p56, %p57
    %p59 = scmp.ne.s32.totalorder %s50, %s51
    %p60 = scmp.eq.s32.totalorder %s19, 0
    %p61 = por %p59, %p60
    %p62 = scmp.ne.s32.totalorder %s50, %s51
    %p63 = scmp.eq.s32.totalorder %s20, 1
    %p64 = por %p62, %p63
    %p66 = scmp.ne.s32.totalorder %s51, %s65
    %p67 = scmp.eq.s32.totalorder %s20, 0
    %p68 = por %p66, %p67
    %s70 = sadd.s32 %s69, 1
    %p73 = scmp.eq.s32.totalorder %s14, 1
    %p74 = scmp.ne.s32.totalorder %s69, %s71
    %p75 = scmp.eq.s32.totalorder %s14, 0
    %p76 = por %p74, %p75
    %p77 = scmp.ne.s32.totalorder %s69, %s71
    %p78 = scmp.eq.s32.totalorder %s19, 1
    %p79 = por %p77, %p78
    %p80 = scmp.ne.s32.totalorder %s71, %s72
    %p81 = scmp.eq.s32.totalorder %s19, 0
    %p82 = por %p80, %p81
    %p83 = scmp.ne.s32.totalorder %s71, %s72
    %p84 = scmp.eq.s32.totalorder %s20, 1
    %p85 = por %p83, %p84
    %p87 = scmp.ne.s32.totalorder %s72, %s86
    %p88 = scmp.eq.s32.totalorder %s20, 0
    %p89 = por %p87, %p88
    %s91 = sadd.s32 %s90, 1
    %p94 = scmp.eq.s32.totalorder %s14, 1
    %p95 = scmp.ne.s32.totalorder %s90, %s92
    %p96 = scmp.eq.s32.totalorder %s14, 0
    %p97 = por %p95, %p96
    %p98 = scmp.ne.s32.totalorder %s90, %s92
    %p99 = scmp.eq.s32.totalorder %s19, 1
    %p100 = por %p98, %p99
    %p101 = scmp.ne.s32.totalorder %s92, %s93
    %p102 = scmp.eq.s32.totalorder %s19, 0
    %p103 = por %p101, %p102
    %p104 = scmp.ne.s32.totalorder %s92, %s93
    %p105 = scmp.eq.s32.totalorder %s20, 1
    %p106 = por %p104, %p105
    %p108 = scmp.ne.s32.totalorder %s93, %s107
    %p109 = scmp.eq.s32.totalorder %s20, 0
    %p110 = por %p108, %p109
    %s112 = sadd.s32 %s111, 1
    %p115 = scmp.eq.s32.totalorder %s14, 1
    %p116 = scmp.ne.s32.totalorder %s111, %s113
    %p117 = scmp.eq.s32.totalorder %s14, 0
    %p118 = por %p116, %p117
    %p119 = scmp.ne.s32.totalorder %s111, %s113
    %p120 = scmp.eq.s32.totalorder %s19, 1
    %p121 = por %p119, %p120
    %p122 = scmp.ne.s32.totalorder %s113, %s114
    %p123 = scmp.eq.s32.totalorder %s19, 0
    %p124 = por %p122, %p123
    %p125 = scmp.ne.s32.totalorder %s113, %s114
    %p126 = scmp.eq.s32.totalorder %s20, 1
    %p127 = por %p125, %p126
    %p129 = scmp.ne.s32.totalorder %s114, %s128
    %p130 = scmp.eq.s32.totalorder %s20, 0
    %p131 = por %p129, %p130
    %s132 = ssub.s32 %s14, %s21
    %p133 = scmp.eq.s32.totalorder %s132, 0
    %s135 = sadd.s32 %s134, 1
    %s136 = scalar_select %p133, %s134, %s135
    %p139 = pneg %p133
    %p140 = scmp.eq.s32.totalorder %s14, 1
    %p141 = por %p139, %p140
    %p142 = scmp.ne.s32.totalorder %s134, %s137
    %p143 = scmp.eq.s32.totalorder %s14, 0
    %p144 = por %p142, %p143
    %p145 = scmp.ne.s32.totalorder %s134, %s137
    %p146 = scmp.eq.s32.totalorder %s19, 1
    %p147 = por %p145, %p146
    %p148 = scmp.ne.s32.totalorder %s137, %s138
    %p149 = scmp.eq.s32.totalorder %s19, 0
    %p150 = por %p148, %p149
    %p151 = scmp.ne.s32.totalorder %s137, %s138
    %p152 = scmp.eq.s32.totalorder %s20, 1
    %p153 = por %p151, %p152
    %p155 = scmp.ne.s32.totalorder %s138, %s154
    %p156 = scmp.eq.s32.totalorder %s20, 0
    %p157 = por %p155, %p156
    %s158 = ssub.s32 %s14, %s21
    %p159 = scmp.eq.s32.totalorder %s158, 0
    %s161 = sadd.s32 %s160, 1
    %s162 = scalar_select %p159, %s160, %s161
    %p165 = pneg %p159
    %p166 = scmp.eq.s32.totalorder %s14, 1
    %p167 = por %p165, %p166
    %p168 = scmp.ne.s32.totalorder %s160, %s163
    %p169 = scmp.eq.s32.totalorder %s14, 0
    %p170 = por %p168, %p169
    %p171 = scmp.ne.s32.totalorder %s160, %s163
    %p172 = scmp.eq.s32.totalorder %s19, 1
    %p173 = por %p171, %p172
    %p174 = scmp.ne.s32.totalorder %s163, %s164
    %p175 = scmp.eq.s32.totalorder %s19, 0
    %p176 = por %p174, %p175
    %p177 = scmp.ne.s32.totalorder %s163, %s164
    %p178 = scmp.eq.s32.totalorder %s20, 1
    %p179 = por %p177, %p178
    %p181 = scmp.ne.s32.totalorder %s164, %s180
    %p182 = scmp.eq.s32.totalorder %s20, 0
    %p183 = por %p181, %p182
    %s184 = ssub.s32 %s14, %s21
    %p185 = scmp.eq.s32.totalorder %s184, 0
    %s187 = sadd.s32 %s186, 1
    %s188 = scalar_select %p185, %s186, %s187
    %p191 = pneg %p185
    %p192 = scmp.eq.s32.totalorder %s14, 1
    %p193 = por %p191, %p192
    %p194 = scmp.ne.s32.totalorder %s186, %s189
    %p195 = scmp.eq.s32.totalorder %s14, 0
    %p196 = por %p194, %p195
    %p197 = scmp.ne.s32.totalorder %s186, %s189
    %p198 = scmp.eq.s32.totalorder %s19, 1
    %p199 = por %p197, %p198
    %p200 = scmp.ne.s32.totalorder %s189, %s190
    %p201 = scmp.eq.s32.totalorder %s19, 0
    %p202 = por %p200, %p201
    %p203 = scmp.ne.s32.totalorder %s189, %s190
    %p204 = scmp.eq.s32.totalorder %s20, 1
    %p205 = por %p203, %p204
    %p207 = scmp.ne.s32.totalorder %s190, %s206
    %p208 = scmp.eq.s32.totalorder %s20, 0
    %p209 = por %p207, %p208
    %p210 = scmp.le.s32.totalorder 1, %s14
    %p211 = scmp.lt.s32.totalorder %s14, 3
    %p212 = pnand %p210, %p211
    %p213 = pneg %p212
    // Predicated region
    $region9: #{resblock_forward.4} parent=5 // pred_check
      _
    $region10: #{resblock_forward.4} parent=5 // pred_check_branch
      %215 = sbr.rel (%p212) target = $region12
    $region11: #{resblock_forward.4} parent=5 // pred_region
      %s216 = ssub.s32 %s14, 1
      // Predicated region
      $region13: #{resblock_forward.4} parent=11 // pred_check
        %p217 = pneg %p61
      $region14: #{resblock_forward.4} parent=11 // pred_check_branch
        %219 = sbr.rel (%p217) target = $region16
      $region15: #{resblock_forward.4} parent=11 // pred_region
        _
      $region16: #{resblock_forward.4} parent=11 // pred_fallthru
        _
      // Predicated region
      $region17: #{resblock_forward.4} parent=11 // pred_check
        %p220 = pneg %p82
      $region18: #{resblock_forward.4} parent=11 // pred_check_branch
        %222 = sbr.rel (%p220) target = $region20
      $region19: #{resblock_forward.4} parent=11 // pred_region
        _
      $region20: #{resblock_forward.4} parent=11 // pred_fallthru
        _
      // Predicated region
      $region21: #{resblock_forward.4} parent=11 // pred_check
        %p223 = pneg %p103
      $region22: #{resblock_forward.4} parent=11 // pred_check_branch
        %225 = sbr.rel (%p223) target = $region24
      $region23: #{resblock_forward.4} parent=11 // pred_region
        _
      $region24: #{resblock_forward.4} parent=11 // pred_fallthru
        _
      // Predicated region
      $region25: #{resblock_forward.4} parent=11 // pred_check
        %p226 = pneg %p124
      $region26: #{resblock_forward.4} parent=11 // pred_check_branch
        %228 = sbr.rel (%p226) target = $region28
      $region27: #{resblock_forward.4} parent=11 // pred_region
        _
      $region28: #{resblock_forward.4} parent=11 // pred_fallthru
        _
    $region12: #{resblock_forward.4} parent=5 // pred_fallthru
      _
    %p229 = scmp.lt.s32.totalorder %s14, 2
    // Predicated region
    $region29: #{resblock_forward.4} parent=5 // pred_check
      %p230 = pneg %p229
    $region30: #{resblock_forward.4} parent=5 // pred_check_branch
      %232 = sbr.rel (%p230) target = $region32
    $region31: #{resblock_forward.4} parent=5 // pred_region
      // Predicated region
      $region33: #{resblock_forward.4} parent=31 // pred_check
        %p233 = pneg %p34
      $region34: #{resblock_forward.4} parent=31 // pred_check_branch
        %235 = sbr.rel (%p233) target = $region36
      $region35: #{resblock_forward.4} parent=31 // pred_region
        %p236 = scmp.lt.s32.totalorder %s14, 1
        %s237 = scalar_select %p236, %s14, 1
        %s238 = smul.addr %s237, 36
        %s239 = smul.addr %s238, 4
        %s240 = scalar_lea.vmem %s0, %s239
      $region36: #{resblock_forward.4} parent=31 // pred_fallthru
        _
    $region32: #{resblock_forward.4} parent=5 // pred_fallthru
      _
    %p241 = scmp.le.s32.totalorder 1, %s14
    %p242 = scmp.lt.s32.totalorder %s14, 3
    %p243 = pnand %p241, %p242
    %p244 = pneg %p243
    // Predicated region
    $region37: #{resblock_forward.4} parent=5 // pred_check
      _
    $region38: #{resblock_forward.4} parent=5 // pred_check_branch
      %246 = sbr.rel (%p243) target = $region40
    $region39: #{resblock_forward.4} parent=5 // pred_region
      %s247 = ssub.s32 %s14, 1
      %p248 = scmp.lt.s32.totalorder %s19, 1
      %s249 = scalar_select %p248, %s19, 1
      %s250 = smul.addr %s249, 36
      %s251 = smul.addr %s250, 4
      %s252 = scalar_lea.vmem %s0, %s251
      %p253 = pneg %p40
      %p254 = pneg %p37
      %p255 = pneg %p61
      %p256 = pneg %p58
      %p257 = pneg %p82
      %p258 = pneg %p79
      %p259 = pneg %p103
      %p260 = pneg %p100
      %p261 = pneg %p124
      %p262 = pneg %p121
      %p263 = pneg %p150
      %p264 = pneg %p147
      %p265 = scmp.lt.s32.totalorder %s19, 1
      %s266 = scalar_select %p265, %s19, 1
      %s267 = smul.addr %s266, 36
      %s268 = smul.addr %s267, 4
      %s269 = scalar_lea.vmem %s5, %s268
      %p270 = pneg %p176
      %p271 = pneg %p173
      %p272 = scmp.lt.s32.totalorder %s19, 1
      %s273 = scalar_select %p272, %s19, 1
      %s274 = scalar_lea.vmem %s6, %s273
      %p275 = pneg %p202
      %p276 = pneg %p199
      %p277 = scmp.lt.s32.totalorder %s19, 1
      %s278 = scalar_select %p277, %s19, 1
      %s279 = scalar_lea.vmem %s7, %s278
      %p280 = scmp.lt.s32.totalorder %s19, 1
      %s281 = scalar_select %p280, %s19, 1
      %s282 = smul.addr %s281, 36
      %s283 = smul.addr %s282, 4
      %s284 = scalar_lea.vmem %s0, %s283
      %p285 = scmp.lt.s32.totalorder %s19, 1
      %s286 = scalar_select %p285, %s19, 1
      %s287 = smul.addr %s286, 36
      %s288 = smul.addr %s287, 4
      %s289 = scalar_lea.vmem %s5, %s288
      %p290 = scmp.lt.s32.totalorder %s19, 1
      %s291 = scalar_select %p290, %s19, 1
      %s292 = scalar_lea.vmem %s6, %s291
      %p293 = scmp.lt.s32.totalorder %s19, 1
      %s294 = scalar_select %p293, %s19, 1
      %s295 = scalar_lea.vmem %s7, %s294
      %v297 = vld [vmem:[%s1] sm:$0xff]
      %v298 = vld [vmem:[%s1 + $0x8] sm:$0xff]
      %v299 = vld [vmem:[%s1 + $0x10] sm:$0xff]
      %v300 = vld [vmem:[%s1 + $0x18] sm:$0xff]
      %v301 = vld [vmem:[%s1 + $0x20] sm:$0xff]
      %v302 = vld [vmem:[%s1 + $0x28] sm:$0xff]
      %v303 = vld [vmem:[%s1 + $0x30] sm:$0xff]
      %v304 = vld [vmem:[%s1 + $0x38] sm:$0xff]
      %v305 = vld [vmem:[%s1 + $0x40] sm:$0xff]
      %v306 = vld [vmem:[%s1 + $0x48] sm:$0xff]
      %v307 = vld [vmem:[%s1 + $0x50] sm:$0xff]
      %v308 = vld [vmem:[%s1 + $0x58] sm:$0xff]
      %v309 = vld [vmem:[%s1 + $0x60] sm:$0xff]
      %v310 = vld [vmem:[%s1 + $0x68] sm:$0xff]
      %v311 = vld [vmem:[%s1 + $0x70] sm:$0xff]
      %v312 = vld [vmem:[%s1 + $0x78] sm:$0xff]
      %v313 = vld [vmem:[%s1 + $0x80] sm:$0xff]
      %v314 = vld [vmem:[%s1 + $0x88] sm:$0xff]
      %v315 = vld [vmem:[%s1 + $0x90] sm:$0xff]
      %v316 = vld [vmem:[%s1 + $0x98] sm:$0xff]
      %v317 = vld [vmem:[%s1 + $0xa0] sm:$0xff]
      %v318 = vld [vmem:[%s1 + $0xa8] sm:$0xff]
      %v319 = vld [vmem:[%s1 + $0xb0] sm:$0xff]
      %v320 = vld [vmem:[%s1 + $0xb8] sm:$0xff]
      %v321 = vld [vmem:[%s1 + $0xc0] sm:$0xff]
      %v322 = vld [vmem:[%s1 + $0xc8] sm:$0xff]
      %v323 = vld [vmem:[%s1 + $0xd0] sm:$0xff]
      %v324 = vld [vmem:[%s1 + $0xd8] sm:$0xff]
      %v325 = vld [vmem:[%s1 + $0xe0] sm:$0xff]
      %v326 = vld [vmem:[%s1 + $0xe8] sm:$0xff]
      %v327 = vld [vmem:[%s1 + $0xf0] sm:$0xff]
      %v328 = vld [vmem:[%s1 + $0xf8] sm:$0xff]
      %v329 = vld [vmem:[%s1 + $0x100] sm:$0xff]
      %v330 = vld [vmem:[%s1 + $0x108] sm:$0xff]
      %v331 = vld [vmem:[%s1 + $0x110] sm:$0xff]
      %v332 = vld [vmem:[%s1 + $0x118] sm:$0xff]
      %vm333 = vcmp.gt.f32.partialorder %v297, 0.5
      %vm334 = vcmp.gt.f32.partialorder %v298, 0.5
      %vm335 = vcmp.gt.f32.partialorder %v299, 0.5
      %vm336 = vcmp.gt.f32.partialorder %v300, 0.5
      %vm337 = vcmp.gt.f32.partialorder %v301, 0.5
      %vm338 = vcmp.gt.f32.partialorder %v302, 0.5
      %vm339 = vcmp.gt.f32.partialorder %v303, 0.5
      %vm340 = vcmp.gt.f32.partialorder %v304, 0.5
      %vm341 = vcmp.gt.f32.partialorder %v305, 0.5
      %vm342 = vcmp.gt.f32.partialorder %v306, 0.5
      %vm343 = vcmp.gt.f32.partialorder %v307, 0.5
      %vm344 = vcmp.gt.f32.partialorder %v308, 0.5
      %vm345 = vcmp.gt.f32.partialorder %v309, 0.5
      %vm346 = vcmp.gt.f32.partialorder %v310, 0.5
      %vm347 = vcmp.gt.f32.partialorder %v311, 0.5
      %vm348 = vcmp.gt.f32.partialorder %v312, 0.5
      %vm349 = vcmp.gt.f32.partialorder %v313, 0.5
      %vm350 = vcmp.gt.f32.partialorder %v314, 0.5
      %vm351 = vcmp.gt.f32.partialorder %v315, 0.5
      %vm352 = vcmp.gt.f32.partialorder %v316, 0.5
      %vm353 = vcmp.gt.f32.partialorder %v317, 0.5
      %vm354 = vcmp.gt.f32.partialorder %v318, 0.5
      %vm355 = vcmp.gt.f32.partialorder %v319, 0.5
      %vm356 = vcmp.gt.f32.partialorder %v320, 0.5
      %vm357 = vcmp.gt.f32.partialorder %v321, 0.5
      %vm358 = vcmp.gt.f32.partialorder %v322, 0.5
      %vm359 = vcmp.gt.f32.partialorder %v323, 0.5
      %vm360 = vcmp.gt.f32.partialorder %v324, 0.5
      %vm361 = vcmp.gt.f32.partialorder %v325, 0.5
      %vm362 = vcmp.gt.f32.partialorder %v326, 0.5
      %vm363 = vcmp.gt.f32.partialorder %v327, 0.5
      %vm364 = vcmp.gt.f32.partialorder %v328, 0.5
      %vm365 = vcmp.gt.f32.partialorder %v329, 0.5
      %vm366 = vcmp.gt.f32.partialorder %v330, 0.5
      %vm367 = vcmp.gt.f32.partialorder %v331, 0.5
      %vm368 = vcmp.gt.f32.partialorder %v332, 0.5
      %v369 = vld [vmem:[%s2] sm:$0x1]
      %v370 = vld [vmem:[%s3] sm:$0x1]
      %371 = vst [vmem:[#allocation2] sm:$0xff] 0
      %372 = vst [vmem:[#allocation2 + $0x8] sm:$0xff] 0
      %373 = vst [vmem:[#allocation2 + $0xa0] sm:$0xff] 0
      %374 = vst [vmem:[#allocation2 + $0xa8] sm:$0xff] 0
      %v375 = vld [vmem:[%s284] sm:$0xf]
      %v376 = vld [vmem:[%s284 + $0x4] sm:$0xf]
      %v377 = vld [vmem:[%s284 + $0x8] sm:$0xf]
      %v378 = vld [vmem:[%s284 + $0xc] sm:$0xf]
      %v379 = vld [vmem:[%s284 + $0x10] sm:$0xf]
      %v380 = vld [vmem:[%s284 + $0x14] sm:$0xf]
      %v381 = vld [vmem:[%s284 + $0x18] sm:$0xf]
      %v382 = vld [vmem:[%s284 + $0x1c] sm:$0xf]
      %v383 = vld [vmem:[%s284 + $0x20] sm:$0xf]
      %v384 = vld [vmem:[%s284 + $0x24] sm:$0xf]
      %v385 = vld [vmem:[%s284 + $0x28] sm:$0xf]
      %v386 = vld [vmem:[%s284 + $0x2c] sm:$0xf]
      %v387 = vld [vmem:[%s284 + $0x30] sm:$0xf]
      %v388 = vld [vmem:[%s284 + $0x34] sm:$0xf]
      %v389 = vld [vmem:[%s284 + $0x38] sm:$0xf]
      %v390 = vld [vmem:[%s284 + $0x3c] sm:$0xf]
      %v391 = vld [vmem:[%s284 + $0x40] sm:$0xf]
      %v392 = vld [vmem:[%s284 + $0x44] sm:$0xf]
      %v393 = vld [vmem:[%s284 + $0x48] sm:$0xf]
      %v394 = vld [vmem:[%s284 + $0x4c] sm:$0xf]
      %v395 = vld [vmem:[%s284 + $0x50] sm:$0xf]
      %v396 = vld [vmem:[%s284 + $0x54] sm:$0xf]
      %v397 = vld [vmem:[%s284 + $0x58] sm:$0xf]
      %v398 = vld [vmem:[%s284 + $0x5c] sm:$0xf]
      %v399 = vld [vmem:[%s284 + $0x60] sm:$0xf]
      %v400 = vld [vmem:[%s284 + $0x64] sm:$0xf]
      %v401 = vld [vmem:[%s284 + $0x68] sm:$0xf]
      %v402 = vld [vmem:[%s284 + $0x6c] sm:$0xf]
      %v403 = vld [vmem:[%s284 + $0x70] sm:$0xf]
      %v404 = vld [vmem:[%s284 + $0x74] sm:$0xf]
      %v405 = vld [vmem:[%s284 + $0x78] sm:$0xf]
      %v406 = vld [vmem:[%s284 + $0x7c] sm:$0xf]
      %v407 = vld [vmem:[%s284 + $0x80] sm:$0xf]
      %v408 = vld [vmem:[%s284 + $0x84] sm:$0xf]
      %v409 = vld [vmem:[%s284 + $0x88] sm:$0xf]
      %v410 = vld [vmem:[%s284 + $0x8c] sm:$0xf]
      %v411 = vunpack.c.l.bf16 %v375
      %v412 = vunpack.c.l.bf16 %v376
      %v413 = vunpack.c.l.bf16 %v377
      %v414 = vunpack.c.l.bf16 %v378
      %v415 = vunpack.c.l.bf16 %v379
      %v416 = vunpack.c.l.bf16 %v380
      %v417 = vunpack.c.l.bf16 %v381
      %v418 = vunpack.c.l.bf16 %v382
      %v419 = vunpack.c.l.bf16 %v383
      %v420 = vunpack.c.l.bf16 %v384
      %v421 = vunpack.c.l.bf16 %v385
      %v422 = vunpack.c.l.bf16 %v386
      %v423 = vunpack.c.l.bf16 %v387
      %v424 = vunpack.c.l.bf16 %v388
      %v425 = vunpack.c.l.bf16 %v389
      %v426 = vunpack.c.l.bf16 %v390
      %v427 = vunpack.c.l.bf16 %v391
      %v428 = vunpack.c.l.bf16 %v392
      %v429 = vunpack.c.l.bf16 %v393
      %v430 = vunpack.c.l.bf16 %v394
      %v431 = vunpack.c.l.bf16 %v395
      %v432 = vunpack.c.l.bf16 %v396
      %v433 = vunpack.c.l.bf16 %v397
      %v434 = vunpack.c.l.bf16 %v398
      %v435 = vunpack.c.l.bf16 %v399
      %v436 = vunpack.c.l.bf16 %v400
      %v437 = vunpack.c.l.bf16 %v401
      %v438 = vunpack.c.l.bf16 %v402
      %v439 = vunpack.c.l.bf16 %v403
      %v440 = vunpack.c.l.bf16 %v404
      %v441 = vunpack.c.l.bf16 %v405
      %v442 = vunpack.c.l.bf16 %v406
      %v443 = vunpack.c.l.bf16 %v407
      %v444 = vunpack.c.l.bf16 %v408
      %v445 = vunpack.c.l.bf16 %v409
      %v446 = vunpack.c.l.bf16 %v410
      %v448 = vlaneseq
      %v449 = vshrl.u32 %v448, 7
      %v450 = vsub.s32 0, %v449
      %v451 = vrot.slane %v369, %v450
      %v453 = vmul.f32 %v411, %v451
      %v454 = vmul.f32 %v412, %v451
      %v455 = vmul.f32 %v413, %v451
      %v456 = vmul.f32 %v414, %v451
      %v457 = vmul.f32 %v415, %v451
      %v458 = vmul.f32 %v416, %v451
      %v459 = vmul.f32 %v417, %v451
      %v460 = vmul.f32 %v418, %v451
      %v461 = vmul.f32 %v419, %v451
      %v462 = vmul.f32 %v420, %v451
      %v463 = vmul.f32 %v421, %v451
      %v464 = vmul.f32 %v422, %v451
      %v465 = vmul.f32 %v423, %v451
      %v466 = vmul.f32 %v424, %v451
      %v467 = vmul.f32 %v425, %v451
      %v468 = vmul.f32 %v426, %v451
      %v469 = vmul.f32 %v427, %v451
      %v470 = vmul.f32 %v428, %v451
      %v471 = vmul.f32 %v429, %v451
      %v472 = vmul.f32 %v430, %v451
      %v473 = vmul.f32 %v431, %v451
      %v474 = vmul.f32 %v432, %v451
      %v475 = vmul.f32 %v433, %v451
      %v476 = vmul.f32 %v434, %v451
      %v477 = vmul.f32 %v435, %v451
      %v478 = vmul.f32 %v436, %v451
      %v479 = vmul.f32 %v437, %v451
      %v480 = vmul.f32 %v438, %v451
      %v481 = vmul.f32 %v439, %v451
      %v482 = vmul.f32 %v440, %v451
      %v483 = vmul.f32 %v441, %v451
      %v484 = vmul.f32 %v442, %v451
      %v485 = vmul.f32 %v443, %v451
      %v486 = vmul.f32 %v444, %v451
      %v487 = vmul.f32 %v445, %v451
      %v488 = vmul.f32 %v446, %v451
      %v490 = vlaneseq
      %v491 = vshrl.u32 %v490, 7
      %v492 = vsub.s32 0, %v491
      %v493 = vrot.slane %v370, %v492
      %v495 = vadd.f32 %v453, %v493
      %v496 = vadd.f32 %v454, %v493
      %v497 = vadd.f32 %v455, %v493
      %v498 = vadd.f32 %v456, %v493
      %v499 = vadd.f32 %v457, %v493
      %v500 = vadd.f32 %v458, %v493
      %v501 = vadd.f32 %v459, %v493
      %v502 = vadd.f32 %v460, %v493
      %v503 = vadd.f32 %v461, %v493
      %v504 = vadd.f32 %v462, %v493
      %v505 = vadd.f32 %v463, %v493
      %v506 = vadd.f32 %v464, %v493
      %v507 = vadd.f32 %v465, %v493
      %v508 = vadd.f32 %v466, %v493
      %v509 = vadd.f32 %v467, %v493
      %v510 = vadd.f32 %v468, %v493
      %v511 = vadd.f32 %v469, %v493
      %v512 = vadd.f32 %v470, %v493
      %v513 = vadd.f32 %v471, %v493
      %v514 = vadd.f32 %v472, %v493
      %v515 = vadd.f32 %v473, %v493
      %v516 = vadd.f32 %v474, %v493
      %v517 = vadd.f32 %v475, %v493
      %v518 = vadd.f32 %v476, %v493
      %v519 = vadd.f32 %v477, %v493
      %v520 = vadd.f32 %v478, %v493
      %v521 = vadd.f32 %v479, %v493
      %v522 = vadd.f32 %v480, %v493
      %v523 = vadd.f32 %v481, %v493
      %v524 = vadd.f32 %v482, %v493
      %v525 = vadd.f32 %v483, %v493
      %v526 = vadd.f32 %v484, %v493
      %v527 = vadd.f32 %v485, %v493
      %v528 = vadd.f32 %v486, %v493
      %v529 = vadd.f32 %v487, %v493
      %v530 = vadd.f32 %v488, %v493
      %v531 = vmax.f32 %v495, 0.0
      %v532 = vmax.f32 %v496, 0.0
      %v533 = vmax.f32 %v497, 0.0
      %v534 = vmax.f32 %v498, 0.0
      %v535 = vmax.f32 %v499, 0.0
      %v536 = vmax.f32 %v500, 0.0
      %v537 = vmax.f32 %v501, 0.0
      %v538 = vmax.f32 %v502, 0.0
      %v539 = vmax.f32 %v503, 0.0
      %v540 = vmax.f32 %v504, 0.0
      %v541 = vmax.f32 %v505, 0.0
      %v542 = vmax.f32 %v506, 0.0
      %v543 = vmax.f32 %v507, 0.0
      %v544 = vmax.f32 %v508, 0.0
      %v545 = vmax.f32 %v509, 0.0
      %v546 = vmax.f32 %v510, 0.0
      %v547 = vmax.f32 %v511, 0.0
      %v548 = vmax.f32 %v512, 0.0
      %v549 = vmax.f32 %v513, 0.0
      %v550 = vmax.f32 %v514, 0.0
      %v551 = vmax.f32 %v515, 0.0
      %v552 = vmax.f32 %v516, 0.0
      %v553 = vmax.f32 %v517, 0.0
      %v554 = vmax.f32 %v518, 0.0
      %v555 = vmax.f32 %v519, 0.0
      %v556 = vmax.f32 %v520, 0.0
      %v557 = vmax.f32 %v521, 0.0
      %v558 = vmax.f32 %v522, 0.0
      %v559 = vmax.f32 %v523, 0.0
      %v560 = vmax.f32 %v524, 0.0
      %v561 = vmax.f32 %v525, 0.0
      %v562 = vmax.f32 %v526, 0.0
      %v563 = vmax.f32 %v527, 0.0
      %v564 = vmax.f32 %v528, 0.0
      %v565 = vmax.f32 %v529, 0.0
      %v566 = vmax.f32 %v530, 0.0
      %v567 = vsel %vm333, 1, 0
      %v568 = vsel %vm334, 1, 0
      %v569 = vsel %vm335, 1, 0
      %v570 = vsel %vm336, 1, 0
      %v571 = vsel %vm337, 1, 0
      %v572 = vsel %vm338, 1, 0
      %v573 = vsel %vm339, 1, 0
      %v574 = vsel %vm340, 1, 0
      %v575 = vsel %vm341, 1, 0
      %v576 = vsel %vm342, 1, 0
      %v577 = vsel %vm343, 1, 0
      %v578 = vsel %vm344, 1, 0
      %v579 = vsel %vm345, 1, 0
      %v580 = vsel %vm346, 1, 0
      %v581 = vsel %vm347, 1, 0
      %v582 = vsel %vm348, 1, 0
      %v583 = vsel %vm349, 1, 0
      %v584 = vsel %vm350, 1, 0
      %v585 = vsel %vm351, 1, 0
      %v586 = vsel %vm352, 1, 0
      %v587 = vsel %vm353, 1, 0
      %v588 = vsel %vm354, 1, 0
      %v589 = vsel %vm355, 1, 0
      %v590 = vsel %vm356, 1, 0
      %v591 = vsel %vm357, 1, 0
      %v592 = vsel %vm358, 1, 0
      %v593 = vsel %vm359, 1, 0
      %v594 = vsel %vm360, 1, 0
      %v595 = vsel %vm361, 1, 0
      %v596 = vsel %vm362, 1, 0
      %v597 = vsel %vm363, 1, 0
      %v598 = vsel %vm364, 1, 0
      %v599 = vsel %vm365, 1, 0
      %v600 = vsel %vm366, 1, 0
      %v601 = vsel %vm367, 1, 0
      %v602 = vsel %vm368, 1, 0
      %603 = vset.pattern.permute.xlu0 0
      %604 = vperm.xlu0 %603, %v567
      %v605 = vpop.permute.xlu0 %604
      %606 = vset.pattern.permute.xlu0 0
      %607 = vperm.xlu0 %606, %v568
      %v608 = vpop.permute.xlu0 %607
      %609 = vset.pattern.permute.xlu0 0
      %610 = vperm.xlu0 %609, %v569
      %v611 = vpop.permute.xlu0 %610
      %612 = vset.pattern.permute.xlu0 0
      %613 = vperm.xlu0 %612, %v570
      %v614 = vpop.permute.xlu0 %613
      %615 = vset.pattern.permute.xlu0 0
      %616 = vperm.xlu0 %615, %v571
      %v617 = vpop.permute.xlu0 %616
      %618 = vset.pattern.permute.xlu0 0
      %619 = vperm.xlu0 %618, %v572
      %v620 = vpop.permute.xlu0 %619
      %621 = vset.pattern.permute.xlu0 0
      %622 = vperm.xlu0 %621, %v573
      %v623 = vpop.permute.xlu0 %622
      %624 = vset.pattern.permute.xlu0 0
      %625 = vperm.xlu0 %624, %v574
      %v626 = vpop.permute.xlu0 %625
      %627 = vset.pattern.permute.xlu0 0
      %628 = vperm.xlu0 %627, %v575
      %v629 = vpop.permute.xlu0 %628
      %630 = vset.pattern.permute.xlu0 0
      %631 = vperm.xlu0 %630, %v576
      %v632 = vpop.permute.xlu0 %631
      %633 = vset.pattern.permute.xlu0 0
      %634 = vperm.xlu0 %633, %v577
      %v635 = vpop.permute.xlu0 %634
      %636 = vset.pattern.permute.xlu0 0
      %637 = vperm.xlu0 %636, %v578
      %v638 = vpop.permute.xlu0 %637
      %639 = vset.pattern.permute.xlu0 0
      %640 = vperm.xlu0 %639, %v579
      %v641 = vpop.permute.xlu0 %640
      %642 = vset.pattern.permute.xlu0 0
      %643 = vperm.xlu0 %642, %v580
      %v644 = vpop.permute.xlu0 %643
      %645 = vset.pattern.permute.xlu0 0
      %646 = vperm.xlu0 %645, %v581
      %v647 = vpop.permute.xlu0 %646
      %648 = vset.pattern.permute.xlu0 0
      %649 = vperm.xlu0 %648, %v582
      %v650 = vpop.permute.xlu0 %649
      %651 = vset.pattern.permute.xlu0 0
      %652 = vperm.xlu0 %651, %v583
      %v653 = vpop.permute.xlu0 %652
      %654 = vset.pattern.permute.xlu0 0
      %655 = vperm.xlu0 %654, %v584
      %v656 = vpop.permute.xlu0 %655
      %657 = vset.pattern.permute.xlu0 0
      %658 = vperm.xlu0 %657, %v585
      %v659 = vpop.permute.xlu0 %658
      %660 = vset.pattern.permute.xlu0 0
      %661 = vperm.xlu0 %660, %v586
      %v662 = vpop.permute.xlu0 %661
      %663 = vset.pattern.permute.xlu0 0
      %664 = vperm.xlu0 %663, %v587
      %v665 = vpop.permute.xlu0 %664
      %666 = vset.pattern.permute.xlu0 0
      %667 = vperm.xlu0 %666, %v588
      %v668 = vpop.permute.xlu0 %667
      %669 = vset.pattern.permute.xlu0 0
      %670 = vperm.xlu0 %669, %v589
      %v671 = vpop.permute.xlu0 %670
      %672 = vset.pattern.permute.xlu0 0
      %673 = vperm.xlu0 %672, %v590
      %v674 = vpop.permute.xlu0 %673
      %675 = vset.pattern.permute.xlu0 0
      %676 = vperm.xlu0 %675, %v591
      %v677 = vpop.permute.xlu0 %676
      %678 = vset.pattern.permute.xlu0 0
      %679 = vperm.xlu0 %678, %v592
      %v680 = vpop.permute.xlu0 %679
      %681 = vset.pattern.permute.xlu0 0
      %682 = vperm.xlu0 %681, %v593
      %v683 = vpop.permute.xlu0 %682
      %684 = vset.pattern.permute.xlu0 0
      %685 = vperm.xlu0 %684, %v594
      %v686 = vpop.permute.xlu0 %685
      %687 = vset.pattern.permute.xlu0 0
      %688 = vperm.xlu0 %687, %v595
      %v689 = vpop.permute.xlu0 %688
      %690 = vset.pattern.permute.xlu0 0
      %691 = vperm.xlu0 %690, %v596
      %v692 = vpop.permute.xlu0 %691
      %693 = vset.pattern.permute.xlu0 0
      %694 = vperm.xlu0 %693, %v597
      %v695 = vpop.permute.xlu0 %694
      %696 = vset.pattern.permute.xlu0 0
      %697 = vperm.xlu0 %696, %v598
      %v698 = vpop.permute.xlu0 %697
      %699 = vset.pattern.permute.xlu0 0
      %700 = vperm.xlu0 %699, %v599
      %v701 = vpop.permute.xlu0 %700
      %702 = vset.pattern.permute.xlu0 0
      %703 = vperm.xlu0 %702, %v600
      %v704 = vpop.permute.xlu0 %703
      %705 = vset.pattern.permute.xlu0 0
      %706 = vperm.xlu0 %705, %v601
      %v707 = vpop.permute.xlu0 %706
      %708 = vset.pattern.permute.xlu0 0
      %709 = vperm.xlu0 %708, %v602
      %v710 = vpop.permute.xlu0 %709
      %vm711 = vcmp.eq.s32.totalorder %v605, 1
      %vm712 = vcmp.eq.s32.totalorder %v608, 1
      %vm713 = vcmp.eq.s32.totalorder %v611, 1
      %vm714 = vcmp.eq.s32.totalorder %v614, 1
      %vm715 = vcmp.eq.s32.totalorder %v617, 1
      %vm716 = vcmp.eq.s32.totalorder %v620, 1
      %vm717 = vcmp.eq.s32.totalorder %v623, 1
      %vm718 = vcmp.eq.s32.totalorder %v626, 1
      %vm719 = vcmp.eq.s32.totalorder %v629, 1
      %vm720 = vcmp.eq.s32.totalorder %v632, 1
      %vm721 = vcmp.eq.s32.totalorder %v635, 1
      %vm722 = vcmp.eq.s32.totalorder %v638, 1
      %vm723 = vcmp.eq.s32.totalorder %v641, 1
      %vm724 = vcmp.eq.s32.totalorder %v644, 1
      %vm725 = vcmp.eq.s32.totalorder %v647, 1
      %vm726 = vcmp.eq.s32.totalorder %v650, 1
      %vm727 = vcmp.eq.s32.totalorder %v653, 1
      %vm728 = vcmp.eq.s32.totalorder %v656, 1
      %vm729 = vcmp.eq.s32.totalorder %v659, 1
      %vm730 = vcmp.eq.s32.totalorder %v662, 1
      %vm731 = vcmp.eq.s32.totalorder %v665, 1
      %vm732 = vcmp.eq.s32.totalorder %v668, 1
      %vm733 = vcmp.eq.s32.totalorder %v671, 1
      %vm734 = vcmp.eq.s32.totalorder %v674, 1
      %vm735 = vcmp.eq.s32.totalorder %v677, 1
      %vm736 = vcmp.eq.s32.totalorder %v680, 1
      %vm737 = vcmp.eq.s32.totalorder %v683, 1
      %vm738 = vcmp.eq.s32.totalorder %v686, 1
      %vm739 = vcmp.eq.s32.totalorder %v689, 1
      %vm740 = vcmp.eq.s32.totalorder %v692, 1
      %vm741 = vcmp.eq.s32.totalorder %v695, 1
      %vm742 = vcmp.eq.s32.totalorder %v698, 1
      %vm743 = vcmp.eq.s32.totalorder %v701, 1
      %vm744 = vcmp.eq.s32.totalorder %v704, 1
      %vm745 = vcmp.eq.s32.totalorder %v707, 1
      %vm746 = vcmp.eq.s32.totalorder %v710, 1
      %v747 = vsel %vm711, %v531, 0.0
      %v748 = vsel %vm712, %v532, 0.0
      %v749 = vsel %vm713, %v533, 0.0
      %v750 = vsel %vm714, %v534, 0.0
      %v751 = vsel %vm715, %v535, 0.0
      %v752 = vsel %vm716, %v536, 0.0
      %v753 = vsel %vm717, %v537, 0.0
      %v754 = vsel %vm718, %v538, 0.0
      %v755 = vsel %vm719, %v539, 0.0
      %v756 = vsel %vm720, %v540, 0.0
      %v757 = vsel %vm721, %v541, 0.0
      %v758 = vsel %vm722, %v542, 0.0
      %v759 = vsel %vm723, %v543, 0.0
      %v760 = vsel %vm724, %v544, 0.0
      %v761 = vsel %vm725, %v545, 0.0
      %v762 = vsel %vm726, %v546, 0.0
      %v763 = vsel %vm727, %v547, 0.0
      %v764 = vsel %vm728, %v548, 0.0
      %v765 = vsel %vm729, %v549, 0.0
      %v766 = vsel %vm730, %v550, 0.0
      %v767 = vsel %vm731, %v551, 0.0
      %v768 = vsel %vm732, %v552, 0.0
      %v769 = vsel %vm733, %v553, 0.0
      %v770 = vsel %vm734, %v554, 0.0
      %v771 = vsel %vm735, %v555, 0.0
      %v772 = vsel %vm736, %v556, 0.0
      %v773 = vsel %vm737, %v557, 0.0
      %v774 = vsel %vm738, %v558, 0.0
      %v775 = vsel %vm739, %v559, 0.0
      %v776 = vsel %vm740, %v560, 0.0
      %v777 = vsel %vm741, %v561, 0.0
      %v778 = vsel %vm742, %v562, 0.0
      %v779 = vsel %vm743, %v563, 0.0
      %v780 = vsel %vm744, %v564, 0.0
      %v781 = vsel %vm745, %v565, 0.0
      %v782 = vsel %vm746, %v566, 0.0
      %v783 = vpack.c.bf16 %v748, %v747
      %v784 = vpack.c.bf16 %v750, %v749
      %v785 = vpack.c.bf16 %v752, %v751
      %v786 = vpack.c.bf16 %v754, %v753
      %v787 = vpack.c.bf16 %v756, %v755
      %v788 = vpack.c.bf16 %v758, %v757
      %v789 = vpack.c.bf16 %v760, %v759
      %v790 = vpack.c.bf16 %v762, %v761
      %v791 = vpack.c.bf16 %v764, %v763
      %v792 = vpack.c.bf16 %v766, %v765
      %v793 = vpack.c.bf16 %v768, %v767
      %v794 = vpack.c.bf16 %v770, %v769
      %v795 = vpack.c.bf16 %v772, %v771
      %v796 = vpack.c.bf16 %v774, %v773
      %v797 = vpack.c.bf16 %v776, %v775
      %v798 = vpack.c.bf16 %v778, %v777
      %v799 = vpack.c.bf16 %v780, %v779
      %v800 = vpack.c.bf16 %v782, %v781
      %801 = vst [vmem:[#allocation2 + $0x10] sm:$0xff] %v783
      %802 = vst [vmem:[#allocation2 + $0x18] sm:$0xff] %v784
      %803 = vst [vmem:[#allocation2 + $0x20] sm:$0xff] %v785
      %804 = vst [vmem:[#allocation2 + $0x28] sm:$0xff] %v786
      %805 = vst [vmem:[#allocation2 + $0x30] sm:$0xff] %v787
      %806 = vst [vmem:[#allocation2 + $0x38] sm:$0xff] %v788
      %807 = vst [vmem:[#allocation2 + $0x40] sm:$0xff] %v789
      %808 = vst [vmem:[#allocation2 + $0x48] sm:$0xff] %v790
      %809 = vst [vmem:[#allocation2 + $0x50] sm:$0xff] %v791
      %810 = vst [vmem:[#allocation2 + $0x58] sm:$0xff] %v792
      %811 = vst [vmem:[#allocation2 + $0x60] sm:$0xff] %v793
      %812 = vst [vmem:[#allocation2 + $0x68] sm:$0xff] %v794
      %813 = vst [vmem:[#allocation2 + $0x70] sm:$0xff] %v795
      %814 = vst [vmem:[#allocation2 + $0x78] sm:$0xff] %v796
      %815 = vst [vmem:[#allocation2 + $0x80] sm:$0xff] %v797
      %816 = vst [vmem:[#allocation2 + $0x88] sm:$0xff] %v798
      %817 = vst [vmem:[#allocation2 + $0x90] sm:$0xff] %v799
      %818 = vst [vmem:[#allocation2 + $0x98] sm:$0xff] %v800
      %v819 = vld [vmem:[#allocation2] sm:$0xc0]
      %v820 = vld [vmem:[#allocation2 + $0x8] sm:$0xff]
      %v821 = vld [vmem:[#allocation2 + $0x10] sm:$0xff]
      %v822 = vld [vmem:[#allocation2 + $0x18] sm:$0xff]
      %v823 = vld [vmem:[#allocation2 + $0x20] sm:$0xff]
      %v824 = vld [vmem:[#allocation2 + $0x28] sm:$0xff]
      %v825 = vld [vmem:[#allocation2 + $0x30] sm:$0xff]
      %v826 = vld [vmem:[#allocation2 + $0x38] sm:$0xff]
      %v827 = vld [vmem:[#allocation2 + $0x40] sm:$0xff]
      %v828 = vld [vmem:[#allocation2 + $0x48] sm:$0xff]
      %v829 = vld [vmem:[#allocation2 + $0x50] sm:$0xff]
      %v830 = vld [vmem:[#allocation2 + $0x58] sm:$0xff]
      %v831 = vld [vmem:[#allocation2 + $0x60] sm:$0xff]
      %v832 = vld [vmem:[#allocation2 + $0x68] sm:$0xff]
      %v833 = vld [vmem:[#allocation2 + $0x70] sm:$0xff]
      %v834 = vld [vmem:[#allocation2 + $0x78] sm:$0xff]
      %v835 = vld [vmem:[#allocation2 + $0x80] sm:$0xff]
      %v836 = vld [vmem:[#allocation2 + $0x88] sm:$0xff]
      %v837 = vld [vmem:[#allocation2 + $0x90] sm:$0x7f]
      %v838 = vld [vmem:[%s4] sm:$0xf]
      %v839 = vld [vmem:[%s4 + $0x4] sm:$0xf]
      %v840 = vld [vmem:[%s4 + $0x8] sm:$0xf]
      %v841 = vld [vmem:[%s4 + $0xc] sm:$0xf]
      %v842 = vld [vmem:[%s4 + $0x10] sm:$0xf]
      %v843 = vld [vmem:[%s4 + $0x14] sm:$0xf]
      %v844 = vld [vmem:[%s4 + $0x18] sm:$0xf]
      %v845 = vld [vmem:[%s4 + $0x1c] sm:$0xf]
      %v846 = vld [vmem:[%s4 + $0x20] sm:$0xf]
      %v847 = vld [vmem:[%s4 + $0x24] sm:$0xf]
      %v848 = vld [vmem:[%s4 + $0x28] sm:$0xf]
      %v849 = vld [vmem:[%s4 + $0x2c] sm:$0xf]
      %v850 = vld [vmem:[%s4 + $0x30] sm:$0xf]
      %v851 = vld [vmem:[%s4 + $0x34] sm:$0xf]
      %v852 = vld [vmem:[%s4 + $0x38] sm:$0xf]
      %v853 = vld [vmem:[%s4 + $0x3c] sm:$0xf]
      %v854 = vld [vmem:[#allocation2] sm:$0x80]
      %s855 = scalar_lea.vmem %s4, 64
      %v856 = vld [vmem:[%s855] sm:$0xf]
      %v857 = vld [vmem:[%s855 + $0x4] sm:$0xf]
      %v858 = vld [vmem:[%s855 + $0x8] sm:$0xf]
      %v859 = vld [vmem:[%s855 + $0xc] sm:$0xf]
      %v860 = vld [vmem:[%s855 + $0x10] sm:$0xf]
      %v861 = vld [vmem:[%s855 + $0x14] sm:$0xf]
      %v862 = vld [vmem:[%s855 + $0x18] sm:$0xf]
      %v863 = vld [vmem:[%s855 + $0x1c] sm:$0xf]
      %v864 = vld [vmem:[%s855 + $0x20] sm:$0xf]
      %v865 = vld [vmem:[%s855 + $0x24] sm:$0xf]
      %v866 = vld [vmem:[%s855 + $0x28] sm:$0xf]
      %v867 = vld [vmem:[%s855 + $0x2c] sm:$0xf]
      %v868 = vld [vmem:[%s855 + $0x30] sm:$0xf]
      %v869 = vld [vmem:[%s855 + $0x34] sm:$0xf]
      %v870 = vld [vmem:[%s855 + $0x38] sm:$0xf]
      %v871 = vld [vmem:[%s855 + $0x3c] sm:$0xf]
      %vm891 = vcmask 1040384
      %v892 = vrot.slane %v854, 7
      %v893 = vrot.slane %v820, 7
      %v894 = vsel %vm891, %v892, %v893
      %v895 = vrot.slane %v821, 7
      %v896 = vsel %vm891, %v893, %v895
      %v897 = vrot.slane %v822, 7
      %v898 = vsel %vm891, %v895, %v897
      %v899 = vrot.slane %v823, 7
      %v900 = vsel %vm891, %v897, %v899
      %v901 = vrot.slane %v824, 7
      %v902 = vsel %vm891, %v899, %v901
      %v903 = vrot.slane %v825, 7
      %v904 = vsel %vm891, %v901, %v903
      %v905 = vrot.slane %v826, 7
      %v906 = vsel %vm891, %v903, %v905
      %v907 = vrot.slane %v827, 7
      %v908 = vsel %vm891, %v905, %v907
      %v909 = vrot.slane %v828, 7
      %v910 = vsel %vm891, %v907, %v909
      %v911 = vrot.slane %v829, 7
      %v912 = vsel %vm891, %v909, %v911
      %v913 = vrot.slane %v830, 7
      %v914 = vsel %vm891, %v911, %v913
      %v915 = vrot.slane %v831, 7
      %v916 = vsel %vm891, %v913, %v915
      %v917 = vrot.slane %v832, 7
      %v918 = vsel %vm891, %v915, %v917
      %v919 = vrot.slane %v833, 7
      %v920 = vsel %vm891, %v917, %v919
      %v921 = vrot.slane %v834, 7
      %v922 = vsel %vm891, %v919, %v921
      %v923 = vrot.slane %v835, 7
      %v924 = vsel %vm891, %v921, %v923
      %v925 = vrot.slane %v836, 7
      %v926 = vsel %vm891, %v923, %v925
      %v927 = vrot.slane %v837, 7
      %v928 = vsel %vm891, %v925, %v927
      %v963 = vunpack.c.l.b16 %v856
      %v964 = vunpack.c.l.b16 %v857
      %v965 = vunpack.c.l.b16 %v858
      %v966 = vunpack.c.l.b16 %v859
      %v967 = vunpack.c.l.b16 %v860
      %v968 = vunpack.c.l.b16 %v861
      %v969 = vunpack.c.l.b16 %v862
      %v970 = vunpack.c.l.b16 %v863
      %v971 = vunpack.c.l.b16 %v864
      %v972 = vunpack.c.l.b16 %v865
      %v973 = vunpack.c.l.b16 %v866
      %v974 = vunpack.c.l.b16 %v867
      %v975 = vunpack.c.l.b16 %v868
      %v976 = vunpack.c.l.b16 %v869
      %v977 = vunpack.c.l.b16 %v870
      %v978 = vunpack.c.l.b16 %v871
      %v979 = vpack.c.b16 %v964, %v963
      %v980 = vpack.c.b16 %v966, %v965
      %v981 = vpack.c.b16 %v968, %v967
      %v982 = vpack.c.b16 %v970, %v969
      %v983 = vpack.c.b16 %v972, %v971
      %v984 = vpack.c.b16 %v974, %v973
      %v985 = vpack.c.b16 %v976, %v975
      %v986 = vpack.c.b16 %v978, %v977
      %995 = vmatprep.subr.bf16.mxu0 0
      %996 = vmatpush1.bf16.msra.mxu0 %v979
      %997 = vmatprep.subr.bf16.mxu0 0
      %998 = vmatpush1.bf16.msra.mxu0 %v980
      %999 = vmatprep.subr.bf16.mxu0 0
      %1000 = vmatpush1.bf16.msra.mxu0 %v981
      %1001 = vmatprep.subr.bf16.mxu0 0
      %1002 = vmatpush1.bf16.msra.mxu0 %v982
      %1003 = vmatprep.subr.bf16.mxu0 0
      %1004 = vmatpush1.bf16.msra.mxu0 %v983
      %1005 = vmatprep.subr.bf16.mxu0 0
      %1006 = vmatpush1.bf16.msra.mxu0 %v984
      %1007 = vmatprep.subr.bf16.mxu0 0
      %1008 = vmatpush1.bf16.msra.mxu0 %v985
      %1009 = vmatprep.subr.bf16.mxu0 0
      %1010 = vmatpush1.bf16.msra.mxu0 %v986
      %1011 = vmatprep.subr.bf16.mxu0 0
      %1012 = vmatpush1.bf16.msra.mxu0 0
      %1013 = vmatprep.subr.bf16.mxu0 0
      %1014 = vmatpush1.bf16.msra.mxu0 0
      %1015 = vmatprep.subr.bf16.mxu0 0
      %1016 = vmatpush1.bf16.msra.mxu0 0
      %1017 = vmatprep.subr.bf16.mxu0 0
      %1018 = vmatpush1.bf16.msra.mxu0 0
      %1019 = vmatprep.subr.bf16.mxu0 0
      %1020 = vmatpush1.bf16.msra.mxu0 0
      %1021 = vmatprep.subr.bf16.mxu0 0
      %1022 = vmatpush1.bf16.msra.mxu0 0
      %1023 = vmatprep.subr.bf16.mxu0 0
      %1024 = vmatpush1.bf16.msra.mxu0 0
      %1025 = vmatprep.subr.bf16.mxu0 0
      %1026 = vmatpush1.bf16.msra.mxu0 0
      %1027 = vmatprep.mubr.bf16.mxu0 0
      %1028 = vmatmul.mubr.bf16.gmra.mrb[0].mxu0 %v894
      %v1029 = vpop.f32.mrb[0].mxu0
      %v1030 = vadd.f32 0.0, %v1029
      %v1031 = vpop.f32.mrb[0].mxu0
      %v1032 = vpop.f32.mrb[0].mxu0
      %v1033 = vadd.f32 0.0, %v1032
      %v1034 = vpop.f32.mrb[0].mxu0
      %1035 = vmatprep.mubr.bf16.mxu0 0
      %1036 = vmatmul.mubr.bf16.gmra.mrb[0].mxu0 %v896
      %v1037 = vpop.f32.mrb[0].mxu0
      %v1038 = vadd.f32 0.0, %v1037
      %v1039 = vpop.f32.mrb[0].mxu0
      %v1040 = vpop.f32.mrb[0].mxu0
      %v1041 = vadd.f32 0.0, %v1040
      %v1042 = vpop.f32.mrb[0].mxu0
      %1043 = vmatprep.mubr.bf16.mxu0 0
      %1044 = vmatmul.mubr.bf16.gmra.mrb[0].mxu0 %v898
      %v1045 = vpop.f32.mrb[0].mxu0
      %v1046 = vadd.f32 0.0, %v1045
      %v1047 = vpop.f32.mrb[0].mxu0
      %v1048 = vpop.f32.mrb[0].mxu0
      %v1049 = vadd.f32 0.0, %v1048
      %v1050 = vpop.f32.mrb[0].mxu0
      %1051 = vmatprep.mubr.bf16.mxu0 0
      %1052 = vmatmul.mubr.bf16.gmra.mrb[0].mxu0 %v900
      %v1053 = vpop.f32.mrb[0].mxu0
      %v1054 = vadd.f32 0.0, %v1053
      %v1055 = vpop.f32.mrb[0].mxu0
      %v1056 = vpop.f32.mrb[0].mxu0
      %v1057 = vadd.f32 0.0, %v1056
      %v1058 = vpop.f32.mrb[0].mxu0
      %1059 = vmatprep.mubr.bf16.mxu0 0
      %1060 = vmatmul.mubr.bf16.gmra.mrb[0].mxu0 %v902
      %v1061 = vpop.f32.mrb[0].mxu0
      %v1062 = vadd.f32 0.0, %v1061
      %v1063 = vpop.f32.mrb[0].mxu0
      %v1064 = vpop.f32.mrb[0].mxu0
      %v1065 = vadd.f32 0.0, %v1064
      %v1066 = vpop.f32.mrb[0].mxu0
      %1067 = vmatprep.mubr.bf16.mxu0 0
      %1068 = vmatmul.mubr.bf16.gmra.mrb[0].mxu0 %v904
      %v1069 = vpop.f32.mrb[0].mxu0
      %v1070 = vadd.f32 0.0, %v1069
      %v1071 = vpop.f32.mrb[0].mxu0
      %v1072 = vpop.f32.mrb[0].mxu0
      %v1073 = vadd.f32 0.0, %v1072
      %v1074 = vpop.f32.mrb[0].mxu0
      %1075 = vmatprep.mubr.bf16.mxu0 0
      %1076 = vmatmul.mubr.bf16.gmra.mrb[0].mxu0 %v906
      %v1077 = vpop.f32.mrb[0].mxu0
      %v1078 = vadd.f32 0.0, %v1077
      %v1079 = vpop.f32.mrb[0].mxu0
      %v1080 = vpop.f32.mrb[0].mxu0
      %v1081 = vadd.f32 0.0, %v1080
      %v1082 = vpop.f32.mrb[0].mxu0
      %1083 = vmatprep.mubr.bf16.mxu0 0
      %1084 = vmatmul.mubr.bf16.gmra.mrb[0].mxu0 %v908
      %v1085 = vpop.f32.mrb[0].mxu0
      %v1086 = vadd.f32 0.0, %v1085
      %v1087 = vpop.f32.mrb[0].mxu0
      %v1088 = vpop.f32.mrb[0].mxu0
      %v1089 = vadd.f32 0.0, %v1088
      %v1090 = vpop.f32.mrb[0].mxu0
      %1091 = vmatprep.mubr.bf16.mxu0 0
      %1092 = vmatmul.mubr.bf16.gmra.mrb[0].mxu0 %v910
      %v1093 = vpop.f32.mrb[0].mxu0
      %v1094 = vadd.f32 0.0, %v1093
      %v1095 = vpop.f32.mrb[0].mxu0
      %v1096 = vpop.f32.mrb[0].mxu0
      %v1097 = vadd.f32 0.0, %v1096
      %v1098 = vpop.f32.mrb[0].mxu0
      %1099 = vmatprep.mubr.bf16.mxu0 0
      %1100 = vmatmul.mubr.bf16.gmra.mrb[0].mxu0 %v912
      %v1101 = vpop.f32.mrb[0].mxu0
      %v1102 = vadd.f32 0.0, %v1101
      %v1103 = vpop.f32.mrb[0].mxu0
      %v1104 = vpop.f32.mrb[0].mxu0
      %v1105 = vadd.f32 0.0, %v1104
      %v1106 = vpop.f32.mrb[0].mxu0
      %1107 = vmatprep.mubr.bf16.mxu0 0
      %1108 = vmatmul.mubr.bf16.gmra.mrb[0].mxu0 %v914
      %v1109 = vpop.f32.mrb[0].mxu0
      %v1110 = vadd.f32 0.0, %v1109
      %v1111 = vpop.f32.mrb[0].mxu0
      %v1112 = vpop.f32.mrb[0].mxu0
      %v1113 = vadd.f32 0.0, %v1112
      %v1114 = vpop.f32.mrb[0].mxu0
      %1115 = vmatprep.mubr.bf16.mxu0 0
      %1116 = vmatmul.mubr.bf16.gmra.mrb[0].mxu0 %v916
      %v1117 = vpop.f32.mrb[0].mxu0
      %v1118 = vadd.f32 0.0, %v1117
      %v1119 = vpop.f32.mrb[0].mxu0
      %v1120 = vpop.f32.mrb[0].mxu0
      %v1121 = vadd.f32 0.0, %v1120
      %v1122 = vpop.f32.mrb[0].mxu0
      %1123 = vmatprep.mubr.bf16.mxu0 0
      %1124 = vmatmul.mubr.bf16.gmra.mrb[0].mxu0 %v918
      %v1125 = vpop.f32.mrb[0].mxu0
      %v1126 = vadd.f32 0.0, %v1125
      %v1127 = vpop.f32.mrb[0].mxu0
      %v1128 = vpop.f32.mrb[0].mxu0
      %v1129 = vadd.f32 0.0, %v1128
      %v1130 = vpop.f32.mrb[0].mxu0
      %1131 = vmatprep.mubr.bf16.mxu0 0
      %1132 = vmatmul.mubr.bf16.gmra.mrb[0].mxu0 %v920
      %v1133 = vpop.f32.mrb[0].mxu0
      %v1134 = vadd.f32 0.0, %v1133
      %v1135 = vpop.f32.mrb[0].mxu0
      %v1136 = vpop.f32.mrb[0].mxu0
      %v1137 = vadd.f32 0.0, %v1136
      %v1138 = vpop.f32.mrb[0].mxu0
      %1139 = vmatprep.mubr.bf16.mxu0 0
      %1140 = vmatmul.mubr.bf16.gmra.mrb[0].mxu0 %v922
      %v1141 = vpop.f32.mrb[0].mxu0
      %v1142 = vadd.f32 0.0, %v1141
      %v1143 = vpop.f32.mrb[0].mxu0
      %v1144 = vpop.f32.mrb[0].mxu0
      %v1145 = vadd.f32 0.0, %v1144
      %v1146 = vpop.f32.mrb[0].mxu0
      %1147 = vmatprep.mubr.bf16.mxu0 0
      %1148 = vmatmul.mubr.bf16.gmra.mrb[0].mxu0 %v924
      %v1149 = vpop.f32.mrb[0].mxu0
      %v1150 = vadd.f32 0.0, %v1149
      %v1151 = vpop.f32.mrb[0].mxu0
      %v1152 = vpop.f32.mrb[0].mxu0
      %v1153 = vadd.f32 0.0, %v1152
      %v1154 = vpop.f32.mrb[0].mxu0
      %1155 = vmatprep.mubr.bf16.mxu0 0
      %1156 = vmatmul.mubr.bf16.gmra.mrb[0].mxu0 %v926
      %v1157 = vpop.f32.mrb[0].mxu0
      %v1158 = vadd.f32 0.0, %v1157
      %v1159 = vpop.f32.mrb[0].mxu0
      %v1160 = vpop.f32.mrb[0].mxu0
      %v1161 = vadd.f32 0.0, %v1160
      %v1162 = vpop.f32.mrb[0].mxu0
      %1163 = vmatprep.mubr.bf16.mxu0 0
      %1164 = vmatmul.mubr.bf16.gmra.mrb[0].mxu0 %v928
      %v1165 = vpop.f32.mrb[0].mxu0
      %v1166 = vadd.f32 0.0, %v1165
      %v1167 = vpop.f32.mrb[0].mxu0
      %v1168 = vpop.f32.mrb[0].mxu0
      %v1169 = vadd.f32 0.0, %v1168
      %v1170 = vpop.f32.mrb[0].mxu0
      %1171 = vdwg.mxu0
      %vm1172 = vsmask.f32 1280
      %v1174 = vshrl.u32 %v819, 16
      %v1176 = vrot.slane %v1174, 6
      %v1177 = vshll.u32 %v819, 16
      %v1179 = vrot.slane %v1177, 7
      %v1180 = vor.u32 %v1176, %v1179
      %v1182 = vshrl.u32 %v820, 16
      %v1184 = vrot.slane %v1182, 6
      %v1185 = vshll.u32 %v820, 16
      %v1187 = vrot.slane %v1185, 7
      %v1188 = vor.u32 %v1184, %v1187
      %v1189 = vsel %vm1172, %v1180, %v1188
      %v1191 = vshrl.u32 %v821, 16
      %v1193 = vrot.slane %v1191, 6
      %v1194 = vshll.u32 %v821, 16
      %v1196 = vrot.slane %v1194, 7
      %v1197 = vor.u32 %v1193, %v1196
      %v1198 = vsel %vm1172, %v1188, %v1197
      %v1200 = vshrl.u32 %v822, 16
      %v1202 = vrot.slane %v1200, 6
      %v1203 = vshll.u32 %v822, 16
      %v1205 = vrot.slane %v1203, 7
      %v1206 = vor.u32 %v1202, %v1205
      %v1207 = vsel %vm1172, %v1197, %v1206
      %v1209 = vshrl.u32 %v823, 16
      %v1211 = vrot.slane %v1209, 6
      %v1212 = vshll.u32 %v823, 16
      %v1214 = vrot.slane %v1212, 7
      %v1215 = vor.u32 %v1211, %v1214
      %v1216 = vsel %vm1172, %v1206, %v1215
      %v1218 = vshrl.u32 %v824, 16
      %v1220 = vrot.slane %v1218, 6
      %v1221 = vshll.u32 %v824, 16
      %v1223 = vrot.slane %v1221, 7
      %v1224 = vor.u32 %v1220, %v1223
      %v1225 = vsel %vm1172, %v1215, %v1224
      %v1227 = vshrl.u32 %v825, 16
      %v1229 = vrot.slane %v1227, 6
      %v1230 = vshll.u32 %v825, 16
      %v1232 = vrot.slane %v1230, 7
      %v1233 = vor.u32 %v1229, %v1232
      %v1234 = vsel %vm1172, %v1224, %v1233
      %v1236 = vshrl.u32 %v826, 16
      %v1238 = vrot.slane %v1236, 6
      %v1239 = vshll.u32 %v826, 16
      %v1241 = vrot.slane %v1239, 7
      %v1242 = vor.u32 %v1238, %v1241
      %v1243 = vsel %vm1172, %v1233, %v1242
      %v1245 = vshrl.u32 %v827, 16
      %v1247 = vrot.slane %v1245, 6
      %v1248 = vshll.u32 %v827, 16
      %v1250 = vrot.slane %v1248, 7
      %v1251 = vor.u32 %v1247, %v1250
      %v1252 = vsel %vm1172, %v1242, %v1251
      %v1254 = vshrl.u32 %v828, 16
      %v1256 = vrot.slane %v1254, 6
      %v1257 = vshll.u32 %v828, 16
      %v1259 = vrot.slane %v1257, 7
      %v1260 = vor.u32 %v1256, %v1259
      %v1261 = vsel %vm1172, %v1251, %v1260
      %v1263 = vshrl.u32 %v829, 16
      %v1265 = vrot.slane %v1263, 6
      %v1266 = vshll.u32 %v829, 16
      %v1268 = vrot.slane %v1266, 7
      %v1269 = vor.u32 %v1265, %v1268
      %v1270 = vsel %vm1172, %v1260, %v1269
      %v1272 = vshrl.u32 %v830, 16
      %v1274 = vrot.slane %v1272, 6
      %v1275 = vshll.u32 %v830, 16
      %v1277 = vrot.slane %v1275, 7
      %v1278 = vor.u32 %v1274, %v1277
      %v1279 = vsel %vm1172, %v1269, %v1278
      %v1281 = vshrl.u32 %v831, 16
      %v1283 = vrot.slane %v1281, 6
      %v1284 = vshll.u32 %v831, 16
      %v1286 = vrot.slane %v1284, 7
      %v1287 = vor.u32 %v1283, %v1286
      %v1288 = vsel %vm1172, %v1278, %v1287
      %v1290 = vshrl.u32 %v832, 16
      %v1292 = vrot.slane %v1290, 6
      %v1293 = vshll.u32 %v832, 16
      %v1295 = vrot.slane %v1293, 7
      %v1296 = vor.u32 %v1292, %v1295
      %v1297 = vsel %vm1172, %v1287, %v1296
      %v1299 = vshrl.u32 %v833, 16
      %v1301 = vrot.slane %v1299, 6
      %v1302 = vshll.u32 %v833, 16
      %v1304 = vrot.slane %v1302, 7
      %v1305 = vor.u32 %v1301, %v1304
      %v1306 = vsel %vm1172, %v1296, %v1305
      %v1308 = vshrl.u32 %v834, 16
      %v1310 = vrot.slane %v1308, 6
      %v1311 = vshll.u32 %v834, 16
      %v1313 = vrot.slane %v1311, 7
      %v1314 = vor.u32 %v1310, %v1313
      %v1315 = vsel %vm1172, %v1305, %v1314
      %v1317 = vshrl.u32 %v835, 16
      %v1319 = vrot.slane %v1317, 6
      %v1320 = vshll.u32 %v835, 16
      %v1322 = vrot.slane %v1320, 7
      %v1323 = vor.u32 %v1319, %v1322
      %v1324 = vsel %vm1172, %v1314, %v1323
      %v1326 = vshrl.u32 %v836, 16
      %v1328 = vrot.slane %v1326, 6
      %v1329 = vshll.u32 %v836, 16
      %v1331 = vrot.slane %v1329, 7
      %v1332 = vor.u32 %v1328, %v1331
      %v1333 = vsel %vm1172, %v1323, %v1332
      %v1335 = vshrl.u32 %v837, 16
      %v1337 = vrot.slane %v1335, 6
      %v1338 = vshll.u32 %v837, 16
      %v1340 = vrot.slane %v1338, 7
      %v1341 = vor.u32 %v1337, %v1340
      %v1342 = vsel %vm1172, %v1332, %v1341
      %v1377 = vunpack.c.l.b16 %v838
      %v1378 = vunpack.c.l.b16 %v839
      %v1379 = vunpack.c.l.b16 %v840
      %v1380 = vunpack.c.l.b16 %v841
      %v1381 = vunpack.c.l.b16 %v842
      %v1382 = vunpack.c.l.b16 %v843
      %v1383 = vunpack.c.l.b16 %v844
      %v1384 = vunpack.c.l.b16 %v845
      %v1385 = vunpack.c.l.b16 %v846
      %v1386 = vunpack.c.l.b16 %v847
      %v1387 = vunpack.c.l.b16 %v848
      %v1388 = vunpack.c.l.b16 %v849
      %v1389 = vunpack.c.l.b16 %v850
      %v1390 = vunpack.c.l.b16 %v851
      %v1391 = vunpack.c.l.b16 %v852
      %v1392 = vunpack.c.l.b16 %v853
      %v1393 = vpack.c.b16 %v1378, %v1377
      %v1394 = vpack.c.b16 %v1380, %v1379
      %v1395 = vpack.c.b16 %v1382, %v1381
      %v1396 = vpack.c.b16 %v1384, %v1383
      %v1397 = vpack.c.b16 %v1386, %v1385
      %v1398 = vpack.c.b16 %v1388, %v1387
      %v1399 = vpack.c.b16 %v1390, %v1389
      %v1400 = vpack.c.b16 %v1392, %v1391
      %1409 = vmatprep.subr.bf16.mxu0 0
      %1410 = vmatpush1.bf16.msra.mxu0 %v1393
      %1411 = vmatprep.subr.bf16.mxu0 0
      %1412 = vmatpush1.bf16.msra.mxu0 %v1394
      %1413 = vmatprep.subr.bf16.mxu0 0
      %1414 = vmatpush1.bf16.msra.mxu0 %v1395
      %1415 = vmatprep.subr.bf16.mxu0 0
      %1416 = vmatpush1.bf16.msra.mxu0 %v1396
      %1417 = vmatprep.subr.bf16.mxu0 0
      %1418 = vmatpush1.bf16.msra.mxu0 %v1397
      %1419 = vmatprep.subr.bf16.mxu0 0
      %1420 = vmatpush1.bf16.msra.mxu0 %v1398
      %1421 = vmatprep.subr.bf16.mxu0 0
      %1422 = vmatpush1.bf16.msra.mxu0 %v1399
      %1423 = vmatprep.subr.bf16.mxu0 0
      %1424 = vmatpush1.bf16.msra.mxu0 %v1400
      %1425 = vmatprep.subr.bf16.mxu0 0
      %1426 = vmatpush1.bf16.msra.mxu0 0
      %1427 = vmatprep.subr.bf16.mxu0 0
      %1428 = vmatpush1.bf16.msra.mxu0 0
      %1429 = vmatprep.subr.bf16.mxu0 0
      %1430 = vmatpush1.bf16.msra.mxu0 0
      %1431 = vmatprep.subr.bf16.mxu0 0
      %1432 = vmatpush1.bf16.msra.mxu0 0
      %1433 = vmatprep.subr.bf16.mxu0 0
      %1434 = vmatpush1.bf16.msra.mxu0 0
      %1435 = vmatprep.subr.bf16.mxu0 0
      %1436 = vmatpush1.bf16.msra.mxu0 0
      %1437 = vmatprep.subr.bf16.mxu0 0
      %1438 = vmatpush1.bf16.msra.mxu0 0
      %1439 = vmatprep.subr.bf16.mxu0 0
      %1440 = vmatpush1.bf16.msra.mxu0 0
      %1441 = vmatprep.mubr.bf16.mxu0 0
      %1442 = vmatmul.mubr.bf16.gmra.mrb[0].mxu0 %v1189
      %v1443 = vpop.f32.mrb[0].mxu0
      %v1444 = vadd.f32 %v1030, %v1443
      %v1445 = vpop.f32.mrb[0].mxu0
      %v1446 = vpop.f32.mrb[0].mxu0
      %v1447 = vadd.f32 %v1033, %v1446
      %v1448 = vpop.f32.mrb[0].mxu0
      %1449 = vmatprep.mubr.bf16.mxu0 0
      %1450 = vmatmul.mubr.bf16.gmra.mrb[0].mxu0 %v1198
      %v1451 = vpop.f32.mrb[0].mxu0
      %v1452 = vadd.f32 %v1038, %v1451
      %v1453 = vpop.f32.mrb[0].mxu0
      %v1454 = vpop.f32.mrb[0].mxu0
      %v1455 = vadd.f32 %v1041, %v1454
      %v1456 = vpop.f32.mrb[0].mxu0
      %1457 = vmatprep.mubr.bf16.mxu0 0
      %1458 = vmatmul.mubr.bf16.gmra.mrb[0].mxu0 %v1207
      %v1459 = vpop.f32.mrb[0].mxu0
      %v1460 = vadd.f32 %v1046, %v1459
      %v1461 = vpop.f32.mrb[0].mxu0
      %v1462 = vpop.f32.mrb[0].mxu0
      %v1463 = vadd.f32 %v1049, %v1462
      %v1464 = vpop.f32.mrb[0].mxu0
      %1465 = vmatprep.mubr.bf16.mxu0 0
      %1466 = vmatmul.mubr.bf16.gmra.mrb[0].mxu0 %v1216
      %v1467 = vpop.f32.mrb[0].mxu0
      %v1468 = vadd.f32 %v1054, %v1467
      %v1469 = vpop.f32.mrb[0].mxu0
      %v1470 = vpop.f32.mrb[0].mxu0
      %v1471 = vadd.f32 %v1057, %v1470
      %v1472 = vpop.f32.mrb[0].mxu0
      %1473 = vmatprep.mubr.bf16.mxu0 0
      %1474 = vmatmul.mubr.bf16.gmra.mrb[0].mxu0 %v1225
      %v1475 = vpop.f32.mrb[0].mxu0
      %v1476 = vadd.f32 %v1062, %v1475
      %v1477 = vpop.f32.mrb[0].mxu0
      %v1478 = vpop.f32.mrb[0].mxu0
      %v1479 = vadd.f32 %v1065, %v1478
      %v1480 = vpop.f32.mrb[0].mxu0
      %1481 = vmatprep.mubr.bf16.mxu0 0
      %1482 = vmatmul.mubr.bf16.gmra.mrb[0].mxu0 %v1234
      %v1483 = vpop.f32.mrb[0].mxu0
      %v1484 = vadd.f32 %v1070, %v1483
      %v1485 = vpop.f32.mrb[0].mxu0
      %v1486 = vpop.f32.mrb[0].mxu0
      %v1487 = vadd.f32 %v1073, %v1486
      %v1488 = vpop.f32.mrb[0].mxu0
      %1489 = vmatprep.mubr.bf16.mxu0 0
      %1490 = vmatmul.mubr.bf16.gmra.mrb[0].mxu0 %v1243
      %v1491 = vpop.f32.mrb[0].mxu0
      %v1492 = vadd.f32 %v1078, %v1491
      %v1493 = vpop.f32.mrb[0].mxu0
      %v1494 = vpop.f32.mrb[0].mxu0
      %v1495 = vadd.f32 %v1081, %v1494
      %v1496 = vpop.f32.mrb[0].mxu0
      %1497 = vmatprep.mubr.bf16.mxu0 0
      %1498 = vmatmul.mubr.bf16.gmra.mrb[0].mxu0 %v1252
      %v1499 = vpop.f32.mrb[0].mxu0
      %v1500 = vadd.f32 %v1086, %v1499
      %v1501 = vpop.f32.mrb[0].mxu0
      %v1502 = vpop.f32.mrb[0].mxu0
      %v1503 = vadd.f32 %v1089, %v1502
      %v1504 = vpop.f32.mrb[0].mxu0
      %1505 = vmatprep.mubr.bf16.mxu0 0
      %1506 = vmatmul.mubr.bf16.gmra.mrb[0].mxu0 %v1261
      %v1507 = vpop.f32.mrb[0].mxu0
      %v1508 = vadd.f32 %v1094, %v1507
      %v1509 = vpop.f32.mrb[0].mxu0
      %v1510 = vpop.f32.mrb[0].mxu0
      %v1511 = vadd.f32 %v1097, %v1510
      %v1512 = vpop.f32.mrb[0].mxu0
      %1513 = vmatprep.mubr.bf16.mxu0 0
      %1514 = vmatmul.mubr.bf16.gmra.mrb[0].mxu0 %v1270
      %v1515 = vpop.f32.mrb[0].mxu0
      %v1516 = vadd.f32 %v1102, %v1515
      %v1517 = vpop.f32.mrb[0].mxu0
      %v1518 = vpop.f32.mrb[0].mxu0
      %v1519 = vadd.f32 %v1105, %v1518
      %v1520 = vpop.f32.mrb[0].mxu0
      %1521 = vmatprep.mubr.bf16.mxu0 0
      %1522 = vmatmul.mubr.bf16.gmra.mrb[0].mxu0 %v1279
      %v1523 = vpop.f32.mrb[0].mxu0
      %v1524 = vadd.f32 %v1110, %v1523
      %v1525 = vpop.f32.mrb[0].mxu0
      %v1526 = vpop.f32.mrb[0].mxu0
      %v1527 = vadd.f32 %v1113, %v1526
      %v1528 = vpop.f32.mrb[0].mxu0
      %1529 = vmatprep.mubr.bf16.mxu0 0
      %1530 = vmatmul.mubr.bf16.gmra.mrb[0].mxu0 %v1288
      %v1531 = vpop.f32.mrb[0].mxu0
      %v1532 = vadd.f32 %v1118, %v1531
      %v1533 = vpop.f32.mrb[0].mxu0
      %v1534 = vpop.f32.mrb[0].mxu0
      %v1535 = vadd.f32 %v1121, %v1534
      %v1536 = vpop.f32.mrb[0].mxu0
      %1537 = vmatprep.mubr.bf16.mxu0 0
      %1538 = vmatmul.mubr.bf16.gmra.mrb[0].mxu0 %v1297
      %v1539 = vpop.f32.mrb[0].mxu0
      %v1540 = vadd.f32 %v1126, %v1539
      %v1541 = vpop.f32.mrb[0].mxu0
      %v1542 = vpop.f32.mrb[0].mxu0
      %v1543 = vadd.f32 %v1129, %v1542
      %v1544 = vpop.f32.mrb[0].mxu0
      %1545 = vmatprep.mubr.bf16.mxu0 0
      %1546 = vmatmul.mubr.bf16.gmra.mrb[0].mxu0 %v1306
      %v1547 = vpop.f32.mrb[0].mxu0
      %v1548 = vadd.f32 %v1134, %v1547
      %v1549 = vpop.f32.mrb[0].mxu0
      %v1550 = vpop.f32.mrb[0].mxu0
      %v1551 = vadd.f32 %v1137, %v1550
      %v1552 = vpop.f32.mrb[0].mxu0
      %1553 = vmatprep.mubr.bf16.mxu0 0
      %1554 = vmatmul.mubr.bf16.gmra.mrb[0].mxu0 %v1315
      %v1555 = vpop.f32.mrb[0].mxu0
      %v1556 = vadd.f32 %v1142, %v1555
      %v1557 = vpop.f32.mrb[0].mxu0
      %v1558 = vpop.f32.mrb[0].mxu0
      %v1559 = vadd.f32 %v1145, %v1558
      %v1560 = vpop.f32.mrb[0].mxu0
      %1561 = vmatprep.mubr.bf16.mxu0 0
      %1562 = vmatmul.mubr.bf16.gmra.mrb[0].mxu0 %v1324
      %v1563 = vpop.f32.mrb[0].mxu0
      %v1564 = vadd.f32 %v1150, %v1563
      %v1565 = vpop.f32.mrb[0].mxu0
      %v1566 = vpop.f32.mrb[0].mxu0
      %v1567 = vadd.f32 %v1153, %v1566
      %v1568 = vpop.f32.mrb[0].mxu0
      %1569 = vmatprep.mubr.bf16.mxu0 0
      %1570 = vmatmul.mubr.bf16.gmra.mrb[0].mxu0 %v1333
      %v1571 = vpop.f32.mrb[0].mxu0
      %v1572 = vadd.f32 %v1158, %v1571
      %v1573 = vpop.f32.mrb[0].mxu0
      %v1574 = vpop.f32.mrb[0].mxu0
      %v1575 = vadd.f32 %v1161, %v1574
      %v1576 = vpop.f32.mrb[0].mxu0
      %1577 = vmatprep.mubr.bf16.mxu0 0
      %1578 = vmatmul.mubr.bf16.gmra.mrb[0].mxu0 %v1342
      %v1579 = vpop.f32.mrb[0].mxu0
      %v1580 = vadd.f32 %v1166, %v1579
      %v1581 = vpop.f32.mrb[0].mxu0
      %v1582 = vpop.f32.mrb[0].mxu0
      %v1583 = vadd.f32 %v1169, %v1582
      %v1584 = vpop.f32.mrb[0].mxu0
      %1585 = vdwg.mxu0
      %v1586 = vld [vmem:[#allocation2 + $0x90] sm:$0xff]
      %s1587 = scalar_lea.vmem %s4, 128
      %v1588 = vld [vmem:[%s1587] sm:$0xf]
      %v1589 = vld [vmem:[%s1587 + $0x4] sm:$0xf]
      %v1590 = vld [vmem:[%s1587 + $0x8] sm:$0xf]
      %v1591 = vld [vmem:[%s1587 + $0xc] sm:$0xf]
      %v1592 = vld [vmem:[%s1587 + $0x10] sm:$0xf]
      %v1593 = vld [vmem:[%s1587 + $0x14] sm:$0xf]
      %v1594 = vld [vmem:[%s1587 + $0x18] sm:$0xf]
      %v1595 = vld [vmem:[%s1587 + $0x1c] sm:$0xf]
      %v1596 = vld [vmem:[%s1587 + $0x20] sm:$0xf]
      %v1597 = vld [vmem:[%s1587 + $0x24] sm:$0xf]
      %v1598 = vld [vmem:[%s1587 + $0x28] sm:$0xf]
      %v1599 = vld [vmem:[%s1587 + $0x2c] sm:$0xf]
      %v1600 = vld [vmem:[%s1587 + $0x30] sm:$0xf]
      %v1601 = vld [vmem:[%s1587 + $0x34] sm:$0xf]
      %v1602 = vld [vmem:[%s1587 + $0x38] sm:$0xf]
      %v1603 = vld [vmem:[%s1587 + $0x3c] sm:$0xf]
      %vm1604 = vsmask.f32 256
      %v1606 = vshrl.u32 %v854, 16
      %v1608 = vrot.slane %v1606, 7
      %v1609 = vrot.slane %v1182, 7
      %v1610 = vor.u32 %v1609, %v1185
      %v1611 = vsel %vm1604, %v1608, %v1610
      %v1612 = vrot.slane %v1191, 7
      %v1613 = vor.u32 %v1612, %v1194
      %v1614 = vsel %vm1604, %v1609, %v1613
      %v1615 = vrot.slane %v1200, 7
      %v1616 = vor.u32 %v1615, %v1203
      %v1617 = vsel %vm1604, %v1612, %v1616
      %v1618 = vrot.slane %v1209, 7
      %v1619 = vor.u32 %v1618, %v1212
      %v1620 = vsel %vm1604, %v1615, %v1619
      %v1621 = vrot.slane %v1218, 7
      %v1622 = vor.u32 %v1621, %v1221
      %v1623 = vsel %vm1604, %v1618, %v1622
      %v1624 = vrot.slane %v1227, 7
      %v1625 = vor.u32 %v1624, %v1230
      %v1626 = vsel %vm1604, %v1621, %v1625
      %v1627 = vrot.slane %v1236, 7
      %v1628 = vor.u32 %v1627, %v1239
      %v1629 = vsel %vm1604, %v1624, %v1628
      %v1630 = vrot.slane %v1245, 7
      %v1631 = vor.u32 %v1630, %v1248
      %v1632 = vsel %vm1604, %v1627, %v1631
      %v1633 = vrot.slane %v1254, 7
      %v1634 = vor.u32 %v1633, %v1257
      %v1635 = vsel %vm1604, %v1630, %v1634
      %v1636 = vrot.slane %v1263, 7
      %v1637 = vor.u32 %v1636, %v1266
      %v1638 = vsel %vm1604, %v1633, %v1637
      %v1639 = vrot.slane %v1272, 7
      %v1640 = vor.u32 %v1639, %v1275
      %v1641 = vsel %vm1604, %v1636, %v1640
      %v1642 = vrot.slane %v1281, 7
      %v1643 = vor.u32 %v1642, %v1284
      %v1644 = vsel %vm1604, %v1639, %v1643
      %v1645 = vrot.slane %v1290, 7
      %v1646 = vor.u32 %v1645, %v1293
      %v1647 = vsel %vm1604, %v1642, %v1646
      %v1648 = vrot.slane %v1299, 7
      %v1649 = vor.u32 %v1648, %v1302
      %v1650 = vsel %vm1604, %v1645, %v1649
      %v1651 = vrot.slane %v1308, 7
      %v1652 = vor.u32 %v1651, %v1311
      %v1653 = vsel %vm1604, %v1648, %v1652
      %v1654 = vrot.slane %v1317, 7
      %v1655 = vor.u32 %v1654, %v1320
      %v1656 = vsel %vm1604, %v1651, %v1655
      %v1657 = vrot.slane %v1326, 7
      %v1658 = vor.u32 %v1657, %v1329
      %v1659 = vsel %vm1604, %v1654, %v1658
      %v1661 = vshrl.u32 %v1586, 16
      %v1663 = vrot.slane %v1661, 7
      %v1664 = vshll.u32 %v1586, 16
      %v1666 = vor.u32 %v1663, %v1664
      %v1667 = vsel %vm1604, %v1657, %v1666
      %v1702 = vunpack.c.l.b16 %v1588
      %v1703 = vunpack.c.l.b16 %v1589
      %v1704 = vunpack.c.l.b16 %v1590
      %v1705 = vunpack.c.l.b16 %v1591
      %v1706 = vunpack.c.l.b16 %v1592
      %v1707 = vunpack.c.l.b16 %v1593
      %v1708 = vunpack.c.l.b16 %v1594
      %v1709 = vunpack.c.l.b16 %v1595
      %v1710 = vunpack.c.l.b16 %v1596
      %v1711 = vunpack.c.l.b16 %v1597
      %v1712 = vunpack.c.l.b16 %v1598
      %v1713 = vunpack.c.l.b16 %v1599
      %v1714 = vunpack.c.l.b16 %v1600
      %v1715 = vunpack.c.l.b16 %v1601
      %v1716 = vunpack.c.l.b16 %v1602
      %v1717 = vunpack.c.l.b16 %v1603
      %v1718 = vpack.c.b16 %v1703, %v1702
      %v1719 = vpack.c.b16 %v1705, %v1704
      %v1720 = vpack.c.b16 %v1707, %v1706
      %v1721 = vpack.c.b16 %v1709, %v1708
      %v1722 = vpack.c.b16 %v1711, %v1710
      %v1723 = vpack.c.b16 %v1713, %v1712
      %v1724 = vpack.c.b16 %v1715, %v1714
      %v1725 = vpack.c.b16 %v1717, %v1716
      %1734 = vmatprep.subr.bf16.mxu0 0
      %1735 = vmatpush1.bf16.msra.mxu0 %v1718
      %1736 = vmatprep.subr.bf16.mxu0 0
      %1737 = vmatpush1.bf16.msra.mxu0 %v1719
      %1738 = vmatprep.subr.bf16.mxu0 0
      %1739 = vmatpush1.bf16.msra.mxu0 %v1720
      %1740 = vmatprep.subr.bf16.mxu0 0
      %1741 = vmatpush1.bf16.msra.mxu0 %v1721
      %1742 = vmatprep.subr.bf16.mxu0 0
      %1743 = vmatpush1.bf16.msra.mxu0 %v1722
      %1744 = vmatprep.subr.bf16.mxu0 0
      %1745 = vmatpush1.bf16.msra.mxu0 %v1723
      %1746 = vmatprep.subr.bf16.mxu0 0
      %1747 = vmatpush1.bf16.msra.mxu0 %v1724
      %1748 = vmatprep.subr.bf16.mxu0 0
      %1749 = vmatpush1.bf16.msra.mxu0 %v1725
      %1750 = vmatprep.subr.bf16.mxu0 0
      %1751 = vmatpush1.bf16.msra.mxu0 0
      %1752 = vmatprep.subr.bf16.mxu0 0
      %1753 = vmatpush1.bf16.msra.mxu0 0
      %1754 = vmatprep.subr.bf16.mxu0 0
      %1755 = vmatpush1.bf16.msra.mxu0 0
      %1756 = vmatprep.subr.bf16.mxu0 0
      %1757 = vmatpush1.bf16.msra.mxu0 0
      %1758 = vmatprep.subr.bf16.mxu0 0
      %1759 = vmatpush1.bf16.msra.mxu0 0
      %1760 = vmatprep.subr.bf16.mxu0 0
      %1761 = vmatpush1.bf16.msra.mxu0 0
      %1762 = vmatprep.subr.bf16.mxu0 0
      %1763 = vmatpush1.bf16.msra.mxu0 0
      %1764 = vmatprep.subr.bf16.mxu0 0
      %1765 = vmatpush1.bf16.msra.mxu0 0
      %1766 = vmatprep.mubr.bf16.mxu0 0
      %1767 = vmatmul.mubr.bf16.gmra.mrb[0].mxu0 %v1611
      %v1768 = vpop.f32.mrb[0].mxu0
      %v1769 = vadd.f32 0.0, %v1768
      %v1770 = vpop.f32.mrb[0].mxu0
      %v1771 = vpop.f32.mrb[0].mxu0
      %v1772 = vadd.f32 0.0, %v1771
      %v1773 = vpop.f32.mrb[0].mxu0
      %1774 = vmatprep.mubr.bf16.mxu0 0
      %1775 = vmatmul.mubr.bf16.gmra.mrb[0].mxu0 %v1614
      %v1776 = vpop.f32.mrb[0].mxu0
      %v1777 = vadd.f32 0.0, %v1776
      %v1778 = vpop.f32.mrb[0].mxu0
      %v1779 = vpop.f32.mrb[0].mxu0
      %v1780 = vadd.f32 0.0, %v1779
      %v1781 = vpop.f32.mrb[0].mxu0
      %1782 = vmatprep.mubr.bf16.mxu0 0
      %1783 = vmatmul.mubr.bf16.gmra.mrb[0].mxu0 %v1617
      %v1784 = vpop.f32.mrb[0].mxu0
      %v1785 = vadd.f32 0.0, %v1784
      %v1786 = vpop.f32.mrb[0].mxu0
      %v1787 = vpop.f32.mrb[0].mxu0
      %v1788 = vadd.f32 0.0, %v1787
      %v1789 = vpop.f32.mrb[0].mxu0
      %1790 = vmatprep.mubr.bf16.mxu0 0
      %1791 = vmatmul.mubr.bf16.gmra.mrb[0].mxu0 %v1620
      %v1792 = vpop.f32.mrb[0].mxu0
      %v1793 = vadd.f32 0.0, %v1792
      %v1794 = vpop.f32.mrb[0].mxu0
      %v1795 = vpop.f32.mrb[0].mxu0
      %v1796 = vadd.f32 0.0, %v1795
      %v1797 = vpop.f32.mrb[0].mxu0
      %1798 = vmatprep.mubr.bf16.mxu0 0
      %1799 = vmatmul.mubr.bf16.gmra.mrb[0].mxu0 %v1623
      %v1800 = vpop.f32.mrb[0].mxu0
      %v1801 = vadd.f32 0.0, %v1800
      %v1802 = vpop.f32.mrb[0].mxu0
      %v1803 = vpop.f32.mrb[0].mxu0
      %v1804 = vadd.f32 0.0, %v1803
      %v1805 = vpop.f32.mrb[0].mxu0
      %1806 = vmatprep.mubr.bf16.mxu0 0
      %1807 = vmatmul.mubr.bf16.gmra.mrb[0].mxu0 %v1626
      %v1808 = vpop.f32.mrb[0].mxu0
      %v1809 = vadd.f32 0.0, %v1808
      %v1810 = vpop.f32.mrb[0].mxu0
      %v1811 = vpop.f32.mrb[0].mxu0
      %v1812 = vadd.f32 0.0, %v1811
      %v1813 = vpop.f32.mrb[0].mxu0
      %1814 = vmatprep.mubr.bf16.mxu0 0
      %1815 = vmatmul.mubr.bf16.gmra.mrb[0].mxu0 %v1629
      %v1816 = vpop.f32.mrb[0].mxu0
      %v1817 = vadd.f32 0.0, %v1816
      %v1818 = vpop.f32.mrb[0].mxu0
      %v1819 = vpop.f32.mrb[0].mxu0
      %v1820 = vadd.f32 0.0, %v1819
      %v1821 = vpop.f32.mrb[0].mxu0
      %1822 = vmatprep.mubr.bf16.mxu0 0
      %1823 = vmatmul.mubr.bf16.gmra.mrb[0].mxu0 %v1632
      %v1824 = vpop.f32.mrb[0].mxu0
      %v1825 = vadd.f32 0.0, %v1824
      %v1826 = vpop.f32.mrb[0].mxu0
      %v1827 = vpop.f32.mrb[0].mxu0
      %v1828 = vadd.f32 0.0, %v1827
      %v1829 = vpop.f32.mrb[0].mxu0
      %1830 = vmatprep.mubr.bf16.mxu0 0
      %1831 = vmatmul.mubr.bf16.gmra.mrb[0].mxu0 %v1635
      %v1832 = vpop.f32.mrb[0].mxu0
      %v1833 = vadd.f32 0.0, %v1832
      %v1834 = vpop.f32.mrb[0].mxu0
      %v1835 = vpop.f32.mrb[0].mxu0
      %v1836 = vadd.f32 0.0, %v1835
      %v1837 = vpop.f32.mrb[0].mxu0
      %1838 = vmatprep.mubr.bf16.mxu0 0
      %1839 = vmatmul.mubr.bf16.gmra.mrb[0].mxu0 %v1638
      %v1840 = vpop.f32.mrb[0].mxu0
      %v1841 = vadd.f32 0.0, %v1840
      %v1842 = vpop.f32.mrb[0].mxu0
      %v1843 = vpop.f32.mrb[0].mxu0
      %v1844 = vadd.f32 0.0, %v1843
      %v1845 = vpop.f32.mrb[0].mxu0
      %1846 = vmatprep.mubr.bf16.mxu0 0
      %1847 = vmatmul.mubr.bf16.gmra.mrb[0].mxu0 %v1641
      %v1848 = vpop.f32.mrb[0].mxu0
      %v1849 = vadd.f32 0.0, %v1848
      %v1850 = vpop.f32.mrb[0].mxu0
      %v1851 = vpop.f32.mrb[0].mxu0
      %v1852 = vadd.f32 0.0, %v1851
      %v1853 = vpop.f32.mrb[0].mxu0
      %1854 = vmatprep.mubr.bf16.mxu0 0
      %1855 = vmatmul.mubr.bf16.gmra.mrb[0].mxu0 %v1644
      %v1856 = vpop.f32.mrb[0].mxu0
      %v1857 = vadd.f32 0.0, %v1856
      %v1858 = vpop.f32.mrb[0].mxu0
      %v1859 = vpop.f32.mrb[0].mxu0
      %v1860 = vadd.f32 0.0, %v1859
      %v1861 = vpop.f32.mrb[0].mxu0
      %1862 = vmatprep.mubr.bf16.mxu0 0
      %1863 = vmatmul.mubr.bf16.gmra.mrb[0].mxu0 %v1647
      %v1864 = vpop.f32.mrb[0].mxu0
      %v1865 = vadd.f32 0.0, %v1864
      %v1866 = vpop.f32.mrb[0].mxu0
      %v1867 = vpop.f32.mrb[0].mxu0
      %v1868 = vadd.f32 0.0, %v1867
      %v1869 = vpop.f32.mrb[0].mxu0
      %1870 = vmatprep.mubr.bf16.mxu0 0
      %1871 = vmatmul.mubr.bf16.gmra.mrb[0].mxu0 %v1650
      %v1872 = vpop.f32.mrb[0].mxu0
      %v1873 = vadd.f32 0.0, %v1872
      %v1874 = vpop.f32.mrb[0].mxu0
      %v1875 = vpop.f32.mrb[0].mxu0
      %v1876 = vadd.f32 0.0, %v1875
      %v1877 = vpop.f32.mrb[0].mxu0
      %1878 = vmatprep.mubr.bf16.mxu0 0
      %1879 = vmatmul.mubr.bf16.gmra.mrb[0].mxu0 %v1653
      %v1880 = vpop.f32.mrb[0].mxu0
      %v1881 = vadd.f32 0.0, %v1880
      %v1882 = vpop.f32.mrb[0].mxu0
      %v1883 = vpop.f32.mrb[0].mxu0
      %v1884 = vadd.f32 0.0, %v1883
      %v1885 = vpop.f32.mrb[0].mxu0
      %1886 = vmatprep.mubr.bf16.mxu0 0
      %1887 = vmatmul.mubr.bf16.gmra.mrb[0].mxu0 %v1656
      %v1888 = vpop.f32.mrb[0].mxu0
      %v1889 = vadd.f32 0.0, %v1888
      %v1890 = vpop.f32.mrb[0].mxu0
      %v1891 = vpop.f32.mrb[0].mxu0
      %v1892 = vadd.f32 0.0, %v1891
      %v1893 = vpop.f32.mrb[0].mxu0
      %1894 = vmatprep.mubr.bf16.mxu0 0
      %1895 = vmatmul.mubr.bf16.gmra.mrb[0].mxu0 %v1659
      %v1896 = vpop.f32.mrb[0].mxu0
      %v1897 = vadd.f32 0.0, %v1896
      %v1898 = vpop.f32.mrb[0].mxu0
      %v1899 = vpop.f32.mrb[0].mxu0
      %v1900 = vadd.f32 0.0, %v1899
      %v1901 = vpop.f32.mrb[0].mxu0
      %1902 = vmatprep.mubr.bf16.mxu0 0
      %1903 = vmatmul.mubr.bf16.gmra.mrb[0].mxu0 %v1667
      %v1904 = vpop.f32.mrb[0].mxu0
      %v1905 = vadd.f32 0.0, %v1904
      %v1906 = vpop.f32.mrb[0].mxu0
      %v1907 = vpop.f32.mrb[0].mxu0
      %v1908 = vadd.f32 0.0, %v1907
      %v1909 = vpop.f32.mrb[0].mxu0
      %1910 = vdwg.mxu0
      %v1911 = vadd.f32 %v1444, %v1769
      %v1912 = vadd.f32 %v1447, %v1772
      %v1913 = vadd.f32 %v1452, %v1777
      %v1914 = vadd.f32 %v1455, %v1780
      %v1915 = vadd.f32 %v1460, %v1785
      %v1916 = vadd.f32 %v1463, %v1788
      %v1917 = vadd.f32 %v1468, %v1793
      %v1918 = vadd.f32 %v1471, %v1796
      %v1919 = vadd.f32 %v1476, %v1801
      %v1920 = vadd.f32 %v1479, %v1804
      %v1921 = vadd.f32 %v1484, %v1809
      %v1922 = vadd.f32 %v1487, %v1812
      %v1923 = vadd.f32 %v1492, %v1817
      %v1924 = vadd.f32 %v1495, %v1820
      %v1925 = vadd.f32 %v1500, %v1825
      %v1926 = vadd.f32 %v1503, %v1828
      %v1927 = vadd.f32 %v1508, %v1833
      %v1928 = vadd.f32 %v1511, %v1836
      %v1929 = vadd.f32 %v1516, %v1841
      %v1930 = vadd.f32 %v1519, %v1844
      %v1931 = vadd.f32 %v1524, %v1849
      %v1932 = vadd.f32 %v1527, %v1852
      %v1933 = vadd.f32 %v1532, %v1857
      %v1934 = vadd.f32 %v1535, %v1860
      %v1935 = vadd.f32 %v1540, %v1865
      %v1936 = vadd.f32 %v1543, %v1868
      %v1937 = vadd.f32 %v1548, %v1873
      %v1938 = vadd.f32 %v1551, %v1876
      %v1939 = vadd.f32 %v1556, %v1881
      %v1940 = vadd.f32 %v1559, %v1884
      %v1941 = vadd.f32 %v1564, %v1889
      %v1942 = vadd.f32 %v1567, %v1892
      %v1943 = vadd.f32 %v1572, %v1897
      %v1944 = vadd.f32 %v1575, %v1900
      %v1945 = vadd.f32 %v1580, %v1905
      %v1946 = vadd.f32 %v1583, %v1908
      %v1947 = vld [vmem:[#allocation2 + $0x8] sm:$0x80]
      %v1948 = vld [vmem:[#allocation2 + $0x10] sm:$0xff]
      %v1949 = vld [vmem:[#allocation2 + $0x18] sm:$0xff]
      %v1950 = vld [vmem:[#allocation2 + $0x20] sm:$0xff]
      %v1951 = vld [vmem:[#allocation2 + $0x28] sm:$0xff]
      %v1952 = vld [vmem:[#allocation2 + $0x30] sm:$0xff]
      %v1953 = vld [vmem:[#allocation2 + $0x38] sm:$0xff]
      %v1954 = vld [vmem:[#allocation2 + $0x40] sm:$0xff]
      %v1955 = vld [vmem:[#allocation2 + $0x48] sm:$0xff]
      %v1956 = vld [vmem:[#allocation2 + $0x50] sm:$0xff]
      %v1957 = vld [vmem:[#allocation2 + $0x58] sm:$0xff]
      %v1958 = vld [vmem:[#allocation2 + $0x60] sm:$0xff]
      %v1959 = vld [vmem:[#allocation2 + $0x68] sm:$0xff]
      %v1960 = vld [vmem:[#allocation2 + $0x70] sm:$0xff]
      %v1961 = vld [vmem:[#allocation2 + $0x78] sm:$0xff]
      %v1962 = vld [vmem:[#allocation2 + $0x80] sm:$0xff]
      %v1963 = vld [vmem:[#allocation2 + $0x88] sm:$0xff]
      %v1964 = vld [vmem:[#allocation2 + $0x90] sm:$0xff]
      %v1965 = vld [vmem:[#allocation2 + $0x98] sm:$0xff]
      %s1966 = scalar_lea.vmem %s4, 192
      %v1967 = vld [vmem:[%s1966] sm:$0xf]
      %v1968 = vld [vmem:[%s1966 + $0x4] sm:$0xf]
      %v1969 = vld [vmem:[%s1966 + $0x8] sm:$0xf]
      %v1970 = vld [vmem:[%s1966 + $0xc] sm:$0xf]
      %v1971 = vld [vmem:[%s1966 + $0x10] sm:$0xf]
      %v1972 = vld [vmem:[%s1966 + $0x14] sm:$0xf]
      %v1973 = vld [vmem:[%s1966 + $0x18] sm:$0xf]
      %v1974 = vld [vmem:[%s1966 + $0x1c] sm:$0xf]
      %v1975 = vld [vmem:[%s1966 + $0x20] sm:$0xf]
      %v1976 = vld [vmem:[%s1966 + $0x24] sm:$0xf]
      %v1977 = vld [vmem:[%s1966 + $0x28] sm:$0xf]
      %v1978 = vld [vmem:[%s1966 + $0x2c] sm:$0xf]
      %v1979 = vld [vmem:[%s1966 + $0x30] sm:$0xf]
      %v1980 = vld [vmem:[%s1966 + $0x34] sm:$0xf]
      %v1981 = vld [vmem:[%s1966 + $0x38] sm:$0xf]
      %v1982 = vld [vmem:[%s1966 + $0x3c] sm:$0xf]
      %v1984 = vshrl.u32 %v1947, 16
      %v1986 = vrot.slane %v1984, 7
      %v1988 = vshrl.u32 %v1948, 16
      %v1990 = vrot.slane %v1988, 7
      %v1991 = vshll.u32 %v1948, 16
      %v1993 = vor.u32 %v1990, %v1991
      %v1994 = vsel %vm1604, %v1986, %v1993
      %v1996 = vshrl.u32 %v1949, 16
      %v1998 = vrot.slane %v1996, 7
      %v1999 = vshll.u32 %v1949, 16
      %v2001 = vor.u32 %v1998, %v1999
      %v2002 = vsel %vm1604, %v1990, %v2001
      %v2004 = vshrl.u32 %v1950, 16
      %v2006 = vrot.slane %v2004, 7
      %v2007 = vshll.u32 %v1950, 16
      %v2009 = vor.u32 %v2006, %v2007
      %v2010 = vsel %vm1604, %v1998, %v2009
      %v2012 = vshrl.u32 %v1951, 16
      %v2014 = vrot.slane %v2012, 7
      %v2015 = vshll.u32 %v1951, 16
      %v2017 = vor.u32 %v2014, %v2015
      %v2018 = vsel %vm1604, %v2006, %v2017
      %v2020 = vshrl.u32 %v1952, 16
      %v2022 = vrot.slane %v2020, 7
      %v2023 = vshll.u32 %v1952, 16
      %v2025 = vor.u32 %v2022, %v2023
      %v2026 = vsel %vm1604, %v2014, %v2025
      %v2028 = vshrl.u32 %v1953, 16
      %v2030 = vrot.slane %v2028, 7
      %v2031 = vshll.u32 %v1953, 16
      %v2033 = vor.u32 %v2030, %v2031
      %v2034 = vsel %vm1604, %v2022, %v2033
      %v2036 = vshrl.u32 %v1954, 16
      %v2038 = vrot.slane %v2036, 7
      %v2039 = vshll.u32 %v1954, 16
      %v2041 = vor.u32 %v2038, %v2039
      %v2042 = vsel %vm1604, %v2030, %v2041
      %v2044 = vshrl.u32 %v1955, 16
      %v2046 = vrot.slane %v2044, 7
      %v2047 = vshll.u32 %v1955, 16
      %v2049 = vor.u32 %v2046, %v2047
      %v2050 = vsel %vm1604, %v2038, %v2049
      %v2052 = vshrl.u32 %v1956, 16
      %v2054 = vrot.slane %v2052, 7
      %v2055 = vshll.u32 %v1956, 16
      %v2057 = vor.u32 %v2054, %v2055
      %v2058 = vsel %vm1604, %v2046, %v2057
      %v2060 = vshrl.u32 %v1957, 16
      %v2062 = vrot.slane %v2060, 7
      %v2063 = vshll.u32 %v1957, 16
      %v2065 = vor.u32 %v2062, %v2063
      %v2066 = vsel %vm1604, %v2054, %v2065
      %v2068 = vshrl.u32 %v1958, 16
      %v2070 = vrot.slane %v2068, 7
      %v2071 = vshll.u32 %v1958, 16
      %v2073 = vor.u32 %v2070, %v2071
      %v2074 = vsel %vm1604, %v2062, %v2073
      %v2076 = vshrl.u32 %v1959, 16
      %v2078 = vrot.slane %v2076, 7
      %v2079 = vshll.u32 %v1959, 16
      %v2081 = vor.u32 %v2078, %v2079
      %v2082 = vsel %vm1604, %v2070, %v2081
      %v2084 = vshrl.u32 %v1960, 16
      %v2086 = vrot.slane %v2084, 7
      %v2087 = vshll.u32 %v1960, 16
      %v2089 = vor.u32 %v2086, %v2087
      %v2090 = vsel %vm1604, %v2078, %v2089
      %v2092 = vshrl.u32 %v1961, 16
      %v2094 = vrot.slane %v2092, 7
      %v2095 = vshll.u32 %v1961, 16
      %v2097 = vor.u32 %v2094, %v2095
      %v2098 = vsel %vm1604, %v2086, %v2097
      %v2100 = vshrl.u32 %v1962, 16
      %v2102 = vrot.slane %v2100, 7
      %v2103 = vshll.u32 %v1962, 16
      %v2105 = vor.u32 %v2102, %v2103
      %v2106 = vsel %vm1604, %v2094, %v2105
      %v2108 = vshrl.u32 %v1963, 16
      %v2110 = vrot.slane %v2108, 7
      %v2111 = vshll.u32 %v1963, 16
      %v2113 = vor.u32 %v2110, %v2111
      %v2114 = vsel %vm1604, %v2102, %v2113
      %v2116 = vshrl.u32 %v1964, 16
      %v2118 = vrot.slane %v2116, 7
      %v2119 = vshll.u32 %v1964, 16
      %v2121 = vor.u32 %v2118, %v2119
      %v2122 = vsel %vm1604, %v2110, %v2121
      %v2124 = vshrl.u32 %v1965, 16
      %v2126 = vrot.slane %v2124, 7
      %v2127 = vshll.u32 %v1965, 16
      %v2129 = vor.u32 %v2126, %v2127
      %v2130 = vsel %vm1604, %v2118, %v2129
      %v2165 = vunpack.c.l.b16 %v1967
      %v2166 = vunpack.c.l.b16 %v1968
      %v2167 = vunpack.c.l.b16 %v1969
      %v2168 = vunpack.c.l.b16 %v1970
      %v2169 = vunpack.c.l.b16 %v1971
      %v2170 = vunpack.c.l.b16 %v1972
      %v2171 = vunpack.c.l.b16 %v1973
      %v2172 = vunpack.c.l.b16 %v1974
      %v2173 = vunpack.c.l.b16 %v1975
      %v2174 = vunpack.c.l.b16 %v1976
      %v2175 = vunpack.c.l.b16 %v1977
      %v2176 = vunpack.c.l.b16 %v1978
      %v2177 = vunpack.c.l.b16 %v1979
      %v2178 = vunpack.c.l.b16 %v1980
      %v2179 = vunpack.c.l.b16 %v1981
      %v2180 = vunpack.c.l.b16 %v1982
      %v2181 = vpack.c.b16 %v2166, %v2165
      %v2182 = vpack.c.b16 %v2168, %v2167
      %v2183 = vpack.c.b16 %v2170, %v2169
      %v2184 = vpack.c.b16 %v2172, %v2171
      %v2185 = vpack.c.b16 %v2174, %v2173
      %v2186 = vpack.c.b16 %v2176, %v2175
      %v2187 = vpack.c.b16 %v2178, %v2177
      %v2188 = vpack.c.b16 %v2180, %v2179
      %2197 = vmatprep.subr.bf16.mxu0 0
      %2198 = vmatpush1.bf16.msra.mxu0 %v2181
      %2199 = vmatprep.subr.bf16.mxu0 0
      %2200 = vmatpush1.bf16.msra.mxu0 %v2182
      %2201 = vmatprep.subr.bf16.mxu0 0
      %2202 = vmatpush1.bf16.msra.mxu0 %v2183
      %2203 = vmatprep.subr.bf16.mxu0 0
      %2204 = vmatpush1.bf16.msra.mxu0 %v2184
      %2205 = vmatprep.subr.bf16.mxu0 0
      %2206 = vmatpush1.bf16.msra.mxu0 %v2185
      %2207 = vmatprep.subr.bf16.mxu0 0
      %2208 = vmatpush1.bf16.msra.mxu0 %v2186
      %2209 = vmatprep.subr.bf16.mxu0 0
      %2210 = vmatpush1.bf16.msra.mxu0 %v2187
      %2211 = vmatprep.subr.bf16.mxu0 0
      %2212 = vmatpush1.bf16.msra.mxu0 %v2188
      %2213 = vmatprep.subr.bf16.mxu0 0
      %2214 = vmatpush1.bf16.msra.mxu0 0
      %2215 = vmatprep.subr.bf16.mxu0 0
      %2216 = vmatpush1.bf16.msra.mxu0 0
      %2217 = vmatprep.subr.bf16.mxu0 0
      %2218 = vmatpush1.bf16.msra.mxu0 0
      %2219 = vmatprep.subr.bf16.mxu0 0
      %2220 = vmatpush1.bf16.msra.mxu0 0
      %2221 = vmatprep.subr.bf16.mxu0 0
      %2222 = vmatpush1.bf16.msra.mxu0 0
      %2223 = vmatprep.subr.bf16.mxu0 0
      %2224 = vmatpush1.bf16.msra.mxu0 0
      %2225 = vmatprep.subr.bf16.mxu0 0
      %2226 = vmatpush1.bf16.msra.mxu0 0
      %2227 = vmatprep.subr.bf16.mxu0 0
      %2228 = vmatpush1.bf16.msra.mxu0 0
      %2229 = vmatprep.mubr.bf16.mxu0 0
      %2230 = vmatmul.mubr.bf16.gmra.mrb[0].mxu0 %v1994
      %v2231 = vpop.f32.mrb[0].mxu0
      %v2232 = vadd.f32 0.0, %v2231
      %v2233 = vpop.f32.mrb[0].mxu0
      %v2234 = vpop.f32.mrb[0].mxu0
      %v2235 = vadd.f32 0.0, %v2234
      %v2236 = vpop.f32.mrb[0].mxu0
      %2237 = vmatprep.mubr.bf16.mxu0 0
      %2238 = vmatmul.mubr.bf16.gmra.mrb[0].mxu0 %v2002
      %v2239 = vpop.f32.mrb[0].mxu0
      %v2240 = vadd.f32 0.0, %v2239
      %v2241 = vpop.f32.mrb[0].mxu0
      %v2242 = vpop.f32.mrb[0].mxu0
      %v2243 = vadd.f32 0.0, %v2242
      %v2244 = vpop.f32.mrb[0].mxu0
      %2245 = vmatprep.mubr.bf16.mxu0 0
      %2246 = vmatmul.mubr.bf16.gmra.mrb[0].mxu0 %v2010
      %v2247 = vpop.f32.mrb[0].mxu0
      %v2248 = vadd.f32 0.0, %v2247
      %v2249 = vpop.f32.mrb[0].mxu0
      %v2250 = vpop.f32.mrb[0].mxu0
      %v2251 = vadd.f32 0.0, %v2250
      %v2252 = vpop.f32.mrb[0].mxu0
      %2253 = vmatprep.mubr.bf16.mxu0 0
      %2254 = vmatmul.mubr.bf16.gmra.mrb[0].mxu0 %v2018
      %v2255 = vpop.f32.mrb[0].mxu0
      %v2256 = vadd.f32 0.0, %v2255
      %v2257 = vpop.f32.mrb[0].mxu0
      %v2258 = vpop.f32.mrb[0].mxu0
      %v2259 = vadd.f32 0.0, %v2258
      %v2260 = vpop.f32.mrb[0].mxu0
      %2261 = vmatprep.mubr.bf16.mxu0 0
      %2262 = vmatmul.mubr.bf16.gmra.mrb[0].mxu0 %v2026
      %v2263 = vpop.f32.mrb[0].mxu0
      %v2264 = vadd.f32 0.0, %v2263
      %v2265 = vpop.f32.mrb[0].mxu0
      %v2266 = vpop.f32.mrb[0].mxu0
      %v2267 = vadd.f32 0.0, %v2266
      %v2268 = vpop.f32.mrb[0].mxu0
      %2269 = vmatprep.mubr.bf16.mxu0 0
      %2270 = vmatmul.mubr.bf16.gmra.mrb[0].mxu0 %v2034
      %v2271 = vpop.f32.mrb[0].mxu0
      %v2272 = vadd.f32 0.0, %v2271
      %v2273 = vpop.f32.mrb[0].mxu0
      %v2274 = vpop.f32.mrb[0].mxu0
      %v2275 = vadd.f32 0.0, %v2274
      %v2276 = vpop.f32.mrb[0].mxu0
      %2277 = vmatprep.mubr.bf16.mxu0 0
      %2278 = vmatmul.mubr.bf16.gmra.mrb[0].mxu0 %v2042
      %v2279 = vpop.f32.mrb[0].mxu0
      %v2280 = vadd.f32 0.0, %v2279
      %v2281 = vpop.f32.mrb[0].mxu0
      %v2282 = vpop.f32.mrb[0].mxu0
      %v2283 = vadd.f32 0.0, %v2282
      %v2284 = vpop.f32.mrb[0].mxu0
      %2285 = vmatprep.mubr.bf16.mxu0 0
      %2286 = vmatmul.mubr.bf16.gmra.mrb[0].mxu0 %v2050
      %v2287 = vpop.f32.mrb[0].mxu0
      %v2288 = vadd.f32 0.0, %v2287
      %v2289 = vpop.f32.mrb[0].mxu0
      %v2290 = vpop.f32.mrb[0].mxu0
      %v2291 = vadd.f32 0.0, %v2290
      %v2292 = vpop.f32.mrb[0].mxu0
      %2293 = vmatprep.mubr.bf16.mxu0 0
      %2294 = vmatmul.mubr.bf16.gmra.mrb[0].mxu0 %v2058
      %v2295 = vpop.f32.mrb[0].mxu0
      %v2296 = vadd.f32 0.0, %v2295
      %v2297 = vpop.f32.mrb[0].mxu0
      %v2298 = vpop.f32.mrb[0].mxu0
      %v2299 = vadd.f32 0.0, %v2298
      %v2300 = vpop.f32.mrb[0].mxu0
      %2301 = vmatprep.mubr.bf16.mxu0 0
      %2302 = vmatmul.mubr.bf16.gmra.mrb[0].mxu0 %v2066
      %v2303 = vpop.f32.mrb[0].mxu0
      %v2304 = vadd.f32 0.0, %v2303
      %v2305 = vpop.f32.mrb[0].mxu0
      %v2306 = vpop.f32.mrb[0].mxu0
      %v2307 = vadd.f32 0.0, %v2306
      %v2308 = vpop.f32.mrb[0].mxu0
      %2309 = vmatprep.mubr.bf16.mxu0 0
      %2310 = vmatmul.mubr.bf16.gmra.mrb[0].mxu0 %v2074
      %v2311 = vpop.f32.mrb[0].mxu0
      %v2312 = vadd.f32 0.0, %v2311
      %v2313 = vpop.f32.mrb[0].mxu0
      %v2314 = vpop.f32.mrb[0].mxu0
      %v2315 = vadd.f32 0.0, %v2314
      %v2316 = vpop.f32.mrb[0].mxu0
      %2317 = vmatprep.mubr.bf16.mxu0 0
      %2318 = vmatmul.mubr.bf16.gmra.mrb[0].mxu0 %v2082
      %v2319 = vpop.f32.mrb[0].mxu0
      %v2320 = vadd.f32 0.0, %v2319
      %v2321 = vpop.f32.mrb[0].mxu0
      %v2322 = vpop.f32.mrb[0].mxu0
      %v2323 = vadd.f32 0.0, %v2322
      %v2324 = vpop.f32.mrb[0].mxu0
      %2325 = vmatprep.mubr.bf16.mxu0 0
      %2326 = vmatmul.mubr.bf16.gmra.mrb[0].mxu0 %v2090
      %v2327 = vpop.f32.mrb[0].mxu0
      %v2328 = vadd.f32 0.0, %v2327
      %v2329 = vpop.f32.mrb[0].mxu0
      %v2330 = vpop.f32.mrb[0].mxu0
      %v2331 = vadd.f32 0.0, %v2330
      %v2332 = vpop.f32.mrb[0].mxu0
      %2333 = vmatprep.mubr.bf16.mxu0 0
      %2334 = vmatmul.mubr.bf16.gmra.mrb[0].mxu0 %v2098
      %v2335 = vpop.f32.mrb[0].mxu0
      %v2336 = vadd.f32 0.0, %v2335
      %v2337 = vpop.f32.mrb[0].mxu0
      %v2338 = vpop.f32.mrb[0].mxu0
      %v2339 = vadd.f32 0.0, %v2338
      %v2340 = vpop.f32.mrb[0].mxu0
      %2341 = vmatprep.mubr.bf16.mxu0 0
      %2342 = vmatmul.mubr.bf16.gmra.mrb[0].mxu0 %v2106
      %v2343 = vpop.f32.mrb[0].mxu0
      %v2344 = vadd.f32 0.0, %v2343
      %v2345 = vpop.f32.mrb[0].mxu0
      %v2346 = vpop.f32.mrb[0].mxu0
      %v2347 = vadd.f32 0.0, %v2346
      %v2348 = vpop.f32.mrb[0].mxu0
      %2349 = vmatprep.mubr.bf16.mxu0 0
      %2350 = vmatmul.mubr.bf16.gmra.mrb[0].mxu0 %v2114
      %v2351 = vpop.f32.mrb[0].mxu0
      %v2352 = vadd.f32 0.0, %v2351
      %v2353 = vpop.f32.mrb[0].mxu0
      %v2354 = vpop.f32.mrb[0].mxu0
      %v2355 = vadd.f32 0.0, %v2354
      %v2356 = vpop.f32.mrb[0].mxu0
      %2357 = vmatprep.mubr.bf16.mxu0 0
      %2358 = vmatmul.mubr.bf16.gmra.mrb[0].mxu0 %v2122
      %v2359 = vpop.f32.mrb[0].mxu0
      %v2360 = vadd.f32 0.0, %v2359
      %v2361 = vpop.f32.mrb[0].mxu0
      %v2362 = vpop.f32.mrb[0].mxu0
      %v2363 = vadd.f32 0.0, %v2362
      %v2364 = vpop.f32.mrb[0].mxu0
      %2365 = vmatprep.mubr.bf16.mxu0 0
      %2366 = vmatmul.mubr.bf16.gmra.mrb[0].mxu0 %v2130
      %v2367 = vpop.f32.mrb[0].mxu0
      %v2368 = vadd.f32 0.0, %v2367
      %v2369 = vpop.f32.mrb[0].mxu0
      %v2370 = vpop.f32.mrb[0].mxu0
      %v2371 = vadd.f32 0.0, %v2370
      %v2372 = vpop.f32.mrb[0].mxu0
      %2373 = vdwg.mxu0
      %v2374 = vadd.f32 %v1911, %v2232
      %v2375 = vadd.f32 %v1912, %v2235
      %v2376 = vadd.f32 %v1913, %v2240
      %v2377 = vadd.f32 %v1914, %v2243
      %v2378 = vadd.f32 %v1915, %v2248
      %v2379 = vadd.f32 %v1916, %v2251
      %v2380 = vadd.f32 %v1917, %v2256
      %v2381 = vadd.f32 %v1918, %v2259
      %v2382 = vadd.f32 %v1919, %v2264
      %v2383 = vadd.f32 %v1920, %v2267
      %v2384 = vadd.f32 %v1921, %v2272
      %v2385 = vadd.f32 %v1922, %v2275
      %v2386 = vadd.f32 %v1923, %v2280
      %v2387 = vadd.f32 %v1924, %v2283
      %v2388 = vadd.f32 %v1925, %v2288
      %v2389 = vadd.f32 %v1926, %v2291
      %v2390 = vadd.f32 %v1927, %v2296
      %v2391 = vadd.f32 %v1928, %v2299
      %v2392 = vadd.f32 %v1929, %v2304
      %v2393 = vadd.f32 %v1930, %v2307
      %v2394 = vadd.f32 %v1931, %v2312
      %v2395 = vadd.f32 %v1932, %v2315
      %v2396 = vadd.f32 %v1933, %v2320
      %v2397 = vadd.f32 %v1934, %v2323
      %v2398 = vadd.f32 %v1935, %v2328
      %v2399 = vadd.f32 %v1936, %v2331
      %v2400 = vadd.f32 %v1937, %v2336
      %v2401 = vadd.f32 %v1938, %v2339
      %v2402 = vadd.f32 %v1939, %v2344
      %v2403 = vadd.f32 %v1940, %v2347
      %v2404 = vadd.f32 %v1941, %v2352
      %v2405 = vadd.f32 %v1942, %v2355
      %v2406 = vadd.f32 %v1943, %v2360
      %v2407 = vadd.f32 %v1944, %v2363
      %v2408 = vadd.f32 %v1945, %v2368
      %v2409 = vadd.f32 %v1946, %v2371
      %s2410 = scalar_lea.vmem %s4, 256
      %v2411 = vld [vmem:[%s2410] sm:$0xf]
      %v2412 = vld [vmem:[%s2410 + $0x4] sm:$0xf]
      %v2413 = vld [vmem:[%s2410 + $0x8] sm:$0xf]
      %v2414 = vld [vmem:[%s2410 + $0xc] sm:$0xf]
      %v2415 = vld [vmem:[%s2410 + $0x10] sm:$0xf]
      %v2416 = vld [vmem:[%s2410 + $0x14] sm:$0xf]
      %v2417 = vld [vmem:[%s2410 + $0x18] sm:$0xf]
      %v2418 = vld [vmem:[%s2410 + $0x1c] sm:$0xf]
      %v2419 = vld [vmem:[%s2410 + $0x20] sm:$0xf]
      %v2420 = vld [vmem:[%s2410 + $0x24] sm:$0xf]
      %v2421 = vld [vmem:[%s2410 + $0x28] sm:$0xf]
      %v2422 = vld [vmem:[%s2410 + $0x2c] sm:$0xf]
      %v2423 = vld [vmem:[%s2410 + $0x30] sm:$0xf]
      %v2424 = vld [vmem:[%s2410 + $0x34] sm:$0xf]
      %v2425 = vld [vmem:[%s2410 + $0x38] sm:$0xf]
      %v2426 = vld [vmem:[%s2410 + $0x3c] sm:$0xf]
      %v2443 = vunpack.c.l.b16 %v2411
      %v2444 = vunpack.c.l.b16 %v2412
      %v2445 = vunpack.c.l.b16 %v2413
      %v2446 = vunpack.c.l.b16 %v2414
      %v2447 = vunpack.c.l.b16 %v2415
      %v2448 = vunpack.c.l.b16 %v2416
      %v2449 = vunpack.c.l.b16 %v2417
      %v2450 = vunpack.c.l.b16 %v2418
      %v2451 = vunpack.c.l.b16 %v2419
      %v2452 = vunpack.c.l.b16 %v2420
      %v2453 = vunpack.c.l.b16 %v2421
      %v2454 = vunpack.c.l.b16 %v2422
      %v2455 = vunpack.c.l.b16 %v2423
      %v2456 = vunpack.c.l.b16 %v2424
      %v2457 = vunpack.c.l.b16 %v2425
      %v2458 = vunpack.c.l.b16 %v2426
      %v2459 = vpack.c.b16 %v2444, %v2443
      %v2460 = vpack.c.b16 %v2446, %v2445
      %v2461 = vpack.c.b16 %v2448, %v2447
      %v2462 = vpack.c.b16 %v2450, %v2449
      %v2463 = vpack.c.b16 %v2452, %v2451
      %v2464 = vpack.c.b16 %v2454, %v2453
      %v2465 = vpack.c.b16 %v2456, %v2455
      %v2466 = vpack.c.b16 %v2458, %v2457
      %2475 = vmatprep.subr.bf16.mxu0 0
      %2476 = vmatpush1.bf16.msra.mxu0 %v2459
      %2477 = vmatprep.subr.bf16.mxu0 0
      %2478 = vmatpush1.bf16.msra.mxu0 %v2460
      %2479 = vmatprep.subr.bf16.mxu0 0
      %2480 = vmatpush1.bf16.msra.mxu0 %v2461
      %2481 = vmatprep.subr.bf16.mxu0 0
      %2482 = vmatpush1.bf16.msra.mxu0 %v2462
      %2483 = vmatprep.subr.bf16.mxu0 0
      %2484 = vmatpush1.bf16.msra.mxu0 %v2463
      %2485 = vmatprep.subr.bf16.mxu0 0
      %2486 = vmatpush1.bf16.msra.mxu0 %v2464
      %2487 = vmatprep.subr.bf16.mxu0 0
      %2488 = vmatpush1.bf16.msra.mxu0 %v2465
      %2489 = vmatprep.subr.bf16.mxu0 0
      %2490 = vmatpush1.bf16.msra.mxu0 %v2466
      %2491 = vmatprep.subr.bf16.mxu0 0
      %2492 = vmatpush1.bf16.msra.mxu0 0
      %2493 = vmatprep.subr.bf16.mxu0 0
      %2494 = vmatpush1.bf16.msra.mxu0 0
      %2495 = vmatprep.subr.bf16.mxu0 0
      %2496 = vmatpush1.bf16.msra.mxu0 0
      %2497 = vmatprep.subr.bf16.mxu0 0
      %2498 = vmatpush1.bf16.msra.mxu0 0
      %2499 = vmatprep.subr.bf16.mxu0 0
      %2500 = vmatpush1.bf16.msra.mxu0 0
      %2501 = vmatprep.subr.bf16.mxu0 0
      %2502 = vmatpush1.bf16.msra.mxu0 0
      %2503 = vmatprep.subr.bf16.mxu0 0
      %2504 = vmatpush1.bf16.msra.mxu0 0
      %2505 = vmatprep.subr.bf16.mxu0 0
      %2506 = vmatpush1.bf16.msra.mxu0 0
      %2507 = vmatprep.mubr.bf16.mxu0 0
      %2508 = vmatmul.mubr.bf16.gmra.mrb[0].mxu0 %v1948
      %v2509 = vpop.f32.mrb[0].mxu0
      %v2510 = vadd.f32 0.0, %v2509
      %v2511 = vpop.f32.mrb[0].mxu0
      %v2512 = vpop.f32.mrb[0].mxu0
      %v2513 = vadd.f32 0.0, %v2512
      %v2514 = vpop.f32.mrb[0].mxu0
      %2515 = vmatprep.mubr.bf16.mxu0 0
      %2516 = vmatmul.mubr.bf16.gmra.mrb[0].mxu0 %v1949
      %v2517 = vpop.f32.mrb[0].mxu0
      %v2518 = vadd.f32 0.0, %v2517
      %v2519 = vpop.f32.mrb[0].mxu0
      %v2520 = vpop.f32.mrb[0].mxu0
      %v2521 = vadd.f32 0.0, %v2520
      %v2522 = vpop.f32.mrb[0].mxu0
      %2523 = vmatprep.mubr.bf16.mxu0 0
      %2524 = vmatmul.mubr.bf16.gmra.mrb[0].mxu0 %v1950
      %v2525 = vpop.f32.mrb[0].mxu0
      %v2526 = vadd.f32 0.0, %v2525
      %v2527 = vpop.f32.mrb[0].mxu0
      %v2528 = vpop.f32.mrb[0].mxu0
      %v2529 = vadd.f32 0.0, %v2528
      %v2530 = vpop.f32.mrb[0].mxu0
      %2531 = vmatprep.mubr.bf16.mxu0 0
      %2532 = vmatmul.mubr.bf16.gmra.mrb[0].mxu0 %v1951
      %v2533 = vpop.f32.mrb[0].mxu0
      %v2534 = vadd.f32 0.0, %v2533
      %v2535 = vpop.f32.mrb[0].mxu0
      %v2536 = vpop.f32.mrb[0].mxu0
      %v2537 = vadd.f32 0.0, %v2536
      %v2538 = vpop.f32.mrb[0].mxu0
      %2539 = vmatprep.mubr.bf16.mxu0 0
      %2540 = vmatmul.mubr.bf16.gmra.mrb[0].mxu0 %v1952
      %v2541 = vpop.f32.mrb[0].mxu0
      %v2542 = vadd.f32 0.0, %v2541
      %v2543 = vpop.f32.mrb[0].mxu0
      %v2544 = vpop.f32.mrb[0].mxu0
      %v2545 = vadd.f32 0.0, %v2544
      %v2546 = vpop.f32.mrb[0].mxu0
      %2547 = vmatprep.mubr.bf16.mxu0 0
      %2548 = vmatmul.mubr.bf16.gmra.mrb[0].mxu0 %v1953
      %v2549 = vpop.f32.mrb[0].mxu0
      %v2550 = vadd.f32 0.0, %v2549
      %v2551 = vpop.f32.mrb[0].mxu0
      %v2552 = vpop.f32.mrb[0].mxu0
      %v2553 = vadd.f32 0.0, %v2552
      %v2554 = vpop.f32.mrb[0].mxu0
      %2555 = vmatprep.mubr.bf16.mxu0 0
      %2556 = vmatmul.mubr.bf16.gmra.mrb[0].mxu0 %v1954
      %v2557 = vpop.f32.mrb[0].mxu0
      %v2558 = vadd.f32 0.0, %v2557
      %v2559 = vpop.f32.mrb[0].mxu0
      %v2560 = vpop.f32.mrb[0].mxu0
      %v2561 = vadd.f32 0.0, %v2560
      %v2562 = vpop.f32.mrb[0].mxu0
      %2563 = vmatprep.mubr.bf16.mxu0 0
      %2564 = vmatmul.mubr.bf16.gmra.mrb[0].mxu0 %v1955
      %v2565 = vpop.f32.mrb[0].mxu0
      %v2566 = vadd.f32 0.0, %v2565
      %v2567 = vpop.f32.mrb[0].mxu0
      %v2568 = vpop.f32.mrb[0].mxu0
      %v2569 = vadd.f32 0.0, %v2568
      %v2570 = vpop.f32.mrb[0].mxu0
      %2571 = vmatprep.mubr.bf16.mxu0 0
      %2572 = vmatmul.mubr.bf16.gmra.mrb[0].mxu0 %v1956
      %v2573 = vpop.f32.mrb[0].mxu0
      %v2574 = vadd.f32 0.0, %v2573
      %v2575 = vpop.f32.mrb[0].mxu0
      %v2576 = vpop.f32.mrb[0].mxu0
      %v2577 = vadd.f32 0.0, %v2576
      %v2578 = vpop.f32.mrb[0].mxu0
      %2579 = vmatprep.mubr.bf16.mxu0 0
      %2580 = vmatmul.mubr.bf16.gmra.mrb[0].mxu0 %v1957
      %v2581 = vpop.f32.mrb[0].mxu0
      %v2582 = vadd.f32 0.0, %v2581
      %v2583 = vpop.f32.mrb[0].mxu0
      %v2584 = vpop.f32.mrb[0].mxu0
      %v2585 = vadd.f32 0.0, %v2584
      %v2586 = vpop.f32.mrb[0].mxu0
      %2587 = vmatprep.mubr.bf16.mxu0 0
      %2588 = vmatmul.mubr.bf16.gmra.mrb[0].mxu0 %v1958
      %v2589 = vpop.f32.mrb[0].mxu0
      %v2590 = vadd.f32 0.0, %v2589
      %v2591 = vpop.f32.mrb[0].mxu0
      %v2592 = vpop.f32.mrb[0].mxu0
      %v2593 = vadd.f32 0.0, %v2592
      %v2594 = vpop.f32.mrb[0].mxu0
      %2595 = vmatprep.mubr.bf16.mxu0 0
      %2596 = vmatmul.mubr.bf16.gmra.mrb[0].mxu0 %v1959
      %v2597 = vpop.f32.mrb[0].mxu0
      %v2598 = vadd.f32 0.0, %v2597
      %v2599 = vpop.f32.mrb[0].mxu0
      %v2600 = vpop.f32.mrb[0].mxu0
      %v2601 = vadd.f32 0.0, %v2600
      %v2602 = vpop.f32.mrb[0].mxu0
      %2603 = vmatprep.mubr.bf16.mxu0 0
      %2604 = vmatmul.mubr.bf16.gmra.mrb[0].mxu0 %v1960
      %v2605 = vpop.f32.mrb[0].mxu0
      %v2606 = vadd.f32 0.0, %v2605
      %v2607 = vpop.f32.mrb[0].mxu0
      %v2608 = vpop.f32.mrb[0].mxu0
      %v2609 = vadd.f32 0.0, %v2608
      %v2610 = vpop.f32.mrb[0].mxu0
      %2611 = vmatprep.mubr.bf16.mxu0 0
      %2612 = vmatmul.mubr.bf16.gmra.mrb[0].mxu0 %v1961
      %v2613 = vpop.f32.mrb[0].mxu0
      %v2614 = vadd.f32 0.0, %v2613
      %v2615 = vpop.f32.mrb[0].mxu0
      %v2616 = vpop.f32.mrb[0].mxu0
      %v2617 = vadd.f32 0.0, %v2616
      %v2618 = vpop.f32.mrb[0].mxu0
      %2619 = vmatprep.mubr.bf16.mxu0 0
      %2620 = vmatmul.mubr.bf16.gmra.mrb[0].mxu0 %v1962
      %v2621 = vpop.f32.mrb[0].mxu0
      %v2622 = vadd.f32 0.0, %v2621
      %v2623 = vpop.f32.mrb[0].mxu0
      %v2624 = vpop.f32.mrb[0].mxu0
      %v2625 = vadd.f32 0.0, %v2624
      %v2626 = vpop.f32.mrb[0].mxu0
      %2627 = vmatprep.mubr.bf16.mxu0 0
      %2628 = vmatmul.mubr.bf16.gmra.mrb[0].mxu0 %v1963
      %v2629 = vpop.f32.mrb[0].mxu0
      %v2630 = vadd.f32 0.0, %v2629
      %v2631 = vpop.f32.mrb[0].mxu0
      %v2632 = vpop.f32.mrb[0].mxu0
      %v2633 = vadd.f32 0.0, %v2632
      %v2634 = vpop.f32.mrb[0].mxu0
      %2635 = vmatprep.mubr.bf16.mxu0 0
      %2636 = vmatmul.mubr.bf16.gmra.mrb[0].mxu0 %v1964
      %v2637 = vpop.f32.mrb[0].mxu0
      %v2638 = vadd.f32 0.0, %v2637
      %v2639 = vpop.f32.mrb[0].mxu0
      %v2640 = vpop.f32.mrb[0].mxu0
      %v2641 = vadd.f32 0.0, %v2640
      %v2642 = vpop.f32.mrb[0].mxu0
      %2643 = vmatprep.mubr.bf16.mxu0 0
      %2644 = vmatmul.mubr.bf16.gmra.mrb[0].mxu0 %v1965
      %v2645 = vpop.f32.mrb[0].mxu0
      %v2646 = vadd.f32 0.0, %v2645
      %v2647 = vpop.f32.mrb[0].mxu0
      %v2648 = vpop.f32.mrb[0].mxu0
      %v2649 = vadd.f32 0.0, %v2648
      %v2650 = vpop.f32.mrb[0].mxu0
      %2651 = vdwg.mxu0
      %v2652 = vadd.f32 %v2374, %v2510
      %v2653 = vadd.f32 %v2375, %v2513
      %v2654 = vadd.f32 %v2376, %v2518
      %v2655 = vadd.f32 %v2377, %v2521
      %v2656 = vadd.f32 %v2378, %v2526
      %v2657 = vadd.f32 %v2379, %v2529
      %v2658 = vadd.f32 %v2380, %v2534
      %v2659 = vadd.f32 %v2381, %v2537
      %v2660 = vadd.f32 %v2382, %v2542
      %v2661 = vadd.f32 %v2383, %v2545
      %v2662 = vadd.f32 %v2384, %v2550
      %v2663 = vadd.f32 %v2385, %v2553
      %v2664 = vadd.f32 %v2386, %v2558
      %v2665 = vadd.f32 %v2387, %v2561
      %v2666 = vadd.f32 %v2388, %v2566
      %v2667 = vadd.f32 %v2389, %v2569
      %v2668 = vadd.f32 %v2390, %v2574
      %v2669 = vadd.f32 %v2391, %v2577
      %v2670 = vadd.f32 %v2392, %v2582
      %v2671 = vadd.f32 %v2393, %v2585
      %v2672 = vadd.f32 %v2394, %v2590
      %v2673 = vadd.f32 %v2395, %v2593
      %v2674 = vadd.f32 %v2396, %v2598
      %v2675 = vadd.f32 %v2397, %v2601
      %v2676 = vadd.f32 %v2398, %v2606
      %v2677 = vadd.f32 %v2399, %v2609
      %v2678 = vadd.f32 %v2400, %v2614
      %v2679 = vadd.f32 %v2401, %v2617
      %v2680 = vadd.f32 %v2402, %v2622
      %v2681 = vadd.f32 %v2403, %v2625
      %v2682 = vadd.f32 %v2404, %v2630
      %v2683 = vadd.f32 %v2405, %v2633
      %v2684 = vadd.f32 %v2406, %v2638
      %v2685 = vadd.f32 %v2407, %v2641
      %v2686 = vadd.f32 %v2408, %v2646
      %v2687 = vadd.f32 %v2409, %v2649
      %v2688 = vld [vmem:[#allocation2 + $0x10] sm:$0xff]
      %v2689 = vld [vmem:[#allocation2 + $0x18] sm:$0xff]
      %v2690 = vld [vmem:[#allocation2 + $0x20] sm:$0xff]
      %v2691 = vld [vmem:[#allocation2 + $0x28] sm:$0xff]
      %v2692 = vld [vmem:[#allocation2 + $0x30] sm:$0xff]
      %v2693 = vld [vmem:[#allocation2 + $0x38] sm:$0xff]
      %v2694 = vld [vmem:[#allocation2 + $0x40] sm:$0xff]
      %v2695 = vld [vmem:[#allocation2 + $0x48] sm:$0xff]
      %v2696 = vld [vmem:[#allocation2 + $0x50] sm:$0xff]
      %v2697 = vld [vmem:[#allocation2 + $0x58] sm:$0xff]
      %v2698 = vld [vmem:[#allocation2 + $0x60] sm:$0xff]
      %v2699 = vld [vmem:[#allocation2 + $0x68] sm:$0xff]
      %v2700 = vld [vmem:[#allocation2 + $0x70] sm:$0xff]
      %v2701 = vld [vmem:[#allocation2 + $0x78] sm:$0xff]
      %v2702 = vld [vmem:[#allocation2 + $0x80] sm:$0xff]
      %v2703 = vld [vmem:[#allocation2 + $0x88] sm:$0xff]
      %v2704 = vld [vmem:[#allocation2 + $0x90] sm:$0xff]
      %v2705 = vld [vmem:[#allocation2 + $0x98] sm:$0xff]
      %v2706 = vld [vmem:[#allocation2 + $0xa0] sm:$0x1]
      %s2707 = scalar_lea.vmem %s4, 320
      %v2708 = vld [vmem:[%s2707] sm:$0xf]
      %v2709 = vld [vmem:[%s2707 + $0x4] sm:$0xf]
      %v2710 = vld [vmem:[%s2707 + $0x8] sm:$0xf]
      %v2711 = vld [vmem:[%s2707 + $0xc] sm:$0xf]
      %v2712 = vld [vmem:[%s2707 + $0x10] sm:$0xf]
      %v2713 = vld [vmem:[%s2707 + $0x14] sm:$0xf]
      %v2714 = vld [vmem:[%s2707 + $0x18] sm:$0xf]
      %v2715 = vld [vmem:[%s2707 + $0x1c] sm:$0xf]
      %v2716 = vld [vmem:[%s2707 + $0x20] sm:$0xf]
      %v2717 = vld [vmem:[%s2707 + $0x24] sm:$0xf]
      %v2718 = vld [vmem:[%s2707 + $0x28] sm:$0xf]
      %v2719 = vld [vmem:[%s2707 + $0x2c] sm:$0xf]
      %v2720 = vld [vmem:[%s2707 + $0x30] sm:$0xf]
      %v2721 = vld [vmem:[%s2707 + $0x34] sm:$0xf]
      %v2722 = vld [vmem:[%s2707 + $0x38] sm:$0xf]
      %v2723 = vld [vmem:[%s2707 + $0x3c] sm:$0xf]
      %vm2724 = vsmask.f32 7424
      %v2726 = vshrl.u32 %v2688, 16
      %v2728 = vshll.u32 %v2688, 16
      %v2730 = vrot.slane %v2728, 1
      %v2731 = vor.u32 %v2726, %v2730
      %v2733 = vshll.u32 %v2689, 16
      %v2735 = vrot.slane %v2733, 1
      %v2736 = vsel %vm2724, %v2731, %v2735
      %v2737 = vshrl.u32 %v2689, 16
      %v2739 = vor.u32 %v2737, %v2735
      %v2741 = vshll.u32 %v2690, 16
      %v2743 = vrot.slane %v2741, 1
      %v2744 = vsel %vm2724, %v2739, %v2743
      %v2745 = vshrl.u32 %v2690, 16
      %v2747 = vor.u32 %v2745, %v2743
      %v2749 = vshll.u32 %v2691, 16
      %v2751 = vrot.slane %v2749, 1
      %v2752 = vsel %vm2724, %v2747, %v2751
      %v2753 = vshrl.u32 %v2691, 16
      %v2755 = vor.u32 %v2753, %v2751
      %v2757 = vshll.u32 %v2692, 16
      %v2759 = vrot.slane %v2757, 1
      %v2760 = vsel %vm2724, %v2755, %v2759
      %v2761 = vshrl.u32 %v2692, 16
      %v2763 = vor.u32 %v2761, %v2759
      %v2765 = vshll.u32 %v2693, 16
      %v2767 = vrot.slane %v2765, 1
      %v2768 = vsel %vm2724, %v2763, %v2767
      %v2769 = vshrl.u32 %v2693, 16
      %v2771 = vor.u32 %v2769, %v2767
      %v2773 = vshll.u32 %v2694, 16
      %v2775 = vrot.slane %v2773, 1
      %v2776 = vsel %vm2724, %v2771, %v2775
      %v2777 = vshrl.u32 %v2694, 16
      %v2779 = vor.u32 %v2777, %v2775
      %v2781 = vshll.u32 %v2695, 16
      %v2783 = vrot.slane %v2781, 1
      %v2784 = vsel %vm2724, %v2779, %v2783
      %v2785 = vshrl.u32 %v2695, 16
      %v2787 = vor.u32 %v2785, %v2783
      %v2789 = vshll.u32 %v2696, 16
      %v2791 = vrot.slane %v2789, 1
      %v2792 = vsel %vm2724, %v2787, %v2791
      %v2793 = vshrl.u32 %v2696, 16
      %v2795 = vor.u32 %v2793, %v2791
      %v2797 = vshll.u32 %v2697, 16
      %v2799 = vrot.slane %v2797, 1
      %v2800 = vsel %vm2724, %v2795, %v2799
      %v2801 = vshrl.u32 %v2697, 16
      %v2803 = vor.u32 %v2801, %v2799
      %v2805 = vshll.u32 %v2698, 16
      %v2807 = vrot.slane %v2805, 1
      %v2808 = vsel %vm2724, %v2803, %v2807
      %v2809 = vshrl.u32 %v2698, 16
      %v2811 = vor.u32 %v2809, %v2807
      %v2813 = vshll.u32 %v2699, 16
      %v2815 = vrot.slane %v2813, 1
      %v2816 = vsel %vm2724, %v2811, %v2815
      %v2817 = vshrl.u32 %v2699, 16
      %v2819 = vor.u32 %v2817, %v2815
      %v2821 = vshll.u32 %v2700, 16
      %v2823 = vrot.slane %v2821, 1
      %v2824 = vsel %vm2724, %v2819, %v2823
      %v2825 = vshrl.u32 %v2700, 16
      %v2827 = vor.u32 %v2825, %v2823
      %v2829 = vshll.u32 %v2701, 16
      %v2831 = vrot.slane %v2829, 1
      %v2832 = vsel %vm2724, %v2827, %v2831
      %v2833 = vshrl.u32 %v2701, 16
      %v2835 = vor.u32 %v2833, %v2831
      %v2837 = vshll.u32 %v2702, 16
      %v2839 = vrot.slane %v2837, 1
      %v2840 = vsel %vm2724, %v2835, %v2839
      %v2841 = vshrl.u32 %v2702, 16
      %v2843 = vor.u32 %v2841, %v2839
      %v2845 = vshll.u32 %v2703, 16
      %v2847 = vrot.slane %v2845, 1
      %v2848 = vsel %vm2724, %v2843, %v2847
      %v2849 = vshrl.u32 %v2703, 16
      %v2851 = vor.u32 %v2849, %v2847
      %v2853 = vshll.u32 %v2704, 16
      %v2855 = vrot.slane %v2853, 1
      %v2856 = vsel %vm2724, %v2851, %v2855
      %v2857 = vshrl.u32 %v2704, 16
      %v2859 = vor.u32 %v2857, %v2855
      %v2861 = vshll.u32 %v2705, 16
      %v2863 = vrot.slane %v2861, 1
      %v2864 = vsel %vm2724, %v2859, %v2863
      %v2865 = vshrl.u32 %v2705, 16
      %v2867 = vor.u32 %v2865, %v2863
      %v2869 = vshll.u32 %v2706, 16
      %v2871 = vrot.slane %v2869, 1
      %v2872 = vsel %vm2724, %v2867, %v2871
      %v2907 = vunpack.c.l.b16 %v2708
      %v2908 = vunpack.c.l.b16 %v2709
      %v2909 = vunpack.c.l.b16 %v2710
      %v2910 = vunpack.c.l.b16 %v2711
      %v2911 = vunpack.c.l.b16 %v2712
      %v2912 = vunpack.c.l.b16 %v2713
      %v2913 = vunpack.c.l.b16 %v2714
      %v2914 = vunpack.c.l.b16 %v2715
      %v2915 = vunpack.c.l.b16 %v2716
      %v2916 = vunpack.c.l.b16 %v2717
      %v2917 = vunpack.c.l.b16 %v2718
      %v2918 = vunpack.c.l.b16 %v2719
      %v2919 = vunpack.c.l.b16 %v2720
      %v2920 = vunpack.c.l.b16 %v2721
      %v2921 = vunpack.c.l.b16 %v2722
      %v2922 = vunpack.c.l.b16 %v2723
      %v2923 = vpack.c.b16 %v2908, %v2907
      %v2924 = vpack.c.b16 %v2910, %v2909
      %v2925 = vpack.c.b16 %v2912, %v2911
      %v2926 = vpack.c.b16 %v2914, %v2913
      %v2927 = vpack.c.b16 %v2916, %v2915
      %v2928 = vpack.c.b16 %v2918, %v2917
      %v2929 = vpack.c.b16 %v2920, %v2919
      %v2930 = vpack.c.b16 %v2922, %v2921
      %2939 = vmatprep.subr.bf16.mxu0 0
      %2940 = vmatpush1.bf16.msra.mxu0 %v2923
      %2941 = vmatprep.subr.bf16.mxu0 0
      %2942 = vmatpush1.bf16.msra.mxu0 %v2924
      %2943 = vmatprep.subr.bf16.mxu0 0
      %2944 = vmatpush1.bf16.msra.mxu0 %v2925
      %2945 = vmatprep.subr.bf16.mxu0 0
      %2946 = vmatpush1.bf16.msra.mxu0 %v2926
      %2947 = vmatprep.subr.bf16.mxu0 0
      %2948 = vmatpush1.bf16.msra.mxu0 %v2927
      %2949 = vmatprep.subr.bf16.mxu0 0
      %2950 = vmatpush1.bf16.msra.mxu0 %v2928
      %2951 = vmatprep.subr.bf16.mxu0 0
      %2952 = vmatpush1.bf16.msra.mxu0 %v2929
      %2953 = vmatprep.subr.bf16.mxu0 0
      %2954 = vmatpush1.bf16.msra.mxu0 %v2930
      %2955 = vmatprep.subr.bf16.mxu0 0
      %2956 = vmatpush1.bf16.msra.mxu0 0
      %2957 = vmatprep.subr.bf16.mxu0 0
      %2958 = vmatpush1.bf16.msra.mxu0 0
      %2959 = vmatprep.subr.bf16.mxu0 0
      %2960 = vmatpush1.bf16.msra.mxu0 0
      %2961 = vmatprep.subr.bf16.mxu0 0
      %2962 = vmatpush1.bf16.msra.mxu0 0
      %2963 = vmatprep.subr.bf16.mxu0 0
      %2964 = vmatpush1.bf16.msra.mxu0 0
      %2965 = vmatprep.subr.bf16.mxu0 0
      %2966 = vmatpush1.bf16.msra.mxu0 0
      %2967 = vmatprep.subr.bf16.mxu0 0
      %2968 = vmatpush1.bf16.msra.mxu0 0
      %2969 = vmatprep.subr.bf16.mxu0 0
      %2970 = vmatpush1.bf16.msra.mxu0 0
      %2971 = vmatprep.mubr.bf16.mxu0 0
      %2972 = vmatmul.mubr.bf16.gmra.mrb[0].mxu0 %v2736
      %v2973 = vpop.f32.mrb[0].mxu0
      %v2974 = vadd.f32 0.0, %v2973
      %v2975 = vpop.f32.mrb[0].mxu0
      %v2976 = vpop.f32.mrb[0].mxu0
      %v2977 = vadd.f32 0.0, %v2976
      %v2978 = vpop.f32.mrb[0].mxu0
      %2979 = vmatprep.mubr.bf16.mxu0 0
      %2980 = vmatmul.mubr.bf16.gmra.mrb[0].mxu0 %v2744
      %v2981 = vpop.f32.mrb[0].mxu0
      %v2982 = vadd.f32 0.0, %v2981
      %v2983 = vpop.f32.mrb[0].mxu0
      %v2984 = vpop.f32.mrb[0].mxu0
      %v2985 = vadd.f32 0.0, %v2984
      %v2986 = vpop.f32.mrb[0].mxu0
      %2987 = vmatprep.mubr.bf16.mxu0 0
      %2988 = vmatmul.mubr.bf16.gmra.mrb[0].mxu0 %v2752
      %v2989 = vpop.f32.mrb[0].mxu0
      %v2990 = vadd.f32 0.0, %v2989
      %v2991 = vpop.f32.mrb[0].mxu0
      %v2992 = vpop.f32.mrb[0].mxu0
      %v2993 = vadd.f32 0.0, %v2992
      %v2994 = vpop.f32.mrb[0].mxu0
      %2995 = vmatprep.mubr.bf16.mxu0 0
      %2996 = vmatmul.mubr.bf16.gmra.mrb[0].mxu0 %v2760
      %v2997 = vpop.f32.mrb[0].mxu0
      %v2998 = vadd.f32 0.0, %v2997
      %v2999 = vpop.f32.mrb[0].mxu0
      %v3000 = vpop.f32.mrb[0].mxu0
      %v3001 = vadd.f32 0.0, %v3000
      %v3002 = vpop.f32.mrb[0].mxu0
      %3003 = vmatprep.mubr.bf16.mxu0 0
      %3004 = vmatmul.mubr.bf16.gmra.mrb[0].mxu0 %v2768
      %v3005 = vpop.f32.mrb[0].mxu0
      %v3006 = vadd.f32 0.0, %v3005
      %v3007 = vpop.f32.mrb[0].mxu0
      %v3008 = vpop.f32.mrb[0].mxu0
      %v3009 = vadd.f32 0.0, %v3008
      %v3010 = vpop.f32.mrb[0].mxu0
      %3011 = vmatprep.mubr.bf16.mxu0 0
      %3012 = vmatmul.mubr.bf16.gmra.mrb[0].mxu0 %v2776
      %v3013 = vpop.f32.mrb[0].mxu0
      %v3014 = vadd.f32 0.0, %v3013
      %v3015 = vpop.f32.mrb[0].mxu0
      %v3016 = vpop.f32.mrb[0].mxu0
      %v3017 = vadd.f32 0.0, %v3016
      %v3018 = vpop.f32.mrb[0].mxu0
      %3019 = vmatprep.mubr.bf16.mxu0 0
      %3020 = vmatmul.mubr.bf16.gmra.mrb[0].mxu0 %v2784
      %v3021 = vpop.f32.mrb[0].mxu0
      %v3022 = vadd.f32 0.0, %v3021
      %v3023 = vpop.f32.mrb[0].mxu0
      %v3024 = vpop.f32.mrb[0].mxu0
      %v3025 = vadd.f32 0.0, %v3024
      %v3026 = vpop.f32.mrb[0].mxu0
      %3027 = vmatprep.mubr.bf16.mxu0 0
      %3028 = vmatmul.mubr.bf16.gmra.mrb[0].mxu0 %v2792
      %v3029 = vpop.f32.mrb[0].mxu0
      %v3030 = vadd.f32 0.0, %v3029
      %v3031 = vpop.f32.mrb[0].mxu0
      %v3032 = vpop.f32.mrb[0].mxu0
      %v3033 = vadd.f32 0.0, %v3032
      %v3034 = vpop.f32.mrb[0].mxu0
      %3035 = vmatprep.mubr.bf16.mxu0 0
      %3036 = vmatmul.mubr.bf16.gmra.mrb[0].mxu0 %v2800
      %v3037 = vpop.f32.mrb[0].mxu0
      %v3038 = vadd.f32 0.0, %v3037
      %v3039 = vpop.f32.mrb[0].mxu0
      %v3040 = vpop.f32.mrb[0].mxu0
      %v3041 = vadd.f32 0.0, %v3040
      %v3042 = vpop.f32.mrb[0].mxu0
      %3043 = vmatprep.mubr.bf16.mxu0 0
      %3044 = vmatmul.mubr.bf16.gmra.mrb[0].mxu0 %v2808
      %v3045 = vpop.f32.mrb[0].mxu0
      %v3046 = vadd.f32 0.0, %v3045
      %v3047 = vpop.f32.mrb[0].mxu0
      %v3048 = vpop.f32.mrb[0].mxu0
      %v3049 = vadd.f32 0.0, %v3048
      %v3050 = vpop.f32.mrb[0].mxu0
      %3051 = vmatprep.mubr.bf16.mxu0 0
      %3052 = vmatmul.mubr.bf16.gmra.mrb[0].mxu0 %v2816
      %v3053 = vpop.f32.mrb[0].mxu0
      %v3054 = vadd.f32 0.0, %v3053
      %v3055 = vpop.f32.mrb[0].mxu0
      %v3056 = vpop.f32.mrb[0].mxu0
      %v3057 = vadd.f32 0.0, %v3056
      %v3058 = vpop.f32.mrb[0].mxu0
      %3059 = vmatprep.mubr.bf16.mxu0 0
      %3060 = vmatmul.mubr.bf16.gmra.mrb[0].mxu0 %v2824
      %v3061 = vpop.f32.mrb[0].mxu0
      %v3062 = vadd.f32 0.0, %v3061
      %v3063 = vpop.f32.mrb[0].mxu0
      %v3064 = vpop.f32.mrb[0].mxu0
      %v3065 = vadd.f32 0.0, %v3064
      %v3066 = vpop.f32.mrb[0].mxu0
      %3067 = vmatprep.mubr.bf16.mxu0 0
      %3068 = vmatmul.mubr.bf16.gmra.mrb[0].mxu0 %v2832
      %v3069 = vpop.f32.mrb[0].mxu0
      %v3070 = vadd.f32 0.0, %v3069
      %v3071 = vpop.f32.mrb[0].mxu0
      %v3072 = vpop.f32.mrb[0].mxu0
      %v3073 = vadd.f32 0.0, %v3072
      %v3074 = vpop.f32.mrb[0].mxu0
      %3075 = vmatprep.mubr.bf16.mxu0 0
      %3076 = vmatmul.mubr.bf16.gmra.mrb[0].mxu0 %v2840
      %v3077 = vpop.f32.mrb[0].mxu0
      %v3078 = vadd.f32 0.0, %v3077
      %v3079 = vpop.f32.mrb[0].mxu0
      %v3080 = vpop.f32.mrb[0].mxu0
      %v3081 = vadd.f32 0.0, %v3080
      %v3082 = vpop.f32.mrb[0].mxu0
      %3083 = vmatprep.mubr.bf16.mxu0 0
      %3084 = vmatmul.mubr.bf16.gmra.mrb[0].mxu0 %v2848
      %v3085 = vpop.f32.mrb[0].mxu0
      %v3086 = vadd.f32 0.0, %v3085
      %v3087 = vpop.f32.mrb[0].mxu0
      %v3088 = vpop.f32.mrb[0].mxu0
      %v3089 = vadd.f32 0.0, %v3088
      %v3090 = vpop.f32.mrb[0].mxu0
      %3091 = vmatprep.mubr.bf16.mxu0 0
      %3092 = vmatmul.mubr.bf16.gmra.mrb[0].mxu0 %v2856
      %v3093 = vpop.f32.mrb[0].mxu0
      %v3094 = vadd.f32 0.0, %v3093
      %v3095 = vpop.f32.mrb[0].mxu0
      %v3096 = vpop.f32.mrb[0].mxu0
      %v3097 = vadd.f32 0.0, %v3096
      %v3098 = vpop.f32.mrb[0].mxu0
      %3099 = vmatprep.mubr.bf16.mxu0 0
      %3100 = vmatmul.mubr.bf16.gmra.mrb[0].mxu0 %v2864
      %v3101 = vpop.f32.mrb[0].mxu0
      %v3102 = vadd.f32 0.0, %v3101
      %v3103 = vpop.f32.mrb[0].mxu0
      %v3104 = vpop.f32.mrb[0].mxu0
      %v3105 = vadd.f32 0.0, %v3104
      %v3106 = vpop.f32.mrb[0].mxu0
      %3107 = vmatprep.mubr.bf16.mxu0 0
      %3108 = vmatmul.mubr.bf16.gmra.mrb[0].mxu0 %v2872
      %v3109 = vpop.f32.mrb[0].mxu0
      %v3110 = vadd.f32 0.0, %v3109
      %v3111 = vpop.f32.mrb[0].mxu0
      %v3112 = vpop.f32.mrb[0].mxu0
      %v3113 = vadd.f32 0.0, %v3112
      %v3114 = vpop.f32.mrb[0].mxu0
      %3115 = vdwg.mxu0
      %v3116 = vadd.f32 %v2652, %v2974
      %v3117 = vadd.f32 %v2653, %v2977
      %v3118 = vadd.f32 %v2654, %v2982
      %v3119 = vadd.f32 %v2655, %v2985
      %v3120 = vadd.f32 %v2656, %v2990
      %v3121 = vadd.f32 %v2657, %v2993
      %v3122 = vadd.f32 %v2658, %v2998
      %v3123 = vadd.f32 %v2659, %v3001
      %v3124 = vadd.f32 %v2660, %v3006
      %v3125 = vadd.f32 %v2661, %v3009
      %v3126 = vadd.f32 %v2662, %v3014
      %v3127 = vadd.f32 %v2663, %v3017
      %v3128 = vadd.f32 %v2664, %v3022
      %v3129 = vadd.f32 %v2665, %v3025
      %v3130 = vadd.f32 %v2666, %v3030
      %v3131 = vadd.f32 %v2667, %v3033
      %v3132 = vadd.f32 %v2668, %v3038
      %v3133 = vadd.f32 %v2669, %v3041
      %v3134 = vadd.f32 %v2670, %v3046
      %v3135 = vadd.f32 %v2671, %v3049
      %v3136 = vadd.f32 %v2672, %v3054
      %v3137 = vadd.f32 %v2673, %v3057
      %v3138 = vadd.f32 %v2674, %v3062
      %v3139 = vadd.f32 %v2675, %v3065
      %v3140 = vadd.f32 %v2676, %v3070
      %v3141 = vadd.f32 %v2677, %v3073
      %v3142 = vadd.f32 %v2678, %v3078
      %v3143 = vadd.f32 %v2679, %v3081
      %v3144 = vadd.f32 %v2680, %v3086
      %v3145 = vadd.f32 %v2681, %v3089
      %v3146 = vadd.f32 %v2682, %v3094
      %v3147 = vadd.f32 %v2683, %v3097
      %v3148 = vadd.f32 %v2684, %v3102
      %v3149 = vadd.f32 %v2685, %v3105
      %v3150 = vadd.f32 %v2686, %v3110
      %v3151 = vadd.f32 %v2687, %v3113
      %v3152 = vld [vmem:[#allocation2 + $0x18] sm:$0xff]
      %v3153 = vld [vmem:[#allocation2 + $0x20] sm:$0xff]
      %v3154 = vld [vmem:[#allocation2 + $0x28] sm:$0xff]
      %v3155 = vld [vmem:[#allocation2 + $0x30] sm:$0xff]
      %v3156 = vld [vmem:[#allocation2 + $0x38] sm:$0xff]
      %v3157 = vld [vmem:[#allocation2 + $0x40] sm:$0xff]
      %v3158 = vld [vmem:[#allocation2 + $0x48] sm:$0xff]
      %v3159 = vld [vmem:[#allocation2 + $0x50] sm:$0xff]
      %v3160 = vld [vmem:[#allocation2 + $0x58] sm:$0xff]
      %v3161 = vld [vmem:[#allocation2 + $0x60] sm:$0xff]
      %v3162 = vld [vmem:[#allocation2 + $0x68] sm:$0xff]
      %v3163 = vld [vmem:[#allocation2 + $0x70] sm:$0xff]
      %v3164 = vld [vmem:[#allocation2 + $0x78] sm:$0xff]
      %v3165 = vld [vmem:[#allocation2 + $0x80] sm:$0xff]
      %v3166 = vld [vmem:[#allocation2 + $0x88] sm:$0xff]
      %v3167 = vld [vmem:[#allocation2 + $0x90] sm:$0xff]
      %v3168 = vld [vmem:[#allocation2 + $0x98] sm:$0xff]
      %v3169 = vld [vmem:[#allocation2 + $0xa0] sm:$0xff]
      %v3170 = vld [vmem:[#allocation2 + $0xa8] sm:$0x1]
      %s3171 = scalar_lea.vmem %s4, 384
      %v3172 = vld [vmem:[%s3171] sm:$0xf]
      %v3173 = vld [vmem:[%s3171 + $0x4] sm:$0xf]
      %v3174 = vld [vmem:[%s3171 + $0x8] sm:$0xf]
      %v3175 = vld [vmem:[%s3171 + $0xc] sm:$0xf]
      %v3176 = vld [vmem:[%s3171 + $0x10] sm:$0xf]
      %v3177 = vld [vmem:[%s3171 + $0x14] sm:$0xf]
      %v3178 = vld [vmem:[%s3171 + $0x18] sm:$0xf]
      %v3179 = vld [vmem:[%s3171 + $0x1c] sm:$0xf]
      %v3180 = vld [vmem:[%s3171 + $0x20] sm:$0xf]
      %v3181 = vld [vmem:[%s3171 + $0x24] sm:$0xf]
      %v3182 = vld [vmem:[%s3171 + $0x28] sm:$0xf]
      %v3183 = vld [vmem:[%s3171 + $0x2c] sm:$0xf]
      %v3184 = vld [vmem:[%s3171 + $0x30] sm:$0xf]
      %v3185 = vld [vmem:[%s3171 + $0x34] sm:$0xf]
      %v3186 = vld [vmem:[%s3171 + $0x38] sm:$0xf]
      %v3187 = vld [vmem:[%s3171 + $0x3c] sm:$0xf]
      %v3189 = vshrl.u32 %v3152, 16
      %v3191 = vshll.u32 %v3152, 16
      %v3193 = vrot.slane %v3191, 1
      %v3194 = vor.u32 %v3189, %v3193
      %v3196 = vshll.u32 %v3153, 16
      %v3198 = vrot.slane %v3196, 1
      %v3199 = vsel %vm2724, %v3194, %v3198
      %v3200 = vshrl.u32 %v3153, 16
      %v3202 = vor.u32 %v3200, %v3198
      %v3204 = vshll.u32 %v3154, 16
      %v3206 = vrot.slane %v3204, 1
      %v3207 = vsel %vm2724, %v3202, %v3206
      %v3208 = vshrl.u32 %v3154, 16
      %v3210 = vor.u32 %v3208, %v3206
      %v3212 = vshll.u32 %v3155, 16
      %v3214 = vrot.slane %v3212, 1
      %v3215 = vsel %vm2724, %v3210, %v3214
      %v3216 = vshrl.u32 %v3155, 16
      %v3218 = vor.u32 %v3216, %v3214
      %v3220 = vshll.u32 %v3156, 16
      %v3222 = vrot.slane %v3220, 1
      %v3223 = vsel %vm2724, %v3218, %v3222
      %v3224 = vshrl.u32 %v3156, 16
      %v3226 = vor.u32 %v3224, %v3222
      %v3228 = vshll.u32 %v3157, 16
      %v3230 = vrot.slane %v3228, 1
      %v3231 = vsel %vm2724, %v3226, %v3230
      %v3232 = vshrl.u32 %v3157, 16
      %v3234 = vor.u32 %v3232, %v3230
      %v3236 = vshll.u32 %v3158, 16
      %v3238 = vrot.slane %v3236, 1
      %v3239 = vsel %vm2724, %v3234, %v3238
      %v3240 = vshrl.u32 %v3158, 16
      %v3242 = vor.u32 %v3240, %v3238
      %v3244 = vshll.u32 %v3159, 16
      %v3246 = vrot.slane %v3244, 1
      %v3247 = vsel %vm2724, %v3242, %v3246
      %v3248 = vshrl.u32 %v3159, 16
      %v3250 = vor.u32 %v3248, %v3246
      %v3252 = vshll.u32 %v3160, 16
      %v3254 = vrot.slane %v3252, 1
      %v3255 = vsel %vm2724, %v3250, %v3254
      %v3256 = vshrl.u32 %v3160, 16
      %v3258 = vor.u32 %v3256, %v3254
      %v3260 = vshll.u32 %v3161, 16
      %v3262 = vrot.slane %v3260, 1
      %v3263 = vsel %vm2724, %v3258, %v3262
      %v3264 = vshrl.u32 %v3161, 16
      %v3266 = vor.u32 %v3264, %v3262
      %v3268 = vshll.u32 %v3162, 16
      %v3270 = vrot.slane %v3268, 1
      %v3271 = vsel %vm2724, %v3266, %v3270
      %v3272 = vshrl.u32 %v3162, 16
      %v3274 = vor.u32 %v3272, %v3270
      %v3276 = vshll.u32 %v3163, 16
      %v3278 = vrot.slane %v3276, 1
      %v3279 = vsel %vm2724, %v3274, %v3278
      %v3280 = vshrl.u32 %v3163, 16
      %v3282 = vor.u32 %v3280, %v3278
      %v3284 = vshll.u32 %v3164, 16
      %v3286 = vrot.slane %v3284, 1
      %v3287 = vsel %vm2724, %v3282, %v3286
      %v3288 = vshrl.u32 %v3164, 16
      %v3290 = vor.u32 %v3288, %v3286
      %v3292 = vshll.u32 %v3165, 16
      %v3294 = vrot.slane %v3292, 1
      %v3295 = vsel %vm2724, %v3290, %v3294
      %v3296 = vshrl.u32 %v3165, 16
      %v3298 = vor.u32 %v3296, %v3294
      %v3300 = vshll.u32 %v3166, 16
      %v3302 = vrot.slane %v3300, 1
      %v3303 = vsel %vm2724, %v3298, %v3302
      %v3304 = vshrl.u32 %v3166, 16
      %v3306 = vor.u32 %v3304, %v3302
      %v3308 = vshll.u32 %v3167, 16
      %v3310 = vrot.slane %v3308, 1
      %v3311 = vsel %vm2724, %v3306, %v3310
      %v3312 = vshrl.u32 %v3167, 16
      %v3314 = vor.u32 %v3312, %v3310
      %v3316 = vshll.u32 %v3168, 16
      %v3318 = vrot.slane %v3316, 1
      %v3319 = vsel %vm2724, %v3314, %v3318
      %v3320 = vshrl.u32 %v3168, 16
      %v3322 = vor.u32 %v3320, %v3318
      %v3324 = vshll.u32 %v3169, 16
      %v3326 = vrot.slane %v3324, 1
      %v3327 = vsel %vm2724, %v3322, %v3326
      %v3328 = vshrl.u32 %v3169, 16
      %v3330 = vor.u32 %v3328, %v3326
      %v3332 = vshll.u32 %v3170, 16
      %v3334 = vrot.slane %v3332, 1
      %v3335 = vsel %vm2724, %v3330, %v3334
      %v3370 = vunpack.c.l.b16 %v3172
      %v3371 = vunpack.c.l.b16 %v3173
      %v3372 = vunpack.c.l.b16 %v3174
      %v3373 = vunpack.c.l.b16 %v3175
      %v3374 = vunpack.c.l.b16 %v3176
      %v3375 = vunpack.c.l.b16 %v3177
      %v3376 = vunpack.c.l.b16 %v3178
      %v3377 = vunpack.c.l.b16 %v3179
      %v3378 = vunpack.c.l.b16 %v3180
      %v3379 = vunpack.c.l.b16 %v3181
      %v3380 = vunpack.c.l.b16 %v3182
      %v3381 = vunpack.c.l.b16 %v3183
      %v3382 = vunpack.c.l.b16 %v3184
      %v3383 = vunpack.c.l.b16 %v3185
      %v3384 = vunpack.c.l.b16 %v3186
      %v3385 = vunpack.c.l.b16 %v3187
      %v3386 = vpack.c.b16 %v3371, %v3370
      %v3387 = vpack.c.b16 %v3373, %v3372
      %v3388 = vpack.c.b16 %v3375, %v3374
      %v3389 = vpack.c.b16 %v3377, %v3376
      %v3390 = vpack.c.b16 %v3379, %v3378
      %v3391 = vpack.c.b16 %v3381, %v3380
      %v3392 = vpack.c.b16 %v3383, %v3382
      %v3393 = vpack.c.b16 %v3385, %v3384
      %3402 = vmatprep.subr.bf16.mxu0 0
      %3403 = vmatpush1.bf16.msra.mxu0 %v3386
      %3404 = vmatprep.subr.bf16.mxu0 0
      %3405 = vmatpush1.bf16.msra.mxu0 %v3387
      %3406 = vmatprep.subr.bf16.mxu0 0
      %3407 = vmatpush1.bf16.msra.mxu0 %v3388
      %3408 = vmatprep.subr.bf16.mxu0 0
      %3409 = vmatpush1.bf16.msra.mxu0 %v3389
      %3410 = vmatprep.subr.bf16.mxu0 0
      %3411 = vmatpush1.bf16.msra.mxu0 %v3390
      %3412 = vmatprep.subr.bf16.mxu0 0
      %3413 = vmatpush1.bf16.msra.mxu0 %v3391
      %3414 = vmatprep.subr.bf16.mxu0 0
      %3415 = vmatpush1.bf16.msra.mxu0 %v3392
      %3416 = vmatprep.subr.bf16.mxu0 0
      %3417 = vmatpush1.bf16.msra.mxu0 %v3393
      %3418 = vmatprep.subr.bf16.mxu0 0
      %3419 = vmatpush1.bf16.msra.mxu0 0
      %3420 = vmatprep.subr.bf16.mxu0 0
      %3421 = vmatpush1.bf16.msra.mxu0 0
      %3422 = vmatprep.subr.bf16.mxu0 0
      %3423 = vmatpush1.bf16.msra.mxu0 0
      %3424 = vmatprep.subr.bf16.mxu0 0
      %3425 = vmatpush1.bf16.msra.mxu0 0
      %3426 = vmatprep.subr.bf16.mxu0 0
      %3427 = vmatpush1.bf16.msra.mxu0 0
      %3428 = vmatprep.subr.bf16.mxu0 0
      %3429 = vmatpush1.bf16.msra.mxu0 0
      %3430 = vmatprep.subr.bf16.mxu0 0
      %3431 = vmatpush1.bf16.msra.mxu0 0
      %3432 = vmatprep.subr.bf16.mxu0 0
      %3433 = vmatpush1.bf16.msra.mxu0 0
      %3434 = vmatprep.mubr.bf16.mxu0 0
      %3435 = vmatmul.mubr.bf16.gmra.mrb[0].mxu0 %v3199
      %v3436 = vpop.f32.mrb[0].mxu0
      %v3437 = vadd.f32 0.0, %v3436
      %v3438 = vpop.f32.mrb[0].mxu0
      %v3439 = vpop.f32.mrb[0].mxu0
      %v3440 = vadd.f32 0.0, %v3439
      %v3441 = vpop.f32.mrb[0].mxu0
      %3442 = vmatprep.mubr.bf16.mxu0 0
      %3443 = vmatmul.mubr.bf16.gmra.mrb[0].mxu0 %v3207
      %v3444 = vpop.f32.mrb[0].mxu0
      %v3445 = vadd.f32 0.0, %v3444
      %v3446 = vpop.f32.mrb[0].mxu0
      %v3447 = vpop.f32.mrb[0].mxu0
      %v3448 = vadd.f32 0.0, %v3447
      %v3449 = vpop.f32.mrb[0].mxu0
      %3450 = vmatprep.mubr.bf16.mxu0 0
      %3451 = vmatmul.mubr.bf16.gmra.mrb[0].mxu0 %v3215
      %v3452 = vpop.f32.mrb[0].mxu0
      %v3453 = vadd.f32 0.0, %v3452
      %v3454 = vpop.f32.mrb[0].mxu0
      %v3455 = vpop.f32.mrb[0].mxu0
      %v3456 = vadd.f32 0.0, %v3455
      %v3457 = vpop.f32.mrb[0].mxu0
      %3458 = vmatprep.mubr.bf16.mxu0 0
      %3459 = vmatmul.mubr.bf16.gmra.mrb[0].mxu0 %v3223
      %v3460 = vpop.f32.mrb[0].mxu0
      %v3461 = vadd.f32 0.0, %v3460
      %v3462 = vpop.f32.mrb[0].mxu0
      %v3463 = vpop.f32.mrb[0].mxu0
      %v3464 = vadd.f32 0.0, %v3463
      %v3465 = vpop.f32.mrb[0].mxu0
      %3466 = vmatprep.mubr.bf16.mxu0 0
      %3467 = vmatmul.mubr.bf16.gmra.mrb[0].mxu0 %v3231
      %v3468 = vpop.f32.mrb[0].mxu0
      %v3469 = vadd.f32 0.0, %v3468
      %v3470 = vpop.f32.mrb[0].mxu0
      %v3471 = vpop.f32.mrb[0].mxu0
      %v3472 = vadd.f32 0.0, %v3471
      %v3473 = vpop.f32.mrb[0].mxu0
      %3474 = vmatprep.mubr.bf16.mxu0 0
      %3475 = vmatmul.mubr.bf16.gmra.mrb[0].mxu0 %v3239
      %v3476 = vpop.f32.mrb[0].mxu0
      %v3477 = vadd.f32 0.0, %v3476
      %v3478 = vpop.f32.mrb[0].mxu0
      %v3479 = vpop.f32.mrb[0].mxu0
      %v3480 = vadd.f32 0.0, %v3479
      %v3481 = vpop.f32.mrb[0].mxu0
      %3482 = vmatprep.mubr.bf16.mxu0 0
      %3483 = vmatmul.mubr.bf16.gmra.mrb[0].mxu0 %v3247
      %v3484 = vpop.f32.mrb[0].mxu0
      %v3485 = vadd.f32 0.0, %v3484
      %v3486 = vpop.f32.mrb[0].mxu0
      %v3487 = vpop.f32.mrb[0].mxu0
      %v3488 = vadd.f32 0.0, %v3487
      %v3489 = vpop.f32.mrb[0].mxu0
      %3490 = vmatprep.mubr.bf16.mxu0 0
      %3491 = vmatmul.mubr.bf16.gmra.mrb[0].mxu0 %v3255
      %v3492 = vpop.f32.mrb[0].mxu0
      %v3493 = vadd.f32 0.0, %v3492
      %v3494 = vpop.f32.mrb[0].mxu0
      %v3495 = vpop.f32.mrb[0].mxu0
      %v3496 = vadd.f32 0.0, %v3495
      %v3497 = vpop.f32.mrb[0].mxu0
      %3498 = vmatprep.mubr.bf16.mxu0 0
      %3499 = vmatmul.mubr.bf16.gmra.mrb[0].mxu0 %v3263
      %v3500 = vpop.f32.mrb[0].mxu0
      %v3501 = vadd.f32 0.0, %v3500
      %v3502 = vpop.f32.mrb[0].mxu0
      %v3503 = vpop.f32.mrb[0].mxu0
      %v3504 = vadd.f32 0.0, %v3503
      %v3505 = vpop.f32.mrb[0].mxu0
      %3506 = vmatprep.mubr.bf16.mxu0 0
      %3507 = vmatmul.mubr.bf16.gmra.mrb[0].mxu0 %v3271
      %v3508 = vpop.f32.mrb[0].mxu0
      %v3509 = vadd.f32 0.0, %v3508
      %v3510 = vpop.f32.mrb[0].mxu0
      %v3511 = vpop.f32.mrb[0].mxu0
      %v3512 = vadd.f32 0.0, %v3511
      %v3513 = vpop.f32.mrb[0].mxu0
      %3514 = vmatprep.mubr.bf16.mxu0 0
      %3515 = vmatmul.mubr.bf16.gmra.mrb[0].mxu0 %v3279
      %v3516 = vpop.f32.mrb[0].mxu0
      %v3517 = vadd.f32 0.0, %v3516
      %v3518 = vpop.f32.mrb[0].mxu0
      %v3519 = vpop.f32.mrb[0].mxu0
      %v3520 = vadd.f32 0.0, %v3519
      %v3521 = vpop.f32.mrb[0].mxu0
      %3522 = vmatprep.mubr.bf16.mxu0 0
      %3523 = vmatmul.mubr.bf16.gmra.mrb[0].mxu0 %v3287
      %v3524 = vpop.f32.mrb[0].mxu0
      %v3525 = vadd.f32 0.0, %v3524
      %v3526 = vpop.f32.mrb[0].mxu0
      %v3527 = vpop.f32.mrb[0].mxu0
      %v3528 = vadd.f32 0.0, %v3527
      %v3529 = vpop.f32.mrb[0].mxu0
      %3530 = vmatprep.mubr.bf16.mxu0 0
      %3531 = vmatmul.mubr.bf16.gmra.mrb[0].mxu0 %v3295
      %v3532 = vpop.f32.mrb[0].mxu0
      %v3533 = vadd.f32 0.0, %v3532
      %v3534 = vpop.f32.mrb[0].mxu0
      %v3535 = vpop.f32.mrb[0].mxu0
      %v3536 = vadd.f32 0.0, %v3535
      %v3537 = vpop.f32.mrb[0].mxu0
      %3538 = vmatprep.mubr.bf16.mxu0 0
      %3539 = vmatmul.mubr.bf16.gmra.mrb[0].mxu0 %v3303
      %v3540 = vpop.f32.mrb[0].mxu0
      %v3541 = vadd.f32 0.0, %v3540
      %v3542 = vpop.f32.mrb[0].mxu0
      %v3543 = vpop.f32.mrb[0].mxu0
      %v3544 = vadd.f32 0.0, %v3543
      %v3545 = vpop.f32.mrb[0].mxu0
      %3546 = vmatprep.mubr.bf16.mxu0 0
      %3547 = vmatmul.mubr.bf16.gmra.mrb[0].mxu0 %v3311
      %v3548 = vpop.f32.mrb[0].mxu0
      %v3549 = vadd.f32 0.0, %v3548
      %v3550 = vpop.f32.mrb[0].mxu0
      %v3551 = vpop.f32.mrb[0].mxu0
      %v3552 = vadd.f32 0.0, %v3551
      %v3553 = vpop.f32.mrb[0].mxu0
      %3554 = vmatprep.mubr.bf16.mxu0 0
      %3555 = vmatmul.mubr.bf16.gmra.mrb[0].mxu0 %v3319
      %v3556 = vpop.f32.mrb[0].mxu0
      %v3557 = vadd.f32 0.0, %v3556
      %v3558 = vpop.f32.mrb[0].mxu0
      %v3559 = vpop.f32.mrb[0].mxu0
      %v3560 = vadd.f32 0.0, %v3559
      %v3561 = vpop.f32.mrb[0].mxu0
      %3562 = vmatprep.mubr.bf16.mxu0 0
      %3563 = vmatmul.mubr.bf16.gmra.mrb[0].mxu0 %v3327
      %v3564 = vpop.f32.mrb[0].mxu0
      %v3565 = vadd.f32 0.0, %v3564
      %v3566 = vpop.f32.mrb[0].mxu0
      %v3567 = vpop.f32.mrb[0].mxu0
      %v3568 = vadd.f32 0.0, %v3567
      %v3569 = vpop.f32.mrb[0].mxu0
      %3570 = vmatprep.mubr.bf16.mxu0 0
      %3571 = vmatmul.mubr.bf16.gmra.mrb[0].mxu0 %v3335
      %v3572 = vpop.f32.mrb[0].mxu0
      %v3573 = vadd.f32 0.0, %v3572
      %v3574 = vpop.f32.mrb[0].mxu0
      %v3575 = vpop.f32.mrb[0].mxu0
      %v3576 = vadd.f32 0.0, %v3575
      %v3577 = vpop.f32.mrb[0].mxu0
      %3578 = vdwg.mxu0
      %v3579 = vadd.f32 %v3116, %v3437
      %v3580 = vadd.f32 %v3117, %v3440
      %v3581 = vadd.f32 %v3118, %v3445
      %v3582 = vadd.f32 %v3119, %v3448
      %v3583 = vadd.f32 %v3120, %v3453
      %v3584 = vadd.f32 %v3121, %v3456
      %v3585 = vadd.f32 %v3122, %v3461
      %v3586 = vadd.f32 %v3123, %v3464
      %v3587 = vadd.f32 %v3124, %v3469
      %v3588 = vadd.f32 %v3125, %v3472
      %v3589 = vadd.f32 %v3126, %v3477
      %v3590 = vadd.f32 %v3127, %v3480
      %v3591 = vadd.f32 %v3128, %v3485
      %v3592 = vadd.f32 %v3129, %v3488
      %v3593 = vadd.f32 %v3130, %v3493
      %v3594 = vadd.f32 %v3131, %v3496
      %v3595 = vadd.f32 %v3132, %v3501
      %v3596 = vadd.f32 %v3133, %v3504
      %v3597 = vadd.f32 %v3134, %v3509
      %v3598 = vadd.f32 %v3135, %v3512
      %v3599 = vadd.f32 %v3136, %v3517
      %v3600 = vadd.f32 %v3137, %v3520
      %v3601 = vadd.f32 %v3138, %v3525
      %v3602 = vadd.f32 %v3139, %v3528
      %v3603 = vadd.f32 %v3140, %v3533
      %v3604 = vadd.f32 %v3141, %v3536
      %v3605 = vadd.f32 %v3142, %v3541
      %v3606 = vadd.f32 %v3143, %v3544
      %v3607 = vadd.f32 %v3144, %v3549
      %v3608 = vadd.f32 %v3145, %v3552
      %v3609 = vadd.f32 %v3146, %v3557
      %v3610 = vadd.f32 %v3147, %v3560
      %v3611 = vadd.f32 %v3148, %v3565
      %v3612 = vadd.f32 %v3149, %v3568
      %v3613 = vadd.f32 %v3150, %v3573
      %v3614 = vadd.f32 %v3151, %v3576
      %v3615 = vld [vmem:[#allocation2 + $0x18] sm:$0xfe]
      %s3616 = scalar_lea.vmem %s4, 448
      %v3617 = vld [vmem:[%s3616] sm:$0xf]
      %v3618 = vld [vmem:[%s3616 + $0x4] sm:$0xf]
      %v3619 = vld [vmem:[%s3616 + $0x8] sm:$0xf]
      %v3620 = vld [vmem:[%s3616 + $0xc] sm:$0xf]
      %v3621 = vld [vmem:[%s3616 + $0x10] sm:$0xf]
      %v3622 = vld [vmem:[%s3616 + $0x14] sm:$0xf]
      %v3623 = vld [vmem:[%s3616 + $0x18] sm:$0xf]
      %v3624 = vld [vmem:[%s3616 + $0x1c] sm:$0xf]
      %v3625 = vld [vmem:[%s3616 + $0x20] sm:$0xf]
      %v3626 = vld [vmem:[%s3616 + $0x24] sm:$0xf]
      %v3627 = vld [vmem:[%s3616 + $0x28] sm:$0xf]
      %v3628 = vld [vmem:[%s3616 + $0x2c] sm:$0xf]
      %v3629 = vld [vmem:[%s3616 + $0x30] sm:$0xf]
      %v3630 = vld [vmem:[%s3616 + $0x34] sm:$0xf]
      %v3631 = vld [vmem:[%s3616 + $0x38] sm:$0xf]
      %v3632 = vld [vmem:[%s3616 + $0x3c] sm:$0xf]
      %vm3652 = vcmask 1046528
      %v3653 = vrot.slane %v3615, 1
      %v3654 = vrot.slane %v3153, 1
      %v3655 = vsel %vm3652, %v3653, %v3654
      %v3656 = vrot.slane %v3154, 1
      %v3657 = vsel %vm3652, %v3654, %v3656
      %v3658 = vrot.slane %v3155, 1
      %v3659 = vsel %vm3652, %v3656, %v3658
      %v3660 = vrot.slane %v3156, 1
      %v3661 = vsel %vm3652, %v3658, %v3660
      %v3662 = vrot.slane %v3157, 1
      %v3663 = vsel %vm3652, %v3660, %v3662
      %v3664 = vrot.slane %v3158, 1
      %v3665 = vsel %vm3652, %v3662, %v3664
      %v3666 = vrot.slane %v3159, 1
      %v3667 = vsel %vm3652, %v3664, %v3666
      %v3668 = vrot.slane %v3160, 1
      %v3669 = vsel %vm3652, %v3666, %v3668
      %v3670 = vrot.slane %v3161, 1
      %v3671 = vsel %vm3652, %v3668, %v3670
      %v3672 = vrot.slane %v3162, 1
      %v3673 = vsel %vm3652, %v3670, %v3672
      %v3674 = vrot.slane %v3163, 1
      %v3675 = vsel %vm3652, %v3672, %v3674
      %v3676 = vrot.slane %v3164, 1
      %v3677 = vsel %vm3652, %v3674, %v3676
      %v3678 = vrot.slane %v3165, 1
      %v3679 = vsel %vm3652, %v3676, %v3678
      %v3680 = vrot.slane %v3166, 1
      %v3681 = vsel %vm3652, %v3678, %v3680
      %v3682 = vrot.slane %v3167, 1
      %v3683 = vsel %vm3652, %v3680, %v3682
      %v3684 = vrot.slane %v3168, 1
      %v3685 = vsel %vm3652, %v3682, %v3684
      %v3686 = vrot.slane %v3169, 1
      %v3687 = vsel %vm3652, %v3684, %v3686
      %v3688 = vrot.slane %v3170, 1
      %v3689 = vsel %vm3652, %v3686, %v3688
      %v3724 = vunpack.c.l.b16 %v3617
      %v3725 = vunpack.c.l.b16 %v3618
      %v3726 = vunpack.c.l.b16 %v3619
      %v3727 = vunpack.c.l.b16 %v3620
      %v3728 = vunpack.c.l.b16 %v3621
      %v3729 = vunpack.c.l.b16 %v3622
      %v3730 = vunpack.c.l.b16 %v3623
      %v3731 = vunpack.c.l.b16 %v3624
      %v3732 = vunpack.c.l.b16 %v3625
      %v3733 = vunpack.c.l.b16 %v3626
      %v3734 = vunpack.c.l.b16 %v3627
      %v3735 = vunpack.c.l.b16 %v3628
      %v3736 = vunpack.c.l.b16 %v3629
      %v3737 = vunpack.c.l.b16 %v3630
      %v3738 = vunpack.c.l.b16 %v3631
      %v3739 = vunpack.c.l.b16 %v3632
      %v3740 = vpack.c.b16 %v3725, %v3724
      %v3741 = vpack.c.b16 %v3727, %v3726
      %v3742 = vpack.c.b16 %v3729, %v3728
      %v3743 = vpack.c.b16 %v3731, %v3730
      %v3744 = vpack.c.b16 %v3733, %v3732
      %v3745 = vpack.c.b16 %v3735, %v3734
      %v3746 = vpack.c.b16 %v3737, %v3736
      %v3747 = vpack.c.b16 %v3739, %v3738
      %3756 = vmatprep.subr.bf16.mxu0 0
      %3757 = vmatpush1.bf16.msra.mxu0 %v3740
      %3758 = vmatprep.subr.bf16.mxu0 0
      %3759 = vmatpush1.bf16.msra.mxu0 %v3741
      %3760 = vmatprep.subr.bf16.mxu0 0
      %3761 = vmatpush1.bf16.msra.mxu0 %v3742
      %3762 = vmatprep.subr.bf16.mxu0 0
      %3763 = vmatpush1.bf16.msra.mxu0 %v3743
      %3764 = vmatprep.subr.bf16.mxu0 0
      %3765 = vmatpush1.bf16.msra.mxu0 %v3744
      %3766 = vmatprep.subr.bf16.mxu0 0
      %3767 = vmatpush1.bf16.msra.mxu0 %v3745
      %3768 = vmatprep.subr.bf16.mxu0 0
      %3769 = vmatpush1.bf16.msra.mxu0 %v3746
      %3770 = vmatprep.subr.bf16.mxu0 0
      %3771 = vmatpush1.bf16.msra.mxu0 %v3747
      %3772 = vmatprep.subr.bf16.mxu0 0
      %3773 = vmatpush1.bf16.msra.mxu0 0
      %3774 = vmatprep.subr.bf16.mxu0 0
      %3775 = vmatpush1.bf16.msra.mxu0 0
      %3776 = vmatprep.subr.bf16.mxu0 0
      %3777 = vmatpush1.bf16.msra.mxu0 0
      %3778 = vmatprep.subr.bf16.mxu0 0
      %3779 = vmatpush1.bf16.msra.mxu0 0
      %3780 = vmatprep.subr.bf16.mxu0 0
      %3781 = vmatpush1.bf16.msra.mxu0 0
      %3782 = vmatprep.subr.bf16.mxu0 0
      %3783 = vmatpush1.bf16.msra.mxu0 0
      %3784 = vmatprep.subr.bf16.mxu0 0
      %3785 = vmatpush1.bf16.msra.mxu0 0
      %3786 = vmatprep.subr.bf16.mxu0 0
      %3787 = vmatpush1.bf16.msra.mxu0 0
      %3788 = vmatprep.mubr.bf16.mxu0 0
      %3789 = vmatmul.mubr.bf16.gmra.mrb[0].mxu0 %v3655
      %v3790 = vpop.f32.mrb[0].mxu0
      %v3791 = vadd.f32 0.0, %v3790
      %v3792 = vpop.f32.mrb[0].mxu0
      %v3793 = vpop.f32.mrb[0].mxu0
      %v3794 = vadd.f32 0.0, %v3793
      %v3795 = vpop.f32.mrb[0].mxu0
      %3796 = vmatprep.mubr.bf16.mxu0 0
      %3797 = vmatmul.mubr.bf16.gmra.mrb[0].mxu0 %v3657
      %v3798 = vpop.f32.mrb[0].mxu0
      %v3799 = vadd.f32 0.0, %v3798
      %v3800 = vpop.f32.mrb[0].mxu0
      %v3801 = vpop.f32.mrb[0].mxu0
      %v3802 = vadd.f32 0.0, %v3801
      %v3803 = vpop.f32.mrb[0].mxu0
      %3804 = vmatprep.mubr.bf16.mxu0 0
      %3805 = vmatmul.mubr.bf16.gmra.mrb[0].mxu0 %v3659
      %v3806 = vpop.f32.mrb[0].mxu0
      %v3807 = vadd.f32 0.0, %v3806
      %v3808 = vpop.f32.mrb[0].mxu0
      %v3809 = vpop.f32.mrb[0].mxu0
      %v3810 = vadd.f32 0.0, %v3809
      %v3811 = vpop.f32.mrb[0].mxu0
      %3812 = vmatprep.mubr.bf16.mxu0 0
      %3813 = vmatmul.mubr.bf16.gmra.mrb[0].mxu0 %v3661
      %v3814 = vpop.f32.mrb[0].mxu0
      %v3815 = vadd.f32 0.0, %v3814
      %v3816 = vpop.f32.mrb[0].mxu0
      %v3817 = vpop.f32.mrb[0].mxu0
      %v3818 = vadd.f32 0.0, %v3817
      %v3819 = vpop.f32.mrb[0].mxu0
      %3820 = vmatprep.mubr.bf16.mxu0 0
      %3821 = vmatmul.mubr.bf16.gmra.mrb[0].mxu0 %v3663
      %v3822 = vpop.f32.mrb[0].mxu0
      %v3823 = vadd.f32 0.0, %v3822
      %v3824 = vpop.f32.mrb[0].mxu0
      %v3825 = vpop.f32.mrb[0].mxu0
      %v3826 = vadd.f32 0.0, %v3825
      %v3827 = vpop.f32.mrb[0].mxu0
      %3828 = vmatprep.mubr.bf16.mxu0 0
      %3829 = vmatmul.mubr.bf16.gmra.mrb[0].mxu0 %v3665
      %v3830 = vpop.f32.mrb[0].mxu0
      %v3831 = vadd.f32 0.0, %v3830
      %v3832 = vpop.f32.mrb[0].mxu0
      %v3833 = vpop.f32.mrb[0].mxu0
      %v3834 = vadd.f32 0.0, %v3833
      %v3835 = vpop.f32.mrb[0].mxu0
      %3836 = vmatprep.mubr.bf16.mxu0 0
      %3837 = vmatmul.mubr.bf16.gmra.mrb[0].mxu0 %v3667
      %v3838 = vpop.f32.mrb[0].mxu0
      %v3839 = vadd.f32 0.0, %v3838
      %v3840 = vpop.f32.mrb[0].mxu0
      %v3841 = vpop.f32.mrb[0].mxu0
      %v3842 = vadd.f32 0.0, %v3841
      %v3843 = vpop.f32.mrb[0].mxu0
      %3844 = vmatprep.mubr.bf16.mxu0 0
      %3845 = vmatmul.mubr.bf16.gmra.mrb[0].mxu0 %v3669
      %v3846 = vpop.f32.mrb[0].mxu0
      %v3847 = vadd.f32 0.0, %v3846
      %v3848 = vpop.f32.mrb[0].mxu0
      %v3849 = vpop.f32.mrb[0].mxu0
      %v3850 = vadd.f32 0.0, %v3849
      %v3851 = vpop.f32.mrb[0].mxu0
      %3852 = vmatprep.mubr.bf16.mxu0 0
      %3853 = vmatmul.mubr.bf16.gmra.mrb[0].mxu0 %v3671
      %v3854 = vpop.f32.mrb[0].mxu0
      %v3855 = vadd.f32 0.0, %v3854
      %v3856 = vpop.f32.mrb[0].mxu0
      %v3857 = vpop.f32.mrb[0].mxu0
      %v3858 = vadd.f32 0.0, %v3857
      %v3859 = vpop.f32.mrb[0].mxu0
      %3860 = vmatprep.mubr.bf16.mxu0 0
      %3861 = vmatmul.mubr.bf16.gmra.mrb[0].mxu0 %v3673
      %v3862 = vpop.f32.mrb[0].mxu0
      %v3863 = vadd.f32 0.0, %v3862
      %v3864 = vpop.f32.mrb[0].mxu0
      %v3865 = vpop.f32.mrb[0].mxu0
      %v3866 = vadd.f32 0.0, %v3865
      %v3867 = vpop.f32.mrb[0].mxu0
      %3868 = vmatprep.mubr.bf16.mxu0 0
      %3869 = vmatmul.mubr.bf16.gmra.mrb[0].mxu0 %v3675
      %v3870 = vpop.f32.mrb[0].mxu0
      %v3871 = vadd.f32 0.0, %v3870
      %v3872 = vpop.f32.mrb[0].mxu0
      %v3873 = vpop.f32.mrb[0].mxu0
      %v3874 = vadd.f32 0.0, %v3873
      %v3875 = vpop.f32.mrb[0].mxu0
      %3876 = vmatprep.mubr.bf16.mxu0 0
      %3877 = vmatmul.mubr.bf16.gmra.mrb[0].mxu0 %v3677
      %v3878 = vpop.f32.mrb[0].mxu0
      %v3879 = vadd.f32 0.0, %v3878
      %v3880 = vpop.f32.mrb[0].mxu0
      %v3881 = vpop.f32.mrb[0].mxu0
      %v3882 = vadd.f32 0.0, %v3881
      %v3883 = vpop.f32.mrb[0].mxu0
      %3884 = vmatprep.mubr.bf16.mxu0 0
      %3885 = vmatmul.mubr.bf16.gmra.mrb[0].mxu0 %v3679
      %v3886 = vpop.f32.mrb[0].mxu0
      %v3887 = vadd.f32 0.0, %v3886
      %v3888 = vpop.f32.mrb[0].mxu0
      %v3889 = vpop.f32.mrb[0].mxu0
      %v3890 = vadd.f32 0.0, %v3889
      %v3891 = vpop.f32.mrb[0].mxu0
      %3892 = vmatprep.mubr.bf16.mxu0 0
      %3893 = vmatmul.mubr.bf16.gmra.mrb[0].mxu0 %v3681
      %v3894 = vpop.f32.mrb[0].mxu0
      %v3895 = vadd.f32 0.0, %v3894
      %v3896 = vpop.f32.mrb[0].mxu0
      %v3897 = vpop.f32.mrb[0].mxu0
      %v3898 = vadd.f32 0.0, %v3897
      %v3899 = vpop.f32.mrb[0].mxu0
      %3900 = vmatprep.mubr.bf16.mxu0 0
      %3901 = vmatmul.mubr.bf16.gmra.mrb[0].mxu0 %v3683
      %v3902 = vpop.f32.mrb[0].mxu0
      %v3903 = vadd.f32 0.0, %v3902
      %v3904 = vpop.f32.mrb[0].mxu0
      %v3905 = vpop.f32.mrb[0].mxu0
      %v3906 = vadd.f32 0.0, %v3905
      %v3907 = vpop.f32.mrb[0].mxu0
      %3908 = vmatprep.mubr.bf16.mxu0 0
      %3909 = vmatmul.mubr.bf16.gmra.mrb[0].mxu0 %v3685
      %v3910 = vpop.f32.mrb[0].mxu0
      %v3911 = vadd.f32 0.0, %v3910
      %v3912 = vpop.f32.mrb[0].mxu0
      %v3913 = vpop.f32.mrb[0].mxu0
      %v3914 = vadd.f32 0.0, %v3913
      %v3915 = vpop.f32.mrb[0].mxu0
      %3916 = vmatprep.mubr.bf16.mxu0 0
      %3917 = vmatmul.mubr.bf16.gmra.mrb[0].mxu0 %v3687
      %v3918 = vpop.f32.mrb[0].mxu0
      %v3919 = vadd.f32 0.0, %v3918
      %v3920 = vpop.f32.mrb[0].mxu0
      %v3921 = vpop.f32.mrb[0].mxu0
      %v3922 = vadd.f32 0.0, %v3921
      %v3923 = vpop.f32.mrb[0].mxu0
      %3924 = vmatprep.mubr.bf16.mxu0 0
      %3925 = vmatmul.mubr.bf16.gmra.mrb[0].mxu0 %v3689
      %v3926 = vpop.f32.mrb[0].mxu0
      %v3927 = vadd.f32 0.0, %v3926
      %v3928 = vpop.f32.mrb[0].mxu0
      %v3929 = vpop.f32.mrb[0].mxu0
      %v3930 = vadd.f32 0.0, %v3929
      %v3931 = vpop.f32.mrb[0].mxu0
      %3932 = vdwg.mxu0
      %v3933 = vadd.f32 %v3579, %v3791
      %v3934 = vadd.f32 %v3580, %v3794
      %v3935 = vadd.f32 %v3581, %v3799
      %v3936 = vadd.f32 %v3582, %v3802
      %v3937 = vadd.f32 %v3583, %v3807
      %v3938 = vadd.f32 %v3584, %v3810
      %v3939 = vadd.f32 %v3585, %v3815
      %v3940 = vadd.f32 %v3586, %v3818
      %v3941 = vadd.f32 %v3587, %v3823
      %v3942 = vadd.f32 %v3588, %v3826
      %v3943 = vadd.f32 %v3589, %v3831
      %v3944 = vadd.f32 %v3590, %v3834
      %v3945 = vadd.f32 %v3591, %v3839
      %v3946 = vadd.f32 %v3592, %v3842
      %v3947 = vadd.f32 %v3593, %v3847
      %v3948 = vadd.f32 %v3594, %v3850
      %v3949 = vadd.f32 %v3595, %v3855
      %v3950 = vadd.f32 %v3596, %v3858
      %v3951 = vadd.f32 %v3597, %v3863
      %v3952 = vadd.f32 %v3598, %v3866
      %v3953 = vadd.f32 %v3599, %v3871
      %v3954 = vadd.f32 %v3600, %v3874
      %v3955 = vadd.f32 %v3601, %v3879
      %v3956 = vadd.f32 %v3602, %v3882
      %v3957 = vadd.f32 %v3603, %v3887
      %v3958 = vadd.f32 %v3604, %v3890
      %v3959 = vadd.f32 %v3605, %v3895
      %v3960 = vadd.f32 %v3606, %v3898
      %v3961 = vadd.f32 %v3607, %v3903
      %v3962 = vadd.f32 %v3608, %v3906
      %v3963 = vadd.f32 %v3609, %v3911
      %v3964 = vadd.f32 %v3610, %v3914
      %v3965 = vadd.f32 %v3611, %v3919
      %v3966 = vadd.f32 %v3612, %v3922
      %v3967 = vadd.f32 %v3613, %v3927
      %v3968 = vadd.f32 %v3614, %v3930
      %v3969 = vld [vmem:[#allocation2 + $0xa8] sm:$0x3]
      %s3970 = scalar_lea.vmem %s4, 512
      %v3971 = vld [vmem:[%s3970] sm:$0xf]
      %v3972 = vld [vmem:[%s3970 + $0x4] sm:$0xf]
      %v3973 = vld [vmem:[%s3970 + $0x8] sm:$0xf]
      %v3974 = vld [vmem:[%s3970 + $0xc] sm:$0xf]
      %v3975 = vld [vmem:[%s3970 + $0x10] sm:$0xf]
      %v3976 = vld [vmem:[%s3970 + $0x14] sm:$0xf]
      %v3977 = vld [vmem:[%s3970 + $0x18] sm:$0xf]
      %v3978 = vld [vmem:[%s3970 + $0x1c] sm:$0xf]
      %v3979 = vld [vmem:[%s3970 + $0x20] sm:$0xf]
      %v3980 = vld [vmem:[%s3970 + $0x24] sm:$0xf]
      %v3981 = vld [vmem:[%s3970 + $0x28] sm:$0xf]
      %v3982 = vld [vmem:[%s3970 + $0x2c] sm:$0xf]
      %v3983 = vld [vmem:[%s3970 + $0x30] sm:$0xf]
      %v3984 = vld [vmem:[%s3970 + $0x34] sm:$0xf]
      %v3985 = vld [vmem:[%s3970 + $0x38] sm:$0xf]
      %v3986 = vld [vmem:[%s3970 + $0x3c] sm:$0xf]
      %vm3987 = vsmask.f32 6400
      %v3989 = vshrl.u32 %v3615, 16
      %v3991 = vrot.slane %v3989, 1
      %v3992 = vshll.u32 %v3615, 16
      %v3994 = vrot.slane %v3992, 2
      %v3995 = vor.u32 %v3991, %v3994
      %v3996 = vrot.slane %v3200, 1
      %v3997 = vrot.slane %v3196, 2
      %v3998 = vor.u32 %v3996, %v3997
      %v3999 = vsel %vm3987, %v3995, %v3998
      %v4000 = vrot.slane %v3208, 1
      %v4001 = vrot.slane %v3204, 2
      %v4002 = vor.u32 %v4000, %v4001
      %v4003 = vsel %vm3987, %v3998, %v4002
      %v4004 = vrot.slane %v3216, 1
      %v4005 = vrot.slane %v3212, 2
      %v4006 = vor.u32 %v4004, %v4005
      %v4007 = vsel %vm3987, %v4002, %v4006
      %v4008 = vrot.slane %v3224, 1
      %v4009 = vrot.slane %v3220, 2
      %v4010 = vor.u32 %v4008, %v4009
      %v4011 = vsel %vm3987, %v4006, %v4010
      %v4012 = vrot.slane %v3232, 1
      %v4013 = vrot.slane %v3228, 2
      %v4014 = vor.u32 %v4012, %v4013
      %v4015 = vsel %vm3987, %v4010, %v4014
      %v4016 = vrot.slane %v3240, 1
      %v4017 = vrot.slane %v3236, 2
      %v4018 = vor.u32 %v4016, %v4017
      %v4019 = vsel %vm3987, %v4014, %v4018
      %v4020 = vrot.slane %v3248, 1
      %v4021 = vrot.slane %v3244, 2
      %v4022 = vor.u32 %v4020, %v4021
      %v4023 = vsel %vm3987, %v4018, %v4022
      %v4024 = vrot.slane %v3256, 1
      %v4025 = vrot.slane %v3252, 2
      %v4026 = vor.u32 %v4024, %v4025
      %v4027 = vsel %vm3987, %v4022, %v4026
      %v4028 = vrot.slane %v3264, 1
      %v4029 = vrot.slane %v3260, 2
      %v4030 = vor.u32 %v4028, %v4029
      %v4031 = vsel %vm3987, %v4026, %v4030
      %v4032 = vrot.slane %v3272, 1
      %v4033 = vrot.slane %v3268, 2
      %v4034 = vor.u32 %v4032, %v4033
      %v4035 = vsel %vm3987, %v4030, %v4034
      %v4036 = vrot.slane %v3280, 1
      %v4037 = vrot.slane %v3276, 2
      %v4038 = vor.u32 %v4036, %v4037
      %v4039 = vsel %vm3987, %v4034, %v4038
      %v4040 = vrot.slane %v3288, 1
      %v4041 = vrot.slane %v3284, 2
      %v4042 = vor.u32 %v4040, %v4041
      %v4043 = vsel %vm3987, %v4038, %v4042
      %v4044 = vrot.slane %v3296, 1
      %v4045 = vrot.slane %v3292, 2
      %v4046 = vor.u32 %v4044, %v4045
      %v4047 = vsel %vm3987, %v4042, %v4046
      %v4048 = vrot.slane %v3304, 1
      %v4049 = vrot.slane %v3300, 2
      %v4050 = vor.u32 %v4048, %v4049
      %v4051 = vsel %vm3987, %v4046, %v4050
      %v4052 = vrot.slane %v3312, 1
      %v4053 = vrot.slane %v3308, 2
      %v4054 = vor.u32 %v4052, %v4053
      %v4055 = vsel %vm3987, %v4050, %v4054
      %v4056 = vrot.slane %v3320, 1
      %v4057 = vrot.slane %v3316, 2
      %v4058 = vor.u32 %v4056, %v4057
      %v4059 = vsel %vm3987, %v4054, %v4058
      %v4060 = vrot.slane %v3328, 1
      %v4061 = vrot.slane %v3324, 2
      %v4062 = vor.u32 %v4060, %v4061
      %v4063 = vsel %vm3987, %v4058, %v4062
      %v4065 = vshrl.u32 %v3969, 16
      %v4067 = vrot.slane %v4065, 1
      %v4068 = vshll.u32 %v3969, 16
      %v4070 = vrot.slane %v4068, 2
      %v4071 = vor.u32 %v4067, %v4070
      %v4072 = vsel %vm3987, %v4062, %v4071
      %v4107 = vunpack.c.l.b16 %v3971
      %v4108 = vunpack.c.l.b16 %v3972
      %v4109 = vunpack.c.l.b16 %v3973
      %v4110 = vunpack.c.l.b16 %v3974
      %v4111 = vunpack.c.l.b16 %v3975
      %v4112 = vunpack.c.l.b16 %v3976
      %v4113 = vunpack.c.l.b16 %v3977
      %v4114 = vunpack.c.l.b16 %v3978
      %v4115 = vunpack.c.l.b16 %v3979
      %v4116 = vunpack.c.l.b16 %v3980
      %v4117 = vunpack.c.l.b16 %v3981
      %v4118 = vunpack.c.l.b16 %v3982
      %v4119 = vunpack.c.l.b16 %v3983
      %v4120 = vunpack.c.l.b16 %v3984
      %v4121 = vunpack.c.l.b16 %v3985
      %v4122 = vunpack.c.l.b16 %v3986
      %v4123 = vpack.c.b16 %v4108, %v4107
      %v4124 = vpack.c.b16 %v4110, %v4109
      %v4125 = vpack.c.b16 %v4112, %v4111
      %v4126 = vpack.c.b16 %v4114, %v4113
      %v4127 = vpack.c.b16 %v4116, %v4115
      %v4128 = vpack.c.b16 %v4118, %v4117
      %v4129 = vpack.c.b16 %v4120, %v4119
      %v4130 = vpack.c.b16 %v4122, %v4121
      %4139 = vmatprep.subr.bf16.mxu0 0
      %4140 = vmatpush1.bf16.msra.mxu0 %v4123
      %4141 = vmatprep.subr.bf16.mxu0 0
      %4142 = vmatpush1.bf16.msra.mxu0 %v4124
      %4143 = vmatprep.subr.bf16.mxu0 0
      %4144 = vmatpush1.bf16.msra.mxu0 %v4125
      %4145 = vmatprep.subr.bf16.mxu0 0
      %4146 = vmatpush1.bf16.msra.mxu0 %v4126
      %4147 = vmatprep.subr.bf16.mxu0 0
      %4148 = vmatpush1.bf16.msra.mxu0 %v4127
      %4149 = vmatprep.subr.bf16.mxu0 0
      %4150 = vmatpush1.bf16.msra.mxu0 %v4128
      %4151 = vmatprep.subr.bf16.mxu0 0
      %4152 = vmatpush1.bf16.msra.mxu0 %v4129
      %4153 = vmatprep.subr.bf16.mxu0 0
      %4154 = vmatpush1.bf16.msra.mxu0 %v4130
      %4155 = vmatprep.subr.bf16.mxu0 0
      %4156 = vmatpush1.bf16.msra.mxu0 0
      %4157 = vmatprep.subr.bf16.mxu0 0
      %4158 = vmatpush1.bf16.msra.mxu0 0
      %4159 = vmatprep.subr.bf16.mxu0 0
      %4160 = vmatpush1.bf16.msra.mxu0 0
      %4161 = vmatprep.subr.bf16.mxu0 0
      %4162 = vmatpush1.bf16.msra.mxu0 0
      %4163 = vmatprep.subr.bf16.mxu0 0
      %4164 = vmatpush1.bf16.msra.mxu0 0
      %4165 = vmatprep.subr.bf16.mxu0 0
      %4166 = vmatpush1.bf16.msra.mxu0 0
      %4167 = vmatprep.subr.bf16.mxu0 0
      %4168 = vmatpush1.bf16.msra.mxu0 0
      %4169 = vmatprep.subr.bf16.mxu0 0
      %4170 = vmatpush1.bf16.msra.mxu0 0
      %4171 = vmatprep.mubr.bf16.mxu0 0
      %4172 = vmatmul.mubr.bf16.gmra.mrb[0].mxu0 %v3999
      %v4173 = vpop.f32.mrb[0].mxu0
      %v4174 = vadd.f32 0.0, %v4173
      %v4175 = vpop.f32.mrb[0].mxu0
      %v4176 = vpop.f32.mrb[0].mxu0
      %v4177 = vadd.f32 0.0, %v4176
      %v4178 = vpop.f32.mrb[0].mxu0
      %4179 = vmatprep.mubr.bf16.mxu0 0
      %4180 = vmatmul.mubr.bf16.gmra.mrb[0].mxu0 %v4003
      %v4181 = vpop.f32.mrb[0].mxu0
      %v4182 = vadd.f32 0.0, %v4181
      %v4183 = vpop.f32.mrb[0].mxu0
      %v4184 = vpop.f32.mrb[0].mxu0
      %v4185 = vadd.f32 0.0, %v4184
      %v4186 = vpop.f32.mrb[0].mxu0
      %4187 = vmatprep.mubr.bf16.mxu0 0
      %4188 = vmatmul.mubr.bf16.gmra.mrb[0].mxu0 %v4007
      %v4189 = vpop.f32.mrb[0].mxu0
      %v4190 = vadd.f32 0.0, %v4189
      %v4191 = vpop.f32.mrb[0].mxu0
      %v4192 = vpop.f32.mrb[0].mxu0
      %v4193 = vadd.f32 0.0, %v4192
      %v4194 = vpop.f32.mrb[0].mxu0
      %4195 = vmatprep.mubr.bf16.mxu0 0
      %4196 = vmatmul.mubr.bf16.gmra.mrb[0].mxu0 %v4011
      %v4197 = vpop.f32.mrb[0].mxu0
      %v4198 = vadd.f32 0.0, %v4197
      %v4199 = vpop.f32.mrb[0].mxu0
      %v4200 = vpop.f32.mrb[0].mxu0
      %v4201 = vadd.f32 0.0, %v4200
      %v4202 = vpop.f32.mrb[0].mxu0
      %4203 = vmatprep.mubr.bf16.mxu0 0
      %4204 = vmatmul.mubr.bf16.gmra.mrb[0].mxu0 %v4015
      %v4205 = vpop.f32.mrb[0].mxu0
      %v4206 = vadd.f32 0.0, %v4205
      %v4207 = vpop.f32.mrb[0].mxu0
      %v4208 = vpop.f32.mrb[0].mxu0
      %v4209 = vadd.f32 0.0, %v4208
      %v4210 = vpop.f32.mrb[0].mxu0
      %4211 = vmatprep.mubr.bf16.mxu0 0
      %4212 = vmatmul.mubr.bf16.gmra.mrb[0].mxu0 %v4019
      %v4213 = vpop.f32.mrb[0].mxu0
      %v4214 = vadd.f32 0.0, %v4213
      %v4215 = vpop.f32.mrb[0].mxu0
      %v4216 = vpop.f32.mrb[0].mxu0
      %v4217 = vadd.f32 0.0, %v4216
      %v4218 = vpop.f32.mrb[0].mxu0
      %4219 = vmatprep.mubr.bf16.mxu0 0
      %4220 = vmatmul.mubr.bf16.gmra.mrb[0].mxu0 %v4023
      %v4221 = vpop.f32.mrb[0].mxu0
      %v4222 = vadd.f32 0.0, %v4221
      %v4223 = vpop.f32.mrb[0].mxu0
      %v4224 = vpop.f32.mrb[0].mxu0
      %v4225 = vadd.f32 0.0, %v4224
      %v4226 = vpop.f32.mrb[0].mxu0
      %4227 = vmatprep.mubr.bf16.mxu0 0
      %4228 = vmatmul.mubr.bf16.gmra.mrb[0].mxu0 %v4027
      %v4229 = vpop.f32.mrb[0].mxu0
      %v4230 = vadd.f32 0.0, %v4229
      %v4231 = vpop.f32.mrb[0].mxu0
      %v4232 = vpop.f32.mrb[0].mxu0
      %v4233 = vadd.f32 0.0, %v4232
      %v4234 = vpop.f32.mrb[0].mxu0
      %4235 = vmatprep.mubr.bf16.mxu0 0
      %4236 = vmatmul.mubr.bf16.gmra.mrb[0].mxu0 %v4031
      %v4237 = vpop.f32.mrb[0].mxu0
      %v4238 = vadd.f32 0.0, %v4237
      %v4239 = vpop.f32.mrb[0].mxu0
      %v4240 = vpop.f32.mrb[0].mxu0
      %v4241 = vadd.f32 0.0, %v4240
      %v4242 = vpop.f32.mrb[0].mxu0
      %4243 = vmatprep.mubr.bf16.mxu0 0
      %4244 = vmatmul.mubr.bf16.gmra.mrb[0].mxu0 %v4035
      %v4245 = vpop.f32.mrb[0].mxu0
      %v4246 = vadd.f32 0.0, %v4245
      %v4247 = vpop.f32.mrb[0].mxu0
      %v4248 = vpop.f32.mrb[0].mxu0
      %v4249 = vadd.f32 0.0, %v4248
      %v4250 = vpop.f32.mrb[0].mxu0
      %4251 = vmatprep.mubr.bf16.mxu0 0
      %4252 = vmatmul.mubr.bf16.gmra.mrb[0].mxu0 %v4039
      %v4253 = vpop.f32.mrb[0].mxu0
      %v4254 = vadd.f32 0.0, %v4253
      %v4255 = vpop.f32.mrb[0].mxu0
      %v4256 = vpop.f32.mrb[0].mxu0
      %v4257 = vadd.f32 0.0, %v4256
      %v4258 = vpop.f32.mrb[0].mxu0
      %4259 = vmatprep.mubr.bf16.mxu0 0
      %4260 = vmatmul.mubr.bf16.gmra.mrb[0].mxu0 %v4043
      %v4261 = vpop.f32.mrb[0].mxu0
      %v4262 = vadd.f32 0.0, %v4261
      %v4263 = vpop.f32.mrb[0].mxu0
      %v4264 = vpop.f32.mrb[0].mxu0
      %v4265 = vadd.f32 0.0, %v4264
      %v4266 = vpop.f32.mrb[0].mxu0
      %4267 = vmatprep.mubr.bf16.mxu0 0
      %4268 = vmatmul.mubr.bf16.gmra.mrb[0].mxu0 %v4047
      %v4269 = vpop.f32.mrb[0].mxu0
      %v4270 = vadd.f32 0.0, %v4269
      %v4271 = vpop.f32.mrb[0].mxu0
      %v4272 = vpop.f32.mrb[0].mxu0
      %v4273 = vadd.f32 0.0, %v4272
      %v4274 = vpop.f32.mrb[0].mxu0
      %4275 = vmatprep.mubr.bf16.mxu0 0
      %4276 = vmatmul.mubr.bf16.gmra.mrb[0].mxu0 %v4051
      %v4277 = vpop.f32.mrb[0].mxu0
      %v4278 = vadd.f32 0.0, %v4277
      %v4279 = vpop.f32.mrb[0].mxu0
      %v4280 = vpop.f32.mrb[0].mxu0
      %v4281 = vadd.f32 0.0, %v4280
      %v4282 = vpop.f32.mrb[0].mxu0
      %4283 = vmatprep.mubr.bf16.mxu0 0
      %4284 = vmatmul.mubr.bf16.gmra.mrb[0].mxu0 %v4055
      %v4285 = vpop.f32.mrb[0].mxu0
      %v4286 = vadd.f32 0.0, %v4285
      %v4287 = vpop.f32.mrb[0].mxu0
      %v4288 = vpop.f32.mrb[0].mxu0
      %v4289 = vadd.f32 0.0, %v4288
      %v4290 = vpop.f32.mrb[0].mxu0
      %4291 = vmatprep.mubr.bf16.mxu0 0
      %4292 = vmatmul.mubr.bf16.gmra.mrb[0].mxu0 %v4059
      %v4293 = vpop.f32.mrb[0].mxu0
      %v4294 = vadd.f32 0.0, %v4293
      %v4295 = vpop.f32.mrb[0].mxu0
      %v4296 = vpop.f32.mrb[0].mxu0
      %v4297 = vadd.f32 0.0, %v4296
      %v4298 = vpop.f32.mrb[0].mxu0
      %4299 = vmatprep.mubr.bf16.mxu0 0
      %4300 = vmatmul.mubr.bf16.gmra.mrb[0].mxu0 %v4063
      %v4301 = vpop.f32.mrb[0].mxu0
      %v4302 = vadd.f32 0.0, %v4301
      %v4303 = vpop.f32.mrb[0].mxu0
      %v4304 = vpop.f32.mrb[0].mxu0
      %v4305 = vadd.f32 0.0, %v4304
      %v4306 = vpop.f32.mrb[0].mxu0
      %4307 = vmatprep.mubr.bf16.mxu0 0
      %4308 = vmatmul.mubr.bf16.gmra.mrb[0].mxu0 %v4072
      %v4309 = vpop.f32.mrb[0].mxu0
      %v4310 = vadd.f32 0.0, %v4309
      %v4311 = vpop.f32.mrb[0].mxu0
      %v4312 = vpop.f32.mrb[0].mxu0
      %v4313 = vadd.f32 0.0, %v4312
      %v4314 = vpop.f32.mrb[0].mxu0
      %4315 = vdwg.mxu0
      %v4316 = vadd.f32 %v3933, %v4174
      %v4317 = vadd.f32 %v3934, %v4177
      %v4318 = vadd.f32 %v3935, %v4182
      %v4319 = vadd.f32 %v3936, %v4185
      %v4320 = vadd.f32 %v3937, %v4190
      %v4321 = vadd.f32 %v3938, %v4193
      %v4322 = vadd.f32 %v3939, %v4198
      %v4323 = vadd.f32 %v3940, %v4201
      %v4324 = vadd.f32 %v3941, %v4206
      %v4325 = vadd.f32 %v3942, %v4209
      %v4326 = vadd.f32 %v3943, %v4214
      %v4327 = vadd.f32 %v3944, %v4217
      %v4328 = vadd.f32 %v3945, %v4222
      %v4329 = vadd.f32 %v3946, %v4225
      %v4330 = vadd.f32 %v3947, %v4230
      %v4331 = vadd.f32 %v3948, %v4233
      %v4332 = vadd.f32 %v3949, %v4238
      %v4333 = vadd.f32 %v3950, %v4241
      %v4334 = vadd.f32 %v3951, %v4246
      %v4335 = vadd.f32 %v3952, %v4249
      %v4336 = vadd.f32 %v3953, %v4254
      %v4337 = vadd.f32 %v3954, %v4257
      %v4338 = vadd.f32 %v3955, %v4262
      %v4339 = vadd.f32 %v3956, %v4265
      %v4340 = vadd.f32 %v3957, %v4270
      %v4341 = vadd.f32 %v3958, %v4273
      %v4342 = vadd.f32 %v3959, %v4278
      %v4343 = vadd.f32 %v3960, %v4281
      %v4344 = vadd.f32 %v3961, %v4286
      %v4345 = vadd.f32 %v3962, %v4289
      %v4346 = vadd.f32 %v3963, %v4294
      %v4347 = vadd.f32 %v3964, %v4297
      %v4348 = vadd.f32 %v3965, %v4302
      %v4349 = vadd.f32 %v3966, %v4305
      %v4350 = vadd.f32 %v3967, %v4310
      %v4351 = vadd.f32 %v3968, %v4313
      %v4352 = vpack.c.bf16 %v4317, %v4316
      %v4353 = vpack.c.bf16 %v4319, %v4318
      %v4354 = vpack.c.bf16 %v4321, %v4320
      %v4355 = vpack.c.bf16 %v4323, %v4322
      %v4356 = vpack.c.bf16 %v4325, %v4324
      %v4357 = vpack.c.bf16 %v4327, %v4326
      %v4358 = vpack.c.bf16 %v4329, %v4328
      %v4359 = vpack.c.bf16 %v4331, %v4330
      %v4360 = vpack.c.bf16 %v4333, %v4332
      %v4361 = vpack.c.bf16 %v4335, %v4334
      %v4362 = vpack.c.bf16 %v4337, %v4336
      %v4363 = vpack.c.bf16 %v4339, %v4338
      %v4364 = vpack.c.bf16 %v4341, %v4340
      %v4365 = vpack.c.bf16 %v4343, %v4342
      %v4366 = vpack.c.bf16 %v4345, %v4344
      %v4367 = vpack.c.bf16 %v4347, %v4346
      %v4368 = vpack.c.bf16 %v4349, %v4348
      %v4369 = vpack.c.bf16 %v4351, %v4350
      %v4388 = vunpack.c.l.b16 %v4352
      %v4389 = vunpack.c.h.b16 %v4352
      %v4390 = vunpack.c.l.b16 %v4353
      %v4391 = vunpack.c.h.b16 %v4353
      %v4392 = vunpack.c.l.b16 %v4354
      %v4393 = vunpack.c.h.b16 %v4354
      %v4394 = vunpack.c.l.b16 %v4355
      %v4395 = vunpack.c.h.b16 %v4355
      %v4396 = vunpack.c.l.b16 %v4356
      %v4397 = vunpack.c.h.b16 %v4356
      %v4398 = vunpack.c.l.b16 %v4357
      %v4399 = vunpack.c.h.b16 %v4357
      %v4400 = vunpack.c.l.b16 %v4358
      %v4401 = vunpack.c.h.b16 %v4358
      %v4402 = vunpack.c.l.b16 %v4359
      %v4403 = vunpack.c.h.b16 %v4359
      %v4404 = vunpack.c.l.b16 %v4360
      %v4405 = vunpack.c.h.b16 %v4360
      %v4406 = vunpack.c.l.b16 %v4361
      %v4407 = vunpack.c.h.b16 %v4361
      %v4408 = vunpack.c.l.b16 %v4362
      %v4409 = vunpack.c.h.b16 %v4362
      %v4410 = vunpack.c.l.b16 %v4363
      %v4411 = vunpack.c.h.b16 %v4363
      %v4412 = vunpack.c.l.b16 %v4364
      %v4413 = vunpack.c.h.b16 %v4364
      %v4414 = vunpack.c.l.b16 %v4365
      %v4415 = vunpack.c.h.b16 %v4365
      %v4416 = vunpack.c.l.b16 %v4366
      %v4417 = vunpack.c.h.b16 %v4366
      %v4418 = vunpack.c.l.b16 %v4367
      %v4419 = vunpack.c.h.b16 %v4367
      %v4420 = vunpack.c.l.b16 %v4368
      %v4421 = vunpack.c.h.b16 %v4368
      %v4422 = vunpack.c.l.b16 %v4369
      %v4423 = vunpack.c.h.b16 %v4369
      %v4424 = vpack.c.b16 %v4388, %v4388
      %v4425 = vpack.c.b16 %v4389, %v4389
      %v4426 = vpack.c.b16 %v4390, %v4390
      %v4427 = vpack.c.b16 %v4391, %v4391
      %v4428 = vpack.c.b16 %v4392, %v4392
      %v4429 = vpack.c.b16 %v4393, %v4393
      %v4430 = vpack.c.b16 %v4394, %v4394
      %v4431 = vpack.c.b16 %v4395, %v4395
      %v4432 = vpack.c.b16 %v4396, %v4396
      %v4433 = vpack.c.b16 %v4397, %v4397
      %v4434 = vpack.c.b16 %v4398, %v4398
      %v4435 = vpack.c.b16 %v4399, %v4399
      %v4436 = vpack.c.b16 %v4400, %v4400
      %v4437 = vpack.c.b16 %v4401, %v4401
      %v4438 = vpack.c.b16 %v4402, %v4402
      %v4439 = vpack.c.b16 %v4403, %v4403
      %v4440 = vpack.c.b16 %v4404, %v4404
      %v4441 = vpack.c.b16 %v4405, %v4405
      %v4442 = vpack.c.b16 %v4406, %v4406
      %v4443 = vpack.c.b16 %v4407, %v4407
      %v4444 = vpack.c.b16 %v4408, %v4408
      %v4445 = vpack.c.b16 %v4409, %v4409
      %v4446 = vpack.c.b16 %v4410, %v4410
      %v4447 = vpack.c.b16 %v4411, %v4411
      %v4448 = vpack.c.b16 %v4412, %v4412
      %v4449 = vpack.c.b16 %v4413, %v4413
      %v4450 = vpack.c.b16 %v4414, %v4414
      %v4451 = vpack.c.b16 %v4415, %v4415
      %v4452 = vpack.c.b16 %v4416, %v4416
      %v4453 = vpack.c.b16 %v4417, %v4417
      %v4454 = vpack.c.b16 %v4418, %v4418
      %v4455 = vpack.c.b16 %v4419, %v4419
      %v4456 = vpack.c.b16 %v4420, %v4420
      %v4457 = vpack.c.b16 %v4421, %v4421
      %v4458 = vpack.c.b16 %v4422, %v4422
      %v4459 = vpack.c.b16 %v4423, %v4423
      %4496 = vst [vmem:[%s289] sm:$0xf] %v4424
      %4497 = vst [vmem:[%s289 + $0x4] sm:$0xf] %v4425
      %4498 = vst [vmem:[%s289 + $0x8] sm:$0xf] %v4426
      %4499 = vst [vmem:[%s289 + $0xc] sm:$0xf] %v4427
      %4500 = vst [vmem:[%s289 + $0x10] sm:$0xf] %v4428
      %4501 = vst [vmem:[%s289 + $0x14] sm:$0xf] %v4429
      %4502 = vst [vmem:[%s289 + $0x18] sm:$0xf] %v4430
      %4503 = vst [vmem:[%s289 + $0x1c] sm:$0xf] %v4431
      %4504 = vst [vmem:[%s289 + $0x20] sm:$0xf] %v4432
      %4505 = vst [vmem:[%s289 + $0x24] sm:$0xf] %v4433
      %4506 = vst [vmem:[%s289 + $0x28] sm:$0xf] %v4434
      %4507 = vst [vmem:[%s289 + $0x2c] sm:$0xf] %v4435
      %4508 = vst [vmem:[%s289 + $0x30] sm:$0xf] %v4436
      %4509 = vst [vmem:[%s289 + $0x34] sm:$0xf] %v4437
      %4510 = vst [vmem:[%s289 + $0x38] sm:$0xf] %v4438
      %4511 = vst [vmem:[%s289 + $0x3c] sm:$0xf] %v4439
      %4512 = vst [vmem:[%s289 + $0x40] sm:$0xf] %v4440
      %4513 = vst [vmem:[%s289 + $0x44] sm:$0xf] %v4441
      %4514 = vst [vmem:[%s289 + $0x48] sm:$0xf] %v4442
      %4515 = vst [vmem:[%s289 + $0x4c] sm:$0xf] %v4443
      %4516 = vst [vmem:[%s289 + $0x50] sm:$0xf] %v4444
      %4517 = vst [vmem:[%s289 + $0x54] sm:$0xf] %v4445
      %4518 = vst [vmem:[%s289 + $0x58] sm:$0xf] %v4446
      %4519 = vst [vmem:[%s289 + $0x5c] sm:$0xf] %v4447
      %4520 = vst [vmem:[%s289 + $0x60] sm:$0xf] %v4448
      %4521 = vst [vmem:[%s289 + $0x64] sm:$0xf] %v4449
      %4522 = vst [vmem:[%s289 + $0x68] sm:$0xf] %v4450
      %4523 = vst [vmem:[%s289 + $0x6c] sm:$0xf] %v4451
      %4524 = vst [vmem:[%s289 + $0x70] sm:$0xf] %v4452
      %4525 = vst [vmem:[%s289 + $0x74] sm:$0xf] %v4453
      %4526 = vst [vmem:[%s289 + $0x78] sm:$0xf] %v4454
      %4527 = vst [vmem:[%s289 + $0x7c] sm:$0xf] %v4455
      %4528 = vst [vmem:[%s289 + $0x80] sm:$0xf] %v4456
      %4529 = vst [vmem:[%s289 + $0x84] sm:$0xf] %v4457
      %4530 = vst [vmem:[%s289 + $0x88] sm:$0xf] %v4458
      %4531 = vst [vmem:[%s289 + $0x8c] sm:$0xf] %v4459
      %v4532 = vsel %vm711, %v4316, 0.0
      %v4533 = vsel %vm712, %v4317, 0.0
      %v4534 = vsel %vm713, %v4318, 0.0
      %v4535 = vsel %vm714, %v4319, 0.0
      %v4536 = vsel %vm715, %v4320, 0.0
      %v4537 = vsel %vm716, %v4321, 0.0
      %v4538 = vsel %vm717, %v4322, 0.0
      %v4539 = vsel %vm718, %v4323, 0.0
      %v4540 = vsel %vm719, %v4324, 0.0
      %v4541 = vsel %vm720, %v4325, 0.0
      %v4542 = vsel %vm721, %v4326, 0.0
      %v4543 = vsel %vm722, %v4327, 0.0
      %v4544 = vsel %vm723, %v4328, 0.0
      %v4545 = vsel %vm724, %v4329, 0.0
      %v4546 = vsel %vm725, %v4330, 0.0
      %v4547 = vsel %vm726, %v4331, 0.0
      %v4548 = vsel %vm727, %v4332, 0.0
      %v4549 = vsel %vm728, %v4333, 0.0
      %v4550 = vsel %vm729, %v4334, 0.0
      %v4551 = vsel %vm730, %v4335, 0.0
      %v4552 = vsel %vm731, %v4336, 0.0
      %v4553 = vsel %vm732, %v4337, 0.0
      %v4554 = vsel %vm733, %v4338, 0.0
      %v4555 = vsel %vm734, %v4339, 0.0
      %v4556 = vsel %vm735, %v4340, 0.0
      %v4557 = vsel %vm736, %v4341, 0.0
      %v4558 = vsel %vm737, %v4342, 0.0
      %v4559 = vsel %vm738, %v4343, 0.0
      %v4560 = vsel %vm739, %v4344, 0.0
      %v4561 = vsel %vm740, %v4345, 0.0
      %v4562 = vsel %vm741, %v4346, 0.0
      %v4563 = vsel %vm742, %v4347, 0.0
      %v4564 = vsel %vm743, %v4348, 0.0
      %v4565 = vsel %vm744, %v4349, 0.0
      %v4566 = vsel %vm745, %v4350, 0.0
      %v4567 = vsel %vm746, %v4351, 0.0
      %v4568 = vadd.f32 %v4532, %v4533
      %v4569 = vadd.f32 %v4568, %v4534
      %v4570 = vadd.f32 %v4569, %v4535
      %v4571 = vadd.f32 %v4570, %v4536
      %v4572 = vadd.f32 %v4571, %v4537
      %v4573 = vadd.f32 %v4572, %v4538
      %v4574 = vadd.f32 %v4573, %v4539
      %v4575 = vadd.f32 %v4574, %v4540
      %v4576 = vadd.f32 %v4575, %v4541
      %v4577 = vadd.f32 %v4576, %v4542
      %v4578 = vadd.f32 %v4577, %v4543
      %v4579 = vadd.f32 %v4578, %v4544
      %v4580 = vadd.f32 %v4579, %v4545
      %v4581 = vadd.f32 %v4580, %v4546
      %v4582 = vadd.f32 %v4581, %v4547
      %v4583 = vadd.f32 %v4582, %v4548
      %v4584 = vadd.f32 %v4583, %v4549
      %v4585 = vadd.f32 %v4584, %v4550
      %v4586 = vadd.f32 %v4585, %v4551
      %v4587 = vadd.f32 %v4586, %v4552
      %v4588 = vadd.f32 %v4587, %v4553
      %v4589 = vadd.f32 %v4588, %v4554
      %v4590 = vadd.f32 %v4589, %v4555
      %v4591 = vadd.f32 %v4590, %v4556
      %v4592 = vadd.f32 %v4591, %v4557
      %v4593 = vadd.f32 %v4592, %v4558
      %v4594 = vadd.f32 %v4593, %v4559
      %v4595 = vadd.f32 %v4594, %v4560
      %v4596 = vadd.f32 %v4595, %v4561
      %v4597 = vadd.f32 %v4596, %v4562
      %v4598 = vadd.f32 %v4597, %v4563
      %v4599 = vadd.f32 %v4598, %v4564
      %v4600 = vadd.f32 %v4599, %v4565
      %v4601 = vadd.f32 %v4600, %v4566
      %v4602 = vadd.f32 %v4601, %v4567
      %v4603 = vrot.slane %v4602, 4
      %v4604 = vadd.f32 %v4602, %v4603
      %v4605 = vrot.slane %v4604, 2
      %v4606 = vadd.f32 %v4604, %v4605
      %v4607 = vrot.slane %v4606, 1
      %v4608 = vadd.f32 %v4606, %v4607
      %v4609 = vmul.f32 %v4532, %v4532
      %v4610 = vmul.f32 %v4533, %v4533
      %v4611 = vmul.f32 %v4534, %v4534
      %v4612 = vmul.f32 %v4535, %v4535
      %v4613 = vmul.f32 %v4536, %v4536
      %v4614 = vmul.f32 %v4537, %v4537
      %v4615 = vmul.f32 %v4538, %v4538
      %v4616 = vmul.f32 %v4539, %v4539
      %v4617 = vmul.f32 %v4540, %v4540
      %v4618 = vmul.f32 %v4541, %v4541
      %v4619 = vmul.f32 %v4542, %v4542
      %v4620 = vmul.f32 %v4543, %v4543
      %v4621 = vmul.f32 %v4544, %v4544
      %v4622 = vmul.f32 %v4545, %v4545
      %v4623 = vmul.f32 %v4546, %v4546
      %v4624 = vmul.f32 %v4547, %v4547
      %v4625 = vmul.f32 %v4548, %v4548
      %v4626 = vmul.f32 %v4549, %v4549
      %v4627 = vmul.f32 %v4550, %v4550
      %v4628 = vmul.f32 %v4551, %v4551
      %v4629 = vmul.f32 %v4552, %v4552
      %v4630 = vmul.f32 %v4553, %v4553
      %v4631 = vmul.f32 %v4554, %v4554
      %v4632 = vmul.f32 %v4555, %v4555
      %v4633 = vmul.f32 %v4556, %v4556
      %v4634 = vmul.f32 %v4557, %v4557
      %v4635 = vmul.f32 %v4558, %v4558
      %v4636 = vmul.f32 %v4559, %v4559
      %v4637 = vmul.f32 %v4560, %v4560
      %v4638 = vmul.f32 %v4561, %v4561
      %v4639 = vmul.f32 %v4562, %v4562
      %v4640 = vmul.f32 %v4563, %v4563
      %v4641 = vmul.f32 %v4564, %v4564
      %v4642 = vmul.f32 %v4565, %v4565
      %v4643 = vmul.f32 %v4566, %v4566
      %v4644 = vmul.f32 %v4567, %v4567
      %v4645 = vadd.f32 %v4609, %v4610
      %v4646 = vadd.f32 %v4645, %v4611
      %v4647 = vadd.f32 %v4646, %v4612
      %v4648 = vadd.f32 %v4647, %v4613
      %v4649 = vadd.f32 %v4648, %v4614
      %v4650 = vadd.f32 %v4649, %v4615
      %v4651 = vadd.f32 %v4650, %v4616
      %v4652 = vadd.f32 %v4651, %v4617
      %v4653 = vadd.f32 %v4652, %v4618
      %v4654 = vadd.f32 %v4653, %v4619
      %v4655 = vadd.f32 %v4654, %v4620
      %v4656 = vadd.f32 %v4655, %v4621
      %v4657 = vadd.f32 %v4656, %v4622
      %v4658 = vadd.f32 %v4657, %v4623
      %v4659 = vadd.f32 %v4658, %v4624
      %v4660 = vadd.f32 %v4659, %v4625
      %v4661 = vadd.f32 %v4660, %v4626
      %v4662 = vadd.f32 %v4661, %v4627
      %v4663 = vadd.f32 %v4662, %v4628
      %v4664 = vadd.f32 %v4663, %v4629
      %v4665 = vadd.f32 %v4664, %v4630
      %v4666 = vadd.f32 %v4665, %v4631
      %v4667 = vadd.f32 %v4666, %v4632
      %v4668 = vadd.f32 %v4667, %v4633
      %v4669 = vadd.f32 %v4668, %v4634
      %v4670 = vadd.f32 %v4669, %v4635
      %v4671 = vadd.f32 %v4670, %v4636
      %v4672 = vadd.f32 %v4671, %v4637
      %v4673 = vadd.f32 %v4672, %v4638
      %v4674 = vadd.f32 %v4673, %v4639
      %v4675 = vadd.f32 %v4674, %v4640
      %v4676 = vadd.f32 %v4675, %v4641
      %v4677 = vadd.f32 %v4676, %v4642
      %v4678 = vadd.f32 %v4677, %v4643
      %v4679 = vadd.f32 %v4678, %v4644
      %v4680 = vrot.slane %v4679, 4
      %v4681 = vadd.f32 %v4679, %v4680
      %v4682 = vrot.slane %v4681, 2
      %v4683 = vadd.f32 %v4681, %v4682
      %v4684 = vrot.slane %v4683, 1
      %v4685 = vadd.f32 %v4683, %v4684
      %v4686 = vadd.f32 %v4608, 0.0
      %v4687 = vadd.f32 %v4685, 0.0
      %4688 = vst [vmem:[%s292] sm:$0x1] %v4686
      %4689 = vst [vmem:[%s295] sm:$0x1] %v4687
      %p4690 = scmp.lt.s32.totalorder %s19, 1
      %s4691 = scalar_select %p4690, %s19, 1
      %s4692 = smul.addr %s4691, 36
      %s4693 = smul.addr %s4692, 4
      %s4694 = scalar_lea.vmem %s5, %s4693
      %p4695 = scmp.lt.s32.totalorder %s19, 1
      %s4696 = scalar_select %p4695, %s19, 1
      %s4697 = scalar_lea.vmem %s6, %s4696
      %p4698 = scmp.lt.s32.totalorder %s19, 1
      %s4699 = scalar_select %p4698, %s19, 1
      %s4700 = scalar_lea.vmem %s7, %s4699
      // Predicated region
      $region41: #{resblock_forward.4} parent=39 // pred_check
        %p4701 = pneg %p147
      $region42: #{resblock_forward.4} parent=39 // pred_check_branch
        %4703 = sbr.rel (%p4701) target = $region44
      $region43: #{resblock_forward.4} parent=39 // pred_region
        _
      $region44: #{resblock_forward.4} parent=39 // pred_fallthru
        _
      // Predicated region
      $region45: #{resblock_forward.4} parent=39 // pred_check
        %p4704 = pneg %p173
      $region46: #{resblock_forward.4} parent=39 // pred_check_branch
        %4706 = sbr.rel (%p4704) target = $region48
      $region47: #{resblock_forward.4} parent=39 // pred_region
        _
      $region48: #{resblock_forward.4} parent=39 // pred_fallthru
        _
      // Predicated region
      $region49: #{resblock_forward.4} parent=39 // pred_check
        %p4707 = pneg %p199
      $region50: #{resblock_forward.4} parent=39 // pred_check_branch
        %4709 = sbr.rel (%p4707) target = $region52
      $region51: #{resblock_forward.4} parent=39 // pred_region
        _
      $region52: #{resblock_forward.4} parent=39 // pred_fallthru
        _
    $region40: #{resblock_forward.4} parent=5 // pred_fallthru
      _
    %p4710 = scmp.le.s32.totalorder 2, %s14
    // Predicated region
    $region53: #{resblock_forward.4} parent=5 // pred_check
      %p4711 = pneg %p4710
    $region54: #{resblock_forward.4} parent=5 // pred_check_branch
      %4713 = sbr.rel (%p4711) target = $region56
    $region55: #{resblock_forward.4} parent=5 // pred_region
      %s4714 = ssub.s32 %s14, 2
      // Predicated region
      $region57: #{resblock_forward.4} parent=55 // pred_check
        %p4715 = pneg %p153
      $region58: #{resblock_forward.4} parent=55 // pred_check_branch
        %4717 = sbr.rel (%p4715) target = $region60
      $region59: #{resblock_forward.4} parent=55 // pred_region
        %p4718 = scmp.lt.s32.totalorder %s20, 1
        %s4719 = scalar_select %p4718, %s20, 1
        %s4720 = smul.addr %s4719, 36
        %s4721 = smul.addr %s4720, 4
        %s4722 = scalar_lea.vmem %s5, %s4721
      $region60: #{resblock_forward.4} parent=55 // pred_fallthru
        _
      // Predicated region
      $region61: #{resblock_forward.4} parent=55 // pred_check
        %p4723 = pneg %p179
      $region62: #{resblock_forward.4} parent=55 // pred_check_branch
        %4725 = sbr.rel (%p4723) target = $region64
      $region63: #{resblock_forward.4} parent=55 // pred_region
        %p4726 = scmp.lt.s32.totalorder %s20, 1
        %s4727 = scalar_select %p4726, %s20, 1
        %s4728 = scalar_lea.vmem %s6, %s4727
      $region64: #{resblock_forward.4} parent=55 // pred_fallthru
        _
      // Predicated region
      $region65: #{resblock_forward.4} parent=55 // pred_check
        %p4729 = pneg %p205
      $region66: #{resblock_forward.4} parent=55 // pred_check_branch
        %4731 = sbr.rel (%p4729) target = $region68
      $region67: #{resblock_forward.4} parent=55 // pred_region
        %p4732 = scmp.lt.s32.totalorder %s20, 1
        %s4733 = scalar_select %p4732, %s20, 1
        %s4734 = scalar_lea.vmem %s7, %s4733
      $region68: #{resblock_forward.4} parent=55 // pred_fallthru
        _
    $region56: #{resblock_forward.4} parent=5 // pred_fallthru
      _
  $region6: #{resblock_forward.4} parent=0 // loop_footer
    %s18 = sadd.s32 1, %s14
  $region7: #{resblock_forward.4} parent=0 // loop_footer_branch
    %13 = sbr.rel target = $region3
  $region8: #{resblock_forward.4} parent=0 // loop_exit
    _

// kernel: resblock_forward.3
$region0: #{resblock_forward.3}
  #allocation0 [shape = 'u32[]', space=smem, size = 0x4, offset = 0x4, fixed_abs, tag = 'smem constant byte address 0x4 - core index']
  #allocation1 [shape = 'u32[144,128]{1,0:T(1,128)}', space=vmem, size = 0x12000, scoped, tag = 'internal scratch']
  %s0 = inlined_call_operand.vmem [shape: bf16[2,326,128], index: 0, kind: input, shape index: {}]
  %s1 = inlined_call_operand.vmem [shape: f32[288,1], index: 1, kind: input, shape index: {}]
  %s2 = inlined_call_operand.vmem [shape: bf16[9,128,128], index: 2, kind: input, shape index: {}]
  %s3 = inlined_call_operand.vmem [shape: bf16[128,128], index: 3, kind: input, shape index: {}]
  %s4 = inlined_call_operand.vmem [shape: bf16[2,288,128], index: 4, kind: output, shape index: {0}]
  %s5 = inlined_call_operand.vmem [shape: f32[2,1,128], index: 5, kind: output, shape index: {1}]
  %s6 = inlined_call_operand.vmem [shape: f32[2,1,128], index: 6, kind: output, shape index: {2}]
  %s7 = inlined_call_operand.vmem [shape: bf16[2,288,128], index: 7, kind: output, shape index: {3}]
  %s8 = inlined_call_operand.vmem [shape: f32[2,1,128], index: 8, kind: output, shape index: {4}]
  %s9 = inlined_call_operand.vmem [shape: f32[2,1,128], index: 9, kind: output, shape index: {5}]
  %10 = xla_tuple %s4, %s5, %s6, %s7, %s8, %s9
  %s11 = sld [smem:[#allocation0]]
  $region89: #{resblock_forward.3} parent=0
    _
  %s13 = ssub.s32 1, %s11
  %s14 = scalar_select 0, %s13, %s11
  loop: start=0, step=1, limit=4
  $region2: #{resblock_forward.3} parent=0 // loop_pre_header
    _
  $region3: #{resblock_forward.3} parent=0 // loop_header
    %s16 = sphi 0, %s20
    %p17 = scmp.ge.s32.totalorder %s16, 4
    %s26 = sphi 0, %s28
    %s29 = sphi 0, %s26
    %s30 = sphi 0, %s29
    %s46 = sphi 0, %s30
    %s50 = sphi 0, %s50
    %s52 = sphi 0, %s50
    %s53 = sphi 0, %s52
    %s67 = sphi 0, %s53
    %s71 = sphi 0, %s71
    %s73 = sphi 0, %s71
    %s74 = sphi 0, %s73
    %s88 = sphi 0, %s74
    %s92 = sphi 0, %s92
    %s94 = sphi 0, %s92
    %s95 = sphi 0, %s94
    %s109 = sphi 0, %s95
    %s115 = sphi 0, %s117
    %s118 = sphi 0, %s115
    %s119 = sphi 0, %s118
    %s135 = sphi 0, %s119
    %s141 = sphi 0, %s143
    %s144 = sphi 0, %s141
    %s145 = sphi 0, %s144
    %s161 = sphi 0, %s145
    %s167 = sphi 0, %s169
    %s170 = sphi 0, %s167
    %s171 = sphi 0, %s170
    %s187 = sphi 0, %s171
    %s193 = sphi 0, %s195
    %s196 = sphi 0, %s193
    %s197 = sphi 0, %s196
    %s213 = sphi 0, %s197
    %s219 = sphi 0, %s221
    %s222 = sphi 0, %s219
    %s223 = sphi 0, %s222
    %s239 = sphi 0, %s223
    %s245 = sphi 0, %s247
    %s248 = sphi 0, %s245
    %s249 = sphi 0, %s248
    %s265 = sphi 0, %s249
  $region4: #{resblock_forward.3} parent=0 // loop_header_branch
    %19 = sbr.rel (%p17) target = $region8
  $region5: #{resblock_forward.3} parent=0 // loop_body
    %s21 = ssub.s32 %s16, 1
    %s22 = ssub.s32 %s16, 2
    %s23 = sadd.s32 %s16, 1
    %s24 = ssub.s32 %s16, %s23
    %p25 = scmp.eq.s32.totalorder %s24, 0
    %s27 = sadd.s32 %s26, 1
    %s28 = scalar_select %p25, %s26, %s27
    %p31 = pneg %p25
    %p32 = scmp.eq.s32.totalorder %s16, 1
    %p33 = por %p31, %p32
    %p34 = scmp.ne.s32.totalorder %s26, %s29
    %p35 = scmp.eq.s32.totalorder %s16, 0
    %p36 = por %p34, %p35
    %p37 = scmp.ne.s32.totalorder %s26, %s29
    %p38 = scmp.eq.s32.totalorder %s21, 1
    %p39 = por %p37, %p38
    %p40 = scmp.ne.s32.totalorder %s29, %s30
    %p41 = scmp.eq.s32.totalorder %s21, 0
    %p42 = por %p40, %p41
    %p43 = scmp.ne.s32.totalorder %s29, %s30
    %p44 = scmp.eq.s32.totalorder %s22, 1
    %p45 = por %p43, %p44
    %p47 = scmp.ne.s32.totalorder %s30, %s46
    %p48 = scmp.eq.s32.totalorder %s22, 0
    %p49 = por %p47, %p48
    %s51 = sadd.s32 %s50, 1
    %p54 = scmp.eq.s32.totalorder %s16, 1
    %p55 = scmp.ne.s32.totalorder %s50, %s52
    %p56 = scmp.eq.s32.totalorder %s16, 0
    %p57 = por %p55, %p56
    %p58 = scmp.ne.s32.totalorder %s50, %s52
    %p59 = scmp.eq.s32.totalorder %s21, 1
    %p60 = por %p58, %p59
    %p61 = scmp.ne.s32.totalorder %s52, %s53
    %p62 = scmp.eq.s32.totalorder %s21, 0
    %p63 = por %p61, %p62
    %p64 = scmp.ne.s32.totalorder %s52, %s53
    %p65 = scmp.eq.s32.totalorder %s22, 1
    %p66 = por %p64, %p65
    %p68 = scmp.ne.s32.totalorder %s53, %s67
    %p69 = scmp.eq.s32.totalorder %s22, 0
    %p70 = por %p68, %p69
    %s72 = sadd.s32 %s71, 1
    %p75 = scmp.eq.s32.totalorder %s16, 1
    %p76 = scmp.ne.s32.totalorder %s71, %s73
    %p77 = scmp.eq.s32.totalorder %s16, 0
    %p78 = por %p76, %p77
    %p79 = scmp.ne.s32.totalorder %s71, %s73
    %p80 = scmp.eq.s32.totalorder %s21, 1
    %p81 = por %p79, %p80
    %p82 = scmp.ne.s32.totalorder %s73, %s74
    %p83 = scmp.eq.s32.totalorder %s21, 0
    %p84 = por %p82, %p83
    %p85 = scmp.ne.s32.totalorder %s73, %s74
    %p86 = scmp.eq.s32.totalorder %s22, 1
    %p87 = por %p85, %p86
    %p89 = scmp.ne.s32.totalorder %s74, %s88
    %p90 = scmp.eq.s32.totalorder %s22, 0
    %p91 = por %p89, %p90
    %s93 = sadd.s32 %s92, 1
    %p96 = scmp.eq.s32.totalorder %s16, 1
    %p97 = scmp.ne.s32.totalorder %s92, %s94
    %p98 = scmp.eq.s32.totalorder %s16, 0
    %p99 = por %p97, %p98
    %p100 = scmp.ne.s32.totalorder %s92, %s94
    %p101 = scmp.eq.s32.totalorder %s21, 1
    %p102 = por %p100, %p101
    %p103 = scmp.ne.s32.totalorder %s94, %s95
    %p104 = scmp.eq.s32.totalorder %s21, 0
    %p105 = por %p103, %p104
    %p106 = scmp.ne.s32.totalorder %s94, %s95
    %p107 = scmp.eq.s32.totalorder %s22, 1
    %p108 = por %p106, %p107
    %p110 = scmp.ne.s32.totalorder %s95, %s109
    %p111 = scmp.eq.s32.totalorder %s22, 0
    %p112 = por %p110, %p111
    %s113 = ssub.s32 %s16, %s23
    %p114 = scmp.eq.s32.totalorder %s113, 0
    %s116 = sadd.s32 %s115, 1
    %s117 = scalar_select %p114, %s115, %s116
    %p120 = pneg %p114
    %p121 = scmp.eq.s32.totalorder %s16, 1
    %p122 = por %p120, %p121
    %p123 = scmp.ne.s32.totalorder %s115, %s118
    %p124 = scmp.eq.s32.totalorder %s16, 0
    %p125 = por %p123, %p124
    %p126 = scmp.ne.s32.totalorder %s115, %s118
    %p127 = scmp.eq.s32.totalorder %s21, 1
    %p128 = por %p126, %p127
    %p129 = scmp.ne.s32.totalorder %s118, %s119
    %p130 = scmp.eq.s32.totalorder %s21, 0
    %p131 = por %p129, %p130
    %p132 = scmp.ne.s32.totalorder %s118, %s119
    %p133 = scmp.eq.s32.totalorder %s22, 1
    %p134 = por %p132, %p133
    %p136 = scmp.ne.s32.totalorder %s119, %s135
    %p137 = scmp.eq.s32.totalorder %s22, 0
    %p138 = por %p136, %p137
    %s139 = ssub.s32 %s16, %s23
    %p140 = scmp.eq.s32.totalorder %s139, 0
    %s142 = sadd.s32 %s141, 1
    %s143 = scalar_select %p140, %s141, %s142
    %p146 = pneg %p140
    %p147 = scmp.eq.s32.totalorder %s16, 1
    %p148 = por %p146, %p147
    %p149 = scmp.ne.s32.totalorder %s141, %s144
    %p150 = scmp.eq.s32.totalorder %s16, 0
    %p151 = por %p149, %p150
    %p152 = scmp.ne.s32.totalorder %s141, %s144
    %p153 = scmp.eq.s32.totalorder %s21, 1
    %p154 = por %p152, %p153
    %p155 = scmp.ne.s32.totalorder %s144, %s145
    %p156 = scmp.eq.s32.totalorder %s21, 0
    %p157 = por %p155, %p156
    %p158 = scmp.ne.s32.totalorder %s144, %s145
    %p159 = scmp.eq.s32.totalorder %s22, 1
    %p160 = por %p158, %p159
    %p162 = scmp.ne.s32.totalorder %s145, %s161
    %p163 = scmp.eq.s32.totalorder %s22, 0
    %p164 = por %p162, %p163
    %s165 = ssub.s32 %s16, %s23
    %p166 = scmp.eq.s32.totalorder %s165, 0
    %s168 = sadd.s32 %s167, 1
    %s169 = scalar_select %p166, %s167, %s168
    %p172 = pneg %p166
    %p173 = scmp.eq.s32.totalorder %s16, 1
    %p174 = por %p172, %p173
    %p175 = scmp.ne.s32.totalorder %s167, %s170
    %p176 = scmp.eq.s32.totalorder %s16, 0
    %p177 = por %p175, %p176
    %p178 = scmp.ne.s32.totalorder %s167, %s170
    %p179 = scmp.eq.s32.totalorder %s21, 1
    %p180 = por %p178, %p179
    %p181 = scmp.ne.s32.totalorder %s170, %s171
    %p182 = scmp.eq.s32.totalorder %s21, 0
    %p183 = por %p181, %p182
    %p184 = scmp.ne.s32.totalorder %s170, %s171
    %p185 = scmp.eq.s32.totalorder %s22, 1
    %p186 = por %p184, %p185
    %p188 = scmp.ne.s32.totalorder %s171, %s187
    %p189 = scmp.eq.s32.totalorder %s22, 0
    %p190 = por %p188, %p189
    %s191 = ssub.s32 %s16, %s23
    %p192 = scmp.eq.s32.totalorder %s191, 0
    %s194 = sadd.s32 %s193, 1
    %s195 = scalar_select %p192, %s193, %s194
    %p198 = pneg %p192
    %p199 = scmp.eq.s32.totalorder %s16, 1
    %p200 = por %p198, %p199
    %p201 = scmp.ne.s32.totalorder %s193, %s196
    %p202 = scmp.eq.s32.totalorder %s16, 0
    %p203 = por %p201, %p202
    %p204 = scmp.ne.s32.totalorder %s193, %s196
    %p205 = scmp.eq.s32.totalorder %s21, 1
    %p206 = por %p204, %p205
    %p207 = scmp.ne.s32.totalorder %s196, %s197
    %p208 = scmp.eq.s32.totalorder %s21, 0
    %p209 = por %p207, %p208
    %p210 = scmp.ne.s32.totalorder %s196, %s197
    %p211 = scmp.eq.s32.totalorder %s22, 1
    %p212 = por %p210, %p211
    %p214 = scmp.ne.s32.totalorder %s197, %s213
    %p215 = scmp.eq.s32.totalorder %s22, 0
    %p216 = por %p214, %p215
    %s217 = ssub.s32 %s16, %s23
    %p218 = scmp.eq.s32.totalorder %s217, 0
    %s220 = sadd.s32 %s219, 1
    %s221 = scalar_select %p218, %s219, %s220
    %p224 = pneg %p218
    %p225 = scmp.eq.s32.totalorder %s16, 1
    %p226 = por %p224, %p225
    %p227 = scmp.ne.s32.totalorder %s219, %s222
    %p228 = scmp.eq.s32.totalorder %s16, 0
    %p229 = por %p227, %p228
    %p230 = scmp.ne.s32.totalorder %s219, %s222
    %p231 = scmp.eq.s32.totalorder %s21, 1
    %p232 = por %p230, %p231
    %p233 = scmp.ne.s32.totalorder %s222, %s223
    %p234 = scmp.eq.s32.totalorder %s21, 0
    %p235 = por %p233, %p234
    %p236 = scmp.ne.s32.totalorder %s222, %s223
    %p237 = scmp.eq.s32.totalorder %s22, 1
    %p238 = por %p236, %p237
    %p240 = scmp.ne.s32.totalorder %s223, %s239
    %p241 = scmp.eq.s32.totalorder %s22, 0
    %p242 = por %p240, %p241
    %s243 = ssub.s32 %s16, %s23
    %p244 = scmp.eq.s32.totalorder %s243, 0
    %s246 = sadd.s32 %s245, 1
    %s247 = scalar_select %p244, %s245, %s246
    %p250 = pneg %p244
    %p251 = scmp.eq.s32.totalorder %s16, 1
    %p252 = por %p250, %p251
    %p253 = scmp.ne.s32.totalorder %s245, %s248
    %p254 = scmp.eq.s32.totalorder %s16, 0
    %p255 = por %p253, %p254
    %p256 = scmp.ne.s32.totalorder %s245, %s248
    %p257 = scmp.eq.s32.totalorder %s21, 1
    %p258 = por %p256, %p257
    %p259 = scmp.ne.s32.totalorder %s248, %s249
    %p260 = scmp.eq.s32.totalorder %s21, 0
    %p261 = por %p259, %p260
    %p262 = scmp.ne.s32.totalorder %s248, %s249
    %p263 = scmp.eq.s32.totalorder %s22, 1
    %p264 = por %p262, %p263
    %p266 = scmp.ne.s32.totalorder %s249, %s265
    %p267 = scmp.eq.s32.totalorder %s22, 0
    %p268 = por %p266, %p267
    %p269 = scmp.le.s32.totalorder 1, %s16
    %p270 = scmp.lt.s32.totalorder %s16, 3
    %p271 = pnand %p269, %p270
    %p272 = pneg %p271
    // Predicated region
    $region9: #{resblock_forward.3} parent=5 // pred_check
      _
    $region10: #{resblock_forward.3} parent=5 // pred_check_branch
      %274 = sbr.rel (%p271) target = $region12
    $region11: #{resblock_forward.3} parent=5 // pred_region
      %s275 = ssub.s32 %s16, 1
      // Predicated region
      $region13: #{resblock_forward.3} parent=11 // pred_check
        %p276 = pneg %p63
      $region14: #{resblock_forward.3} parent=11 // pred_check_branch
        %278 = sbr.rel (%p276) target = $region16
      $region15: #{resblock_forward.3} parent=11 // pred_region
        _
      $region16: #{resblock_forward.3} parent=11 // pred_fallthru
        _
      // Predicated region
      $region17: #{resblock_forward.3} parent=11 // pred_check
        %p279 = pneg %p84
      $region18: #{resblock_forward.3} parent=11 // pred_check_branch
        %281 = sbr.rel (%p279) target = $region20
      $region19: #{resblock_forward.3} parent=11 // pred_region
        _
      $region20: #{resblock_forward.3} parent=11 // pred_fallthru
        _
      // Predicated region
      $region21: #{resblock_forward.3} parent=11 // pred_check
        %p282 = pneg %p105
      $region22: #{resblock_forward.3} parent=11 // pred_check_branch
        %284 = sbr.rel (%p282) target = $region24
      $region23: #{resblock_forward.3} parent=11 // pred_region
        _
      $region24: #{resblock_forward.3} parent=11 // pred_fallthru
        _
    $region12: #{resblock_forward.3} parent=5 // pred_fallthru
      _
    %p285 = scmp.lt.s32.totalorder %s16, 2
    // Predicated region
    $region25: #{resblock_forward.3} parent=5 // pred_check
      %p286 = pneg %p285
    $region26: #{resblock_forward.3} parent=5 // pred_check_branch
      %288 = sbr.rel (%p286) target = $region28
    $region27: #{resblock_forward.3} parent=5 // pred_region
      // Predicated region
      $region29: #{resblock_forward.3} parent=27 // pred_check
        %p289 = pneg %p36
      $region30: #{resblock_forward.3} parent=27 // pred_check_branch
        %291 = sbr.rel (%p289) target = $region32
      $region31: #{resblock_forward.3} parent=27 // pred_region
        %p292 = scmp.lt.s32.totalorder %s16, 1
        %s293 = scalar_select %p292, %s16, 1
        %s294 = smul.addr %s293, 41
        %s295 = smul.addr %s294, 4
        %s296 = scalar_lea.vmem %s0, %s295
      $region32: #{resblock_forward.3} parent=27 // pred_fallthru
        _
    $region28: #{resblock_forward.3} parent=5 // pred_fallthru
      _
    %p297 = scmp.le.s32.totalorder 1, %s16
    %p298 = scmp.lt.s32.totalorder %s16, 3
    %p299 = pnand %p297, %p298
    %p300 = pneg %p299
    // Predicated region
    $region33: #{resblock_forward.3} parent=5 // pred_check
      _
    $region34: #{resblock_forward.3} parent=5 // pred_check_branch
      %302 = sbr.rel (%p299) target = $region36
    $region35: #{resblock_forward.3} parent=5 // pred_region
      %s303 = ssub.s32 %s16, 1
      %p304 = scmp.lt.s32.totalorder %s21, 1
      %s305 = scalar_select %p304, %s21, 1
      %s306 = smul.addr %s305, 41
      %s307 = smul.addr %s306, 4
      %s308 = scalar_lea.vmem %s0, %s307
      %p309 = pneg %p42
      %p310 = pneg %p39
      %p311 = pneg %p63
      %p312 = pneg %p60
      %p313 = pneg %p84
      %p314 = pneg %p81
      %p315 = pneg %p105
      %p316 = pneg %p102
      %p317 = pneg %p131
      %p318 = pneg %p128
      %p319 = scmp.lt.s32.totalorder %s21, 1
      %s320 = scalar_select %p319, %s21, 1
      %s321 = smul.addr %s320, 36
      %s322 = smul.addr %s321, 4
      %s323 = scalar_lea.vmem %s4, %s322
      %p324 = pneg %p157
      %p325 = pneg %p154
      %p326 = scmp.lt.s32.totalorder %s21, 1
      %s327 = scalar_select %p326, %s21, 1
      %s328 = scalar_lea.vmem %s5, %s327
      %p329 = pneg %p183
      %p330 = pneg %p180
      %p331 = scmp.lt.s32.totalorder %s21, 1
      %s332 = scalar_select %p331, %s21, 1
      %s333 = scalar_lea.vmem %s6, %s332
      %p334 = pneg %p209
      %p335 = pneg %p206
      %p336 = scmp.lt.s32.totalorder %s21, 1
      %s337 = scalar_select %p336, %s21, 1
      %s338 = smul.addr %s337, 36
      %s339 = smul.addr %s338, 4
      %s340 = scalar_lea.vmem %s7, %s339
      %p341 = pneg %p235
      %p342 = pneg %p232
      %p343 = scmp.lt.s32.totalorder %s21, 1
      %s344 = scalar_select %p343, %s21, 1
      %s345 = scalar_lea.vmem %s8, %s344
      %p346 = pneg %p261
      %p347 = pneg %p258
      %p348 = scmp.lt.s32.totalorder %s21, 1
      %s349 = scalar_select %p348, %s21, 1
      %s350 = scalar_lea.vmem %s9, %s349
      %p351 = scmp.lt.s32.totalorder %s21, 1
      %s352 = scalar_select %p351, %s21, 1
      %s353 = smul.addr %s352, 41
      %s354 = smul.addr %s353, 4
      %s355 = scalar_lea.vmem %s0, %s354
      %p356 = scmp.lt.s32.totalorder %s21, 1
      %s357 = scalar_select %p356, %s21, 1
      %s358 = smul.addr %s357, 36
      %s359 = smul.addr %s358, 4
      %s360 = scalar_lea.vmem %s4, %s359
      %p361 = scmp.lt.s32.totalorder %s21, 1
      %s362 = scalar_select %p361, %s21, 1
      %s363 = scalar_lea.vmem %s5, %s362
      %p364 = scmp.lt.s32.totalorder %s21, 1
      %s365 = scalar_select %p364, %s21, 1
      %s366 = scalar_lea.vmem %s6, %s365
      %p367 = scmp.lt.s32.totalorder %s21, 1
      %s368 = scalar_select %p367, %s21, 1
      %s369 = smul.addr %s368, 36
      %s370 = smul.addr %s369, 4
      %s371 = scalar_lea.vmem %s7, %s370
      %p372 = scmp.lt.s32.totalorder %s21, 1
      %s373 = scalar_select %p372, %s21, 1
      %s374 = scalar_lea.vmem %s8, %s373
      %p375 = scmp.lt.s32.totalorder %s21, 1
      %s376 = scalar_select %p375, %s21, 1
      %s377 = scalar_lea.vmem %s9, %s376
      %v379 = vld [vmem:[%s1] sm:$0xff]
      %v380 = vld [vmem:[%s1 + $0x8] sm:$0xff]
      %v381 = vld [vmem:[%s1 + $0x10] sm:$0xff]
      %v382 = vld [vmem:[%s1 + $0x18] sm:$0xff]
      %v383 = vld [vmem:[%s1 + $0x20] sm:$0xff]
      %v384 = vld [vmem:[%s1 + $0x28] sm:$0xff]
      %v385 = vld [vmem:[%s1 + $0x30] sm:$0xff]
      %v386 = vld [vmem:[%s1 + $0x38] sm:$0xff]
      %v387 = vld [vmem:[%s1 + $0x40] sm:$0xff]
      %v388 = vld [vmem:[%s1 + $0x48] sm:$0xff]
      %v389 = vld [vmem:[%s1 + $0x50] sm:$0xff]
      %v390 = vld [vmem:[%s1 + $0x58] sm:$0xff]
      %v391 = vld [vmem:[%s1 + $0x60] sm:$0xff]
      %v392 = vld [vmem:[%s1 + $0x68] sm:$0xff]
      %v393 = vld [vmem:[%s1 + $0x70] sm:$0xff]
      %v394 = vld [vmem:[%s1 + $0x78] sm:$0xff]
      %v395 = vld [vmem:[%s1 + $0x80] sm:$0xff]
      %v396 = vld [vmem:[%s1 + $0x88] sm:$0xff]
      %v397 = vld [vmem:[%s1 + $0x90] sm:$0xff]
      %v398 = vld [vmem:[%s1 + $0x98] sm:$0xff]
      %v399 = vld [vmem:[%s1 + $0xa0] sm:$0xff]
      %v400 = vld [vmem:[%s1 + $0xa8] sm:$0xff]
      %v401 = vld [vmem:[%s1 + $0xb0] sm:$0xff]
      %v402 = vld [vmem:[%s1 + $0xb8] sm:$0xff]
      %v403 = vld [vmem:[%s1 + $0xc0] sm:$0xff]
      %v404 = vld [vmem:[%s1 + $0xc8] sm:$0xff]
      %v405 = vld [vmem:[%s1 + $0xd0] sm:$0xff]
      %v406 = vld [vmem:[%s1 + $0xd8] sm:$0xff]
      %v407 = vld [vmem:[%s1 + $0xe0] sm:$0xff]
      %v408 = vld [vmem:[%s1 + $0xe8] sm:$0xff]
      %v409 = vld [vmem:[%s1 + $0xf0] sm:$0xff]
      %v410 = vld [vmem:[%s1 + $0xf8] sm:$0xff]
      %v411 = vld [vmem:[%s1 + $0x100] sm:$0xff]
      %v412 = vld [vmem:[%s1 + $0x108] sm:$0xff]
      %v413 = vld [vmem:[%s1 + $0x110] sm:$0xff]
      %v414 = vld [vmem:[%s1 + $0x118] sm:$0xff]
      %vm415 = vcmp.gt.f32.partialorder %v379, 0.5
      %vm416 = vcmp.gt.f32.partialorder %v380, 0.5
      %vm417 = vcmp.gt.f32.partialorder %v381, 0.5
      %vm418 = vcmp.gt.f32.partialorder %v382, 0.5
      %vm419 = vcmp.gt.f32.partialorder %v383, 0.5
      %vm420 = vcmp.gt.f32.partialorder %v384, 0.5
      %vm421 = vcmp.gt.f32.partialorder %v385, 0.5
      %vm422 = vcmp.gt.f32.partialorder %v386, 0.5
      %vm423 = vcmp.gt.f32.partialorder %v387, 0.5
      %vm424 = vcmp.gt.f32.partialorder %v388, 0.5
      %vm425 = vcmp.gt.f32.partialorder %v389, 0.5
      %vm426 = vcmp.gt.f32.partialorder %v390, 0.5
      %vm427 = vcmp.gt.f32.partialorder %v391, 0.5
      %vm428 = vcmp.gt.f32.partialorder %v392, 0.5
      %vm429 = vcmp.gt.f32.partialorder %v393, 0.5
      %vm430 = vcmp.gt.f32.partialorder %v394, 0.5
      %vm431 = vcmp.gt.f32.partialorder %v395, 0.5
      %vm432 = vcmp.gt.f32.partialorder %v396, 0.5
      %vm433 = vcmp.gt.f32.partialorder %v397, 0.5
      %vm434 = vcmp.gt.f32.partialorder %v398, 0.5
      %vm435 = vcmp.gt.f32.partialorder %v399, 0.5
      %vm436 = vcmp.gt.f32.partialorder %v400, 0.5
      %vm437 = vcmp.gt.f32.partialorder %v401, 0.5
      %vm438 = vcmp.gt.f32.partialorder %v402, 0.5
      %vm439 = vcmp.gt.f32.partialorder %v403, 0.5
      %vm440 = vcmp.gt.f32.partialorder %v404, 0.5
      %vm441 = vcmp.gt.f32.partialorder %v405, 0.5
      %vm442 = vcmp.gt.f32.partialorder %v406, 0.5
      %vm443 = vcmp.gt.f32.partialorder %v407, 0.5
      %vm444 = vcmp.gt.f32.partialorder %v408, 0.5
      %vm445 = vcmp.gt.f32.partialorder %v409, 0.5
      %vm446 = vcmp.gt.f32.partialorder %v410, 0.5
      %vm447 = vcmp.gt.f32.partialorder %v411, 0.5
      %vm448 = vcmp.gt.f32.partialorder %v412, 0.5
      %vm449 = vcmp.gt.f32.partialorder %v413, 0.5
      %vm450 = vcmp.gt.f32.partialorder %v414, 0.5
      %v451 = vld [vmem:[%s355] sm:$0xf]
      %v452 = vld [vmem:[%s355 + $0x4] sm:$0xf]
      %v453 = vld [vmem:[%s355 + $0x8] sm:$0xf]
      %v454 = vld [vmem:[%s355 + $0xc] sm:$0xf]
      %v455 = vld [vmem:[%s355 + $0x10] sm:$0xf]
      %v456 = vld [vmem:[%s355 + $0x14] sm:$0xf]
      %v457 = vld [vmem:[%s355 + $0x18] sm:$0xf]
      %v458 = vld [vmem:[%s355 + $0x1c] sm:$0xf]
      %v459 = vld [vmem:[%s355 + $0x20] sm:$0xf]
      %v460 = vld [vmem:[%s355 + $0x24] sm:$0xf]
      %v461 = vld [vmem:[%s355 + $0x28] sm:$0xf]
      %v462 = vld [vmem:[%s355 + $0x2c] sm:$0xf]
      %v463 = vld [vmem:[%s355 + $0x30] sm:$0xf]
      %v464 = vld [vmem:[%s355 + $0x34] sm:$0xf]
      %v465 = vld [vmem:[%s355 + $0x38] sm:$0xf]
      %v466 = vld [vmem:[%s355 + $0x3c] sm:$0xf]
      %v467 = vld [vmem:[%s355 + $0x40] sm:$0xf]
      %v468 = vld [vmem:[%s355 + $0x44] sm:$0xf]
      %v469 = vld [vmem:[%s355 + $0x48] sm:$0xf]
      %v470 = vld [vmem:[%s355 + $0x4c] sm:$0xf]
      %v471 = vld [vmem:[%s355 + $0x50] sm:$0xf]
      %v472 = vld [vmem:[%s355 + $0x54] sm:$0xf]
      %v473 = vld [vmem:[%s355 + $0x58] sm:$0xf]
      %v474 = vld [vmem:[%s355 + $0x5c] sm:$0xf]
      %v475 = vld [vmem:[%s355 + $0x60] sm:$0xf]
      %v476 = vld [vmem:[%s355 + $0x64] sm:$0xf]
      %v477 = vld [vmem:[%s355 + $0x68] sm:$0xf]
      %v478 = vld [vmem:[%s355 + $0x6c] sm:$0xf]
      %v479 = vld [vmem:[%s355 + $0x70] sm:$0xf]
      %v480 = vld [vmem:[%s355 + $0x74] sm:$0xf]
      %v481 = vld [vmem:[%s355 + $0x78] sm:$0xf]
      %v482 = vld [vmem:[%s355 + $0x7c] sm:$0xf]
      %v483 = vld [vmem:[%s355 + $0x80] sm:$0xf]
      %v484 = vld [vmem:[%s355 + $0x84] sm:$0xf]
      %v485 = vld [vmem:[%s355 + $0x88] sm:$0xf]
      %v486 = vld [vmem:[%s355 + $0x8c] sm:$0xf]
      %v487 = vld [vmem:[%s2] sm:$0xf]
      %v488 = vld [vmem:[%s2 + $0x4] sm:$0xf]
      %v489 = vld [vmem:[%s2 + $0x8] sm:$0xf]
      %v490 = vld [vmem:[%s2 + $0xc] sm:$0xf]
      %v491 = vld [vmem:[%s2 + $0x10] sm:$0xf]
      %v492 = vld [vmem:[%s2 + $0x14] sm:$0xf]
      %v493 = vld [vmem:[%s2 + $0x18] sm:$0xf]
      %v494 = vld [vmem:[%s2 + $0x1c] sm:$0xf]
      %v495 = vld [vmem:[%s2 + $0x20] sm:$0xf]
      %v496 = vld [vmem:[%s2 + $0x24] sm:$0xf]
      %v497 = vld [vmem:[%s2 + $0x28] sm:$0xf]
      %v498 = vld [vmem:[%s2 + $0x2c] sm:$0xf]
      %v499 = vld [vmem:[%s2 + $0x30] sm:$0xf]
      %v500 = vld [vmem:[%s2 + $0x34] sm:$0xf]
      %v501 = vld [vmem:[%s2 + $0x38] sm:$0xf]
      %v502 = vld [vmem:[%s2 + $0x3c] sm:$0xf]
      %v503 = vld [vmem:[%s355 + $0x90] sm:$0x1]
      %s504 = scalar_lea.vmem %s2, 64
      %v505 = vld [vmem:[%s504] sm:$0xf]
      %v506 = vld [vmem:[%s504 + $0x4] sm:$0xf]
      %v507 = vld [vmem:[%s504 + $0x8] sm:$0xf]
      %v508 = vld [vmem:[%s504 + $0xc] sm:$0xf]
      %v509 = vld [vmem:[%s504 + $0x10] sm:$0xf]
      %v510 = vld [vmem:[%s504 + $0x14] sm:$0xf]
      %v511 = vld [vmem:[%s504 + $0x18] sm:$0xf]
      %v512 = vld [vmem:[%s504 + $0x1c] sm:$0xf]
      %v513 = vld [vmem:[%s504 + $0x20] sm:$0xf]
      %v514 = vld [vmem:[%s504 + $0x24] sm:$0xf]
      %v515 = vld [vmem:[%s504 + $0x28] sm:$0xf]
      %v516 = vld [vmem:[%s504 + $0x2c] sm:$0xf]
      %v517 = vld [vmem:[%s504 + $0x30] sm:$0xf]
      %v518 = vld [vmem:[%s504 + $0x34] sm:$0xf]
      %v519 = vld [vmem:[%s504 + $0x38] sm:$0xf]
      %v520 = vld [vmem:[%s504 + $0x3c] sm:$0xf]
      %v558 = vunpack.c.l.b16 %v451
      %v559 = vunpack.c.l.b16 %v452
      %v560 = vunpack.c.l.b16 %v453
      %v561 = vunpack.c.l.b16 %v454
      %v562 = vunpack.c.l.b16 %v455
      %v563 = vunpack.c.l.b16 %v456
      %v564 = vunpack.c.l.b16 %v457
      %v565 = vunpack.c.l.b16 %v458
      %v566 = vunpack.c.l.b16 %v459
      %v567 = vunpack.c.l.b16 %v460
      %v568 = vunpack.c.l.b16 %v461
      %v569 = vunpack.c.l.b16 %v462
      %v570 = vunpack.c.l.b16 %v463
      %v571 = vunpack.c.l.b16 %v464
      %v572 = vunpack.c.l.b16 %v465
      %v573 = vunpack.c.l.b16 %v466
      %v574 = vunpack.c.l.b16 %v467
      %v575 = vunpack.c.l.b16 %v468
      %v576 = vunpack.c.l.b16 %v469
      %v577 = vunpack.c.l.b16 %v470
      %v578 = vunpack.c.l.b16 %v471
      %v579 = vunpack.c.l.b16 %v472
      %v580 = vunpack.c.l.b16 %v473
      %v581 = vunpack.c.l.b16 %v474
      %v582 = vunpack.c.l.b16 %v475
      %v583 = vunpack.c.l.b16 %v476
      %v584 = vunpack.c.l.b16 %v477
      %v585 = vunpack.c.l.b16 %v478
      %v586 = vunpack.c.l.b16 %v479
      %v587 = vunpack.c.l.b16 %v480
      %v588 = vunpack.c.l.b16 %v481
      %v589 = vunpack.c.l.b16 %v482
      %v590 = vunpack.c.l.b16 %v483
      %v591 = vunpack.c.l.b16 %v484
      %v592 = vunpack.c.l.b16 %v485
      %v593 = vunpack.c.l.b16 %v486
      %v594 = vunpack.c.l.b16 %v503
      %v595 = vpack.c.b16 %v559, %v558
      %v596 = vpack.c.b16 %v561, %v560
      %v597 = vpack.c.b16 %v563, %v562
      %v598 = vpack.c.b16 %v565, %v564
      %v599 = vpack.c.b16 %v567, %v566
      %v600 = vpack.c.b16 %v569, %v568
      %v601 = vpack.c.b16 %v571, %v570
      %v602 = vpack.c.b16 %v573, %v572
      %v603 = vpack.c.b16 %v575, %v574
      %v604 = vpack.c.b16 %v577, %v576
      %v605 = vpack.c.b16 %v579, %v578
      %v606 = vpack.c.b16 %v581, %v580
      %v607 = vpack.c.b16 %v583, %v582
      %v608 = vpack.c.b16 %v585, %v584
      %v609 = vpack.c.b16 %v587, %v586
      %v610 = vpack.c.b16 %v589, %v588
      %v611 = vpack.c.b16 %v591, %v590
      %v612 = vpack.c.b16 %v593, %v592
      %v613 = vpack.c.b16 %v594, %v594
      %vm614 = vsmask.f32 7424
      %v616 = vshrl.u32 %v595, 16
      %v618 = vshll.u32 %v595, 16
      %v620 = vrot.slane %v618, 1
      %v621 = vor.u32 %v616, %v620
      %v623 = vshll.u32 %v596, 16
      %v625 = vrot.slane %v623, 1
      %v626 = vsel %vm614, %v621, %v625
      %v627 = vshrl.u32 %v596, 16
      %v629 = vor.u32 %v627, %v625
      %v631 = vshll.u32 %v597, 16
      %v633 = vrot.slane %v631, 1
      %v634 = vsel %vm614, %v629, %v633
      %v635 = vshrl.u32 %v597, 16
      %v637 = vor.u32 %v635, %v633
      %v639 = vshll.u32 %v598, 16
      %v641 = vrot.slane %v639, 1
      %v642 = vsel %vm614, %v637, %v641
      %v643 = vshrl.u32 %v598, 16
      %v645 = vor.u32 %v643, %v641
      %v647 = vshll.u32 %v599, 16
      %v649 = vrot.slane %v647, 1
      %v650 = vsel %vm614, %v645, %v649
      %v651 = vshrl.u32 %v599, 16
      %v653 = vor.u32 %v651, %v649
      %v655 = vshll.u32 %v600, 16
      %v657 = vrot.slane %v655, 1
      %v658 = vsel %vm614, %v653, %v657
      %v659 = vshrl.u32 %v600, 16
      %v661 = vor.u32 %v659, %v657
      %v663 = vshll.u32 %v601, 16
      %v665 = vrot.slane %v663, 1
      %v666 = vsel %vm614, %v661, %v665
      %v667 = vshrl.u32 %v601, 16
      %v669 = vor.u32 %v667, %v665
      %v671 = vshll.u32 %v602, 16
      %v673 = vrot.slane %v671, 1
      %v674 = vsel %vm614, %v669, %v673
      %v675 = vshrl.u32 %v602, 16
      %v677 = vor.u32 %v675, %v673
      %v679 = vshll.u32 %v603, 16
      %v681 = vrot.slane %v679, 1
      %v682 = vsel %vm614, %v677, %v681
      %v683 = vshrl.u32 %v603, 16
      %v685 = vor.u32 %v683, %v681
      %v687 = vshll.u32 %v604, 16
      %v689 = vrot.slane %v687, 1
      %v690 = vsel %vm614, %v685, %v689
      %v691 = vshrl.u32 %v604, 16
      %v693 = vor.u32 %v691, %v689
      %v695 = vshll.u32 %v605, 16
      %v697 = vrot.slane %v695, 1
      %v698 = vsel %vm614, %v693, %v697
      %v699 = vshrl.u32 %v605, 16
      %v701 = vor.u32 %v699, %v697
      %v703 = vshll.u32 %v606, 16
      %v705 = vrot.slane %v703, 1
      %v706 = vsel %vm614, %v701, %v705
      %v707 = vshrl.u32 %v606, 16
      %v709 = vor.u32 %v707, %v705
      %v711 = vshll.u32 %v607, 16
      %v713 = vrot.slane %v711, 1
      %v714 = vsel %vm614, %v709, %v713
      %v715 = vshrl.u32 %v607, 16
      %v717 = vor.u32 %v715, %v713
      %v719 = vshll.u32 %v608, 16
      %v721 = vrot.slane %v719, 1
      %v722 = vsel %vm614, %v717, %v721
      %v723 = vshrl.u32 %v608, 16
      %v725 = vor.u32 %v723, %v721
      %v727 = vshll.u32 %v609, 16
      %v729 = vrot.slane %v727, 1
      %v730 = vsel %vm614, %v725, %v729
      %v731 = vshrl.u32 %v609, 16
      %v733 = vor.u32 %v731, %v729
      %v735 = vshll.u32 %v610, 16
      %v737 = vrot.slane %v735, 1
      %v738 = vsel %vm614, %v733, %v737
      %v739 = vshrl.u32 %v610, 16
      %v741 = vor.u32 %v739, %v737
      %v743 = vshll.u32 %v611, 16
      %v745 = vrot.slane %v743, 1
      %v746 = vsel %vm614, %v741, %v745
      %v747 = vshrl.u32 %v611, 16
      %v749 = vor.u32 %v747, %v745
      %v751 = vshll.u32 %v612, 16
      %v753 = vrot.slane %v751, 1
      %v754 = vsel %vm614, %v749, %v753
      %v755 = vshrl.u32 %v612, 16
      %v757 = vor.u32 %v755, %v753
      %v759 = vshll.u32 %v613, 16
      %v761 = vrot.slane %v759, 1
      %v762 = vsel %vm614, %v757, %v761
      %v797 = vunpack.c.l.b16 %v505
      %v798 = vunpack.c.l.b16 %v506
      %v799 = vunpack.c.l.b16 %v507
      %v800 = vunpack.c.l.b16 %v508
      %v801 = vunpack.c.l.b16 %v509
      %v802 = vunpack.c.l.b16 %v510
      %v803 = vunpack.c.l.b16 %v511
      %v804 = vunpack.c.l.b16 %v512
      %v805 = vunpack.c.l.b16 %v513
      %v806 = vunpack.c.l.b16 %v514
      %v807 = vunpack.c.l.b16 %v515
      %v808 = vunpack.c.l.b16 %v516
      %v809 = vunpack.c.l.b16 %v517
      %v810 = vunpack.c.l.b16 %v518
      %v811 = vunpack.c.l.b16 %v519
      %v812 = vunpack.c.l.b16 %v520
      %v813 = vpack.c.b16 %v798, %v797
      %v814 = vpack.c.b16 %v800, %v799
      %v815 = vpack.c.b16 %v802, %v801
      %v816 = vpack.c.b16 %v804, %v803
      %v817 = vpack.c.b16 %v806, %v805
      %v818 = vpack.c.b16 %v808, %v807
      %v819 = vpack.c.b16 %v810, %v809
      %v820 = vpack.c.b16 %v812, %v811
      %829 = vmatprep.subr.bf16.mxu0 0
      %830 = vmatpush1.bf16.msra.mxu0 %v813
      %831 = vmatprep.subr.bf16.mxu0 0
      %832 = vmatpush1.bf16.msra.mxu0 %v814
      %833 = vmatprep.subr.bf16.mxu0 0
      %834 = vmatpush1.bf16.msra.mxu0 %v815
      %835 = vmatprep.subr.bf16.mxu0 0
      %836 = vmatpush1.bf16.msra.mxu0 %v816
      %837 = vmatprep.subr.bf16.mxu0 0
      %838 = vmatpush1.bf16.msra.mxu0 %v817
      %839 = vmatprep.subr.bf16.mxu0 0
      %840 = vmatpush1.bf16.msra.mxu0 %v818
      %841 = vmatprep.subr.bf16.mxu0 0
      %842 = vmatpush1.bf16.msra.mxu0 %v819
      %843 = vmatprep.subr.bf16.mxu0 0
      %844 = vmatpush1.bf16.msra.mxu0 %v820
      %845 = vmatprep.subr.bf16.mxu0 0
      %846 = vmatpush1.bf16.msra.mxu0 0
      %847 = vmatprep.subr.bf16.mxu0 0
      %848 = vmatpush1.bf16.msra.mxu0 0
      %849 = vmatprep.subr.bf16.mxu0 0
      %850 = vmatpush1.bf16.msra.mxu0 0
      %851 = vmatprep.subr.bf16.mxu0 0
      %852 = vmatpush1.bf16.msra.mxu0 0
      %853 = vmatprep.subr.bf16.mxu0 0
      %854 = vmatpush1.bf16.msra.mxu0 0
      %855 = vmatprep.subr.bf16.mxu0 0
      %856 = vmatpush1.bf16.msra.mxu0 0
      %857 = vmatprep.subr.bf16.mxu0 0
      %858 = vmatpush1.bf16.msra.mxu0 0
      %859 = vmatprep.subr.bf16.mxu0 0
      %860 = vmatpush1.bf16.msra.mxu0 0
      %861 = vmatprep.mubr.bf16.mxu0 0
      %862 = vmatmul.mubr.bf16.gmra.mrb[0].mxu0 %v626
      %v863 = vpop.f32.mrb[0].mxu0
      %v864 = vadd.f32 0.0, %v863
      %v865 = vpop.f32.mrb[0].mxu0
      %v866 = vpop.f32.mrb[0].mxu0
      %v867 = vadd.f32 0.0, %v866
      %v868 = vpop.f32.mrb[0].mxu0
      %869 = vmatprep.mubr.bf16.mxu0 0
      %870 = vmatmul.mubr.bf16.gmra.mrb[0].mxu0 %v634
      %v871 = vpop.f32.mrb[0].mxu0
      %v872 = vadd.f32 0.0, %v871
      %v873 = vpop.f32.mrb[0].mxu0
      %v874 = vpop.f32.mrb[0].mxu0
      %v875 = vadd.f32 0.0, %v874
      %v876 = vpop.f32.mrb[0].mxu0
      %877 = vmatprep.mubr.bf16.mxu0 0
      %878 = vmatmul.mubr.bf16.gmra.mrb[0].mxu0 %v642
      %v879 = vpop.f32.mrb[0].mxu0
      %v880 = vadd.f32 0.0, %v879
      %v881 = vpop.f32.mrb[0].mxu0
      %v882 = vpop.f32.mrb[0].mxu0
      %v883 = vadd.f32 0.0, %v882
      %v884 = vpop.f32.mrb[0].mxu0
      %885 = vmatprep.mubr.bf16.mxu0 0
      %886 = vmatmul.mubr.bf16.gmra.mrb[0].mxu0 %v650
      %v887 = vpop.f32.mrb[0].mxu0
      %v888 = vadd.f32 0.0, %v887
      %v889 = vpop.f32.mrb[0].mxu0
      %v890 = vpop.f32.mrb[0].mxu0
      %v891 = vadd.f32 0.0, %v890
      %v892 = vpop.f32.mrb[0].mxu0
      %893 = vmatprep.mubr.bf16.mxu0 0
      %894 = vmatmul.mubr.bf16.gmra.mrb[0].mxu0 %v658
      %v895 = vpop.f32.mrb[0].mxu0
      %v896 = vadd.f32 0.0, %v895
      %v897 = vpop.f32.mrb[0].mxu0
      %v898 = vpop.f32.mrb[0].mxu0
      %v899 = vadd.f32 0.0, %v898
      %v900 = vpop.f32.mrb[0].mxu0
      %901 = vmatprep.mubr.bf16.mxu0 0
      %902 = vmatmul.mubr.bf16.gmra.mrb[0].mxu0 %v666
      %v903 = vpop.f32.mrb[0].mxu0
      %v904 = vadd.f32 0.0, %v903
      %v905 = vpop.f32.mrb[0].mxu0
      %v906 = vpop.f32.mrb[0].mxu0
      %v907 = vadd.f32 0.0, %v906
      %v908 = vpop.f32.mrb[0].mxu0
      %909 = vmatprep.mubr.bf16.mxu0 0
      %910 = vmatmul.mubr.bf16.gmra.mrb[0].mxu0 %v674
      %v911 = vpop.f32.mrb[0].mxu0
      %v912 = vadd.f32 0.0, %v911
      %v913 = vpop.f32.mrb[0].mxu0
      %v914 = vpop.f32.mrb[0].mxu0
      %v915 = vadd.f32 0.0, %v914
      %v916 = vpop.f32.mrb[0].mxu0
      %917 = vmatprep.mubr.bf16.mxu0 0
      %918 = vmatmul.mubr.bf16.gmra.mrb[0].mxu0 %v682
      %v919 = vpop.f32.mrb[0].mxu0
      %v920 = vadd.f32 0.0, %v919
      %v921 = vpop.f32.mrb[0].mxu0
      %v922 = vpop.f32.mrb[0].mxu0
      %v923 = vadd.f32 0.0, %v922
      %v924 = vpop.f32.mrb[0].mxu0
      %925 = vmatprep.mubr.bf16.mxu0 0
      %926 = vmatmul.mubr.bf16.gmra.mrb[0].mxu0 %v690
      %v927 = vpop.f32.mrb[0].mxu0
      %v928 = vadd.f32 0.0, %v927
      %v929 = vpop.f32.mrb[0].mxu0
      %v930 = vpop.f32.mrb[0].mxu0
      %v931 = vadd.f32 0.0, %v930
      %v932 = vpop.f32.mrb[0].mxu0
      %933 = vmatprep.mubr.bf16.mxu0 0
      %934 = vmatmul.mubr.bf16.gmra.mrb[0].mxu0 %v698
      %v935 = vpop.f32.mrb[0].mxu0
      %v936 = vadd.f32 0.0, %v935
      %v937 = vpop.f32.mrb[0].mxu0
      %v938 = vpop.f32.mrb[0].mxu0
      %v939 = vadd.f32 0.0, %v938
      %v940 = vpop.f32.mrb[0].mxu0
      %941 = vmatprep.mubr.bf16.mxu0 0
      %942 = vmatmul.mubr.bf16.gmra.mrb[0].mxu0 %v706
      %v943 = vpop.f32.mrb[0].mxu0
      %v944 = vadd.f32 0.0, %v943
      %v945 = vpop.f32.mrb[0].mxu0
      %v946 = vpop.f32.mrb[0].mxu0
      %v947 = vadd.f32 0.0, %v946
      %v948 = vpop.f32.mrb[0].mxu0
      %949 = vmatprep.mubr.bf16.mxu0 0
      %950 = vmatmul.mubr.bf16.gmra.mrb[0].mxu0 %v714
      %v951 = vpop.f32.mrb[0].mxu0
      %v952 = vadd.f32 0.0, %v951
      %v953 = vpop.f32.mrb[0].mxu0
      %v954 = vpop.f32.mrb[0].mxu0
      %v955 = vadd.f32 0.0, %v954
      %v956 = vpop.f32.mrb[0].mxu0
      %957 = vmatprep.mubr.bf16.mxu0 0
      %958 = vmatmul.mubr.bf16.gmra.mrb[0].mxu0 %v722
      %v959 = vpop.f32.mrb[0].mxu0
      %v960 = vadd.f32 0.0, %v959
      %v961 = vpop.f32.mrb[0].mxu0
      %v962 = vpop.f32.mrb[0].mxu0
      %v963 = vadd.f32 0.0, %v962
      %v964 = vpop.f32.mrb[0].mxu0
      %965 = vmatprep.mubr.bf16.mxu0 0
      %966 = vmatmul.mubr.bf16.gmra.mrb[0].mxu0 %v730
      %v967 = vpop.f32.mrb[0].mxu0
      %v968 = vadd.f32 0.0, %v967
      %v969 = vpop.f32.mrb[0].mxu0
      %v970 = vpop.f32.mrb[0].mxu0
      %v971 = vadd.f32 0.0, %v970
      %v972 = vpop.f32.mrb[0].mxu0
      %973 = vmatprep.mubr.bf16.mxu0 0
      %974 = vmatmul.mubr.bf16.gmra.mrb[0].mxu0 %v738
      %v975 = vpop.f32.mrb[0].mxu0
      %v976 = vadd.f32 0.0, %v975
      %v977 = vpop.f32.mrb[0].mxu0
      %v978 = vpop.f32.mrb[0].mxu0
      %v979 = vadd.f32 0.0, %v978
      %v980 = vpop.f32.mrb[0].mxu0
      %981 = vmatprep.mubr.bf16.mxu0 0
      %982 = vmatmul.mubr.bf16.gmra.mrb[0].mxu0 %v746
      %v983 = vpop.f32.mrb[0].mxu0
      %v984 = vadd.f32 0.0, %v983
      %v985 = vpop.f32.mrb[0].mxu0
      %v986 = vpop.f32.mrb[0].mxu0
      %v987 = vadd.f32 0.0, %v986
      %v988 = vpop.f32.mrb[0].mxu0
      %989 = vmatprep.mubr.bf16.mxu0 0
      %990 = vmatmul.mubr.bf16.gmra.mrb[0].mxu0 %v754
      %v991 = vpop.f32.mrb[0].mxu0
      %v992 = vadd.f32 0.0, %v991
      %v993 = vpop.f32.mrb[0].mxu0
      %v994 = vpop.f32.mrb[0].mxu0
      %v995 = vadd.f32 0.0, %v994
      %v996 = vpop.f32.mrb[0].mxu0
      %997 = vmatprep.mubr.bf16.mxu0 0
      %998 = vmatmul.mubr.bf16.gmra.mrb[0].mxu0 %v762
      %v999 = vpop.f32.mrb[0].mxu0
      %v1000 = vadd.f32 0.0, %v999
      %v1001 = vpop.f32.mrb[0].mxu0
      %v1002 = vpop.f32.mrb[0].mxu0
      %v1003 = vadd.f32 0.0, %v1002
      %v1004 = vpop.f32.mrb[0].mxu0
      %1005 = vdwg.mxu0
      %v1040 = vunpack.c.l.b16 %v487
      %v1041 = vunpack.c.l.b16 %v488
      %v1042 = vunpack.c.l.b16 %v489
      %v1043 = vunpack.c.l.b16 %v490
      %v1044 = vunpack.c.l.b16 %v491
      %v1045 = vunpack.c.l.b16 %v492
      %v1046 = vunpack.c.l.b16 %v493
      %v1047 = vunpack.c.l.b16 %v494
      %v1048 = vunpack.c.l.b16 %v495
      %v1049 = vunpack.c.l.b16 %v496
      %v1050 = vunpack.c.l.b16 %v497
      %v1051 = vunpack.c.l.b16 %v498
      %v1052 = vunpack.c.l.b16 %v499
      %v1053 = vunpack.c.l.b16 %v500
      %v1054 = vunpack.c.l.b16 %v501
      %v1055 = vunpack.c.l.b16 %v502
      %v1056 = vpack.c.b16 %v1041, %v1040
      %v1057 = vpack.c.b16 %v1043, %v1042
      %v1058 = vpack.c.b16 %v1045, %v1044
      %v1059 = vpack.c.b16 %v1047, %v1046
      %v1060 = vpack.c.b16 %v1049, %v1048
      %v1061 = vpack.c.b16 %v1051, %v1050
      %v1062 = vpack.c.b16 %v1053, %v1052
      %v1063 = vpack.c.b16 %v1055, %v1054
      %1072 = vmatprep.subr.bf16.mxu0 0
      %1073 = vmatpush1.bf16.msra.mxu0 %v1056
      %1074 = vmatprep.subr.bf16.mxu0 0
      %1075 = vmatpush1.bf16.msra.mxu0 %v1057
      %1076 = vmatprep.subr.bf16.mxu0 0
      %1077 = vmatpush1.bf16.msra.mxu0 %v1058
      %1078 = vmatprep.subr.bf16.mxu0 0
      %1079 = vmatpush1.bf16.msra.mxu0 %v1059
      %1080 = vmatprep.subr.bf16.mxu0 0
      %1081 = vmatpush1.bf16.msra.mxu0 %v1060
      %1082 = vmatprep.subr.bf16.mxu0 0
      %1083 = vmatpush1.bf16.msra.mxu0 %v1061
      %1084 = vmatprep.subr.bf16.mxu0 0
      %1085 = vmatpush1.bf16.msra.mxu0 %v1062
      %1086 = vmatprep.subr.bf16.mxu0 0
      %1087 = vmatpush1.bf16.msra.mxu0 %v1063
      %1088 = vmatprep.subr.bf16.mxu0 0
      %1089 = vmatpush1.bf16.msra.mxu0 0
      %1090 = vmatprep.subr.bf16.mxu0 0
      %1091 = vmatpush1.bf16.msra.mxu0 0
      %1092 = vmatprep.subr.bf16.mxu0 0
      %1093 = vmatpush1.bf16.msra.mxu0 0
      %1094 = vmatprep.subr.bf16.mxu0 0
      %1095 = vmatpush1.bf16.msra.mxu0 0
      %1096 = vmatprep.subr.bf16.mxu0 0
      %1097 = vmatpush1.bf16.msra.mxu0 0
      %1098 = vmatprep.subr.bf16.mxu0 0
      %1099 = vmatpush1.bf16.msra.mxu0 0
      %1100 = vmatprep.subr.bf16.mxu0 0
      %1101 = vmatpush1.bf16.msra.mxu0 0
      %1102 = vmatprep.subr.bf16.mxu0 0
      %1103 = vmatpush1.bf16.msra.mxu0 0
      %1104 = vmatprep.mubr.bf16.mxu0 0
      %1105 = vmatmul.mubr.bf16.gmra.mrb[0].mxu0 %v595
      %v1106 = vpop.f32.mrb[0].mxu0
      %v1107 = vadd.f32 %v864, %v1106
      %v1108 = vpop.f32.mrb[0].mxu0
      %v1109 = vpop.f32.mrb[0].mxu0
      %v1110 = vadd.f32 %v867, %v1109
      %v1111 = vpop.f32.mrb[0].mxu0
      %1112 = vmatprep.mubr.bf16.mxu0 0
      %1113 = vmatmul.mubr.bf16.gmra.mrb[0].mxu0 %v596
      %v1114 = vpop.f32.mrb[0].mxu0
      %v1115 = vadd.f32 %v872, %v1114
      %v1116 = vpop.f32.mrb[0].mxu0
      %v1117 = vpop.f32.mrb[0].mxu0
      %v1118 = vadd.f32 %v875, %v1117
      %v1119 = vpop.f32.mrb[0].mxu0
      %1120 = vmatprep.mubr.bf16.mxu0 0
      %1121 = vmatmul.mubr.bf16.gmra.mrb[0].mxu0 %v597
      %v1122 = vpop.f32.mrb[0].mxu0
      %v1123 = vadd.f32 %v880, %v1122
      %v1124 = vpop.f32.mrb[0].mxu0
      %v1125 = vpop.f32.mrb[0].mxu0
      %v1126 = vadd.f32 %v883, %v1125
      %v1127 = vpop.f32.mrb[0].mxu0
      %1128 = vmatprep.mubr.bf16.mxu0 0
      %1129 = vmatmul.mubr.bf16.gmra.mrb[0].mxu0 %v598
      %v1130 = vpop.f32.mrb[0].mxu0
      %v1131 = vadd.f32 %v888, %v1130
      %v1132 = vpop.f32.mrb[0].mxu0
      %v1133 = vpop.f32.mrb[0].mxu0
      %v1134 = vadd.f32 %v891, %v1133
      %v1135 = vpop.f32.mrb[0].mxu0
      %1136 = vmatprep.mubr.bf16.mxu0 0
      %1137 = vmatmul.mubr.bf16.gmra.mrb[0].mxu0 %v599
      %v1138 = vpop.f32.mrb[0].mxu0
      %v1139 = vadd.f32 %v896, %v1138
      %v1140 = vpop.f32.mrb[0].mxu0
      %v1141 = vpop.f32.mrb[0].mxu0
      %v1142 = vadd.f32 %v899, %v1141
      %v1143 = vpop.f32.mrb[0].mxu0
      %1144 = vmatprep.mubr.bf16.mxu0 0
      %1145 = vmatmul.mubr.bf16.gmra.mrb[0].mxu0 %v600
      %v1146 = vpop.f32.mrb[0].mxu0
      %v1147 = vadd.f32 %v904, %v1146
      %v1148 = vpop.f32.mrb[0].mxu0
      %v1149 = vpop.f32.mrb[0].mxu0
      %v1150 = vadd.f32 %v907, %v1149
      %v1151 = vpop.f32.mrb[0].mxu0
      %1152 = vmatprep.mubr.bf16.mxu0 0
      %1153 = vmatmul.mubr.bf16.gmra.mrb[0].mxu0 %v601
      %v1154 = vpop.f32.mrb[0].mxu0
      %v1155 = vadd.f32 %v912, %v1154
      %v1156 = vpop.f32.mrb[0].mxu0
      %v1157 = vpop.f32.mrb[0].mxu0
      %v1158 = vadd.f32 %v915, %v1157
      %v1159 = vpop.f32.mrb[0].mxu0
      %1160 = vmatprep.mubr.bf16.mxu0 0
      %1161 = vmatmul.mubr.bf16.gmra.mrb[0].mxu0 %v602
      %v1162 = vpop.f32.mrb[0].mxu0
      %v1163 = vadd.f32 %v920, %v1162
      %v1164 = vpop.f32.mrb[0].mxu0
      %v1165 = vpop.f32.mrb[0].mxu0
      %v1166 = vadd.f32 %v923, %v1165
      %v1167 = vpop.f32.mrb[0].mxu0
      %1168 = vmatprep.mubr.bf16.mxu0 0
      %1169 = vmatmul.mubr.bf16.gmra.mrb[0].mxu0 %v603
      %v1170 = vpop.f32.mrb[0].mxu0
      %v1171 = vadd.f32 %v928, %v1170
      %v1172 = vpop.f32.mrb[0].mxu0
      %v1173 = vpop.f32.mrb[0].mxu0
      %v1174 = vadd.f32 %v931, %v1173
      %v1175 = vpop.f32.mrb[0].mxu0
      %1176 = vmatprep.mubr.bf16.mxu0 0
      %1177 = vmatmul.mubr.bf16.gmra.mrb[0].mxu0 %v604
      %v1178 = vpop.f32.mrb[0].mxu0
      %v1179 = vadd.f32 %v936, %v1178
      %v1180 = vpop.f32.mrb[0].mxu0
      %v1181 = vpop.f32.mrb[0].mxu0
      %v1182 = vadd.f32 %v939, %v1181
      %v1183 = vpop.f32.mrb[0].mxu0
      %1184 = vmatprep.mubr.bf16.mxu0 0
      %1185 = vmatmul.mubr.bf16.gmra.mrb[0].mxu0 %v605
      %v1186 = vpop.f32.mrb[0].mxu0
      %v1187 = vadd.f32 %v944, %v1186
      %v1188 = vpop.f32.mrb[0].mxu0
      %v1189 = vpop.f32.mrb[0].mxu0
      %v1190 = vadd.f32 %v947, %v1189
      %v1191 = vpop.f32.mrb[0].mxu0
      %1192 = vmatprep.mubr.bf16.mxu0 0
      %1193 = vmatmul.mubr.bf16.gmra.mrb[0].mxu0 %v606
      %v1194 = vpop.f32.mrb[0].mxu0
      %v1195 = vadd.f32 %v952, %v1194
      %v1196 = vpop.f32.mrb[0].mxu0
      %v1197 = vpop.f32.mrb[0].mxu0
      %v1198 = vadd.f32 %v955, %v1197
      %v1199 = vpop.f32.mrb[0].mxu0
      %1200 = vmatprep.mubr.bf16.mxu0 0
      %1201 = vmatmul.mubr.bf16.gmra.mrb[0].mxu0 %v607
      %v1202 = vpop.f32.mrb[0].mxu0
      %v1203 = vadd.f32 %v960, %v1202
      %v1204 = vpop.f32.mrb[0].mxu0
      %v1205 = vpop.f32.mrb[0].mxu0
      %v1206 = vadd.f32 %v963, %v1205
      %v1207 = vpop.f32.mrb[0].mxu0
      %1208 = vmatprep.mubr.bf16.mxu0 0
      %1209 = vmatmul.mubr.bf16.gmra.mrb[0].mxu0 %v608
      %v1210 = vpop.f32.mrb[0].mxu0
      %v1211 = vadd.f32 %v968, %v1210
      %v1212 = vpop.f32.mrb[0].mxu0
      %v1213 = vpop.f32.mrb[0].mxu0
      %v1214 = vadd.f32 %v971, %v1213
      %v1215 = vpop.f32.mrb[0].mxu0
      %1216 = vmatprep.mubr.bf16.mxu0 0
      %1217 = vmatmul.mubr.bf16.gmra.mrb[0].mxu0 %v609
      %v1218 = vpop.f32.mrb[0].mxu0
      %v1219 = vadd.f32 %v976, %v1218
      %v1220 = vpop.f32.mrb[0].mxu0
      %v1221 = vpop.f32.mrb[0].mxu0
      %v1222 = vadd.f32 %v979, %v1221
      %v1223 = vpop.f32.mrb[0].mxu0
      %1224 = vmatprep.mubr.bf16.mxu0 0
      %1225 = vmatmul.mubr.bf16.gmra.mrb[0].mxu0 %v610
      %v1226 = vpop.f32.mrb[0].mxu0
      %v1227 = vadd.f32 %v984, %v1226
      %v1228 = vpop.f32.mrb[0].mxu0
      %v1229 = vpop.f32.mrb[0].mxu0
      %v1230 = vadd.f32 %v987, %v1229
      %v1231 = vpop.f32.mrb[0].mxu0
      %1232 = vmatprep.mubr.bf16.mxu0 0
      %1233 = vmatmul.mubr.bf16.gmra.mrb[0].mxu0 %v611
      %v1234 = vpop.f32.mrb[0].mxu0
      %v1235 = vadd.f32 %v992, %v1234
      %v1236 = vpop.f32.mrb[0].mxu0
      %v1237 = vpop.f32.mrb[0].mxu0
      %v1238 = vadd.f32 %v995, %v1237
      %v1239 = vpop.f32.mrb[0].mxu0
      %1240 = vmatprep.mubr.bf16.mxu0 0
      %1241 = vmatmul.mubr.bf16.gmra.mrb[0].mxu0 %v612
      %v1242 = vpop.f32.mrb[0].mxu0
      %v1243 = vadd.f32 %v1000, %v1242
      %v1244 = vpop.f32.mrb[0].mxu0
      %v1245 = vpop.f32.mrb[0].mxu0
      %v1246 = vadd.f32 %v1003, %v1245
      %v1247 = vpop.f32.mrb[0].mxu0
      %1248 = vdwg.mxu0
      %v1249 = vld [vmem:[%s355] sm:$0xe]
      %s1250 = scalar_lea.vmem %s2, 128
      %v1251 = vld [vmem:[%s1250] sm:$0xf]
      %v1252 = vld [vmem:[%s1250 + $0x4] sm:$0xf]
      %v1253 = vld [vmem:[%s1250 + $0x8] sm:$0xf]
      %v1254 = vld [vmem:[%s1250 + $0xc] sm:$0xf]
      %v1255 = vld [vmem:[%s1250 + $0x10] sm:$0xf]
      %v1256 = vld [vmem:[%s1250 + $0x14] sm:$0xf]
      %v1257 = vld [vmem:[%s1250 + $0x18] sm:$0xf]
      %v1258 = vld [vmem:[%s1250 + $0x1c] sm:$0xf]
      %v1259 = vld [vmem:[%s1250 + $0x20] sm:$0xf]
      %v1260 = vld [vmem:[%s1250 + $0x24] sm:$0xf]
      %v1261 = vld [vmem:[%s1250 + $0x28] sm:$0xf]
      %v1262 = vld [vmem:[%s1250 + $0x2c] sm:$0xf]
      %v1263 = vld [vmem:[%s1250 + $0x30] sm:$0xf]
      %v1264 = vld [vmem:[%s1250 + $0x34] sm:$0xf]
      %v1265 = vld [vmem:[%s1250 + $0x38] sm:$0xf]
      %v1266 = vld [vmem:[%s1250 + $0x3c] sm:$0xf]
      %v1268 = vunpack.c.l.b16 %v1249
      %v1269 = vpack.c.b16 %v559, %v1268
      %vm1270 = vcmask 1046528
      %v1271 = vrot.slane %v1269, 1
      %v1272 = vrot.slane %v596, 1
      %v1273 = vsel %vm1270, %v1271, %v1272
      %v1274 = vrot.slane %v597, 1
      %v1275 = vsel %vm1270, %v1272, %v1274
      %v1276 = vrot.slane %v598, 1
      %v1277 = vsel %vm1270, %v1274, %v1276
      %v1278 = vrot.slane %v599, 1
      %v1279 = vsel %vm1270, %v1276, %v1278
      %v1280 = vrot.slane %v600, 1
      %v1281 = vsel %vm1270, %v1278, %v1280
      %v1282 = vrot.slane %v601, 1
      %v1283 = vsel %vm1270, %v1280, %v1282
      %v1284 = vrot.slane %v602, 1
      %v1285 = vsel %vm1270, %v1282, %v1284
      %v1286 = vrot.slane %v603, 1
      %v1287 = vsel %vm1270, %v1284, %v1286
      %v1288 = vrot.slane %v604, 1
      %v1289 = vsel %vm1270, %v1286, %v1288
      %v1290 = vrot.slane %v605, 1
      %v1291 = vsel %vm1270, %v1288, %v1290
      %v1292 = vrot.slane %v606, 1
      %v1293 = vsel %vm1270, %v1290, %v1292
      %v1294 = vrot.slane %v607, 1
      %v1295 = vsel %vm1270, %v1292, %v1294
      %v1296 = vrot.slane %v608, 1
      %v1297 = vsel %vm1270, %v1294, %v1296
      %v1298 = vrot.slane %v609, 1
      %v1299 = vsel %vm1270, %v1296, %v1298
      %v1300 = vrot.slane %v610, 1
      %v1301 = vsel %vm1270, %v1298, %v1300
      %v1302 = vrot.slane %v611, 1
      %v1303 = vsel %vm1270, %v1300, %v1302
      %v1304 = vrot.slane %v612, 1
      %v1305 = vsel %vm1270, %v1302, %v1304
      %v1306 = vrot.slane %v613, 1
      %v1307 = vsel %vm1270, %v1304, %v1306
      %v1342 = vunpack.c.l.b16 %v1251
      %v1343 = vunpack.c.l.b16 %v1252
      %v1344 = vunpack.c.l.b16 %v1253
      %v1345 = vunpack.c.l.b16 %v1254
      %v1346 = vunpack.c.l.b16 %v1255
      %v1347 = vunpack.c.l.b16 %v1256
      %v1348 = vunpack.c.l.b16 %v1257
      %v1349 = vunpack.c.l.b16 %v1258
      %v1350 = vunpack.c.l.b16 %v1259
      %v1351 = vunpack.c.l.b16 %v1260
      %v1352 = vunpack.c.l.b16 %v1261
      %v1353 = vunpack.c.l.b16 %v1262
      %v1354 = vunpack.c.l.b16 %v1263
      %v1355 = vunpack.c.l.b16 %v1264
      %v1356 = vunpack.c.l.b16 %v1265
      %v1357 = vunpack.c.l.b16 %v1266
      %v1358 = vpack.c.b16 %v1343, %v1342
      %v1359 = vpack.c.b16 %v1345, %v1344
      %v1360 = vpack.c.b16 %v1347, %v1346
      %v1361 = vpack.c.b16 %v1349, %v1348
      %v1362 = vpack.c.b16 %v1351, %v1350
      %v1363 = vpack.c.b16 %v1353, %v1352
      %v1364 = vpack.c.b16 %v1355, %v1354
      %v1365 = vpack.c.b16 %v1357, %v1356
      %1374 = vmatprep.subr.bf16.mxu0 0
      %1375 = vmatpush1.bf16.msra.mxu0 %v1358
      %1376 = vmatprep.subr.bf16.mxu0 0
      %1377 = vmatpush1.bf16.msra.mxu0 %v1359
      %1378 = vmatprep.subr.bf16.mxu0 0
      %1379 = vmatpush1.bf16.msra.mxu0 %v1360
      %1380 = vmatprep.subr.bf16.mxu0 0
      %1381 = vmatpush1.bf16.msra.mxu0 %v1361
      %1382 = vmatprep.subr.bf16.mxu0 0
      %1383 = vmatpush1.bf16.msra.mxu0 %v1362
      %1384 = vmatprep.subr.bf16.mxu0 0
      %1385 = vmatpush1.bf16.msra.mxu0 %v1363
      %1386 = vmatprep.subr.bf16.mxu0 0
      %1387 = vmatpush1.bf16.msra.mxu0 %v1364
      %1388 = vmatprep.subr.bf16.mxu0 0
      %1389 = vmatpush1.bf16.msra.mxu0 %v1365
      %1390 = vmatprep.subr.bf16.mxu0 0
      %1391 = vmatpush1.bf16.msra.mxu0 0
      %1392 = vmatprep.subr.bf16.mxu0 0
      %1393 = vmatpush1.bf16.msra.mxu0 0
      %1394 = vmatprep.subr.bf16.mxu0 0
      %1395 = vmatpush1.bf16.msra.mxu0 0
      %1396 = vmatprep.subr.bf16.mxu0 0
      %1397 = vmatpush1.bf16.msra.mxu0 0
      %1398 = vmatprep.subr.bf16.mxu0 0
      %1399 = vmatpush1.bf16.msra.mxu0 0
      %1400 = vmatprep.subr.bf16.mxu0 0
      %1401 = vmatpush1.bf16.msra.mxu0 0
      %1402 = vmatprep.subr.bf16.mxu0 0
      %1403 = vmatpush1.bf16.msra.mxu0 0
      %1404 = vmatprep.subr.bf16.mxu0 0
      %1405 = vmatpush1.bf16.msra.mxu0 0
      %1406 = vmatprep.mubr.bf16.mxu0 0
      %1407 = vmatmul.mubr.bf16.gmra.mrb[0].mxu0 %v1273
      %v1408 = vpop.f32.mrb[0].mxu0
      %v1409 = vadd.f32 0.0, %v1408
      %v1410 = vpop.f32.mrb[0].mxu0
      %v1411 = vpop.f32.mrb[0].mxu0
      %v1412 = vadd.f32 0.0, %v1411
      %v1413 = vpop.f32.mrb[0].mxu0
      %1414 = vmatprep.mubr.bf16.mxu0 0
      %1415 = vmatmul.mubr.bf16.gmra.mrb[0].mxu0 %v1275
      %v1416 = vpop.f32.mrb[0].mxu0
      %v1417 = vadd.f32 0.0, %v1416
      %v1418 = vpop.f32.mrb[0].mxu0
      %v1419 = vpop.f32.mrb[0].mxu0
      %v1420 = vadd.f32 0.0, %v1419
      %v1421 = vpop.f32.mrb[0].mxu0
      %1422 = vmatprep.mubr.bf16.mxu0 0
      %1423 = vmatmul.mubr.bf16.gmra.mrb[0].mxu0 %v1277
      %v1424 = vpop.f32.mrb[0].mxu0
      %v1425 = vadd.f32 0.0, %v1424
      %v1426 = vpop.f32.mrb[0].mxu0
      %v1427 = vpop.f32.mrb[0].mxu0
      %v1428 = vadd.f32 0.0, %v1427
      %v1429 = vpop.f32.mrb[0].mxu0
      %1430 = vmatprep.mubr.bf16.mxu0 0
      %1431 = vmatmul.mubr.bf16.gmra.mrb[0].mxu0 %v1279
      %v1432 = vpop.f32.mrb[0].mxu0
      %v1433 = vadd.f32 0.0, %v1432
      %v1434 = vpop.f32.mrb[0].mxu0
      %v1435 = vpop.f32.mrb[0].mxu0
      %v1436 = vadd.f32 0.0, %v1435
      %v1437 = vpop.f32.mrb[0].mxu0
      %1438 = vmatprep.mubr.bf16.mxu0 0
      %1439 = vmatmul.mubr.bf16.gmra.mrb[0].mxu0 %v1281
      %v1440 = vpop.f32.mrb[0].mxu0
      %v1441 = vadd.f32 0.0, %v1440
      %v1442 = vpop.f32.mrb[0].mxu0
      %v1443 = vpop.f32.mrb[0].mxu0
      %v1444 = vadd.f32 0.0, %v1443
      %v1445 = vpop.f32.mrb[0].mxu0
      %1446 = vmatprep.mubr.bf16.mxu0 0
      %1447 = vmatmul.mubr.bf16.gmra.mrb[0].mxu0 %v1283
      %v1448 = vpop.f32.mrb[0].mxu0
      %v1449 = vadd.f32 0.0, %v1448
      %v1450 = vpop.f32.mrb[0].mxu0
      %v1451 = vpop.f32.mrb[0].mxu0
      %v1452 = vadd.f32 0.0, %v1451
      %v1453 = vpop.f32.mrb[0].mxu0
      %1454 = vmatprep.mubr.bf16.mxu0 0
      %1455 = vmatmul.mubr.bf16.gmra.mrb[0].mxu0 %v1285
      %v1456 = vpop.f32.mrb[0].mxu0
      %v1457 = vadd.f32 0.0, %v1456
      %v1458 = vpop.f32.mrb[0].mxu0
      %v1459 = vpop.f32.mrb[0].mxu0
      %v1460 = vadd.f32 0.0, %v1459
      %v1461 = vpop.f32.mrb[0].mxu0
      %1462 = vmatprep.mubr.bf16.mxu0 0
      %1463 = vmatmul.mubr.bf16.gmra.mrb[0].mxu0 %v1287
      %v1464 = vpop.f32.mrb[0].mxu0
      %v1465 = vadd.f32 0.0, %v1464
      %v1466 = vpop.f32.mrb[0].mxu0
      %v1467 = vpop.f32.mrb[0].mxu0
      %v1468 = vadd.f32 0.0, %v1467
      %v1469 = vpop.f32.mrb[0].mxu0
      %1470 = vmatprep.mubr.bf16.mxu0 0
      %1471 = vmatmul.mubr.bf16.gmra.mrb[0].mxu0 %v1289
      %v1472 = vpop.f32.mrb[0].mxu0
      %v1473 = vadd.f32 0.0, %v1472
      %v1474 = vpop.f32.mrb[0].mxu0
      %v1475 = vpop.f32.mrb[0].mxu0
      %v1476 = vadd.f32 0.0, %v1475
      %v1477 = vpop.f32.mrb[0].mxu0
      %1478 = vmatprep.mubr.bf16.mxu0 0
      %1479 = vmatmul.mubr.bf16.gmra.mrb[0].mxu0 %v1291
      %v1480 = vpop.f32.mrb[0].mxu0
      %v1481 = vadd.f32 0.0, %v1480
      %v1482 = vpop.f32.mrb[0].mxu0
      %v1483 = vpop.f32.mrb[0].mxu0
      %v1484 = vadd.f32 0.0, %v1483
      %v1485 = vpop.f32.mrb[0].mxu0
      %1486 = vmatprep.mubr.bf16.mxu0 0
      %1487 = vmatmul.mubr.bf16.gmra.mrb[0].mxu0 %v1293
      %v1488 = vpop.f32.mrb[0].mxu0
      %v1489 = vadd.f32 0.0, %v1488
      %v1490 = vpop.f32.mrb[0].mxu0
      %v1491 = vpop.f32.mrb[0].mxu0
      %v1492 = vadd.f32 0.0, %v1491
      %v1493 = vpop.f32.mrb[0].mxu0
      %1494 = vmatprep.mubr.bf16.mxu0 0
      %1495 = vmatmul.mubr.bf16.gmra.mrb[0].mxu0 %v1295
      %v1496 = vpop.f32.mrb[0].mxu0
      %v1497 = vadd.f32 0.0, %v1496
      %v1498 = vpop.f32.mrb[0].mxu0
      %v1499 = vpop.f32.mrb[0].mxu0
      %v1500 = vadd.f32 0.0, %v1499
      %v1501 = vpop.f32.mrb[0].mxu0
      %1502 = vmatprep.mubr.bf16.mxu0 0
      %1503 = vmatmul.mubr.bf16.gmra.mrb[0].mxu0 %v1297
      %v1504 = vpop.f32.mrb[0].mxu0
      %v1505 = vadd.f32 0.0, %v1504
      %v1506 = vpop.f32.mrb[0].mxu0
      %v1507 = vpop.f32.mrb[0].mxu0
      %v1508 = vadd.f32 0.0, %v1507
      %v1509 = vpop.f32.mrb[0].mxu0
      %1510 = vmatprep.mubr.bf16.mxu0 0
      %1511 = vmatmul.mubr.bf16.gmra.mrb[0].mxu0 %v1299
      %v1512 = vpop.f32.mrb[0].mxu0
      %v1513 = vadd.f32 0.0, %v1512
      %v1514 = vpop.f32.mrb[0].mxu0
      %v1515 = vpop.f32.mrb[0].mxu0
      %v1516 = vadd.f32 0.0, %v1515
      %v1517 = vpop.f32.mrb[0].mxu0
      %1518 = vmatprep.mubr.bf16.mxu0 0
      %1519 = vmatmul.mubr.bf16.gmra.mrb[0].mxu0 %v1301
      %v1520 = vpop.f32.mrb[0].mxu0
      %v1521 = vadd.f32 0.0, %v1520
      %v1522 = vpop.f32.mrb[0].mxu0
      %v1523 = vpop.f32.mrb[0].mxu0
      %v1524 = vadd.f32 0.0, %v1523
      %v1525 = vpop.f32.mrb[0].mxu0
      %1526 = vmatprep.mubr.bf16.mxu0 0
      %1527 = vmatmul.mubr.bf16.gmra.mrb[0].mxu0 %v1303
      %v1528 = vpop.f32.mrb[0].mxu0
      %v1529 = vadd.f32 0.0, %v1528
      %v1530 = vpop.f32.mrb[0].mxu0
      %v1531 = vpop.f32.mrb[0].mxu0
      %v1532 = vadd.f32 0.0, %v1531
      %v1533 = vpop.f32.mrb[0].mxu0
      %1534 = vmatprep.mubr.bf16.mxu0 0
      %1535 = vmatmul.mubr.bf16.gmra.mrb[0].mxu0 %v1305
      %v1536 = vpop.f32.mrb[0].mxu0
      %v1537 = vadd.f32 0.0, %v1536
      %v1538 = vpop.f32.mrb[0].mxu0
      %v1539 = vpop.f32.mrb[0].mxu0
      %v1540 = vadd.f32 0.0, %v1539
      %v1541 = vpop.f32.mrb[0].mxu0
      %1542 = vmatprep.mubr.bf16.mxu0 0
      %1543 = vmatmul.mubr.bf16.gmra.mrb[0].mxu0 %v1307
      %v1544 = vpop.f32.mrb[0].mxu0
      %v1545 = vadd.f32 0.0, %v1544
      %v1546 = vpop.f32.mrb[0].mxu0
      %v1547 = vpop.f32.mrb[0].mxu0
      %v1548 = vadd.f32 0.0, %v1547
      %v1549 = vpop.f32.mrb[0].mxu0
      %1550 = vdwg.mxu0
      %v1551 = vadd.f32 %v1107, %v1409
      %v1552 = vadd.f32 %v1110, %v1412
      %v1553 = vadd.f32 %v1115, %v1417
      %v1554 = vadd.f32 %v1118, %v1420
      %v1555 = vadd.f32 %v1123, %v1425
      %v1556 = vadd.f32 %v1126, %v1428
      %v1557 = vadd.f32 %v1131, %v1433
      %v1558 = vadd.f32 %v1134, %v1436
      %v1559 = vadd.f32 %v1139, %v1441
      %v1560 = vadd.f32 %v1142, %v1444
      %v1561 = vadd.f32 %v1147, %v1449
      %v1562 = vadd.f32 %v1150, %v1452
      %v1563 = vadd.f32 %v1155, %v1457
      %v1564 = vadd.f32 %v1158, %v1460
      %v1565 = vadd.f32 %v1163, %v1465
      %v1566 = vadd.f32 %v1166, %v1468
      %v1567 = vadd.f32 %v1171, %v1473
      %v1568 = vadd.f32 %v1174, %v1476
      %v1569 = vadd.f32 %v1179, %v1481
      %v1570 = vadd.f32 %v1182, %v1484
      %v1571 = vadd.f32 %v1187, %v1489
      %v1572 = vadd.f32 %v1190, %v1492
      %v1573 = vadd.f32 %v1195, %v1497
      %v1574 = vadd.f32 %v1198, %v1500
      %v1575 = vadd.f32 %v1203, %v1505
      %v1576 = vadd.f32 %v1206, %v1508
      %v1577 = vadd.f32 %v1211, %v1513
      %v1578 = vadd.f32 %v1214, %v1516
      %v1579 = vadd.f32 %v1219, %v1521
      %v1580 = vadd.f32 %v1222, %v1524
      %v1581 = vadd.f32 %v1227, %v1529
      %v1582 = vadd.f32 %v1230, %v1532
      %v1583 = vadd.f32 %v1235, %v1537
      %v1584 = vadd.f32 %v1238, %v1540
      %v1585 = vadd.f32 %v1243, %v1545
      %v1586 = vadd.f32 %v1246, %v1548
      %v1587 = vld [vmem:[%s355 + $0x8] sm:$0xe]
      %v1588 = vld [vmem:[%s355 + $0xc] sm:$0xf]
      %v1589 = vld [vmem:[%s355 + $0x10] sm:$0xf]
      %v1590 = vld [vmem:[%s355 + $0x14] sm:$0xf]
      %v1591 = vld [vmem:[%s355 + $0x18] sm:$0xf]
      %v1592 = vld [vmem:[%s355 + $0x1c] sm:$0xf]
      %v1593 = vld [vmem:[%s355 + $0x20] sm:$0xf]
      %v1594 = vld [vmem:[%s355 + $0x24] sm:$0xf]
      %v1595 = vld [vmem:[%s355 + $0x28] sm:$0xf]
      %v1596 = vld [vmem:[%s355 + $0x2c] sm:$0xf]
      %v1597 = vld [vmem:[%s355 + $0x30] sm:$0xf]
      %v1598 = vld [vmem:[%s355 + $0x34] sm:$0xf]
      %v1599 = vld [vmem:[%s355 + $0x38] sm:$0xf]
      %v1600 = vld [vmem:[%s355 + $0x3c] sm:$0xf]
      %v1601 = vld [vmem:[%s355 + $0x40] sm:$0xf]
      %v1602 = vld [vmem:[%s355 + $0x44] sm:$0xf]
      %v1603 = vld [vmem:[%s355 + $0x48] sm:$0xf]
      %v1604 = vld [vmem:[%s355 + $0x4c] sm:$0xf]
      %v1605 = vld [vmem:[%s355 + $0x50] sm:$0xf]
      %v1606 = vld [vmem:[%s355 + $0x54] sm:$0xf]
      %v1607 = vld [vmem:[%s355 + $0x58] sm:$0xf]
      %v1608 = vld [vmem:[%s355 + $0x5c] sm:$0xf]
      %v1609 = vld [vmem:[%s355 + $0x60] sm:$0xf]
      %v1610 = vld [vmem:[%s355 + $0x64] sm:$0xf]
      %v1611 = vld [vmem:[%s355 + $0x68] sm:$0xf]
      %v1612 = vld [vmem:[%s355 + $0x6c] sm:$0xf]
      %v1613 = vld [vmem:[%s355 + $0x70] sm:$0xf]
      %v1614 = vld [vmem:[%s355 + $0x74] sm:$0xf]
      %v1615 = vld [vmem:[%s355 + $0x78] sm:$0xf]
      %v1616 = vld [vmem:[%s355 + $0x7c] sm:$0xf]
      %v1617 = vld [vmem:[%s355 + $0x80] sm:$0xf]
      %v1618 = vld [vmem:[%s355 + $0x84] sm:$0xf]
      %v1619 = vld [vmem:[%s355 + $0x88] sm:$0xf]
      %v1620 = vld [vmem:[%s355 + $0x8c] sm:$0xf]
      %v1621 = vld [vmem:[%s355 + $0x90] sm:$0xf]
      %v1622 = vld [vmem:[%s355 + $0x94] sm:$0xf]
      %v1623 = vld [vmem:[%s355 + $0x98] sm:$0x1]
      %s1624 = scalar_lea.vmem %s2, 192
      %v1625 = vld [vmem:[%s1624] sm:$0xf]
      %v1626 = vld [vmem:[%s1624 + $0x4] sm:$0xf]
      %v1627 = vld [vmem:[%s1624 + $0x8] sm:$0xf]
      %v1628 = vld [vmem:[%s1624 + $0xc] sm:$0xf]
      %v1629 = vld [vmem:[%s1624 + $0x10] sm:$0xf]
      %v1630 = vld [vmem:[%s1624 + $0x14] sm:$0xf]
      %v1631 = vld [vmem:[%s1624 + $0x18] sm:$0xf]
      %v1632 = vld [vmem:[%s1624 + $0x1c] sm:$0xf]
      %v1633 = vld [vmem:[%s1624 + $0x20] sm:$0xf]
      %v1634 = vld [vmem:[%s1624 + $0x24] sm:$0xf]
      %v1635 = vld [vmem:[%s1624 + $0x28] sm:$0xf]
      %v1636 = vld [vmem:[%s1624 + $0x2c] sm:$0xf]
      %v1637 = vld [vmem:[%s1624 + $0x30] sm:$0xf]
      %v1638 = vld [vmem:[%s1624 + $0x34] sm:$0xf]
      %v1639 = vld [vmem:[%s1624 + $0x38] sm:$0xf]
      %v1640 = vld [vmem:[%s1624 + $0x3c] sm:$0xf]
      %v1678 = vunpack.c.l.b16 %v1587
      %v1679 = vunpack.c.l.b16 %v1588
      %v1680 = vunpack.c.l.b16 %v1589
      %v1681 = vunpack.c.l.b16 %v1590
      %v1682 = vunpack.c.l.b16 %v1591
      %v1683 = vunpack.c.l.b16 %v1592
      %v1684 = vunpack.c.l.b16 %v1593
      %v1685 = vunpack.c.l.b16 %v1594
      %v1686 = vunpack.c.l.b16 %v1595
      %v1687 = vunpack.c.l.b16 %v1596
      %v1688 = vunpack.c.l.b16 %v1597
      %v1689 = vunpack.c.l.b16 %v1598
      %v1690 = vunpack.c.l.b16 %v1599
      %v1691 = vunpack.c.l.b16 %v1600
      %v1692 = vunpack.c.l.b16 %v1601
      %v1693 = vunpack.c.l.b16 %v1602
      %v1694 = vunpack.c.l.b16 %v1603
      %v1695 = vunpack.c.l.b16 %v1604
      %v1696 = vunpack.c.l.b16 %v1605
      %v1697 = vunpack.c.l.b16 %v1606
      %v1698 = vunpack.c.l.b16 %v1607
      %v1699 = vunpack.c.l.b16 %v1608
      %v1700 = vunpack.c.l.b16 %v1609
      %v1701 = vunpack.c.l.b16 %v1610
      %v1702 = vunpack.c.l.b16 %v1611
      %v1703 = vunpack.c.l.b16 %v1612
      %v1704 = vunpack.c.l.b16 %v1613
      %v1705 = vunpack.c.l.b16 %v1614
      %v1706 = vunpack.c.l.b16 %v1615
      %v1707 = vunpack.c.l.b16 %v1616
      %v1708 = vunpack.c.l.b16 %v1617
      %v1709 = vunpack.c.l.b16 %v1618
      %v1710 = vunpack.c.l.b16 %v1619
      %v1711 = vunpack.c.l.b16 %v1620
      %v1712 = vunpack.c.l.b16 %v1621
      %v1713 = vunpack.c.l.b16 %v1622
      %v1714 = vunpack.c.l.b16 %v1623
      %v1715 = vpack.c.b16 %v1679, %v1678
      %v1716 = vpack.c.b16 %v1681, %v1680
      %v1717 = vpack.c.b16 %v1683, %v1682
      %v1718 = vpack.c.b16 %v1685, %v1684
      %v1719 = vpack.c.b16 %v1687, %v1686
      %v1720 = vpack.c.b16 %v1689, %v1688
      %v1721 = vpack.c.b16 %v1691, %v1690
      %v1722 = vpack.c.b16 %v1693, %v1692
      %v1723 = vpack.c.b16 %v1695, %v1694
      %v1724 = vpack.c.b16 %v1697, %v1696
      %v1725 = vpack.c.b16 %v1699, %v1698
      %v1726 = vpack.c.b16 %v1701, %v1700
      %v1727 = vpack.c.b16 %v1703, %v1702
      %v1728 = vpack.c.b16 %v1705, %v1704
      %v1729 = vpack.c.b16 %v1707, %v1706
      %v1730 = vpack.c.b16 %v1709, %v1708
      %v1731 = vpack.c.b16 %v1711, %v1710
      %v1732 = vpack.c.b16 %v1713, %v1712
      %v1733 = vpack.c.b16 %v1714, %v1714
      %v1734 = vrot.slane %v1715, 1
      %v1735 = vrot.slane %v1716, 1
      %v1736 = vsel %vm1270, %v1734, %v1735
      %v1737 = vrot.slane %v1717, 1
      %v1738 = vsel %vm1270, %v1735, %v1737
      %v1739 = vrot.slane %v1718, 1
      %v1740 = vsel %vm1270, %v1737, %v1739
      %v1741 = vrot.slane %v1719, 1
      %v1742 = vsel %vm1270, %v1739, %v1741
      %v1743 = vrot.slane %v1720, 1
      %v1744 = vsel %vm1270, %v1741, %v1743
      %v1745 = vrot.slane %v1721, 1
      %v1746 = vsel %vm1270, %v1743, %v1745
      %v1747 = vrot.slane %v1722, 1
      %v1748 = vsel %vm1270, %v1745, %v1747
      %v1749 = vrot.slane %v1723, 1
      %v1750 = vsel %vm1270, %v1747, %v1749
      %v1751 = vrot.slane %v1724, 1
      %v1752 = vsel %vm1270, %v1749, %v1751
      %v1753 = vrot.slane %v1725, 1
      %v1754 = vsel %vm1270, %v1751, %v1753
      %v1755 = vrot.slane %v1726, 1
      %v1756 = vsel %vm1270, %v1753, %v1755
      %v1757 = vrot.slane %v1727, 1
      %v1758 = vsel %vm1270, %v1755, %v1757
      %v1759 = vrot.slane %v1728, 1
      %v1760 = vsel %vm1270, %v1757, %v1759
      %v1761 = vrot.slane %v1729, 1
      %v1762 = vsel %vm1270, %v1759, %v1761
      %v1763 = vrot.slane %v1730, 1
      %v1764 = vsel %vm1270, %v1761, %v1763
      %v1765 = vrot.slane %v1731, 1
      %v1766 = vsel %vm1270, %v1763, %v1765
      %v1767 = vrot.slane %v1732, 1
      %v1768 = vsel %vm1270, %v1765, %v1767
      %v1769 = vrot.slane %v1733, 1
      %v1770 = vsel %vm1270, %v1767, %v1769
      %v1805 = vunpack.c.l.b16 %v1625
      %v1806 = vunpack.c.l.b16 %v1626
      %v1807 = vunpack.c.l.b16 %v1627
      %v1808 = vunpack.c.l.b16 %v1628
      %v1809 = vunpack.c.l.b16 %v1629
      %v1810 = vunpack.c.l.b16 %v1630
      %v1811 = vunpack.c.l.b16 %v1631
      %v1812 = vunpack.c.l.b16 %v1632
      %v1813 = vunpack.c.l.b16 %v1633
      %v1814 = vunpack.c.l.b16 %v1634
      %v1815 = vunpack.c.l.b16 %v1635
      %v1816 = vunpack.c.l.b16 %v1636
      %v1817 = vunpack.c.l.b16 %v1637
      %v1818 = vunpack.c.l.b16 %v1638
      %v1819 = vunpack.c.l.b16 %v1639
      %v1820 = vunpack.c.l.b16 %v1640
      %v1821 = vpack.c.b16 %v1806, %v1805
      %v1822 = vpack.c.b16 %v1808, %v1807
      %v1823 = vpack.c.b16 %v1810, %v1809
      %v1824 = vpack.c.b16 %v1812, %v1811
      %v1825 = vpack.c.b16 %v1814, %v1813
      %v1826 = vpack.c.b16 %v1816, %v1815
      %v1827 = vpack.c.b16 %v1818, %v1817
      %v1828 = vpack.c.b16 %v1820, %v1819
      %1837 = vmatprep.subr.bf16.mxu0 0
      %1838 = vmatpush1.bf16.msra.mxu0 %v1821
      %1839 = vmatprep.subr.bf16.mxu0 0
      %1840 = vmatpush1.bf16.msra.mxu0 %v1822
      %1841 = vmatprep.subr.bf16.mxu0 0
      %1842 = vmatpush1.bf16.msra.mxu0 %v1823
      %1843 = vmatprep.subr.bf16.mxu0 0
      %1844 = vmatpush1.bf16.msra.mxu0 %v1824
      %1845 = vmatprep.subr.bf16.mxu0 0
      %1846 = vmatpush1.bf16.msra.mxu0 %v1825
      %1847 = vmatprep.subr.bf16.mxu0 0
      %1848 = vmatpush1.bf16.msra.mxu0 %v1826
      %1849 = vmatprep.subr.bf16.mxu0 0
      %1850 = vmatpush1.bf16.msra.mxu0 %v1827
      %1851 = vmatprep.subr.bf16.mxu0 0
      %1852 = vmatpush1.bf16.msra.mxu0 %v1828
      %1853 = vmatprep.subr.bf16.mxu0 0
      %1854 = vmatpush1.bf16.msra.mxu0 0
      %1855 = vmatprep.subr.bf16.mxu0 0
      %1856 = vmatpush1.bf16.msra.mxu0 0
      %1857 = vmatprep.subr.bf16.mxu0 0
      %1858 = vmatpush1.bf16.msra.mxu0 0
      %1859 = vmatprep.subr.bf16.mxu0 0
      %1860 = vmatpush1.bf16.msra.mxu0 0
      %1861 = vmatprep.subr.bf16.mxu0 0
      %1862 = vmatpush1.bf16.msra.mxu0 0
      %1863 = vmatprep.subr.bf16.mxu0 0
      %1864 = vmatpush1.bf16.msra.mxu0 0
      %1865 = vmatprep.subr.bf16.mxu0 0
      %1866 = vmatpush1.bf16.msra.mxu0 0
      %1867 = vmatprep.subr.bf16.mxu0 0
      %1868 = vmatpush1.bf16.msra.mxu0 0
      %1869 = vmatprep.mubr.bf16.mxu0 0
      %1870 = vmatmul.mubr.bf16.gmra.mrb[0].mxu0 %v1736
      %v1871 = vpop.f32.mrb[0].mxu0
      %v1872 = vadd.f32 0.0, %v1871
      %v1873 = vpop.f32.mrb[0].mxu0
      %v1874 = vpop.f32.mrb[0].mxu0
      %v1875 = vadd.f32 0.0, %v1874
      %v1876 = vpop.f32.mrb[0].mxu0
      %1877 = vmatprep.mubr.bf16.mxu0 0
      %1878 = vmatmul.mubr.bf16.gmra.mrb[0].mxu0 %v1738
      %v1879 = vpop.f32.mrb[0].mxu0
      %v1880 = vadd.f32 0.0, %v1879
      %v1881 = vpop.f32.mrb[0].mxu0
      %v1882 = vpop.f32.mrb[0].mxu0
      %v1883 = vadd.f32 0.0, %v1882
      %v1884 = vpop.f32.mrb[0].mxu0
      %1885 = vmatprep.mubr.bf16.mxu0 0
      %1886 = vmatmul.mubr.bf16.gmra.mrb[0].mxu0 %v1740
      %v1887 = vpop.f32.mrb[0].mxu0
      %v1888 = vadd.f32 0.0, %v1887
      %v1889 = vpop.f32.mrb[0].mxu0
      %v1890 = vpop.f32.mrb[0].mxu0
      %v1891 = vadd.f32 0.0, %v1890
      %v1892 = vpop.f32.mrb[0].mxu0
      %1893 = vmatprep.mubr.bf16.mxu0 0
      %1894 = vmatmul.mubr.bf16.gmra.mrb[0].mxu0 %v1742
      %v1895 = vpop.f32.mrb[0].mxu0
      %v1896 = vadd.f32 0.0, %v1895
      %v1897 = vpop.f32.mrb[0].mxu0
      %v1898 = vpop.f32.mrb[0].mxu0
      %v1899 = vadd.f32 0.0, %v1898
      %v1900 = vpop.f32.mrb[0].mxu0
      %1901 = vmatprep.mubr.bf16.mxu0 0
      %1902 = vmatmul.mubr.bf16.gmra.mrb[0].mxu0 %v1744
      %v1903 = vpop.f32.mrb[0].mxu0
      %v1904 = vadd.f32 0.0, %v1903
      %v1905 = vpop.f32.mrb[0].mxu0
      %v1906 = vpop.f32.mrb[0].mxu0
      %v1907 = vadd.f32 0.0, %v1906
      %v1908 = vpop.f32.mrb[0].mxu0
      %1909 = vmatprep.mubr.bf16.mxu0 0
      %1910 = vmatmul.mubr.bf16.gmra.mrb[0].mxu0 %v1746
      %v1911 = vpop.f32.mrb[0].mxu0
      %v1912 = vadd.f32 0.0, %v1911
      %v1913 = vpop.f32.mrb[0].mxu0
      %v1914 = vpop.f32.mrb[0].mxu0
      %v1915 = vadd.f32 0.0, %v1914
      %v1916 = vpop.f32.mrb[0].mxu0
      %1917 = vmatprep.mubr.bf16.mxu0 0
      %1918 = vmatmul.mubr.bf16.gmra.mrb[0].mxu0 %v1748
      %v1919 = vpop.f32.mrb[0].mxu0
      %v1920 = vadd.f32 0.0, %v1919
      %v1921 = vpop.f32.mrb[0].mxu0
      %v1922 = vpop.f32.mrb[0].mxu0
      %v1923 = vadd.f32 0.0, %v1922
      %v1924 = vpop.f32.mrb[0].mxu0
      %1925 = vmatprep.mubr.bf16.mxu0 0
      %1926 = vmatmul.mubr.bf16.gmra.mrb[0].mxu0 %v1750
      %v1927 = vpop.f32.mrb[0].mxu0
      %v1928 = vadd.f32 0.0, %v1927
      %v1929 = vpop.f32.mrb[0].mxu0
      %v1930 = vpop.f32.mrb[0].mxu0
      %v1931 = vadd.f32 0.0, %v1930
      %v1932 = vpop.f32.mrb[0].mxu0
      %1933 = vmatprep.mubr.bf16.mxu0 0
      %1934 = vmatmul.mubr.bf16.gmra.mrb[0].mxu0 %v1752
      %v1935 = vpop.f32.mrb[0].mxu0
      %v1936 = vadd.f32 0.0, %v1935
      %v1937 = vpop.f32.mrb[0].mxu0
      %v1938 = vpop.f32.mrb[0].mxu0
      %v1939 = vadd.f32 0.0, %v1938
      %v1940 = vpop.f32.mrb[0].mxu0
      %1941 = vmatprep.mubr.bf16.mxu0 0
      %1942 = vmatmul.mubr.bf16.gmra.mrb[0].mxu0 %v1754
      %v1943 = vpop.f32.mrb[0].mxu0
      %v1944 = vadd.f32 0.0, %v1943
      %v1945 = vpop.f32.mrb[0].mxu0
      %v1946 = vpop.f32.mrb[0].mxu0
      %v1947 = vadd.f32 0.0, %v1946
      %v1948 = vpop.f32.mrb[0].mxu0
      %1949 = vmatprep.mubr.bf16.mxu0 0
      %1950 = vmatmul.mubr.bf16.gmra.mrb[0].mxu0 %v1756
      %v1951 = vpop.f32.mrb[0].mxu0
      %v1952 = vadd.f32 0.0, %v1951
      %v1953 = vpop.f32.mrb[0].mxu0
      %v1954 = vpop.f32.mrb[0].mxu0
      %v1955 = vadd.f32 0.0, %v1954
      %v1956 = vpop.f32.mrb[0].mxu0
      %1957 = vmatprep.mubr.bf16.mxu0 0
      %1958 = vmatmul.mubr.bf16.gmra.mrb[0].mxu0 %v1758
      %v1959 = vpop.f32.mrb[0].mxu0
      %v1960 = vadd.f32 0.0, %v1959
      %v1961 = vpop.f32.mrb[0].mxu0
      %v1962 = vpop.f32.mrb[0].mxu0
      %v1963 = vadd.f32 0.0, %v1962
      %v1964 = vpop.f32.mrb[0].mxu0
      %1965 = vmatprep.mubr.bf16.mxu0 0
      %1966 = vmatmul.mubr.bf16.gmra.mrb[0].mxu0 %v1760
      %v1967 = vpop.f32.mrb[0].mxu0
      %v1968 = vadd.f32 0.0, %v1967
      %v1969 = vpop.f32.mrb[0].mxu0
      %v1970 = vpop.f32.mrb[0].mxu0
      %v1971 = vadd.f32 0.0, %v1970
      %v1972 = vpop.f32.mrb[0].mxu0
      %1973 = vmatprep.mubr.bf16.mxu0 0
      %1974 = vmatmul.mubr.bf16.gmra.mrb[0].mxu0 %v1762
      %v1975 = vpop.f32.mrb[0].mxu0
      %v1976 = vadd.f32 0.0, %v1975
      %v1977 = vpop.f32.mrb[0].mxu0
      %v1978 = vpop.f32.mrb[0].mxu0
      %v1979 = vadd.f32 0.0, %v1978
      %v1980 = vpop.f32.mrb[0].mxu0
      %1981 = vmatprep.mubr.bf16.mxu0 0
      %1982 = vmatmul.mubr.bf16.gmra.mrb[0].mxu0 %v1764
      %v1983 = vpop.f32.mrb[0].mxu0
      %v1984 = vadd.f32 0.0, %v1983
      %v1985 = vpop.f32.mrb[0].mxu0
      %v1986 = vpop.f32.mrb[0].mxu0
      %v1987 = vadd.f32 0.0, %v1986
      %v1988 = vpop.f32.mrb[0].mxu0
      %1989 = vmatprep.mubr.bf16.mxu0 0
      %1990 = vmatmul.mubr.bf16.gmra.mrb[0].mxu0 %v1766
      %v1991 = vpop.f32.mrb[0].mxu0
      %v1992 = vadd.f32 0.0, %v1991
      %v1993 = vpop.f32.mrb[0].mxu0
      %v1994 = vpop.f32.mrb[0].mxu0
      %v1995 = vadd.f32 0.0, %v1994
      %v1996 = vpop.f32.mrb[0].mxu0
      %1997 = vmatprep.mubr.bf16.mxu0 0
      %1998 = vmatmul.mubr.bf16.gmra.mrb[0].mxu0 %v1768
      %v1999 = vpop.f32.mrb[0].mxu0
      %v2000 = vadd.f32 0.0, %v1999
      %v2001 = vpop.f32.mrb[0].mxu0
      %v2002 = vpop.f32.mrb[0].mxu0
      %v2003 = vadd.f32 0.0, %v2002
      %v2004 = vpop.f32.mrb[0].mxu0
      %2005 = vmatprep.mubr.bf16.mxu0 0
      %2006 = vmatmul.mubr.bf16.gmra.mrb[0].mxu0 %v1770
      %v2007 = vpop.f32.mrb[0].mxu0
      %v2008 = vadd.f32 0.0, %v2007
      %v2009 = vpop.f32.mrb[0].mxu0
      %v2010 = vpop.f32.mrb[0].mxu0
      %v2011 = vadd.f32 0.0, %v2010
      %v2012 = vpop.f32.mrb[0].mxu0
      %2013 = vdwg.mxu0
      %v2014 = vadd.f32 %v1551, %v1872
      %v2015 = vadd.f32 %v1552, %v1875
      %v2016 = vadd.f32 %v1553, %v1880
      %v2017 = vadd.f32 %v1554, %v1883
      %v2018 = vadd.f32 %v1555, %v1888
      %v2019 = vadd.f32 %v1556, %v1891
      %v2020 = vadd.f32 %v1557, %v1896
      %v2021 = vadd.f32 %v1558, %v1899
      %v2022 = vadd.f32 %v1559, %v1904
      %v2023 = vadd.f32 %v1560, %v1907
      %v2024 = vadd.f32 %v1561, %v1912
      %v2025 = vadd.f32 %v1562, %v1915
      %v2026 = vadd.f32 %v1563, %v1920
      %v2027 = vadd.f32 %v1564, %v1923
      %v2028 = vadd.f32 %v1565, %v1928
      %v2029 = vadd.f32 %v1566, %v1931
      %v2030 = vadd.f32 %v1567, %v1936
      %v2031 = vadd.f32 %v1568, %v1939
      %v2032 = vadd.f32 %v1569, %v1944
      %v2033 = vadd.f32 %v1570, %v1947
      %v2034 = vadd.f32 %v1571, %v1952
      %v2035 = vadd.f32 %v1572, %v1955
      %v2036 = vadd.f32 %v1573, %v1960
      %v2037 = vadd.f32 %v1574, %v1963
      %v2038 = vadd.f32 %v1575, %v1968
      %v2039 = vadd.f32 %v1576, %v1971
      %v2040 = vadd.f32 %v1577, %v1976
      %v2041 = vadd.f32 %v1578, %v1979
      %v2042 = vadd.f32 %v1579, %v1984
      %v2043 = vadd.f32 %v1580, %v1987
      %v2044 = vadd.f32 %v1581, %v1992
      %v2045 = vadd.f32 %v1582, %v1995
      %v2046 = vadd.f32 %v1583, %v2000
      %v2047 = vadd.f32 %v1584, %v2003
      %v2048 = vadd.f32 %v1585, %v2008
      %v2049 = vadd.f32 %v1586, %v2011
      %v2050 = vld [vmem:[%s355 + $0x98] sm:$0x3]
      %s2051 = scalar_lea.vmem %s2, 256
      %v2052 = vld [vmem:[%s2051] sm:$0xf]
      %v2053 = vld [vmem:[%s2051 + $0x4] sm:$0xf]
      %v2054 = vld [vmem:[%s2051 + $0x8] sm:$0xf]
      %v2055 = vld [vmem:[%s2051 + $0xc] sm:$0xf]
      %v2056 = vld [vmem:[%s2051 + $0x10] sm:$0xf]
      %v2057 = vld [vmem:[%s2051 + $0x14] sm:$0xf]
      %v2058 = vld [vmem:[%s2051 + $0x18] sm:$0xf]
      %v2059 = vld [vmem:[%s2051 + $0x1c] sm:$0xf]
      %v2060 = vld [vmem:[%s2051 + $0x20] sm:$0xf]
      %v2061 = vld [vmem:[%s2051 + $0x24] sm:$0xf]
      %v2062 = vld [vmem:[%s2051 + $0x28] sm:$0xf]
      %v2063 = vld [vmem:[%s2051 + $0x2c] sm:$0xf]
      %v2064 = vld [vmem:[%s2051 + $0x30] sm:$0xf]
      %v2065 = vld [vmem:[%s2051 + $0x34] sm:$0xf]
      %v2066 = vld [vmem:[%s2051 + $0x38] sm:$0xf]
      %v2067 = vld [vmem:[%s2051 + $0x3c] sm:$0xf]
      %v2069 = vunpack.c.l.b16 %v2050
      %v2070 = vpack.c.b16 %v2069, %v2069
      %vm2071 = vsmask.f32 6400
      %v2073 = vshrl.u32 %v1715, 16
      %v2075 = vrot.slane %v2073, 1
      %v2076 = vshll.u32 %v1715, 16
      %v2078 = vrot.slane %v2076, 2
      %v2079 = vor.u32 %v2075, %v2078
      %v2081 = vshrl.u32 %v1716, 16
      %v2083 = vrot.slane %v2081, 1
      %v2084 = vshll.u32 %v1716, 16
      %v2086 = vrot.slane %v2084, 2
      %v2087 = vor.u32 %v2083, %v2086
      %v2088 = vsel %vm2071, %v2079, %v2087
      %v2090 = vshrl.u32 %v1717, 16
      %v2092 = vrot.slane %v2090, 1
      %v2093 = vshll.u32 %v1717, 16
      %v2095 = vrot.slane %v2093, 2
      %v2096 = vor.u32 %v2092, %v2095
      %v2097 = vsel %vm2071, %v2087, %v2096
      %v2099 = vshrl.u32 %v1718, 16
      %v2101 = vrot.slane %v2099, 1
      %v2102 = vshll.u32 %v1718, 16
      %v2104 = vrot.slane %v2102, 2
      %v2105 = vor.u32 %v2101, %v2104
      %v2106 = vsel %vm2071, %v2096, %v2105
      %v2108 = vshrl.u32 %v1719, 16
      %v2110 = vrot.slane %v2108, 1
      %v2111 = vshll.u32 %v1719, 16
      %v2113 = vrot.slane %v2111, 2
      %v2114 = vor.u32 %v2110, %v2113
      %v2115 = vsel %vm2071, %v2105, %v2114
      %v2117 = vshrl.u32 %v1720, 16
      %v2119 = vrot.slane %v2117, 1
      %v2120 = vshll.u32 %v1720, 16
      %v2122 = vrot.slane %v2120, 2
      %v2123 = vor.u32 %v2119, %v2122
      %v2124 = vsel %vm2071, %v2114, %v2123
      %v2126 = vshrl.u32 %v1721, 16
      %v2128 = vrot.slane %v2126, 1
      %v2129 = vshll.u32 %v1721, 16
      %v2131 = vrot.slane %v2129, 2
      %v2132 = vor.u32 %v2128, %v2131
      %v2133 = vsel %vm2071, %v2123, %v2132
      %v2135 = vshrl.u32 %v1722, 16
      %v2137 = vrot.slane %v2135, 1
      %v2138 = vshll.u32 %v1722, 16
      %v2140 = vrot.slane %v2138, 2
      %v2141 = vor.u32 %v2137, %v2140
      %v2142 = vsel %vm2071, %v2132, %v2141
      %v2144 = vshrl.u32 %v1723, 16
      %v2146 = vrot.slane %v2144, 1
      %v2147 = vshll.u32 %v1723, 16
      %v2149 = vrot.slane %v2147, 2
      %v2150 = vor.u32 %v2146, %v2149
      %v2151 = vsel %vm2071, %v2141, %v2150
      %v2153 = vshrl.u32 %v1724, 16
      %v2155 = vrot.slane %v2153, 1
      %v2156 = vshll.u32 %v1724, 16
      %v2158 = vrot.slane %v2156, 2
      %v2159 = vor.u32 %v2155, %v2158
      %v2160 = vsel %vm2071, %v2150, %v2159
      %v2162 = vshrl.u32 %v1725, 16
      %v2164 = vrot.slane %v2162, 1
      %v2165 = vshll.u32 %v1725, 16
      %v2167 = vrot.slane %v2165, 2
      %v2168 = vor.u32 %v2164, %v2167
      %v2169 = vsel %vm2071, %v2159, %v2168
      %v2171 = vshrl.u32 %v1726, 16
      %v2173 = vrot.slane %v2171, 1
      %v2174 = vshll.u32 %v1726, 16
      %v2176 = vrot.slane %v2174, 2
      %v2177 = vor.u32 %v2173, %v2176
      %v2178 = vsel %vm2071, %v2168, %v2177
      %v2180 = vshrl.u32 %v1727, 16
      %v2182 = vrot.slane %v2180, 1
      %v2183 = vshll.u32 %v1727, 16
      %v2185 = vrot.slane %v2183, 2
      %v2186 = vor.u32 %v2182, %v2185
      %v2187 = vsel %vm2071, %v2177, %v2186
      %v2189 = vshrl.u32 %v1728, 16
      %v2191 = vrot.slane %v2189, 1
      %v2192 = vshll.u32 %v1728, 16
      %v2194 = vrot.slane %v2192, 2
      %v2195 = vor.u32 %v2191, %v2194
      %v2196 = vsel %vm2071, %v2186, %v2195
      %v2198 = vshrl.u32 %v1729, 16
      %v2200 = vrot.slane %v2198, 1
      %v2201 = vshll.u32 %v1729, 16
      %v2203 = vrot.slane %v2201, 2
      %v2204 = vor.u32 %v2200, %v2203
      %v2205 = vsel %vm2071, %v2195, %v2204
      %v2207 = vshrl.u32 %v1730, 16
      %v2209 = vrot.slane %v2207, 1
      %v2210 = vshll.u32 %v1730, 16
      %v2212 = vrot.slane %v2210, 2
      %v2213 = vor.u32 %v2209, %v2212
      %v2214 = vsel %vm2071, %v2204, %v2213
      %v2216 = vshrl.u32 %v1731, 16
      %v2218 = vrot.slane %v2216, 1
      %v2219 = vshll.u32 %v1731, 16
      %v2221 = vrot.slane %v2219, 2
      %v2222 = vor.u32 %v2218, %v2221
      %v2223 = vsel %vm2071, %v2213, %v2222
      %v2225 = vshrl.u32 %v1732, 16
      %v2227 = vrot.slane %v2225, 1
      %v2228 = vshll.u32 %v1732, 16
      %v2230 = vrot.slane %v2228, 2
      %v2231 = vor.u32 %v2227, %v2230
      %v2232 = vsel %vm2071, %v2222, %v2231
      %v2234 = vshrl.u32 %v2070, 16
      %v2236 = vrot.slane %v2234, 1
      %v2237 = vshll.u32 %v2070, 16
      %v2239 = vrot.slane %v2237, 2
      %v2240 = vor.u32 %v2236, %v2239
      %v2241 = vsel %vm2071, %v2231, %v2240
      %v2276 = vunpack.c.l.b16 %v2052
      %v2277 = vunpack.c.l.b16 %v2053
      %v2278 = vunpack.c.l.b16 %v2054
      %v2279 = vunpack.c.l.b16 %v2055
      %v2280 = vunpack.c.l.b16 %v2056
      %v2281 = vunpack.c.l.b16 %v2057
      %v2282 = vunpack.c.l.b16 %v2058
      %v2283 = vunpack.c.l.b16 %v2059
      %v2284 = vunpack.c.l.b16 %v2060
      %v2285 = vunpack.c.l.b16 %v2061
      %v2286 = vunpack.c.l.b16 %v2062
      %v2287 = vunpack.c.l.b16 %v2063
      %v2288 = vunpack.c.l.b16 %v2064
      %v2289 = vunpack.c.l.b16 %v2065
      %v2290 = vunpack.c.l.b16 %v2066
      %v2291 = vunpack.c.l.b16 %v2067
      %v2292 = vpack.c.b16 %v2277, %v2276
      %v2293 = vpack.c.b16 %v2279, %v2278
      %v2294 = vpack.c.b16 %v2281, %v2280
      %v2295 = vpack.c.b16 %v2283, %v2282
      %v2296 = vpack.c.b16 %v2285, %v2284
      %v2297 = vpack.c.b16 %v2287, %v2286
      %v2298 = vpack.c.b16 %v2289, %v2288
      %v2299 = vpack.c.b16 %v2291, %v2290
      %2308 = vmatprep.subr.bf16.mxu0 0
      %2309 = vmatpush1.bf16.msra.mxu0 %v2292
      %2310 = vmatprep.subr.bf16.mxu0 0
      %2311 = vmatpush1.bf16.msra.mxu0 %v2293
      %2312 = vmatprep.subr.bf16.mxu0 0
      %2313 = vmatpush1.bf16.msra.mxu0 %v2294
      %2314 = vmatprep.subr.bf16.mxu0 0
      %2315 = vmatpush1.bf16.msra.mxu0 %v2295
      %2316 = vmatprep.subr.bf16.mxu0 0
      %2317 = vmatpush1.bf16.msra.mxu0 %v2296
      %2318 = vmatprep.subr.bf16.mxu0 0
      %2319 = vmatpush1.bf16.msra.mxu0 %v2297
      %2320 = vmatprep.subr.bf16.mxu0 0
      %2321 = vmatpush1.bf16.msra.mxu0 %v2298
      %2322 = vmatprep.subr.bf16.mxu0 0
      %2323 = vmatpush1.bf16.msra.mxu0 %v2299
      %2324 = vmatprep.subr.bf16.mxu0 0
      %2325 = vmatpush1.bf16.msra.mxu0 0
      %2326 = vmatprep.subr.bf16.mxu0 0
      %2327 = vmatpush1.bf16.msra.mxu0 0
      %2328 = vmatprep.subr.bf16.mxu0 0
      %2329 = vmatpush1.bf16.msra.mxu0 0
      %2330 = vmatprep.subr.bf16.mxu0 0
      %2331 = vmatpush1.bf16.msra.mxu0 0
      %2332 = vmatprep.subr.bf16.mxu0 0
      %2333 = vmatpush1.bf16.msra.mxu0 0
      %2334 = vmatprep.subr.bf16.mxu0 0
      %2335 = vmatpush1.bf16.msra.mxu0 0
      %2336 = vmatprep.subr.bf16.mxu0 0
      %2337 = vmatpush1.bf16.msra.mxu0 0
      %2338 = vmatprep.subr.bf16.mxu0 0
      %2339 = vmatpush1.bf16.msra.mxu0 0
      %2340 = vmatprep.mubr.bf16.mxu0 0
      %2341 = vmatmul.mubr.bf16.gmra.mrb[0].mxu0 %v2088
      %v2342 = vpop.f32.mrb[0].mxu0
      %v2343 = vadd.f32 0.0, %v2342
      %v2344 = vpop.f32.mrb[0].mxu0
      %v2345 = vpop.f32.mrb[0].mxu0
      %v2346 = vadd.f32 0.0, %v2345
      %v2347 = vpop.f32.mrb[0].mxu0
      %2348 = vmatprep.mubr.bf16.mxu0 0
      %2349 = vmatmul.mubr.bf16.gmra.mrb[0].mxu0 %v2097
      %v2350 = vpop.f32.mrb[0].mxu0
      %v2351 = vadd.f32 0.0, %v2350
      %v2352 = vpop.f32.mrb[0].mxu0
      %v2353 = vpop.f32.mrb[0].mxu0
      %v2354 = vadd.f32 0.0, %v2353
      %v2355 = vpop.f32.mrb[0].mxu0
      %2356 = vmatprep.mubr.bf16.mxu0 0
      %2357 = vmatmul.mubr.bf16.gmra.mrb[0].mxu0 %v2106
      %v2358 = vpop.f32.mrb[0].mxu0
      %v2359 = vadd.f32 0.0, %v2358
      %v2360 = vpop.f32.mrb[0].mxu0
      %v2361 = vpop.f32.mrb[0].mxu0
      %v2362 = vadd.f32 0.0, %v2361
      %v2363 = vpop.f32.mrb[0].mxu0
      %2364 = vmatprep.mubr.bf16.mxu0 0
      %2365 = vmatmul.mubr.bf16.gmra.mrb[0].mxu0 %v2115
      %v2366 = vpop.f32.mrb[0].mxu0
      %v2367 = vadd.f32 0.0, %v2366
      %v2368 = vpop.f32.mrb[0].mxu0
      %v2369 = vpop.f32.mrb[0].mxu0
      %v2370 = vadd.f32 0.0, %v2369
      %v2371 = vpop.f32.mrb[0].mxu0
      %2372 = vmatprep.mubr.bf16.mxu0 0
      %2373 = vmatmul.mubr.bf16.gmra.mrb[0].mxu0 %v2124
      %v2374 = vpop.f32.mrb[0].mxu0
      %v2375 = vadd.f32 0.0, %v2374
      %v2376 = vpop.f32.mrb[0].mxu0
      %v2377 = vpop.f32.mrb[0].mxu0
      %v2378 = vadd.f32 0.0, %v2377
      %v2379 = vpop.f32.mrb[0].mxu0
      %2380 = vmatprep.mubr.bf16.mxu0 0
      %2381 = vmatmul.mubr.bf16.gmra.mrb[0].mxu0 %v2133
      %v2382 = vpop.f32.mrb[0].mxu0
      %v2383 = vadd.f32 0.0, %v2382
      %v2384 = vpop.f32.mrb[0].mxu0
      %v2385 = vpop.f32.mrb[0].mxu0
      %v2386 = vadd.f32 0.0, %v2385
      %v2387 = vpop.f32.mrb[0].mxu0
      %2388 = vmatprep.mubr.bf16.mxu0 0
      %2389 = vmatmul.mubr.bf16.gmra.mrb[0].mxu0 %v2142
      %v2390 = vpop.f32.mrb[0].mxu0
      %v2391 = vadd.f32 0.0, %v2390
      %v2392 = vpop.f32.mrb[0].mxu0
      %v2393 = vpop.f32.mrb[0].mxu0
      %v2394 = vadd.f32 0.0, %v2393
      %v2395 = vpop.f32.mrb[0].mxu0
      %2396 = vmatprep.mubr.bf16.mxu0 0
      %2397 = vmatmul.mubr.bf16.gmra.mrb[0].mxu0 %v2151
      %v2398 = vpop.f32.mrb[0].mxu0
      %v2399 = vadd.f32 0.0, %v2398
      %v2400 = vpop.f32.mrb[0].mxu0
      %v2401 = vpop.f32.mrb[0].mxu0
      %v2402 = vadd.f32 0.0, %v2401
      %v2403 = vpop.f32.mrb[0].mxu0
      %2404 = vmatprep.mubr.bf16.mxu0 0
      %2405 = vmatmul.mubr.bf16.gmra.mrb[0].mxu0 %v2160
      %v2406 = vpop.f32.mrb[0].mxu0
      %v2407 = vadd.f32 0.0, %v2406
      %v2408 = vpop.f32.mrb[0].mxu0
      %v2409 = vpop.f32.mrb[0].mxu0
      %v2410 = vadd.f32 0.0, %v2409
      %v2411 = vpop.f32.mrb[0].mxu0
      %2412 = vmatprep.mubr.bf16.mxu0 0
      %2413 = vmatmul.mubr.bf16.gmra.mrb[0].mxu0 %v2169
      %v2414 = vpop.f32.mrb[0].mxu0
      %v2415 = vadd.f32 0.0, %v2414
      %v2416 = vpop.f32.mrb[0].mxu0
      %v2417 = vpop.f32.mrb[0].mxu0
      %v2418 = vadd.f32 0.0, %v2417
      %v2419 = vpop.f32.mrb[0].mxu0
      %2420 = vmatprep.mubr.bf16.mxu0 0
      %2421 = vmatmul.mubr.bf16.gmra.mrb[0].mxu0 %v2178
      %v2422 = vpop.f32.mrb[0].mxu0
      %v2423 = vadd.f32 0.0, %v2422
      %v2424 = vpop.f32.mrb[0].mxu0
      %v2425 = vpop.f32.mrb[0].mxu0
      %v2426 = vadd.f32 0.0, %v2425
      %v2427 = vpop.f32.mrb[0].mxu0
      %2428 = vmatprep.mubr.bf16.mxu0 0
      %2429 = vmatmul.mubr.bf16.gmra.mrb[0].mxu0 %v2187
      %v2430 = vpop.f32.mrb[0].mxu0
      %v2431 = vadd.f32 0.0, %v2430
      %v2432 = vpop.f32.mrb[0].mxu0
      %v2433 = vpop.f32.mrb[0].mxu0
      %v2434 = vadd.f32 0.0, %v2433
      %v2435 = vpop.f32.mrb[0].mxu0
      %2436 = vmatprep.mubr.bf16.mxu0 0
      %2437 = vmatmul.mubr.bf16.gmra.mrb[0].mxu0 %v2196
      %v2438 = vpop.f32.mrb[0].mxu0
      %v2439 = vadd.f32 0.0, %v2438
      %v2440 = vpop.f32.mrb[0].mxu0
      %v2441 = vpop.f32.mrb[0].mxu0
      %v2442 = vadd.f32 0.0, %v2441
      %v2443 = vpop.f32.mrb[0].mxu0
      %2444 = vmatprep.mubr.bf16.mxu0 0
      %2445 = vmatmul.mubr.bf16.gmra.mrb[0].mxu0 %v2205
      %v2446 = vpop.f32.mrb[0].mxu0
      %v2447 = vadd.f32 0.0, %v2446
      %v2448 = vpop.f32.mrb[0].mxu0
      %v2449 = vpop.f32.mrb[0].mxu0
      %v2450 = vadd.f32 0.0, %v2449
      %v2451 = vpop.f32.mrb[0].mxu0
      %2452 = vmatprep.mubr.bf16.mxu0 0
      %2453 = vmatmul.mubr.bf16.gmra.mrb[0].mxu0 %v2214
      %v2454 = vpop.f32.mrb[0].mxu0
      %v2455 = vadd.f32 0.0, %v2454
      %v2456 = vpop.f32.mrb[0].mxu0
      %v2457 = vpop.f32.mrb[0].mxu0
      %v2458 = vadd.f32 0.0, %v2457
      %v2459 = vpop.f32.mrb[0].mxu0
      %2460 = vmatprep.mubr.bf16.mxu0 0
      %2461 = vmatmul.mubr.bf16.gmra.mrb[0].mxu0 %v2223
      %v2462 = vpop.f32.mrb[0].mxu0
      %v2463 = vadd.f32 0.0, %v2462
      %v2464 = vpop.f32.mrb[0].mxu0
      %v2465 = vpop.f32.mrb[0].mxu0
      %v2466 = vadd.f32 0.0, %v2465
      %v2467 = vpop.f32.mrb[0].mxu0
      %2468 = vmatprep.mubr.bf16.mxu0 0
      %2469 = vmatmul.mubr.bf16.gmra.mrb[0].mxu0 %v2232
      %v2470 = vpop.f32.mrb[0].mxu0
      %v2471 = vadd.f32 0.0, %v2470
      %v2472 = vpop.f32.mrb[0].mxu0
      %v2473 = vpop.f32.mrb[0].mxu0
      %v2474 = vadd.f32 0.0, %v2473
      %v2475 = vpop.f32.mrb[0].mxu0
      %2476 = vmatprep.mubr.bf16.mxu0 0
      %2477 = vmatmul.mubr.bf16.gmra.mrb[0].mxu0 %v2241
      %v2478 = vpop.f32.mrb[0].mxu0
      %v2479 = vadd.f32 0.0, %v2478
      %v2480 = vpop.f32.mrb[0].mxu0
      %v2481 = vpop.f32.mrb[0].mxu0
      %v2482 = vadd.f32 0.0, %v2481
      %v2483 = vpop.f32.mrb[0].mxu0
      %2484 = vdwg.mxu0
      %v2485 = vadd.f32 %v2014, %v2343
      %v2486 = vadd.f32 %v2015, %v2346
      %v2487 = vadd.f32 %v2016, %v2351
      %v2488 = vadd.f32 %v2017, %v2354
      %v2489 = vadd.f32 %v2018, %v2359
      %v2490 = vadd.f32 %v2019, %v2362
      %v2491 = vadd.f32 %v2020, %v2367
      %v2492 = vadd.f32 %v2021, %v2370
      %v2493 = vadd.f32 %v2022, %v2375
      %v2494 = vadd.f32 %v2023, %v2378
      %v2495 = vadd.f32 %v2024, %v2383
      %v2496 = vadd.f32 %v2025, %v2386
      %v2497 = vadd.f32 %v2026, %v2391
      %v2498 = vadd.f32 %v2027, %v2394
      %v2499 = vadd.f32 %v2028, %v2399
      %v2500 = vadd.f32 %v2029, %v2402
      %v2501 = vadd.f32 %v2030, %v2407
      %v2502 = vadd.f32 %v2031, %v2410
      %v2503 = vadd.f32 %v2032, %v2415
      %v2504 = vadd.f32 %v2033, %v2418
      %v2505 = vadd.f32 %v2034, %v2423
      %v2506 = vadd.f32 %v2035, %v2426
      %v2507 = vadd.f32 %v2036, %v2431
      %v2508 = vadd.f32 %v2037, %v2434
      %v2509 = vadd.f32 %v2038, %v2439
      %v2510 = vadd.f32 %v2039, %v2442
      %v2511 = vadd.f32 %v2040, %v2447
      %v2512 = vadd.f32 %v2041, %v2450
      %v2513 = vadd.f32 %v2042, %v2455
      %v2514 = vadd.f32 %v2043, %v2458
      %v2515 = vadd.f32 %v2044, %v2463
      %v2516 = vadd.f32 %v2045, %v2466
      %v2517 = vadd.f32 %v2046, %v2471
      %v2518 = vadd.f32 %v2047, %v2474
      %v2519 = vadd.f32 %v2048, %v2479
      %v2520 = vadd.f32 %v2049, %v2482
      %v2521 = vld [vmem:[%s355 + $0x8] sm:$0xc]
      %s2522 = scalar_lea.vmem %s2, 320
      %v2523 = vld [vmem:[%s2522] sm:$0xf]
      %v2524 = vld [vmem:[%s2522 + $0x4] sm:$0xf]
      %v2525 = vld [vmem:[%s2522 + $0x8] sm:$0xf]
      %v2526 = vld [vmem:[%s2522 + $0xc] sm:$0xf]
      %v2527 = vld [vmem:[%s2522 + $0x10] sm:$0xf]
      %v2528 = vld [vmem:[%s2522 + $0x14] sm:$0xf]
      %v2529 = vld [vmem:[%s2522 + $0x18] sm:$0xf]
      %v2530 = vld [vmem:[%s2522 + $0x1c] sm:$0xf]
      %v2531 = vld [vmem:[%s2522 + $0x20] sm:$0xf]
      %v2532 = vld [vmem:[%s2522 + $0x24] sm:$0xf]
      %v2533 = vld [vmem:[%s2522 + $0x28] sm:$0xf]
      %v2534 = vld [vmem:[%s2522 + $0x2c] sm:$0xf]
      %v2535 = vld [vmem:[%s2522 + $0x30] sm:$0xf]
      %v2536 = vld [vmem:[%s2522 + $0x34] sm:$0xf]
      %v2537 = vld [vmem:[%s2522 + $0x38] sm:$0xf]
      %v2538 = vld [vmem:[%s2522 + $0x3c] sm:$0xf]
      %v2540 = vunpack.c.l.b16 %v2521
      %v2541 = vpack.c.b16 %v1679, %v2540
      %vm2542 = vcmask 1045504
      %v2543 = vrot.slane %v2541, 2
      %v2544 = vrot.slane %v1716, 2
      %v2545 = vsel %vm2542, %v2543, %v2544
      %v2546 = vrot.slane %v1717, 2
      %v2547 = vsel %vm2542, %v2544, %v2546
      %v2548 = vrot.slane %v1718, 2
      %v2549 = vsel %vm2542, %v2546, %v2548
      %v2550 = vrot.slane %v1719, 2
      %v2551 = vsel %vm2542, %v2548, %v2550
      %v2552 = vrot.slane %v1720, 2
      %v2553 = vsel %vm2542, %v2550, %v2552
      %v2554 = vrot.slane %v1721, 2
      %v2555 = vsel %vm2542, %v2552, %v2554
      %v2556 = vrot.slane %v1722, 2
      %v2557 = vsel %vm2542, %v2554, %v2556
      %v2558 = vrot.slane %v1723, 2
      %v2559 = vsel %vm2542, %v2556, %v2558
      %v2560 = vrot.slane %v1724, 2
      %v2561 = vsel %vm2542, %v2558, %v2560
      %v2562 = vrot.slane %v1725, 2
      %v2563 = vsel %vm2542, %v2560, %v2562
      %v2564 = vrot.slane %v1726, 2
      %v2565 = vsel %vm2542, %v2562, %v2564
      %v2566 = vrot.slane %v1727, 2
      %v2567 = vsel %vm2542, %v2564, %v2566
      %v2568 = vrot.slane %v1728, 2
      %v2569 = vsel %vm2542, %v2566, %v2568
      %v2570 = vrot.slane %v1729, 2
      %v2571 = vsel %vm2542, %v2568, %v2570
      %v2572 = vrot.slane %v1730, 2
      %v2573 = vsel %vm2542, %v2570, %v2572
      %v2574 = vrot.slane %v1731, 2
      %v2575 = vsel %vm2542, %v2572, %v2574
      %v2576 = vrot.slane %v1732, 2
      %v2577 = vsel %vm2542, %v2574, %v2576
      %v2578 = vrot.slane %v2070, 2
      %v2579 = vsel %vm2542, %v2576, %v2578
      %v2614 = vunpack.c.l.b16 %v2523
      %v2615 = vunpack.c.l.b16 %v2524
      %v2616 = vunpack.c.l.b16 %v2525
      %v2617 = vunpack.c.l.b16 %v2526
      %v2618 = vunpack.c.l.b16 %v2527
      %v2619 = vunpack.c.l.b16 %v2528
      %v2620 = vunpack.c.l.b16 %v2529
      %v2621 = vunpack.c.l.b16 %v2530
      %v2622 = vunpack.c.l.b16 %v2531
      %v2623 = vunpack.c.l.b16 %v2532
      %v2624 = vunpack.c.l.b16 %v2533
      %v2625 = vunpack.c.l.b16 %v2534
      %v2626 = vunpack.c.l.b16 %v2535
      %v2627 = vunpack.c.l.b16 %v2536
      %v2628 = vunpack.c.l.b16 %v2537
      %v2629 = vunpack.c.l.b16 %v2538
      %v2630 = vpack.c.b16 %v2615, %v2614
      %v2631 = vpack.c.b16 %v2617, %v2616
      %v2632 = vpack.c.b16 %v2619, %v2618
      %v2633 = vpack.c.b16 %v2621, %v2620
      %v2634 = vpack.c.b16 %v2623, %v2622
      %v2635 = vpack.c.b16 %v2625, %v2624
      %v2636 = vpack.c.b16 %v2627, %v2626
      %v2637 = vpack.c.b16 %v2629, %v2628
      %2646 = vmatprep.subr.bf16.mxu0 0
      %2647 = vmatpush1.bf16.msra.mxu0 %v2630
      %2648 = vmatprep.subr.bf16.mxu0 0
      %2649 = vmatpush1.bf16.msra.mxu0 %v2631
      %2650 = vmatprep.subr.bf16.mxu0 0
      %2651 = vmatpush1.bf16.msra.mxu0 %v2632
      %2652 = vmatprep.subr.bf16.mxu0 0
      %2653 = vmatpush1.bf16.msra.mxu0 %v2633
      %2654 = vmatprep.subr.bf16.mxu0 0
      %2655 = vmatpush1.bf16.msra.mxu0 %v2634
      %2656 = vmatprep.subr.bf16.mxu0 0
      %2657 = vmatpush1.bf16.msra.mxu0 %v2635
      %2658 = vmatprep.subr.bf16.mxu0 0
      %2659 = vmatpush1.bf16.msra.mxu0 %v2636
      %2660 = vmatprep.subr.bf16.mxu0 0
      %2661 = vmatpush1.bf16.msra.mxu0 %v2637
      %2662 = vmatprep.subr.bf16.mxu0 0
      %2663 = vmatpush1.bf16.msra.mxu0 0
      %2664 = vmatprep.subr.bf16.mxu0 0
      %2665 = vmatpush1.bf16.msra.mxu0 0
      %2666 = vmatprep.subr.bf16.mxu0 0
      %2667 = vmatpush1.bf16.msra.mxu0 0
      %2668 = vmatprep.subr.bf16.mxu0 0
      %2669 = vmatpush1.bf16.msra.mxu0 0
      %2670 = vmatprep.subr.bf16.mxu0 0
      %2671 = vmatpush1.bf16.msra.mxu0 0
      %2672 = vmatprep.subr.bf16.mxu0 0
      %2673 = vmatpush1.bf16.msra.mxu0 0
      %2674 = vmatprep.subr.bf16.mxu0 0
      %2675 = vmatpush1.bf16.msra.mxu0 0
      %2676 = vmatprep.subr.bf16.mxu0 0
      %2677 = vmatpush1.bf16.msra.mxu0 0
      %2678 = vmatprep.mubr.bf16.mxu0 0
      %2679 = vmatmul.mubr.bf16.gmra.mrb[0].mxu0 %v2545
      %v2680 = vpop.f32.mrb[0].mxu0
      %v2681 = vadd.f32 0.0, %v2680
      %v2682 = vpop.f32.mrb[0].mxu0
      %v2683 = vpop.f32.mrb[0].mxu0
      %v2684 = vadd.f32 0.0, %v2683
      %v2685 = vpop.f32.mrb[0].mxu0
      %2686 = vmatprep.mubr.bf16.mxu0 0
      %2687 = vmatmul.mubr.bf16.gmra.mrb[0].mxu0 %v2547
      %v2688 = vpop.f32.mrb[0].mxu0
      %v2689 = vadd.f32 0.0, %v2688
      %v2690 = vpop.f32.mrb[0].mxu0
      %v2691 = vpop.f32.mrb[0].mxu0
      %v2692 = vadd.f32 0.0, %v2691
      %v2693 = vpop.f32.mrb[0].mxu0
      %2694 = vmatprep.mubr.bf16.mxu0 0
      %2695 = vmatmul.mubr.bf16.gmra.mrb[0].mxu0 %v2549
      %v2696 = vpop.f32.mrb[0].mxu0
      %v2697 = vadd.f32 0.0, %v2696
      %v2698 = vpop.f32.mrb[0].mxu0
      %v2699 = vpop.f32.mrb[0].mxu0
      %v2700 = vadd.f32 0.0, %v2699
      %v2701 = vpop.f32.mrb[0].mxu0
      %2702 = vmatprep.mubr.bf16.mxu0 0
      %2703 = vmatmul.mubr.bf16.gmra.mrb[0].mxu0 %v2551
      %v2704 = vpop.f32.mrb[0].mxu0
      %v2705 = vadd.f32 0.0, %v2704
      %v2706 = vpop.f32.mrb[0].mxu0
      %v2707 = vpop.f32.mrb[0].mxu0
      %v2708 = vadd.f32 0.0, %v2707
      %v2709 = vpop.f32.mrb[0].mxu0
      %2710 = vmatprep.mubr.bf16.mxu0 0
      %2711 = vmatmul.mubr.bf16.gmra.mrb[0].mxu0 %v2553
      %v2712 = vpop.f32.mrb[0].mxu0
      %v2713 = vadd.f32 0.0, %v2712
      %v2714 = vpop.f32.mrb[0].mxu0
      %v2715 = vpop.f32.mrb[0].mxu0
      %v2716 = vadd.f32 0.0, %v2715
      %v2717 = vpop.f32.mrb[0].mxu0
      %2718 = vmatprep.mubr.bf16.mxu0 0
      %2719 = vmatmul.mubr.bf16.gmra.mrb[0].mxu0 %v2555
      %v2720 = vpop.f32.mrb[0].mxu0
      %v2721 = vadd.f32 0.0, %v2720
      %v2722 = vpop.f32.mrb[0].mxu0
      %v2723 = vpop.f32.mrb[0].mxu0
      %v2724 = vadd.f32 0.0, %v2723
      %v2725 = vpop.f32.mrb[0].mxu0
      %2726 = vmatprep.mubr.bf16.mxu0 0
      %2727 = vmatmul.mubr.bf16.gmra.mrb[0].mxu0 %v2557
      %v2728 = vpop.f32.mrb[0].mxu0
      %v2729 = vadd.f32 0.0, %v2728
      %v2730 = vpop.f32.mrb[0].mxu0
      %v2731 = vpop.f32.mrb[0].mxu0
      %v2732 = vadd.f32 0.0, %v2731
      %v2733 = vpop.f32.mrb[0].mxu0
      %2734 = vmatprep.mubr.bf16.mxu0 0
      %2735 = vmatmul.mubr.bf16.gmra.mrb[0].mxu0 %v2559
      %v2736 = vpop.f32.mrb[0].mxu0
      %v2737 = vadd.f32 0.0, %v2736
      %v2738 = vpop.f32.mrb[0].mxu0
      %v2739 = vpop.f32.mrb[0].mxu0
      %v2740 = vadd.f32 0.0, %v2739
      %v2741 = vpop.f32.mrb[0].mxu0
      %2742 = vmatprep.mubr.bf16.mxu0 0
      %2743 = vmatmul.mubr.bf16.gmra.mrb[0].mxu0 %v2561
      %v2744 = vpop.f32.mrb[0].mxu0
      %v2745 = vadd.f32 0.0, %v2744
      %v2746 = vpop.f32.mrb[0].mxu0
      %v2747 = vpop.f32.mrb[0].mxu0
      %v2748 = vadd.f32 0.0, %v2747
      %v2749 = vpop.f32.mrb[0].mxu0
      %2750 = vmatprep.mubr.bf16.mxu0 0
      %2751 = vmatmul.mubr.bf16.gmra.mrb[0].mxu0 %v2563
      %v2752 = vpop.f32.mrb[0].mxu0
      %v2753 = vadd.f32 0.0, %v2752
      %v2754 = vpop.f32.mrb[0].mxu0
      %v2755 = vpop.f32.mrb[0].mxu0
      %v2756 = vadd.f32 0.0, %v2755
      %v2757 = vpop.f32.mrb[0].mxu0
      %2758 = vmatprep.mubr.bf16.mxu0 0
      %2759 = vmatmul.mubr.bf16.gmra.mrb[0].mxu0 %v2565
      %v2760 = vpop.f32.mrb[0].mxu0
      %v2761 = vadd.f32 0.0, %v2760
      %v2762 = vpop.f32.mrb[0].mxu0
      %v2763 = vpop.f32.mrb[0].mxu0
      %v2764 = vadd.f32 0.0, %v2763
      %v2765 = vpop.f32.mrb[0].mxu0
      %2766 = vmatprep.mubr.bf16.mxu0 0
      %2767 = vmatmul.mubr.bf16.gmra.mrb[0].mxu0 %v2567
      %v2768 = vpop.f32.mrb[0].mxu0
      %v2769 = vadd.f32 0.0, %v2768
      %v2770 = vpop.f32.mrb[0].mxu0
      %v2771 = vpop.f32.mrb[0].mxu0
      %v2772 = vadd.f32 0.0, %v2771
      %v2773 = vpop.f32.mrb[0].mxu0
      %2774 = vmatprep.mubr.bf16.mxu0 0
      %2775 = vmatmul.mubr.bf16.gmra.mrb[0].mxu0 %v2569
      %v2776 = vpop.f32.mrb[0].mxu0
      %v2777 = vadd.f32 0.0, %v2776
      %v2778 = vpop.f32.mrb[0].mxu0
      %v2779 = vpop.f32.mrb[0].mxu0
      %v2780 = vadd.f32 0.0, %v2779
      %v2781 = vpop.f32.mrb[0].mxu0
      %2782 = vmatprep.mubr.bf16.mxu0 0
      %2783 = vmatmul.mubr.bf16.gmra.mrb[0].mxu0 %v2571
      %v2784 = vpop.f32.mrb[0].mxu0
      %v2785 = vadd.f32 0.0, %v2784
      %v2786 = vpop.f32.mrb[0].mxu0
      %v2787 = vpop.f32.mrb[0].mxu0
      %v2788 = vadd.f32 0.0, %v2787
      %v2789 = vpop.f32.mrb[0].mxu0
      %2790 = vmatprep.mubr.bf16.mxu0 0
      %2791 = vmatmul.mubr.bf16.gmra.mrb[0].mxu0 %v2573
      %v2792 = vpop.f32.mrb[0].mxu0
      %v2793 = vadd.f32 0.0, %v2792
      %v2794 = vpop.f32.mrb[0].mxu0
      %v2795 = vpop.f32.mrb[0].mxu0
      %v2796 = vadd.f32 0.0, %v2795
      %v2797 = vpop.f32.mrb[0].mxu0
      %2798 = vmatprep.mubr.bf16.mxu0 0
      %2799 = vmatmul.mubr.bf16.gmra.mrb[0].mxu0 %v2575
      %v2800 = vpop.f32.mrb[0].mxu0
      %v2801 = vadd.f32 0.0, %v2800
      %v2802 = vpop.f32.mrb[0].mxu0
      %v2803 = vpop.f32.mrb[0].mxu0
      %v2804 = vadd.f32 0.0, %v2803
      %v2805 = vpop.f32.mrb[0].mxu0
      %2806 = vmatprep.mubr.bf16.mxu0 0
      %2807 = vmatmul.mubr.bf16.gmra.mrb[0].mxu0 %v2577
      %v2808 = vpop.f32.mrb[0].mxu0
      %v2809 = vadd.f32 0.0, %v2808
      %v2810 = vpop.f32.mrb[0].mxu0
      %v2811 = vpop.f32.mrb[0].mxu0
      %v2812 = vadd.f32 0.0, %v2811
      %v2813 = vpop.f32.mrb[0].mxu0
      %2814 = vmatprep.mubr.bf16.mxu0 0
      %2815 = vmatmul.mubr.bf16.gmra.mrb[0].mxu0 %v2579
      %v2816 = vpop.f32.mrb[0].mxu0
      %v2817 = vadd.f32 0.0, %v2816
      %v2818 = vpop.f32.mrb[0].mxu0
      %v2819 = vpop.f32.mrb[0].mxu0
      %v2820 = vadd.f32 0.0, %v2819
      %v2821 = vpop.f32.mrb[0].mxu0
      %2822 = vdwg.mxu0
      %v2823 = vadd.f32 %v2485, %v2681
      %v2824 = vadd.f32 %v2486, %v2684
      %v2825 = vadd.f32 %v2487, %v2689
      %v2826 = vadd.f32 %v2488, %v2692
      %v2827 = vadd.f32 %v2489, %v2697
      %v2828 = vadd.f32 %v2490, %v2700
      %v2829 = vadd.f32 %v2491, %v2705
      %v2830 = vadd.f32 %v2492, %v2708
      %v2831 = vadd.f32 %v2493, %v2713
      %v2832 = vadd.f32 %v2494, %v2716
      %v2833 = vadd.f32 %v2495, %v2721
      %v2834 = vadd.f32 %v2496, %v2724
      %v2835 = vadd.f32 %v2497, %v2729
      %v2836 = vadd.f32 %v2498, %v2732
      %v2837 = vadd.f32 %v2499, %v2737
      %v2838 = vadd.f32 %v2500, %v2740
      %v2839 = vadd.f32 %v2501, %v2745
      %v2840 = vadd.f32 %v2502, %v2748
      %v2841 = vadd.f32 %v2503, %v2753
      %v2842 = vadd.f32 %v2504, %v2756
      %v2843 = vadd.f32 %v2505, %v2761
      %v2844 = vadd.f32 %v2506, %v2764
      %v2845 = vadd.f32 %v2507, %v2769
      %v2846 = vadd.f32 %v2508, %v2772
      %v2847 = vadd.f32 %v2509, %v2777
      %v2848 = vadd.f32 %v2510, %v2780
      %v2849 = vadd.f32 %v2511, %v2785
      %v2850 = vadd.f32 %v2512, %v2788
      %v2851 = vadd.f32 %v2513, %v2793
      %v2852 = vadd.f32 %v2514, %v2796
      %v2853 = vadd.f32 %v2515, %v2801
      %v2854 = vadd.f32 %v2516, %v2804
      %v2855 = vadd.f32 %v2517, %v2809
      %v2856 = vadd.f32 %v2518, %v2812
      %v2857 = vadd.f32 %v2519, %v2817
      %v2858 = vadd.f32 %v2520, %v2820
      %v2859 = vld [vmem:[%s355 + $0x10] sm:$0xc]
      %v2860 = vld [vmem:[%s355 + $0x14] sm:$0xf]
      %v2861 = vld [vmem:[%s355 + $0x18] sm:$0xf]
      %v2862 = vld [vmem:[%s355 + $0x1c] sm:$0xf]
      %v2863 = vld [vmem:[%s355 + $0x20] sm:$0xf]
      %v2864 = vld [vmem:[%s355 + $0x24] sm:$0xf]
      %v2865 = vld [vmem:[%s355 + $0x28] sm:$0xf]
      %v2866 = vld [vmem:[%s355 + $0x2c] sm:$0xf]
      %v2867 = vld [vmem:[%s355 + $0x30] sm:$0xf]
      %v2868 = vld [vmem:[%s355 + $0x34] sm:$0xf]
      %v2869 = vld [vmem:[%s355 + $0x38] sm:$0xf]
      %v2870 = vld [vmem:[%s355 + $0x3c] sm:$0xf]
      %v2871 = vld [vmem:[%s355 + $0x40] sm:$0xf]
      %v2872 = vld [vmem:[%s355 + $0x44] sm:$0xf]
      %v2873 = vld [vmem:[%s355 + $0x48] sm:$0xf]
      %v2874 = vld [vmem:[%s355 + $0x4c] sm:$0xf]
      %v2875 = vld [vmem:[%s355 + $0x50] sm:$0xf]
      %v2876 = vld [vmem:[%s355 + $0x54] sm:$0xf]
      %v2877 = vld [vmem:[%s355 + $0x58] sm:$0xf]
      %v2878 = vld [vmem:[%s355 + $0x5c] sm:$0xf]
      %v2879 = vld [vmem:[%s355 + $0x60] sm:$0xf]
      %v2880 = vld [vmem:[%s355 + $0x64] sm:$0xf]
      %v2881 = vld [vmem:[%s355 + $0x68] sm:$0xf]
      %v2882 = vld [vmem:[%s355 + $0x6c] sm:$0xf]
      %v2883 = vld [vmem:[%s355 + $0x70] sm:$0xf]
      %v2884 = vld [vmem:[%s355 + $0x74] sm:$0xf]
      %v2885 = vld [vmem:[%s355 + $0x78] sm:$0xf]
      %v2886 = vld [vmem:[%s355 + $0x7c] sm:$0xf]
      %v2887 = vld [vmem:[%s355 + $0x80] sm:$0xf]
      %v2888 = vld [vmem:[%s355 + $0x84] sm:$0xf]
      %v2889 = vld [vmem:[%s355 + $0x88] sm:$0xf]
      %v2890 = vld [vmem:[%s355 + $0x8c] sm:$0xf]
      %v2891 = vld [vmem:[%s355 + $0x90] sm:$0xf]
      %v2892 = vld [vmem:[%s355 + $0x94] sm:$0xf]
      %v2893 = vld [vmem:[%s355 + $0x98] sm:$0xf]
      %v2894 = vld [vmem:[%s355 + $0x9c] sm:$0xf]
      %v2895 = vld [vmem:[%s355 + $0xa0] sm:$0x3]
      %s2896 = scalar_lea.vmem %s2, 384
      %v2897 = vld [vmem:[%s2896] sm:$0xf]
      %v2898 = vld [vmem:[%s2896 + $0x4] sm:$0xf]
      %v2899 = vld [vmem:[%s2896 + $0x8] sm:$0xf]
      %v2900 = vld [vmem:[%s2896 + $0xc] sm:$0xf]
      %v2901 = vld [vmem:[%s2896 + $0x10] sm:$0xf]
      %v2902 = vld [vmem:[%s2896 + $0x14] sm:$0xf]
      %v2903 = vld [vmem:[%s2896 + $0x18] sm:$0xf]
      %v2904 = vld [vmem:[%s2896 + $0x1c] sm:$0xf]
      %v2905 = vld [vmem:[%s2896 + $0x20] sm:$0xf]
      %v2906 = vld [vmem:[%s2896 + $0x24] sm:$0xf]
      %v2907 = vld [vmem:[%s2896 + $0x28] sm:$0xf]
      %v2908 = vld [vmem:[%s2896 + $0x2c] sm:$0xf]
      %v2909 = vld [vmem:[%s2896 + $0x30] sm:$0xf]
      %v2910 = vld [vmem:[%s2896 + $0x34] sm:$0xf]
      %v2911 = vld [vmem:[%s2896 + $0x38] sm:$0xf]
      %v2912 = vld [vmem:[%s2896 + $0x3c] sm:$0xf]
      %v2950 = vunpack.c.l.b16 %v2859
      %v2951 = vunpack.c.l.b16 %v2860
      %v2952 = vunpack.c.l.b16 %v2861
      %v2953 = vunpack.c.l.b16 %v2862
      %v2954 = vunpack.c.l.b16 %v2863
      %v2955 = vunpack.c.l.b16 %v2864
      %v2956 = vunpack.c.l.b16 %v2865
      %v2957 = vunpack.c.l.b16 %v2866
      %v2958 = vunpack.c.l.b16 %v2867
      %v2959 = vunpack.c.l.b16 %v2868
      %v2960 = vunpack.c.l.b16 %v2869
      %v2961 = vunpack.c.l.b16 %v2870
      %v2962 = vunpack.c.l.b16 %v2871
      %v2963 = vunpack.c.l.b16 %v2872
      %v2964 = vunpack.c.l.b16 %v2873
      %v2965 = vunpack.c.l.b16 %v2874
      %v2966 = vunpack.c.l.b16 %v2875
      %v2967 = vunpack.c.l.b16 %v2876
      %v2968 = vunpack.c.l.b16 %v2877
      %v2969 = vunpack.c.l.b16 %v2878
      %v2970 = vunpack.c.l.b16 %v2879
      %v2971 = vunpack.c.l.b16 %v2880
      %v2972 = vunpack.c.l.b16 %v2881
      %v2973 = vunpack.c.l.b16 %v2882
      %v2974 = vunpack.c.l.b16 %v2883
      %v2975 = vunpack.c.l.b16 %v2884
      %v2976 = vunpack.c.l.b16 %v2885
      %v2977 = vunpack.c.l.b16 %v2886
      %v2978 = vunpack.c.l.b16 %v2887
      %v2979 = vunpack.c.l.b16 %v2888
      %v2980 = vunpack.c.l.b16 %v2889
      %v2981 = vunpack.c.l.b16 %v2890
      %v2982 = vunpack.c.l.b16 %v2891
      %v2983 = vunpack.c.l.b16 %v2892
      %v2984 = vunpack.c.l.b16 %v2893
      %v2985 = vunpack.c.l.b16 %v2894
      %v2986 = vunpack.c.l.b16 %v2895
      %v2987 = vpack.c.b16 %v2951, %v2950
      %v2988 = vpack.c.b16 %v2953, %v2952
      %v2989 = vpack.c.b16 %v2955, %v2954
      %v2990 = vpack.c.b16 %v2957, %v2956
      %v2991 = vpack.c.b16 %v2959, %v2958
      %v2992 = vpack.c.b16 %v2961, %v2960
      %v2993 = vpack.c.b16 %v2963, %v2962
      %v2994 = vpack.c.b16 %v2965, %v2964
      %v2995 = vpack.c.b16 %v2967, %v2966
      %v2996 = vpack.c.b16 %v2969, %v2968
      %v2997 = vpack.c.b16 %v2971, %v2970
      %v2998 = vpack.c.b16 %v2973, %v2972
      %v2999 = vpack.c.b16 %v2975, %v2974
      %v3000 = vpack.c.b16 %v2977, %v2976
      %v3001 = vpack.c.b16 %v2979, %v2978
      %v3002 = vpack.c.b16 %v2981, %v2980
      %v3003 = vpack.c.b16 %v2983, %v2982
      %v3004 = vpack.c.b16 %v2985, %v2984
      %v3005 = vpack.c.b16 %v2986, %v2986
      %v3006 = vrot.slane %v2987, 2
      %v3007 = vrot.slane %v2988, 2
      %v3008 = vsel %vm2542, %v3006, %v3007
      %v3009 = vrot.slane %v2989, 2
      %v3010 = vsel %vm2542, %v3007, %v3009
      %v3011 = vrot.slane %v2990, 2
      %v3012 = vsel %vm2542, %v3009, %v3011
      %v3013 = vrot.slane %v2991, 2
      %v3014 = vsel %vm2542, %v3011, %v3013
      %v3015 = vrot.slane %v2992, 2
      %v3016 = vsel %vm2542, %v3013, %v3015
      %v3017 = vrot.slane %v2993, 2
      %v3018 = vsel %vm2542, %v3015, %v3017
      %v3019 = vrot.slane %v2994, 2
      %v3020 = vsel %vm2542, %v3017, %v3019
      %v3021 = vrot.slane %v2995, 2
      %v3022 = vsel %vm2542, %v3019, %v3021
      %v3023 = vrot.slane %v2996, 2
      %v3024 = vsel %vm2542, %v3021, %v3023
      %v3025 = vrot.slane %v2997, 2
      %v3026 = vsel %vm2542, %v3023, %v3025
      %v3027 = vrot.slane %v2998, 2
      %v3028 = vsel %vm2542, %v3025, %v3027
      %v3029 = vrot.slane %v2999, 2
      %v3030 = vsel %vm2542, %v3027, %v3029
      %v3031 = vrot.slane %v3000, 2
      %v3032 = vsel %vm2542, %v3029, %v3031
      %v3033 = vrot.slane %v3001, 2
      %v3034 = vsel %vm2542, %v3031, %v3033
      %v3035 = vrot.slane %v3002, 2
      %v3036 = vsel %vm2542, %v3033, %v3035
      %v3037 = vrot.slane %v3003, 2
      %v3038 = vsel %vm2542, %v3035, %v3037
      %v3039 = vrot.slane %v3004, 2
      %v3040 = vsel %vm2542, %v3037, %v3039
      %v3041 = vrot.slane %v3005, 2
      %v3042 = vsel %vm2542, %v3039, %v3041
      %v3077 = vunpack.c.l.b16 %v2897
      %v3078 = vunpack.c.l.b16 %v2898
      %v3079 = vunpack.c.l.b16 %v2899
      %v3080 = vunpack.c.l.b16 %v2900
      %v3081 = vunpack.c.l.b16 %v2901
      %v3082 = vunpack.c.l.b16 %v2902
      %v3083 = vunpack.c.l.b16 %v2903
      %v3084 = vunpack.c.l.b16 %v2904
      %v3085 = vunpack.c.l.b16 %v2905
      %v3086 = vunpack.c.l.b16 %v2906
      %v3087 = vunpack.c.l.b16 %v2907
      %v3088 = vunpack.c.l.b16 %v2908
      %v3089 = vunpack.c.l.b16 %v2909
      %v3090 = vunpack.c.l.b16 %v2910
      %v3091 = vunpack.c.l.b16 %v2911
      %v3092 = vunpack.c.l.b16 %v2912
      %v3093 = vpack.c.b16 %v3078, %v3077
      %v3094 = vpack.c.b16 %v3080, %v3079
      %v3095 = vpack.c.b16 %v3082, %v3081
      %v3096 = vpack.c.b16 %v3084, %v3083
      %v3097 = vpack.c.b16 %v3086, %v3085
      %v3098 = vpack.c.b16 %v3088, %v3087
      %v3099 = vpack.c.b16 %v3090, %v3089
      %v3100 = vpack.c.b16 %v3092, %v3091
      %3109 = vmatprep.subr.bf16.mxu0 0
      %3110 = vmatpush1.bf16.msra.mxu0 %v3093
      %3111 = vmatprep.subr.bf16.mxu0 0
      %3112 = vmatpush1.bf16.msra.mxu0 %v3094
      %3113 = vmatprep.subr.bf16.mxu0 0
      %3114 = vmatpush1.bf16.msra.mxu0 %v3095
      %3115 = vmatprep.subr.bf16.mxu0 0
      %3116 = vmatpush1.bf16.msra.mxu0 %v3096
      %3117 = vmatprep.subr.bf16.mxu0 0
      %3118 = vmatpush1.bf16.msra.mxu0 %v3097
      %3119 = vmatprep.subr.bf16.mxu0 0
      %3120 = vmatpush1.bf16.msra.mxu0 %v3098
      %3121 = vmatprep.subr.bf16.mxu0 0
      %3122 = vmatpush1.bf16.msra.mxu0 %v3099
      %3123 = vmatprep.subr.bf16.mxu0 0
      %3124 = vmatpush1.bf16.msra.mxu0 %v3100
      %3125 = vmatprep.subr.bf16.mxu0 0
      %3126 = vmatpush1.bf16.msra.mxu0 0
      %3127 = vmatprep.subr.bf16.mxu0 0
      %3128 = vmatpush1.bf16.msra.mxu0 0
      %3129 = vmatprep.subr.bf16.mxu0 0
      %3130 = vmatpush1.bf16.msra.mxu0 0
      %3131 = vmatprep.subr.bf16.mxu0 0
      %3132 = vmatpush1.bf16.msra.mxu0 0
      %3133 = vmatprep.subr.bf16.mxu0 0
      %3134 = vmatpush1.bf16.msra.mxu0 0
      %3135 = vmatprep.subr.bf16.mxu0 0
      %3136 = vmatpush1.bf16.msra.mxu0 0
      %3137 = vmatprep.subr.bf16.mxu0 0
      %3138 = vmatpush1.bf16.msra.mxu0 0
      %3139 = vmatprep.subr.bf16.mxu0 0
      %3140 = vmatpush1.bf16.msra.mxu0 0
      %3141 = vmatprep.mubr.bf16.mxu0 0
      %3142 = vmatmul.mubr.bf16.gmra.mrb[0].mxu0 %v3008
      %v3143 = vpop.f32.mrb[0].mxu0
      %v3144 = vadd.f32 0.0, %v3143
      %v3145 = vpop.f32.mrb[0].mxu0
      %v3146 = vpop.f32.mrb[0].mxu0
      %v3147 = vadd.f32 0.0, %v3146
      %v3148 = vpop.f32.mrb[0].mxu0
      %3149 = vmatprep.mubr.bf16.mxu0 0
      %3150 = vmatmul.mubr.bf16.gmra.mrb[0].mxu0 %v3010
      %v3151 = vpop.f32.mrb[0].mxu0
      %v3152 = vadd.f32 0.0, %v3151
      %v3153 = vpop.f32.mrb[0].mxu0
      %v3154 = vpop.f32.mrb[0].mxu0
      %v3155 = vadd.f32 0.0, %v3154
      %v3156 = vpop.f32.mrb[0].mxu0
      %3157 = vmatprep.mubr.bf16.mxu0 0
      %3158 = vmatmul.mubr.bf16.gmra.mrb[0].mxu0 %v3012
      %v3159 = vpop.f32.mrb[0].mxu0
      %v3160 = vadd.f32 0.0, %v3159
      %v3161 = vpop.f32.mrb[0].mxu0
      %v3162 = vpop.f32.mrb[0].mxu0
      %v3163 = vadd.f32 0.0, %v3162
      %v3164 = vpop.f32.mrb[0].mxu0
      %3165 = vmatprep.mubr.bf16.mxu0 0
      %3166 = vmatmul.mubr.bf16.gmra.mrb[0].mxu0 %v3014
      %v3167 = vpop.f32.mrb[0].mxu0
      %v3168 = vadd.f32 0.0, %v3167
      %v3169 = vpop.f32.mrb[0].mxu0
      %v3170 = vpop.f32.mrb[0].mxu0
      %v3171 = vadd.f32 0.0, %v3170
      %v3172 = vpop.f32.mrb[0].mxu0
      %3173 = vmatprep.mubr.bf16.mxu0 0
      %3174 = vmatmul.mubr.bf16.gmra.mrb[0].mxu0 %v3016
      %v3175 = vpop.f32.mrb[0].mxu0
      %v3176 = vadd.f32 0.0, %v3175
      %v3177 = vpop.f32.mrb[0].mxu0
      %v3178 = vpop.f32.mrb[0].mxu0
      %v3179 = vadd.f32 0.0, %v3178
      %v3180 = vpop.f32.mrb[0].mxu0
      %3181 = vmatprep.mubr.bf16.mxu0 0
      %3182 = vmatmul.mubr.bf16.gmra.mrb[0].mxu0 %v3018
      %v3183 = vpop.f32.mrb[0].mxu0
      %v3184 = vadd.f32 0.0, %v3183
      %v3185 = vpop.f32.mrb[0].mxu0
      %v3186 = vpop.f32.mrb[0].mxu0
      %v3187 = vadd.f32 0.0, %v3186
      %v3188 = vpop.f32.mrb[0].mxu0
      %3189 = vmatprep.mubr.bf16.mxu0 0
      %3190 = vmatmul.mubr.bf16.gmra.mrb[0].mxu0 %v3020
      %v3191 = vpop.f32.mrb[0].mxu0
      %v3192 = vadd.f32 0.0, %v3191
      %v3193 = vpop.f32.mrb[0].mxu0
      %v3194 = vpop.f32.mrb[0].mxu0
      %v3195 = vadd.f32 0.0, %v3194
      %v3196 = vpop.f32.mrb[0].mxu0
      %3197 = vmatprep.mubr.bf16.mxu0 0
      %3198 = vmatmul.mubr.bf16.gmra.mrb[0].mxu0 %v3022
      %v3199 = vpop.f32.mrb[0].mxu0
      %v3200 = vadd.f32 0.0, %v3199
      %v3201 = vpop.f32.mrb[0].mxu0
      %v3202 = vpop.f32.mrb[0].mxu0
      %v3203 = vadd.f32 0.0, %v3202
      %v3204 = vpop.f32.mrb[0].mxu0
      %3205 = vmatprep.mubr.bf16.mxu0 0
      %3206 = vmatmul.mubr.bf16.gmra.mrb[0].mxu0 %v3024
      %v3207 = vpop.f32.mrb[0].mxu0
      %v3208 = vadd.f32 0.0, %v3207
      %v3209 = vpop.f32.mrb[0].mxu0
      %v3210 = vpop.f32.mrb[0].mxu0
      %v3211 = vadd.f32 0.0, %v3210
      %v3212 = vpop.f32.mrb[0].mxu0
      %3213 = vmatprep.mubr.bf16.mxu0 0
      %3214 = vmatmul.mubr.bf16.gmra.mrb[0].mxu0 %v3026
      %v3215 = vpop.f32.mrb[0].mxu0
      %v3216 = vadd.f32 0.0, %v3215
      %v3217 = vpop.f32.mrb[0].mxu0
      %v3218 = vpop.f32.mrb[0].mxu0
      %v3219 = vadd.f32 0.0, %v3218
      %v3220 = vpop.f32.mrb[0].mxu0
      %3221 = vmatprep.mubr.bf16.mxu0 0
      %3222 = vmatmul.mubr.bf16.gmra.mrb[0].mxu0 %v3028
      %v3223 = vpop.f32.mrb[0].mxu0
      %v3224 = vadd.f32 0.0, %v3223
      %v3225 = vpop.f32.mrb[0].mxu0
      %v3226 = vpop.f32.mrb[0].mxu0
      %v3227 = vadd.f32 0.0, %v3226
      %v3228 = vpop.f32.mrb[0].mxu0
      %3229 = vmatprep.mubr.bf16.mxu0 0
      %3230 = vmatmul.mubr.bf16.gmra.mrb[0].mxu0 %v3030
      %v3231 = vpop.f32.mrb[0].mxu0
      %v3232 = vadd.f32 0.0, %v3231
      %v3233 = vpop.f32.mrb[0].mxu0
      %v3234 = vpop.f32.mrb[0].mxu0
      %v3235 = vadd.f32 0.0, %v3234
      %v3236 = vpop.f32.mrb[0].mxu0
      %3237 = vmatprep.mubr.bf16.mxu0 0
      %3238 = vmatmul.mubr.bf16.gmra.mrb[0].mxu0 %v3032
      %v3239 = vpop.f32.mrb[0].mxu0
      %v3240 = vadd.f32 0.0, %v3239
      %v3241 = vpop.f32.mrb[0].mxu0
      %v3242 = vpop.f32.mrb[0].mxu0
      %v3243 = vadd.f32 0.0, %v3242
      %v3244 = vpop.f32.mrb[0].mxu0
      %3245 = vmatprep.mubr.bf16.mxu0 0
      %3246 = vmatmul.mubr.bf16.gmra.mrb[0].mxu0 %v3034
      %v3247 = vpop.f32.mrb[0].mxu0
      %v3248 = vadd.f32 0.0, %v3247
      %v3249 = vpop.f32.mrb[0].mxu0
      %v3250 = vpop.f32.mrb[0].mxu0
      %v3251 = vadd.f32 0.0, %v3250
      %v3252 = vpop.f32.mrb[0].mxu0
      %3253 = vmatprep.mubr.bf16.mxu0 0
      %3254 = vmatmul.mubr.bf16.gmra.mrb[0].mxu0 %v3036
      %v3255 = vpop.f32.mrb[0].mxu0
      %v3256 = vadd.f32 0.0, %v3255
      %v3257 = vpop.f32.mrb[0].mxu0
      %v3258 = vpop.f32.mrb[0].mxu0
      %v3259 = vadd.f32 0.0, %v3258
      %v3260 = vpop.f32.mrb[0].mxu0
      %3261 = vmatprep.mubr.bf16.mxu0 0
      %3262 = vmatmul.mubr.bf16.gmra.mrb[0].mxu0 %v3038
      %v3263 = vpop.f32.mrb[0].mxu0
      %v3264 = vadd.f32 0.0, %v3263
      %v3265 = vpop.f32.mrb[0].mxu0
      %v3266 = vpop.f32.mrb[0].mxu0
      %v3267 = vadd.f32 0.0, %v3266
      %v3268 = vpop.f32.mrb[0].mxu0
      %3269 = vmatprep.mubr.bf16.mxu0 0
      %3270 = vmatmul.mubr.bf16.gmra.mrb[0].mxu0 %v3040
      %v3271 = vpop.f32.mrb[0].mxu0
      %v3272 = vadd.f32 0.0, %v3271
      %v3273 = vpop.f32.mrb[0].mxu0
      %v3274 = vpop.f32.mrb[0].mxu0
      %v3275 = vadd.f32 0.0, %v3274
      %v3276 = vpop.f32.mrb[0].mxu0
      %3277 = vmatprep.mubr.bf16.mxu0 0
      %3278 = vmatmul.mubr.bf16.gmra.mrb[0].mxu0 %v3042
      %v3279 = vpop.f32.mrb[0].mxu0
      %v3280 = vadd.f32 0.0, %v3279
      %v3281 = vpop.f32.mrb[0].mxu0
      %v3282 = vpop.f32.mrb[0].mxu0
      %v3283 = vadd.f32 0.0, %v3282
      %v3284 = vpop.f32.mrb[0].mxu0
      %3285 = vdwg.mxu0
      %v3286 = vadd.f32 %v2823, %v3144
      %v3287 = vadd.f32 %v2824, %v3147
      %v3288 = vadd.f32 %v2825, %v3152
      %v3289 = vadd.f32 %v2826, %v3155
      %v3290 = vadd.f32 %v2827, %v3160
      %v3291 = vadd.f32 %v2828, %v3163
      %v3292 = vadd.f32 %v2829, %v3168
      %v3293 = vadd.f32 %v2830, %v3171
      %v3294 = vadd.f32 %v2831, %v3176
      %v3295 = vadd.f32 %v2832, %v3179
      %v3296 = vadd.f32 %v2833, %v3184
      %v3297 = vadd.f32 %v2834, %v3187
      %v3298 = vadd.f32 %v2835, %v3192
      %v3299 = vadd.f32 %v2836, %v3195
      %v3300 = vadd.f32 %v2837, %v3200
      %v3301 = vadd.f32 %v2838, %v3203
      %v3302 = vadd.f32 %v2839, %v3208
      %v3303 = vadd.f32 %v2840, %v3211
      %v3304 = vadd.f32 %v2841, %v3216
      %v3305 = vadd.f32 %v2842, %v3219
      %v3306 = vadd.f32 %v2843, %v3224
      %v3307 = vadd.f32 %v2844, %v3227
      %v3308 = vadd.f32 %v2845, %v3232
      %v3309 = vadd.f32 %v2846, %v3235
      %v3310 = vadd.f32 %v2847, %v3240
      %v3311 = vadd.f32 %v2848, %v3243
      %v3312 = vadd.f32 %v2849, %v3248
      %v3313 = vadd.f32 %v2850, %v3251
      %v3314 = vadd.f32 %v2851, %v3256
      %v3315 = vadd.f32 %v2852, %v3259
      %v3316 = vadd.f32 %v2853, %v3264
      %v3317 = vadd.f32 %v2854, %v3267
      %v3318 = vadd.f32 %v2855, %v3272
      %v3319 = vadd.f32 %v2856, %v3275
      %v3320 = vadd.f32 %v2857, %v3280
      %v3321 = vadd.f32 %v2858, %v3283
      %v3322 = vld [vmem:[%s355 + $0xa0] sm:$0x7]
      %s3323 = scalar_lea.vmem %s2, 448
      %v3324 = vld [vmem:[%s3323] sm:$0xf]
      %v3325 = vld [vmem:[%s3323 + $0x4] sm:$0xf]
      %v3326 = vld [vmem:[%s3323 + $0x8] sm:$0xf]
      %v3327 = vld [vmem:[%s3323 + $0xc] sm:$0xf]
      %v3328 = vld [vmem:[%s3323 + $0x10] sm:$0xf]
      %v3329 = vld [vmem:[%s3323 + $0x14] sm:$0xf]
      %v3330 = vld [vmem:[%s3323 + $0x18] sm:$0xf]
      %v3331 = vld [vmem:[%s3323 + $0x1c] sm:$0xf]
      %v3332 = vld [vmem:[%s3323 + $0x20] sm:$0xf]
      %v3333 = vld [vmem:[%s3323 + $0x24] sm:$0xf]
      %v3334 = vld [vmem:[%s3323 + $0x28] sm:$0xf]
      %v3335 = vld [vmem:[%s3323 + $0x2c] sm:$0xf]
      %v3336 = vld [vmem:[%s3323 + $0x30] sm:$0xf]
      %v3337 = vld [vmem:[%s3323 + $0x34] sm:$0xf]
      %v3338 = vld [vmem:[%s3323 + $0x38] sm:$0xf]
      %v3339 = vld [vmem:[%s3323 + $0x3c] sm:$0xf]
      %v3341 = vunpack.c.l.b16 %v3322
      %v3342 = vpack.c.b16 %v3341, %v3341
      %vm3343 = vsmask.f32 5376
      %v3345 = vshrl.u32 %v2987, 16
      %v3347 = vrot.slane %v3345, 2
      %v3348 = vshll.u32 %v2987, 16
      %v3350 = vrot.slane %v3348, 3
      %v3351 = vor.u32 %v3347, %v3350
      %v3353 = vshrl.u32 %v2988, 16
      %v3355 = vrot.slane %v3353, 2
      %v3356 = vshll.u32 %v2988, 16
      %v3358 = vrot.slane %v3356, 3
      %v3359 = vor.u32 %v3355, %v3358
      %v3360 = vsel %vm3343, %v3351, %v3359
      %v3362 = vshrl.u32 %v2989, 16
      %v3364 = vrot.slane %v3362, 2
      %v3365 = vshll.u32 %v2989, 16
      %v3367 = vrot.slane %v3365, 3
      %v3368 = vor.u32 %v3364, %v3367
      %v3369 = vsel %vm3343, %v3359, %v3368
      %v3371 = vshrl.u32 %v2990, 16
      %v3373 = vrot.slane %v3371, 2
      %v3374 = vshll.u32 %v2990, 16
      %v3376 = vrot.slane %v3374, 3
      %v3377 = vor.u32 %v3373, %v3376
      %v3378 = vsel %vm3343, %v3368, %v3377
      %v3380 = vshrl.u32 %v2991, 16
      %v3382 = vrot.slane %v3380, 2
      %v3383 = vshll.u32 %v2991, 16
      %v3385 = vrot.slane %v3383, 3
      %v3386 = vor.u32 %v3382, %v3385
      %v3387 = vsel %vm3343, %v3377, %v3386
      %v3389 = vshrl.u32 %v2992, 16
      %v3391 = vrot.slane %v3389, 2
      %v3392 = vshll.u32 %v2992, 16
      %v3394 = vrot.slane %v3392, 3
      %v3395 = vor.u32 %v3391, %v3394
      %v3396 = vsel %vm3343, %v3386, %v3395
      %v3398 = vshrl.u32 %v2993, 16
      %v3400 = vrot.slane %v3398, 2
      %v3401 = vshll.u32 %v2993, 16
      %v3403 = vrot.slane %v3401, 3
      %v3404 = vor.u32 %v3400, %v3403
      %v3405 = vsel %vm3343, %v3395, %v3404
      %v3407 = vshrl.u32 %v2994, 16
      %v3409 = vrot.slane %v3407, 2
      %v3410 = vshll.u32 %v2994, 16
      %v3412 = vrot.slane %v3410, 3
      %v3413 = vor.u32 %v3409, %v3412
      %v3414 = vsel %vm3343, %v3404, %v3413
      %v3416 = vshrl.u32 %v2995, 16
      %v3418 = vrot.slane %v3416, 2
      %v3419 = vshll.u32 %v2995, 16
      %v3421 = vrot.slane %v3419, 3
      %v3422 = vor.u32 %v3418, %v3421
      %v3423 = vsel %vm3343, %v3413, %v3422
      %v3425 = vshrl.u32 %v2996, 16
      %v3427 = vrot.slane %v3425, 2
      %v3428 = vshll.u32 %v2996, 16
      %v3430 = vrot.slane %v3428, 3
      %v3431 = vor.u32 %v3427, %v3430
      %v3432 = vsel %vm3343, %v3422, %v3431
      %v3434 = vshrl.u32 %v2997, 16
      %v3436 = vrot.slane %v3434, 2
      %v3437 = vshll.u32 %v2997, 16
      %v3439 = vrot.slane %v3437, 3
      %v3440 = vor.u32 %v3436, %v3439
      %v3441 = vsel %vm3343, %v3431, %v3440
      %v3443 = vshrl.u32 %v2998, 16
      %v3445 = vrot.slane %v3443, 2
      %v3446 = vshll.u32 %v2998, 16
      %v3448 = vrot.slane %v3446, 3
      %v3449 = vor.u32 %v3445, %v3448
      %v3450 = vsel %vm3343, %v3440, %v3449
      %v3452 = vshrl.u32 %v2999, 16
      %v3454 = vrot.slane %v3452, 2
      %v3455 = vshll.u32 %v2999, 16
      %v3457 = vrot.slane %v3455, 3
      %v3458 = vor.u32 %v3454, %v3457
      %v3459 = vsel %vm3343, %v3449, %v3458
      %v3461 = vshrl.u32 %v3000, 16
      %v3463 = vrot.slane %v3461, 2
      %v3464 = vshll.u32 %v3000, 16
      %v3466 = vrot.slane %v3464, 3
      %v3467 = vor.u32 %v3463, %v3466
      %v3468 = vsel %vm3343, %v3458, %v3467
      %v3470 = vshrl.u32 %v3001, 16
      %v3472 = vrot.slane %v3470, 2
      %v3473 = vshll.u32 %v3001, 16
      %v3475 = vrot.slane %v3473, 3
      %v3476 = vor.u32 %v3472, %v3475
      %v3477 = vsel %vm3343, %v3467, %v3476
      %v3479 = vshrl.u32 %v3002, 16
      %v3481 = vrot.slane %v3479, 2
      %v3482 = vshll.u32 %v3002, 16
      %v3484 = vrot.slane %v3482, 3
      %v3485 = vor.u32 %v3481, %v3484
      %v3486 = vsel %vm3343, %v3476, %v3485
      %v3488 = vshrl.u32 %v3003, 16
      %v3490 = vrot.slane %v3488, 2
      %v3491 = vshll.u32 %v3003, 16
      %v3493 = vrot.slane %v3491, 3
      %v3494 = vor.u32 %v3490, %v3493
      %v3495 = vsel %vm3343, %v3485, %v3494
      %v3497 = vshrl.u32 %v3004, 16
      %v3499 = vrot.slane %v3497, 2
      %v3500 = vshll.u32 %v3004, 16
      %v3502 = vrot.slane %v3500, 3
      %v3503 = vor.u32 %v3499, %v3502
      %v3504 = vsel %vm3343, %v3494, %v3503
      %v3506 = vshrl.u32 %v3342, 16
      %v3508 = vrot.slane %v3506, 2
      %v3509 = vshll.u32 %v3342, 16
      %v3511 = vrot.slane %v3509, 3
      %v3512 = vor.u32 %v3508, %v3511
      %v3513 = vsel %vm3343, %v3503, %v3512
      %v3548 = vunpack.c.l.b16 %v3324
      %v3549 = vunpack.c.l.b16 %v3325
      %v3550 = vunpack.c.l.b16 %v3326
      %v3551 = vunpack.c.l.b16 %v3327
      %v3552 = vunpack.c.l.b16 %v3328
      %v3553 = vunpack.c.l.b16 %v3329
      %v3554 = vunpack.c.l.b16 %v3330
      %v3555 = vunpack.c.l.b16 %v3331
      %v3556 = vunpack.c.l.b16 %v3332
      %v3557 = vunpack.c.l.b16 %v3333
      %v3558 = vunpack.c.l.b16 %v3334
      %v3559 = vunpack.c.l.b16 %v3335
      %v3560 = vunpack.c.l.b16 %v3336
      %v3561 = vunpack.c.l.b16 %v3337
      %v3562 = vunpack.c.l.b16 %v3338
      %v3563 = vunpack.c.l.b16 %v3339
      %v3564 = vpack.c.b16 %v3549, %v3548
      %v3565 = vpack.c.b16 %v3551, %v3550
      %v3566 = vpack.c.b16 %v3553, %v3552
      %v3567 = vpack.c.b16 %v3555, %v3554
      %v3568 = vpack.c.b16 %v3557, %v3556
      %v3569 = vpack.c.b16 %v3559, %v3558
      %v3570 = vpack.c.b16 %v3561, %v3560
      %v3571 = vpack.c.b16 %v3563, %v3562
      %3580 = vmatprep.subr.bf16.mxu0 0
      %3581 = vmatpush1.bf16.msra.mxu0 %v3564
      %3582 = vmatprep.subr.bf16.mxu0 0
      %3583 = vmatpush1.bf16.msra.mxu0 %v3565
      %3584 = vmatprep.subr.bf16.mxu0 0
      %3585 = vmatpush1.bf16.msra.mxu0 %v3566
      %3586 = vmatprep.subr.bf16.mxu0 0
      %3587 = vmatpush1.bf16.msra.mxu0 %v3567
      %3588 = vmatprep.subr.bf16.mxu0 0
      %3589 = vmatpush1.bf16.msra.mxu0 %v3568
      %3590 = vmatprep.subr.bf16.mxu0 0
      %3591 = vmatpush1.bf16.msra.mxu0 %v3569
      %3592 = vmatprep.subr.bf16.mxu0 0
      %3593 = vmatpush1.bf16.msra.mxu0 %v3570
      %3594 = vmatprep.subr.bf16.mxu0 0
      %3595 = vmatpush1.bf16.msra.mxu0 %v3571
      %3596 = vmatprep.subr.bf16.mxu0 0
      %3597 = vmatpush1.bf16.msra.mxu0 0
      %3598 = vmatprep.subr.bf16.mxu0 0
      %3599 = vmatpush1.bf16.msra.mxu0 0
      %3600 = vmatprep.subr.bf16.mxu0 0
      %3601 = vmatpush1.bf16.msra.mxu0 0
      %3602 = vmatprep.subr.bf16.mxu0 0
      %3603 = vmatpush1.bf16.msra.mxu0 0
      %3604 = vmatprep.subr.bf16.mxu0 0
      %3605 = vmatpush1.bf16.msra.mxu0 0
      %3606 = vmatprep.subr.bf16.mxu0 0
      %3607 = vmatpush1.bf16.msra.mxu0 0
      %3608 = vmatprep.subr.bf16.mxu0 0
      %3609 = vmatpush1.bf16.msra.mxu0 0
      %3610 = vmatprep.subr.bf16.mxu0 0
      %3611 = vmatpush1.bf16.msra.mxu0 0
      %3612 = vmatprep.mubr.bf16.mxu0 0
      %3613 = vmatmul.mubr.bf16.gmra.mrb[0].mxu0 %v3360
      %v3614 = vpop.f32.mrb[0].mxu0
      %v3615 = vadd.f32 0.0, %v3614
      %v3616 = vpop.f32.mrb[0].mxu0
      %v3617 = vpop.f32.mrb[0].mxu0
      %v3618 = vadd.f32 0.0, %v3617
      %v3619 = vpop.f32.mrb[0].mxu0
      %3620 = vmatprep.mubr.bf16.mxu0 0
      %3621 = vmatmul.mubr.bf16.gmra.mrb[0].mxu0 %v3369
      %v3622 = vpop.f32.mrb[0].mxu0
      %v3623 = vadd.f32 0.0, %v3622
      %v3624 = vpop.f32.mrb[0].mxu0
      %v3625 = vpop.f32.mrb[0].mxu0
      %v3626 = vadd.f32 0.0, %v3625
      %v3627 = vpop.f32.mrb[0].mxu0
      %3628 = vmatprep.mubr.bf16.mxu0 0
      %3629 = vmatmul.mubr.bf16.gmra.mrb[0].mxu0 %v3378
      %v3630 = vpop.f32.mrb[0].mxu0
      %v3631 = vadd.f32 0.0, %v3630
      %v3632 = vpop.f32.mrb[0].mxu0
      %v3633 = vpop.f32.mrb[0].mxu0
      %v3634 = vadd.f32 0.0, %v3633
      %v3635 = vpop.f32.mrb[0].mxu0
      %3636 = vmatprep.mubr.bf16.mxu0 0
      %3637 = vmatmul.mubr.bf16.gmra.mrb[0].mxu0 %v3387
      %v3638 = vpop.f32.mrb[0].mxu0
      %v3639 = vadd.f32 0.0, %v3638
      %v3640 = vpop.f32.mrb[0].mxu0
      %v3641 = vpop.f32.mrb[0].mxu0
      %v3642 = vadd.f32 0.0, %v3641
      %v3643 = vpop.f32.mrb[0].mxu0
      %3644 = vmatprep.mubr.bf16.mxu0 0
      %3645 = vmatmul.mubr.bf16.gmra.mrb[0].mxu0 %v3396
      %v3646 = vpop.f32.mrb[0].mxu0
      %v3647 = vadd.f32 0.0, %v3646
      %v3648 = vpop.f32.mrb[0].mxu0
      %v3649 = vpop.f32.mrb[0].mxu0
      %v3650 = vadd.f32 0.0, %v3649
      %v3651 = vpop.f32.mrb[0].mxu0
      %3652 = vmatprep.mubr.bf16.mxu0 0
      %3653 = vmatmul.mubr.bf16.gmra.mrb[0].mxu0 %v3405
      %v3654 = vpop.f32.mrb[0].mxu0
      %v3655 = vadd.f32 0.0, %v3654
      %v3656 = vpop.f32.mrb[0].mxu0
      %v3657 = vpop.f32.mrb[0].mxu0
      %v3658 = vadd.f32 0.0, %v3657
      %v3659 = vpop.f32.mrb[0].mxu0
      %3660 = vmatprep.mubr.bf16.mxu0 0
      %3661 = vmatmul.mubr.bf16.gmra.mrb[0].mxu0 %v3414
      %v3662 = vpop.f32.mrb[0].mxu0
      %v3663 = vadd.f32 0.0, %v3662
      %v3664 = vpop.f32.mrb[0].mxu0
      %v3665 = vpop.f32.mrb[0].mxu0
      %v3666 = vadd.f32 0.0, %v3665
      %v3667 = vpop.f32.mrb[0].mxu0
      %3668 = vmatprep.mubr.bf16.mxu0 0
      %3669 = vmatmul.mubr.bf16.gmra.mrb[0].mxu0 %v3423
      %v3670 = vpop.f32.mrb[0].mxu0
      %v3671 = vadd.f32 0.0, %v3670
      %v3672 = vpop.f32.mrb[0].mxu0
      %v3673 = vpop.f32.mrb[0].mxu0
      %v3674 = vadd.f32 0.0, %v3673
      %v3675 = vpop.f32.mrb[0].mxu0
      %3676 = vmatprep.mubr.bf16.mxu0 0
      %3677 = vmatmul.mubr.bf16.gmra.mrb[0].mxu0 %v3432
      %v3678 = vpop.f32.mrb[0].mxu0
      %v3679 = vadd.f32 0.0, %v3678
      %v3680 = vpop.f32.mrb[0].mxu0
      %v3681 = vpop.f32.mrb[0].mxu0
      %v3682 = vadd.f32 0.0, %v3681
      %v3683 = vpop.f32.mrb[0].mxu0
      %3684 = vmatprep.mubr.bf16.mxu0 0
      %3685 = vmatmul.mubr.bf16.gmra.mrb[0].mxu0 %v3441
      %v3686 = vpop.f32.mrb[0].mxu0
      %v3687 = vadd.f32 0.0, %v3686
      %v3688 = vpop.f32.mrb[0].mxu0
      %v3689 = vpop.f32.mrb[0].mxu0
      %v3690 = vadd.f32 0.0, %v3689
      %v3691 = vpop.f32.mrb[0].mxu0
      %3692 = vmatprep.mubr.bf16.mxu0 0
      %3693 = vmatmul.mubr.bf16.gmra.mrb[0].mxu0 %v3450
      %v3694 = vpop.f32.mrb[0].mxu0
      %v3695 = vadd.f32 0.0, %v3694
      %v3696 = vpop.f32.mrb[0].mxu0
      %v3697 = vpop.f32.mrb[0].mxu0
      %v3698 = vadd.f32 0.0, %v3697
      %v3699 = vpop.f32.mrb[0].mxu0
      %3700 = vmatprep.mubr.bf16.mxu0 0
      %3701 = vmatmul.mubr.bf16.gmra.mrb[0].mxu0 %v3459
      %v3702 = vpop.f32.mrb[0].mxu0
      %v3703 = vadd.f32 0.0, %v3702
      %v3704 = vpop.f32.mrb[0].mxu0
      %v3705 = vpop.f32.mrb[0].mxu0
      %v3706 = vadd.f32 0.0, %v3705
      %v3707 = vpop.f32.mrb[0].mxu0
      %3708 = vmatprep.mubr.bf16.mxu0 0
      %3709 = vmatmul.mubr.bf16.gmra.mrb[0].mxu0 %v3468
      %v3710 = vpop.f32.mrb[0].mxu0
      %v3711 = vadd.f32 0.0, %v3710
      %v3712 = vpop.f32.mrb[0].mxu0
      %v3713 = vpop.f32.mrb[0].mxu0
      %v3714 = vadd.f32 0.0, %v3713
      %v3715 = vpop.f32.mrb[0].mxu0
      %3716 = vmatprep.mubr.bf16.mxu0 0
      %3717 = vmatmul.mubr.bf16.gmra.mrb[0].mxu0 %v3477
      %v3718 = vpop.f32.mrb[0].mxu0
      %v3719 = vadd.f32 0.0, %v3718
      %v3720 = vpop.f32.mrb[0].mxu0
      %v3721 = vpop.f32.mrb[0].mxu0
      %v3722 = vadd.f32 0.0, %v3721
      %v3723 = vpop.f32.mrb[0].mxu0
      %3724 = vmatprep.mubr.bf16.mxu0 0
      %3725 = vmatmul.mubr.bf16.gmra.mrb[0].mxu0 %v3486
      %v3726 = vpop.f32.mrb[0].mxu0
      %v3727 = vadd.f32 0.0, %v3726
      %v3728 = vpop.f32.mrb[0].mxu0
      %v3729 = vpop.f32.mrb[0].mxu0
      %v3730 = vadd.f32 0.0, %v3729
      %v3731 = vpop.f32.mrb[0].mxu0
      %3732 = vmatprep.mubr.bf16.mxu0 0
      %3733 = vmatmul.mubr.bf16.gmra.mrb[0].mxu0 %v3495
      %v3734 = vpop.f32.mrb[0].mxu0
      %v3735 = vadd.f32 0.0, %v3734
      %v3736 = vpop.f32.mrb[0].mxu0
      %v3737 = vpop.f32.mrb[0].mxu0
      %v3738 = vadd.f32 0.0, %v3737
      %v3739 = vpop.f32.mrb[0].mxu0
      %3740 = vmatprep.mubr.bf16.mxu0 0
      %3741 = vmatmul.mubr.bf16.gmra.mrb[0].mxu0 %v3504
      %v3742 = vpop.f32.mrb[0].mxu0
      %v3743 = vadd.f32 0.0, %v3742
      %v3744 = vpop.f32.mrb[0].mxu0
      %v3745 = vpop.f32.mrb[0].mxu0
      %v3746 = vadd.f32 0.0, %v3745
      %v3747 = vpop.f32.mrb[0].mxu0
      %3748 = vmatprep.mubr.bf16.mxu0 0
      %3749 = vmatmul.mubr.bf16.gmra.mrb[0].mxu0 %v3513
      %v3750 = vpop.f32.mrb[0].mxu0
      %v3751 = vadd.f32 0.0, %v3750
      %v3752 = vpop.f32.mrb[0].mxu0
      %v3753 = vpop.f32.mrb[0].mxu0
      %v3754 = vadd.f32 0.0, %v3753
      %v3755 = vpop.f32.mrb[0].mxu0
      %3756 = vdwg.mxu0
      %v3757 = vadd.f32 %v3286, %v3615
      %v3758 = vadd.f32 %v3287, %v3618
      %v3759 = vadd.f32 %v3288, %v3623
      %v3760 = vadd.f32 %v3289, %v3626
      %v3761 = vadd.f32 %v3290, %v3631
      %v3762 = vadd.f32 %v3291, %v3634
      %v3763 = vadd.f32 %v3292, %v3639
      %v3764 = vadd.f32 %v3293, %v3642
      %v3765 = vadd.f32 %v3294, %v3647
      %v3766 = vadd.f32 %v3295, %v3650
      %v3767 = vadd.f32 %v3296, %v3655
      %v3768 = vadd.f32 %v3297, %v3658
      %v3769 = vadd.f32 %v3298, %v3663
      %v3770 = vadd.f32 %v3299, %v3666
      %v3771 = vadd.f32 %v3300, %v3671
      %v3772 = vadd.f32 %v3301, %v3674
      %v3773 = vadd.f32 %v3302, %v3679
      %v3774 = vadd.f32 %v3303, %v3682
      %v3775 = vadd.f32 %v3304, %v3687
      %v3776 = vadd.f32 %v3305, %v3690
      %v3777 = vadd.f32 %v3306, %v3695
      %v3778 = vadd.f32 %v3307, %v3698
      %v3779 = vadd.f32 %v3308, %v3703
      %v3780 = vadd.f32 %v3309, %v3706
      %v3781 = vadd.f32 %v3310, %v3711
      %v3782 = vadd.f32 %v3311, %v3714
      %v3783 = vadd.f32 %v3312, %v3719
      %v3784 = vadd.f32 %v3313, %v3722
      %v3785 = vadd.f32 %v3314, %v3727
      %v3786 = vadd.f32 %v3315, %v3730
      %v3787 = vadd.f32 %v3316, %v3735
      %v3788 = vadd.f32 %v3317, %v3738
      %v3789 = vadd.f32 %v3318, %v3743
      %v3790 = vadd.f32 %v3319, %v3746
      %v3791 = vadd.f32 %v3320, %v3751
      %v3792 = vadd.f32 %v3321, %v3754
      %v3793 = vld [vmem:[%s355 + $0x10] sm:$0x8]
      %s3794 = scalar_lea.vmem %s2, 512
      %v3795 = vld [vmem:[%s3794] sm:$0xf]
      %v3796 = vld [vmem:[%s3794 + $0x4] sm:$0xf]
      %v3797 = vld [vmem:[%s3794 + $0x8] sm:$0xf]
      %v3798 = vld [vmem:[%s3794 + $0xc] sm:$0xf]
      %v3799 = vld [vmem:[%s3794 + $0x10] sm:$0xf]
      %v3800 = vld [vmem:[%s3794 + $0x14] sm:$0xf]
      %v3801 = vld [vmem:[%s3794 + $0x18] sm:$0xf]
      %v3802 = vld [vmem:[%s3794 + $0x1c] sm:$0xf]
      %v3803 = vld [vmem:[%s3794 + $0x20] sm:$0xf]
      %v3804 = vld [vmem:[%s3794 + $0x24] sm:$0xf]
      %v3805 = vld [vmem:[%s3794 + $0x28] sm:$0xf]
      %v3806 = vld [vmem:[%s3794 + $0x2c] sm:$0xf]
      %v3807 = vld [vmem:[%s3794 + $0x30] sm:$0xf]
      %v3808 = vld [vmem:[%s3794 + $0x34] sm:$0xf]
      %v3809 = vld [vmem:[%s3794 + $0x38] sm:$0xf]
      %v3810 = vld [vmem:[%s3794 + $0x3c] sm:$0xf]
      %v3812 = vunpack.c.l.b16 %v3793
      %v3813 = vpack.c.b16 %v2951, %v3812
      %vm3814 = vcmask 1044480
      %v3815 = vrot.slane %v3813, 3
      %v3816 = vrot.slane %v2988, 3
      %v3817 = vsel %vm3814, %v3815, %v3816
      %v3818 = vrot.slane %v2989, 3
      %v3819 = vsel %vm3814, %v3816, %v3818
      %v3820 = vrot.slane %v2990, 3
      %v3821 = vsel %vm3814, %v3818, %v3820
      %v3822 = vrot.slane %v2991, 3
      %v3823 = vsel %vm3814, %v3820, %v3822
      %v3824 = vrot.slane %v2992, 3
      %v3825 = vsel %vm3814, %v3822, %v3824
      %v3826 = vrot.slane %v2993, 3
      %v3827 = vsel %vm3814, %v3824, %v3826
      %v3828 = vrot.slane %v2994, 3
      %v3829 = vsel %vm3814, %v3826, %v3828
      %v3830 = vrot.slane %v2995, 3
      %v3831 = vsel %vm3814, %v3828, %v3830
      %v3832 = vrot.slane %v2996, 3
      %v3833 = vsel %vm3814, %v3830, %v3832
      %v3834 = vrot.slane %v2997, 3
      %v3835 = vsel %vm3814, %v3832, %v3834
      %v3836 = vrot.slane %v2998, 3
      %v3837 = vsel %vm3814, %v3834, %v3836
      %v3838 = vrot.slane %v2999, 3
      %v3839 = vsel %vm3814, %v3836, %v3838
      %v3840 = vrot.slane %v3000, 3
      %v3841 = vsel %vm3814, %v3838, %v3840
      %v3842 = vrot.slane %v3001, 3
      %v3843 = vsel %vm3814, %v3840, %v3842
      %v3844 = vrot.slane %v3002, 3
      %v3845 = vsel %vm3814, %v3842, %v3844
      %v3846 = vrot.slane %v3003, 3
      %v3847 = vsel %vm3814, %v3844, %v3846
      %v3848 = vrot.slane %v3004, 3
      %v3849 = vsel %vm3814, %v3846, %v3848
      %v3850 = vrot.slane %v3342, 3
      %v3851 = vsel %vm3814, %v3848, %v3850
      %v3886 = vunpack.c.l.b16 %v3795
      %v3887 = vunpack.c.l.b16 %v3796
      %v3888 = vunpack.c.l.b16 %v3797
      %v3889 = vunpack.c.l.b16 %v3798
      %v3890 = vunpack.c.l.b16 %v3799
      %v3891 = vunpack.c.l.b16 %v3800
      %v3892 = vunpack.c.l.b16 %v3801
      %v3893 = vunpack.c.l.b16 %v3802
      %v3894 = vunpack.c.l.b16 %v3803
      %v3895 = vunpack.c.l.b16 %v3804
      %v3896 = vunpack.c.l.b16 %v3805
      %v3897 = vunpack.c.l.b16 %v3806
      %v3898 = vunpack.c.l.b16 %v3807
      %v3899 = vunpack.c.l.b16 %v3808
      %v3900 = vunpack.c.l.b16 %v3809
      %v3901 = vunpack.c.l.b16 %v3810
      %v3902 = vpack.c.b16 %v3887, %v3886
      %v3903 = vpack.c.b16 %v3889, %v3888
      %v3904 = vpack.c.b16 %v3891, %v3890
      %v3905 = vpack.c.b16 %v3893, %v3892
      %v3906 = vpack.c.b16 %v3895, %v3894
      %v3907 = vpack.c.b16 %v3897, %v3896
      %v3908 = vpack.c.b16 %v3899, %v3898
      %v3909 = vpack.c.b16 %v3901, %v3900
      %3918 = vmatprep.subr.bf16.mxu0 0
      %3919 = vmatpush1.bf16.msra.mxu0 %v3902
      %3920 = vmatprep.subr.bf16.mxu0 0
      %3921 = vmatpush1.bf16.msra.mxu0 %v3903
      %3922 = vmatprep.subr.bf16.mxu0 0
      %3923 = vmatpush1.bf16.msra.mxu0 %v3904
      %3924 = vmatprep.subr.bf16.mxu0 0
      %3925 = vmatpush1.bf16.msra.mxu0 %v3905
      %3926 = vmatprep.subr.bf16.mxu0 0
      %3927 = vmatpush1.bf16.msra.mxu0 %v3906
      %3928 = vmatprep.subr.bf16.mxu0 0
      %3929 = vmatpush1.bf16.msra.mxu0 %v3907
      %3930 = vmatprep.subr.bf16.mxu0 0
      %3931 = vmatpush1.bf16.msra.mxu0 %v3908
      %3932 = vmatprep.subr.bf16.mxu0 0
      %3933 = vmatpush1.bf16.msra.mxu0 %v3909
      %3934 = vmatprep.subr.bf16.mxu0 0
      %3935 = vmatpush1.bf16.msra.mxu0 0
      %3936 = vmatprep.subr.bf16.mxu0 0
      %3937 = vmatpush1.bf16.msra.mxu0 0
      %3938 = vmatprep.subr.bf16.mxu0 0
      %3939 = vmatpush1.bf16.msra.mxu0 0
      %3940 = vmatprep.subr.bf16.mxu0 0
      %3941 = vmatpush1.bf16.msra.mxu0 0
      %3942 = vmatprep.subr.bf16.mxu0 0
      %3943 = vmatpush1.bf16.msra.mxu0 0
      %3944 = vmatprep.subr.bf16.mxu0 0
      %3945 = vmatpush1.bf16.msra.mxu0 0
      %3946 = vmatprep.subr.bf16.mxu0 0
      %3947 = vmatpush1.bf16.msra.mxu0 0
      %3948 = vmatprep.subr.bf16.mxu0 0
      %3949 = vmatpush1.bf16.msra.mxu0 0
      %3950 = vmatprep.mubr.bf16.mxu0 0
      %3951 = vmatmul.mubr.bf16.gmra.mrb[0].mxu0 %v3817
      %v3952 = vpop.f32.mrb[0].mxu0
      %v3953 = vadd.f32 0.0, %v3952
      %v3954 = vpop.f32.mrb[0].mxu0
      %v3955 = vpop.f32.mrb[0].mxu0
      %v3956 = vadd.f32 0.0, %v3955
      %v3957 = vpop.f32.mrb[0].mxu0
      %3958 = vmatprep.mubr.bf16.mxu0 0
      %3959 = vmatmul.mubr.bf16.gmra.mrb[0].mxu0 %v3819
      %v3960 = vpop.f32.mrb[0].mxu0
      %v3961 = vadd.f32 0.0, %v3960
      %v3962 = vpop.f32.mrb[0].mxu0
      %v3963 = vpop.f32.mrb[0].mxu0
      %v3964 = vadd.f32 0.0, %v3963
      %v3965 = vpop.f32.mrb[0].mxu0
      %3966 = vmatprep.mubr.bf16.mxu0 0
      %3967 = vmatmul.mubr.bf16.gmra.mrb[0].mxu0 %v3821
      %v3968 = vpop.f32.mrb[0].mxu0
      %v3969 = vadd.f32 0.0, %v3968
      %v3970 = vpop.f32.mrb[0].mxu0
      %v3971 = vpop.f32.mrb[0].mxu0
      %v3972 = vadd.f32 0.0, %v3971
      %v3973 = vpop.f32.mrb[0].mxu0
      %3974 = vmatprep.mubr.bf16.mxu0 0
      %3975 = vmatmul.mubr.bf16.gmra.mrb[0].mxu0 %v3823
      %v3976 = vpop.f32.mrb[0].mxu0
      %v3977 = vadd.f32 0.0, %v3976
      %v3978 = vpop.f32.mrb[0].mxu0
      %v3979 = vpop.f32.mrb[0].mxu0
      %v3980 = vadd.f32 0.0, %v3979
      %v3981 = vpop.f32.mrb[0].mxu0
      %3982 = vmatprep.mubr.bf16.mxu0 0
      %3983 = vmatmul.mubr.bf16.gmra.mrb[0].mxu0 %v3825
      %v3984 = vpop.f32.mrb[0].mxu0
      %v3985 = vadd.f32 0.0, %v3984
      %v3986 = vpop.f32.mrb[0].mxu0
      %v3987 = vpop.f32.mrb[0].mxu0
      %v3988 = vadd.f32 0.0, %v3987
      %v3989 = vpop.f32.mrb[0].mxu0
      %3990 = vmatprep.mubr.bf16.mxu0 0
      %3991 = vmatmul.mubr.bf16.gmra.mrb[0].mxu0 %v3827
      %v3992 = vpop.f32.mrb[0].mxu0
      %v3993 = vadd.f32 0.0, %v3992
      %v3994 = vpop.f32.mrb[0].mxu0
      %v3995 = vpop.f32.mrb[0].mxu0
      %v3996 = vadd.f32 0.0, %v3995
      %v3997 = vpop.f32.mrb[0].mxu0
      %3998 = vmatprep.mubr.bf16.mxu0 0
      %3999 = vmatmul.mubr.bf16.gmra.mrb[0].mxu0 %v3829
      %v4000 = vpop.f32.mrb[0].mxu0
      %v4001 = vadd.f32 0.0, %v4000
      %v4002 = vpop.f32.mrb[0].mxu0
      %v4003 = vpop.f32.mrb[0].mxu0
      %v4004 = vadd.f32 0.0, %v4003
      %v4005 = vpop.f32.mrb[0].mxu0
      %4006 = vmatprep.mubr.bf16.mxu0 0
      %4007 = vmatmul.mubr.bf16.gmra.mrb[0].mxu0 %v3831
      %v4008 = vpop.f32.mrb[0].mxu0
      %v4009 = vadd.f32 0.0, %v4008
      %v4010 = vpop.f32.mrb[0].mxu0
      %v4011 = vpop.f32.mrb[0].mxu0
      %v4012 = vadd.f32 0.0, %v4011
      %v4013 = vpop.f32.mrb[0].mxu0
      %4014 = vmatprep.mubr.bf16.mxu0 0
      %4015 = vmatmul.mubr.bf16.gmra.mrb[0].mxu0 %v3833
      %v4016 = vpop.f32.mrb[0].mxu0
      %v4017 = vadd.f32 0.0, %v4016
      %v4018 = vpop.f32.mrb[0].mxu0
      %v4019 = vpop.f32.mrb[0].mxu0
      %v4020 = vadd.f32 0.0, %v4019
      %v4021 = vpop.f32.mrb[0].mxu0
      %4022 = vmatprep.mubr.bf16.mxu0 0
      %4023 = vmatmul.mubr.bf16.gmra.mrb[0].mxu0 %v3835
      %v4024 = vpop.f32.mrb[0].mxu0
      %v4025 = vadd.f32 0.0, %v4024
      %v4026 = vpop.f32.mrb[0].mxu0
      %v4027 = vpop.f32.mrb[0].mxu0
      %v4028 = vadd.f32 0.0, %v4027
      %v4029 = vpop.f32.mrb[0].mxu0
      %4030 = vmatprep.mubr.bf16.mxu0 0
      %4031 = vmatmul.mubr.bf16.gmra.mrb[0].mxu0 %v3837
      %v4032 = vpop.f32.mrb[0].mxu0
      %v4033 = vadd.f32 0.0, %v4032
      %v4034 = vpop.f32.mrb[0].mxu0
      %v4035 = vpop.f32.mrb[0].mxu0
      %v4036 = vadd.f32 0.0, %v4035
      %v4037 = vpop.f32.mrb[0].mxu0
      %4038 = vmatprep.mubr.bf16.mxu0 0
      %4039 = vmatmul.mubr.bf16.gmra.mrb[0].mxu0 %v3839
      %v4040 = vpop.f32.mrb[0].mxu0
      %v4041 = vadd.f32 0.0, %v4040
      %v4042 = vpop.f32.mrb[0].mxu0
      %v4043 = vpop.f32.mrb[0].mxu0
      %v4044 = vadd.f32 0.0, %v4043
      %v4045 = vpop.f32.mrb[0].mxu0
      %4046 = vmatprep.mubr.bf16.mxu0 0
      %4047 = vmatmul.mubr.bf16.gmra.mrb[0].mxu0 %v3841
      %v4048 = vpop.f32.mrb[0].mxu0
      %v4049 = vadd.f32 0.0, %v4048
      %v4050 = vpop.f32.mrb[0].mxu0
      %v4051 = vpop.f32.mrb[0].mxu0
      %v4052 = vadd.f32 0.0, %v4051
      %v4053 = vpop.f32.mrb[0].mxu0
      %4054 = vmatprep.mubr.bf16.mxu0 0
      %4055 = vmatmul.mubr.bf16.gmra.mrb[0].mxu0 %v3843
      %v4056 = vpop.f32.mrb[0].mxu0
      %v4057 = vadd.f32 0.0, %v4056
      %v4058 = vpop.f32.mrb[0].mxu0
      %v4059 = vpop.f32.mrb[0].mxu0
      %v4060 = vadd.f32 0.0, %v4059
      %v4061 = vpop.f32.mrb[0].mxu0
      %4062 = vmatprep.mubr.bf16.mxu0 0
      %4063 = vmatmul.mubr.bf16.gmra.mrb[0].mxu0 %v3845
      %v4064 = vpop.f32.mrb[0].mxu0
      %v4065 = vadd.f32 0.0, %v4064
      %v4066 = vpop.f32.mrb[0].mxu0
      %v4067 = vpop.f32.mrb[0].mxu0
      %v4068 = vadd.f32 0.0, %v4067
      %v4069 = vpop.f32.mrb[0].mxu0
      %4070 = vmatprep.mubr.bf16.mxu0 0
      %4071 = vmatmul.mubr.bf16.gmra.mrb[0].mxu0 %v3847
      %v4072 = vpop.f32.mrb[0].mxu0
      %v4073 = vadd.f32 0.0, %v4072
      %v4074 = vpop.f32.mrb[0].mxu0
      %v4075 = vpop.f32.mrb[0].mxu0
      %v4076 = vadd.f32 0.0, %v4075
      %v4077 = vpop.f32.mrb[0].mxu0
      %4078 = vmatprep.mubr.bf16.mxu0 0
      %4079 = vmatmul.mubr.bf16.gmra.mrb[0].mxu0 %v3849
      %v4080 = vpop.f32.mrb[0].mxu0
      %v4081 = vadd.f32 0.0, %v4080
      %v4082 = vpop.f32.mrb[0].mxu0
      %v4083 = vpop.f32.mrb[0].mxu0
      %v4084 = vadd.f32 0.0, %v4083
      %v4085 = vpop.f32.mrb[0].mxu0
      %4086 = vmatprep.mubr.bf16.mxu0 0
      %4087 = vmatmul.mubr.bf16.gmra.mrb[0].mxu0 %v3851
      %v4088 = vpop.f32.mrb[0].mxu0
      %v4089 = vadd.f32 0.0, %v4088
      %v4090 = vpop.f32.mrb[0].mxu0
      %v4091 = vpop.f32.mrb[0].mxu0
      %v4092 = vadd.f32 0.0, %v4091
      %v4093 = vpop.f32.mrb[0].mxu0
      %4094 = vdwg.mxu0
      %v4095 = vadd.f32 %v3757, %v3953
      %v4096 = vadd.f32 %v3758, %v3956
      %v4097 = vadd.f32 %v3759, %v3961
      %v4098 = vadd.f32 %v3760, %v3964
      %v4099 = vadd.f32 %v3761, %v3969
      %v4100 = vadd.f32 %v3762, %v3972
      %v4101 = vadd.f32 %v3763, %v3977
      %v4102 = vadd.f32 %v3764, %v3980
      %v4103 = vadd.f32 %v3765, %v3985
      %v4104 = vadd.f32 %v3766, %v3988
      %v4105 = vadd.f32 %v3767, %v3993
      %v4106 = vadd.f32 %v3768, %v3996
      %v4107 = vadd.f32 %v3769, %v4001
      %v4108 = vadd.f32 %v3770, %v4004
      %v4109 = vadd.f32 %v3771, %v4009
      %v4110 = vadd.f32 %v3772, %v4012
      %v4111 = vadd.f32 %v3773, %v4017
      %v4112 = vadd.f32 %v3774, %v4020
      %v4113 = vadd.f32 %v3775, %v4025
      %v4114 = vadd.f32 %v3776, %v4028
      %v4115 = vadd.f32 %v3777, %v4033
      %v4116 = vadd.f32 %v3778, %v4036
      %v4117 = vadd.f32 %v3779, %v4041
      %v4118 = vadd.f32 %v3780, %v4044
      %v4119 = vadd.f32 %v3781, %v4049
      %v4120 = vadd.f32 %v3782, %v4052
      %v4121 = vadd.f32 %v3783, %v4057
      %v4122 = vadd.f32 %v3784, %v4060
      %v4123 = vadd.f32 %v3785, %v4065
      %v4124 = vadd.f32 %v3786, %v4068
      %v4125 = vadd.f32 %v3787, %v4073
      %v4126 = vadd.f32 %v3788, %v4076
      %v4127 = vadd.f32 %v3789, %v4081
      %v4128 = vadd.f32 %v3790, %v4084
      %v4129 = vadd.f32 %v3791, %v4089
      %v4130 = vadd.f32 %v3792, %v4092
      %v4131 = vpack.c.bf16 %v4096, %v4095
      %v4132 = vpack.c.bf16 %v4098, %v4097
      %v4133 = vpack.c.bf16 %v4100, %v4099
      %v4134 = vpack.c.bf16 %v4102, %v4101
      %v4135 = vpack.c.bf16 %v4104, %v4103
      %v4136 = vpack.c.bf16 %v4106, %v4105
      %v4137 = vpack.c.bf16 %v4108, %v4107
      %v4138 = vpack.c.bf16 %v4110, %v4109
      %v4139 = vpack.c.bf16 %v4112, %v4111
      %v4140 = vpack.c.bf16 %v4114, %v4113
      %v4141 = vpack.c.bf16 %v4116, %v4115
      %v4142 = vpack.c.bf16 %v4118, %v4117
      %v4143 = vpack.c.bf16 %v4120, %v4119
      %v4144 = vpack.c.bf16 %v4122, %v4121
      %v4145 = vpack.c.bf16 %v4124, %v4123
      %v4146 = vpack.c.bf16 %v4126, %v4125
      %v4147 = vpack.c.bf16 %v4128, %v4127
      %v4148 = vpack.c.bf16 %v4130, %v4129
      %v4167 = vunpack.c.l.b16 %v4131
      %v4168 = vunpack.c.h.b16 %v4131
      %v4169 = vunpack.c.l.b16 %v4132
      %v4170 = vunpack.c.h.b16 %v4132
      %v4171 = vunpack.c.l.b16 %v4133
      %v4172 = vunpack.c.h.b16 %v4133
      %v4173 = vunpack.c.l.b16 %v4134
      %v4174 = vunpack.c.h.b16 %v4134
      %v4175 = vunpack.c.l.b16 %v4135
      %v4176 = vunpack.c.h.b16 %v4135
      %v4177 = vunpack.c.l.b16 %v4136
      %v4178 = vunpack.c.h.b16 %v4136
      %v4179 = vunpack.c.l.b16 %v4137
      %v4180 = vunpack.c.h.b16 %v4137
      %v4181 = vunpack.c.l.b16 %v4138
      %v4182 = vunpack.c.h.b16 %v4138
      %v4183 = vunpack.c.l.b16 %v4139
      %v4184 = vunpack.c.h.b16 %v4139
      %v4185 = vunpack.c.l.b16 %v4140
      %v4186 = vunpack.c.h.b16 %v4140
      %v4187 = vunpack.c.l.b16 %v4141
      %v4188 = vunpack.c.h.b16 %v4141
      %v4189 = vunpack.c.l.b16 %v4142
      %v4190 = vunpack.c.h.b16 %v4142
      %v4191 = vunpack.c.l.b16 %v4143
      %v4192 = vunpack.c.h.b16 %v4143
      %v4193 = vunpack.c.l.b16 %v4144
      %v4194 = vunpack.c.h.b16 %v4144
      %v4195 = vunpack.c.l.b16 %v4145
      %v4196 = vunpack.c.h.b16 %v4145
      %v4197 = vunpack.c.l.b16 %v4146
      %v4198 = vunpack.c.h.b16 %v4146
      %v4199 = vunpack.c.l.b16 %v4147
      %v4200 = vunpack.c.h.b16 %v4147
      %v4201 = vunpack.c.l.b16 %v4148
      %v4202 = vunpack.c.h.b16 %v4148
      %v4203 = vpack.c.b16 %v4167, %v4167
      %v4204 = vpack.c.b16 %v4168, %v4168
      %v4205 = vpack.c.b16 %v4169, %v4169
      %v4206 = vpack.c.b16 %v4170, %v4170
      %v4207 = vpack.c.b16 %v4171, %v4171
      %v4208 = vpack.c.b16 %v4172, %v4172
      %v4209 = vpack.c.b16 %v4173, %v4173
      %v4210 = vpack.c.b16 %v4174, %v4174
      %v4211 = vpack.c.b16 %v4175, %v4175
      %v4212 = vpack.c.b16 %v4176, %v4176
      %v4213 = vpack.c.b16 %v4177, %v4177
      %v4214 = vpack.c.b16 %v4178, %v4178
      %v4215 = vpack.c.b16 %v4179, %v4179
      %v4216 = vpack.c.b16 %v4180, %v4180
      %v4217 = vpack.c.b16 %v4181, %v4181
      %v4218 = vpack.c.b16 %v4182, %v4182
      %v4219 = vpack.c.b16 %v4183, %v4183
      %v4220 = vpack.c.b16 %v4184, %v4184
      %v4221 = vpack.c.b16 %v4185, %v4185
      %v4222 = vpack.c.b16 %v4186, %v4186
      %v4223 = vpack.c.b16 %v4187, %v4187
      %v4224 = vpack.c.b16 %v4188, %v4188
      %v4225 = vpack.c.b16 %v4189, %v4189
      %v4226 = vpack.c.b16 %v4190, %v4190
      %v4227 = vpack.c.b16 %v4191, %v4191
      %v4228 = vpack.c.b16 %v4192, %v4192
      %v4229 = vpack.c.b16 %v4193, %v4193
      %v4230 = vpack.c.b16 %v4194, %v4194
      %v4231 = vpack.c.b16 %v4195, %v4195
      %v4232 = vpack.c.b16 %v4196, %v4196
      %v4233 = vpack.c.b16 %v4197, %v4197
      %v4234 = vpack.c.b16 %v4198, %v4198
      %v4235 = vpack.c.b16 %v4199, %v4199
      %v4236 = vpack.c.b16 %v4200, %v4200
      %v4237 = vpack.c.b16 %v4201, %v4201
      %v4238 = vpack.c.b16 %v4202, %v4202
      %4275 = vst [vmem:[%s360] sm:$0xf] %v4203
      %4276 = vst [vmem:[%s360 + $0x4] sm:$0xf] %v4204
      %4277 = vst [vmem:[%s360 + $0x8] sm:$0xf] %v4205
      %4278 = vst [vmem:[%s360 + $0xc] sm:$0xf] %v4206
      %4279 = vst [vmem:[%s360 + $0x10] sm:$0xf] %v4207
      %4280 = vst [vmem:[%s360 + $0x14] sm:$0xf] %v4208
      %4281 = vst [vmem:[%s360 + $0x18] sm:$0xf] %v4209
      %4282 = vst [vmem:[%s360 + $0x1c] sm:$0xf] %v4210
      %4283 = vst [vmem:[%s360 + $0x20] sm:$0xf] %v4211
      %4284 = vst [vmem:[%s360 + $0x24] sm:$0xf] %v4212
      %4285 = vst [vmem:[%s360 + $0x28] sm:$0xf] %v4213
      %4286 = vst [vmem:[%s360 + $0x2c] sm:$0xf] %v4214
      %4287 = vst [vmem:[%s360 + $0x30] sm:$0xf] %v4215
      %4288 = vst [vmem:[%s360 + $0x34] sm:$0xf] %v4216
      %4289 = vst [vmem:[%s360 + $0x38] sm:$0xf] %v4217
      %4290 = vst [vmem:[%s360 + $0x3c] sm:$0xf] %v4218
      %4291 = vst [vmem:[%s360 + $0x40] sm:$0xf] %v4219
      %4292 = vst [vmem:[%s360 + $0x44] sm:$0xf] %v4220
      %4293 = vst [vmem:[%s360 + $0x48] sm:$0xf] %v4221
      %4294 = vst [vmem:[%s360 + $0x4c] sm:$0xf] %v4222
      %4295 = vst [vmem:[%s360 + $0x50] sm:$0xf] %v4223
      %4296 = vst [vmem:[%s360 + $0x54] sm:$0xf] %v4224
      %4297 = vst [vmem:[%s360 + $0x58] sm:$0xf] %v4225
      %4298 = vst [vmem:[%s360 + $0x5c] sm:$0xf] %v4226
      %4299 = vst [vmem:[%s360 + $0x60] sm:$0xf] %v4227
      %4300 = vst [vmem:[%s360 + $0x64] sm:$0xf] %v4228
      %4301 = vst [vmem:[%s360 + $0x68] sm:$0xf] %v4229
      %4302 = vst [vmem:[%s360 + $0x6c] sm:$0xf] %v4230
      %4303 = vst [vmem:[%s360 + $0x70] sm:$0xf] %v4231
      %4304 = vst [vmem:[%s360 + $0x74] sm:$0xf] %v4232
      %4305 = vst [vmem:[%s360 + $0x78] sm:$0xf] %v4233
      %4306 = vst [vmem:[%s360 + $0x7c] sm:$0xf] %v4234
      %4307 = vst [vmem:[%s360 + $0x80] sm:$0xf] %v4235
      %4308 = vst [vmem:[%s360 + $0x84] sm:$0xf] %v4236
      %4309 = vst [vmem:[%s360 + $0x88] sm:$0xf] %v4237
      %4310 = vst [vmem:[%s360 + $0x8c] sm:$0xf] %v4238
      %v4311 = vsel %vm415, 1, 0
      %v4312 = vsel %vm416, 1, 0
      %v4313 = vsel %vm417, 1, 0
      %v4314 = vsel %vm418, 1, 0
      %v4315 = vsel %vm419, 1, 0
      %v4316 = vsel %vm420, 1, 0
      %v4317 = vsel %vm421, 1, 0
      %v4318 = vsel %vm422, 1, 0
      %v4319 = vsel %vm423, 1, 0
      %v4320 = vsel %vm424, 1, 0
      %v4321 = vsel %vm425, 1, 0
      %v4322 = vsel %vm426, 1, 0
      %v4323 = vsel %vm427, 1, 0
      %v4324 = vsel %vm428, 1, 0
      %v4325 = vsel %vm429, 1, 0
      %v4326 = vsel %vm430, 1, 0
      %v4327 = vsel %vm431, 1, 0
      %v4328 = vsel %vm432, 1, 0
      %v4329 = vsel %vm433, 1, 0
      %v4330 = vsel %vm434, 1, 0
      %v4331 = vsel %vm435, 1, 0
      %v4332 = vsel %vm436, 1, 0
      %v4333 = vsel %vm437, 1, 0
      %v4334 = vsel %vm438, 1, 0
      %v4335 = vsel %vm439, 1, 0
      %v4336 = vsel %vm440, 1, 0
      %v4337 = vsel %vm441, 1, 0
      %v4338 = vsel %vm442, 1, 0
      %v4339 = vsel %vm443, 1, 0
      %v4340 = vsel %vm444, 1, 0
      %v4341 = vsel %vm445, 1, 0
      %v4342 = vsel %vm446, 1, 0
      %v4343 = vsel %vm447, 1, 0
      %v4344 = vsel %vm448, 1, 0
      %v4345 = vsel %vm449, 1, 0
      %v4346 = vsel %vm450, 1, 0
      %4347 = vset.pattern.permute.xlu0 0
      %4348 = vperm.xlu0 %4347, %v4311
      %v4349 = vpop.permute.xlu0 %4348
      %4350 = vset.pattern.permute.xlu0 0
      %4351 = vperm.xlu0 %4350, %v4312
      %v4352 = vpop.permute.xlu0 %4351
      %4353 = vset.pattern.permute.xlu0 0
      %4354 = vperm.xlu0 %4353, %v4313
      %v4355 = vpop.permute.xlu0 %4354
      %4356 = vset.pattern.permute.xlu0 0
      %4357 = vperm.xlu0 %4356, %v4314
      %v4358 = vpop.permute.xlu0 %4357
      %4359 = vset.pattern.permute.xlu0 0
      %4360 = vperm.xlu0 %4359, %v4315
      %v4361 = vpop.permute.xlu0 %4360
      %4362 = vset.pattern.permute.xlu0 0
      %4363 = vperm.xlu0 %4362, %v4316
      %v4364 = vpop.permute.xlu0 %4363
      %4365 = vset.pattern.permute.xlu0 0
      %4366 = vperm.xlu0 %4365, %v4317
      %v4367 = vpop.permute.xlu0 %4366
      %4368 = vset.pattern.permute.xlu0 0
      %4369 = vperm.xlu0 %4368, %v4318
      %v4370 = vpop.permute.xlu0 %4369
      %4371 = vset.pattern.permute.xlu0 0
      %4372 = vperm.xlu0 %4371, %v4319
      %v4373 = vpop.permute.xlu0 %4372
      %4374 = vset.pattern.permute.xlu0 0
      %4375 = vperm.xlu0 %4374, %v4320
      %v4376 = vpop.permute.xlu0 %4375
      %4377 = vset.pattern.permute.xlu0 0
      %4378 = vperm.xlu0 %4377, %v4321
      %v4379 = vpop.permute.xlu0 %4378
      %4380 = vset.pattern.permute.xlu0 0
      %4381 = vperm.xlu0 %4380, %v4322
      %v4382 = vpop.permute.xlu0 %4381
      %4383 = vset.pattern.permute.xlu0 0
      %4384 = vperm.xlu0 %4383, %v4323
      %v4385 = vpop.permute.xlu0 %4384
      %4386 = vset.pattern.permute.xlu0 0
      %4387 = vperm.xlu0 %4386, %v4324
      %v4388 = vpop.permute.xlu0 %4387
      %4389 = vset.pattern.permute.xlu0 0
      %4390 = vperm.xlu0 %4389, %v4325
      %v4391 = vpop.permute.xlu0 %4390
      %4392 = vset.pattern.permute.xlu0 0
      %4393 = vperm.xlu0 %4392, %v4326
      %v4394 = vpop.permute.xlu0 %4393
      %4395 = vset.pattern.permute.xlu0 0
      %4396 = vperm.xlu0 %4395, %v4327
      %v4397 = vpop.permute.xlu0 %4396
      %4398 = vset.pattern.permute.xlu0 0
      %4399 = vperm.xlu0 %4398, %v4328
      %v4400 = vpop.permute.xlu0 %4399
      %4401 = vset.pattern.permute.xlu0 0
      %4402 = vperm.xlu0 %4401, %v4329
      %v4403 = vpop.permute.xlu0 %4402
      %4404 = vset.pattern.permute.xlu0 0
      %4405 = vperm.xlu0 %4404, %v4330
      %v4406 = vpop.permute.xlu0 %4405
      %4407 = vset.pattern.permute.xlu0 0
      %4408 = vperm.xlu0 %4407, %v4331
      %v4409 = vpop.permute.xlu0 %4408
      %4410 = vset.pattern.permute.xlu0 0
      %4411 = vperm.xlu0 %4410, %v4332
      %v4412 = vpop.permute.xlu0 %4411
      %4413 = vset.pattern.permute.xlu0 0
      %4414 = vperm.xlu0 %4413, %v4333
      %v4415 = vpop.permute.xlu0 %4414
      %4416 = vset.pattern.permute.xlu0 0
      %4417 = vperm.xlu0 %4416, %v4334
      %v4418 = vpop.permute.xlu0 %4417
      %4419 = vset.pattern.permute.xlu0 0
      %4420 = vperm.xlu0 %4419, %v4335
      %v4421 = vpop.permute.xlu0 %4420
      %4422 = vset.pattern.permute.xlu0 0
      %4423 = vperm.xlu0 %4422, %v4336
      %v4424 = vpop.permute.xlu0 %4423
      %4425 = vset.pattern.permute.xlu0 0
      %4426 = vperm.xlu0 %4425, %v4337
      %v4427 = vpop.permute.xlu0 %4426
      %4428 = vset.pattern.permute.xlu0 0
      %4429 = vperm.xlu0 %4428, %v4338
      %v4430 = vpop.permute.xlu0 %4429
      %4431 = vset.pattern.permute.xlu0 0
      %4432 = vperm.xlu0 %4431, %v4339
      %v4433 = vpop.permute.xlu0 %4432
      %4434 = vset.pattern.permute.xlu0 0
      %4435 = vperm.xlu0 %4434, %v4340
      %v4436 = vpop.permute.xlu0 %4435
      %4437 = vset.pattern.permute.xlu0 0
      %4438 = vperm.xlu0 %4437, %v4341
      %v4439 = vpop.permute.xlu0 %4438
      %4440 = vset.pattern.permute.xlu0 0
      %4441 = vperm.xlu0 %4440, %v4342
      %v4442 = vpop.permute.xlu0 %4441
      %4443 = vset.pattern.permute.xlu0 0
      %4444 = vperm.xlu0 %4443, %v4343
      %v4445 = vpop.permute.xlu0 %4444
      %4446 = vset.pattern.permute.xlu0 0
      %4447 = vperm.xlu0 %4446, %v4344
      %v4448 = vpop.permute.xlu0 %4447
      %4449 = vset.pattern.permute.xlu0 0
      %4450 = vperm.xlu0 %4449, %v4345
      %v4451 = vpop.permute.xlu0 %4450
      %4452 = vset.pattern.permute.xlu0 0
      %4453 = vperm.xlu0 %4452, %v4346
      %v4454 = vpop.permute.xlu0 %4453
      %vm4455 = vcmp.eq.s32.totalorder %v4349, 1
      %vm4456 = vcmp.eq.s32.totalorder %v4352, 1
      %vm4457 = vcmp.eq.s32.totalorder %v4355, 1
      %vm4458 = vcmp.eq.s32.totalorder %v4358, 1
      %vm4459 = vcmp.eq.s32.totalorder %v4361, 1
      %vm4460 = vcmp.eq.s32.totalorder %v4364, 1
      %vm4461 = vcmp.eq.s32.totalorder %v4367, 1
      %vm4462 = vcmp.eq.s32.totalorder %v4370, 1
      %vm4463 = vcmp.eq.s32.totalorder %v4373, 1
      %vm4464 = vcmp.eq.s32.totalorder %v4376, 1
      %vm4465 = vcmp.eq.s32.totalorder %v4379, 1
      %vm4466 = vcmp.eq.s32.totalorder %v4382, 1
      %vm4467 = vcmp.eq.s32.totalorder %v4385, 1
      %vm4468 = vcmp.eq.s32.totalorder %v4388, 1
      %vm4469 = vcmp.eq.s32.totalorder %v4391, 1
      %vm4470 = vcmp.eq.s32.totalorder %v4394, 1
      %vm4471 = vcmp.eq.s32.totalorder %v4397, 1
      %vm4472 = vcmp.eq.s32.totalorder %v4400, 1
      %vm4473 = vcmp.eq.s32.totalorder %v4403, 1
      %vm4474 = vcmp.eq.s32.totalorder %v4406, 1
      %vm4475 = vcmp.eq.s32.totalorder %v4409, 1
      %vm4476 = vcmp.eq.s32.totalorder %v4412, 1
      %vm4477 = vcmp.eq.s32.totalorder %v4415, 1
      %vm4478 = vcmp.eq.s32.totalorder %v4418, 1
      %vm4479 = vcmp.eq.s32.totalorder %v4421, 1
      %vm4480 = vcmp.eq.s32.totalorder %v4424, 1
      %vm4481 = vcmp.eq.s32.totalorder %v4427, 1
      %vm4482 = vcmp.eq.s32.totalorder %v4430, 1
      %vm4483 = vcmp.eq.s32.totalorder %v4433, 1
      %vm4484 = vcmp.eq.s32.totalorder %v4436, 1
      %vm4485 = vcmp.eq.s32.totalorder %v4439, 1
      %vm4486 = vcmp.eq.s32.totalorder %v4442, 1
      %vm4487 = vcmp.eq.s32.totalorder %v4445, 1
      %vm4488 = vcmp.eq.s32.totalorder %v4448, 1
      %vm4489 = vcmp.eq.s32.totalorder %v4451, 1
      %vm4490 = vcmp.eq.s32.totalorder %v4454, 1
      %v4491 = vsel %vm4455, %v4095, 0.0
      %v4492 = vsel %vm4456, %v4096, 0.0
      %v4493 = vsel %vm4457, %v4097, 0.0
      %v4494 = vsel %vm4458, %v4098, 0.0
      %v4495 = vsel %vm4459, %v4099, 0.0
      %v4496 = vsel %vm4460, %v4100, 0.0
      %v4497 = vsel %vm4461, %v4101, 0.0
      %v4498 = vsel %vm4462, %v4102, 0.0
      %v4499 = vsel %vm4463, %v4103, 0.0
      %v4500 = vsel %vm4464, %v4104, 0.0
      %v4501 = vsel %vm4465, %v4105, 0.0
      %v4502 = vsel %vm4466, %v4106, 0.0
      %v4503 = vsel %vm4467, %v4107, 0.0
      %v4504 = vsel %vm4468, %v4108, 0.0
      %v4505 = vsel %vm4469, %v4109, 0.0
      %v4506 = vsel %vm4470, %v4110, 0.0
      %v4507 = vsel %vm4471, %v4111, 0.0
      %v4508 = vsel %vm4472, %v4112, 0.0
      %v4509 = vsel %vm4473, %v4113, 0.0
      %v4510 = vsel %vm4474, %v4114, 0.0
      %v4511 = vsel %vm4475, %v4115, 0.0
      %v4512 = vsel %vm4476, %v4116, 0.0
      %v4513 = vsel %vm4477, %v4117, 0.0
      %v4514 = vsel %vm4478, %v4118, 0.0
      %v4515 = vsel %vm4479, %v4119, 0.0
      %v4516 = vsel %vm4480, %v4120, 0.0
      %v4517 = vsel %vm4481, %v4121, 0.0
      %v4518 = vsel %vm4482, %v4122, 0.0
      %v4519 = vsel %vm4483, %v4123, 0.0
      %v4520 = vsel %vm4484, %v4124, 0.0
      %v4521 = vsel %vm4485, %v4125, 0.0
      %v4522 = vsel %vm4486, %v4126, 0.0
      %v4523 = vsel %vm4487, %v4127, 0.0
      %v4524 = vsel %vm4488, %v4128, 0.0
      %v4525 = vsel %vm4489, %v4129, 0.0
      %v4526 = vsel %vm4490, %v4130, 0.0
      %v4527 = vadd.f32 %v4491, %v4492
      %v4528 = vadd.f32 %v4527, %v4493
      %v4529 = vadd.f32 %v4528, %v4494
      %v4530 = vadd.f32 %v4529, %v4495
      %v4531 = vadd.f32 %v4530, %v4496
      %v4532 = vadd.f32 %v4531, %v4497
      %v4533 = vadd.f32 %v4532, %v4498
      %v4534 = vadd.f32 %v4533, %v4499
      %v4535 = vadd.f32 %v4534, %v4500
      %v4536 = vadd.f32 %v4535, %v4501
      %v4537 = vadd.f32 %v4536, %v4502
      %v4538 = vadd.f32 %v4537, %v4503
      %v4539 = vadd.f32 %v4538, %v4504
      %v4540 = vadd.f32 %v4539, %v4505
      %v4541 = vadd.f32 %v4540, %v4506
      %v4542 = vadd.f32 %v4541, %v4507
      %v4543 = vadd.f32 %v4542, %v4508
      %v4544 = vadd.f32 %v4543, %v4509
      %v4545 = vadd.f32 %v4544, %v4510
      %v4546 = vadd.f32 %v4545, %v4511
      %v4547 = vadd.f32 %v4546, %v4512
      %v4548 = vadd.f32 %v4547, %v4513
      %v4549 = vadd.f32 %v4548, %v4514
      %v4550 = vadd.f32 %v4549, %v4515
      %v4551 = vadd.f32 %v4550, %v4516
      %v4552 = vadd.f32 %v4551, %v4517
      %v4553 = vadd.f32 %v4552, %v4518
      %v4554 = vadd.f32 %v4553, %v4519
      %v4555 = vadd.f32 %v4554, %v4520
      %v4556 = vadd.f32 %v4555, %v4521
      %v4557 = vadd.f32 %v4556, %v4522
      %v4558 = vadd.f32 %v4557, %v4523
      %v4559 = vadd.f32 %v4558, %v4524
      %v4560 = vadd.f32 %v4559, %v4525
      %v4561 = vadd.f32 %v4560, %v4526
      %v4562 = vrot.slane %v4561, 4
      %v4563 = vadd.f32 %v4561, %v4562
      %v4564 = vrot.slane %v4563, 2
      %v4565 = vadd.f32 %v4563, %v4564
      %v4566 = vrot.slane %v4565, 1
      %v4567 = vadd.f32 %v4565, %v4566
      %v4568 = vmul.f32 %v4491, %v4491
      %v4569 = vmul.f32 %v4492, %v4492
      %v4570 = vmul.f32 %v4493, %v4493
      %v4571 = vmul.f32 %v4494, %v4494
      %v4572 = vmul.f32 %v4495, %v4495
      %v4573 = vmul.f32 %v4496, %v4496
      %v4574 = vmul.f32 %v4497, %v4497
      %v4575 = vmul.f32 %v4498, %v4498
      %v4576 = vmul.f32 %v4499, %v4499
      %v4577 = vmul.f32 %v4500, %v4500
      %v4578 = vmul.f32 %v4501, %v4501
      %v4579 = vmul.f32 %v4502, %v4502
      %v4580 = vmul.f32 %v4503, %v4503
      %v4581 = vmul.f32 %v4504, %v4504
      %v4582 = vmul.f32 %v4505, %v4505
      %v4583 = vmul.f32 %v4506, %v4506
      %v4584 = vmul.f32 %v4507, %v4507
      %v4585 = vmul.f32 %v4508, %v4508
      %v4586 = vmul.f32 %v4509, %v4509
      %v4587 = vmul.f32 %v4510, %v4510
      %v4588 = vmul.f32 %v4511, %v4511
      %v4589 = vmul.f32 %v4512, %v4512
      %v4590 = vmul.f32 %v4513, %v4513
      %v4591 = vmul.f32 %v4514, %v4514
      %v4592 = vmul.f32 %v4515, %v4515
      %v4593 = vmul.f32 %v4516, %v4516
      %v4594 = vmul.f32 %v4517, %v4517
      %v4595 = vmul.f32 %v4518, %v4518
      %v4596 = vmul.f32 %v4519, %v4519
      %v4597 = vmul.f32 %v4520, %v4520
      %v4598 = vmul.f32 %v4521, %v4521
      %v4599 = vmul.f32 %v4522, %v4522
      %v4600 = vmul.f32 %v4523, %v4523
      %v4601 = vmul.f32 %v4524, %v4524
      %v4602 = vmul.f32 %v4525, %v4525
      %v4603 = vmul.f32 %v4526, %v4526
      %v4604 = vadd.f32 %v4568, %v4569
      %v4605 = vadd.f32 %v4604, %v4570
      %v4606 = vadd.f32 %v4605, %v4571
      %v4607 = vadd.f32 %v4606, %v4572
      %v4608 = vadd.f32 %v4607, %v4573
      %v4609 = vadd.f32 %v4608, %v4574
      %v4610 = vadd.f32 %v4609, %v4575
      %v4611 = vadd.f32 %v4610, %v4576
      %v4612 = vadd.f32 %v4611, %v4577
      %v4613 = vadd.f32 %v4612, %v4578
      %v4614 = vadd.f32 %v4613, %v4579
      %v4615 = vadd.f32 %v4614, %v4580
      %v4616 = vadd.f32 %v4615, %v4581
      %v4617 = vadd.f32 %v4616, %v4582
      %v4618 = vadd.f32 %v4617, %v4583
      %v4619 = vadd.f32 %v4618, %v4584
      %v4620 = vadd.f32 %v4619, %v4585
      %v4621 = vadd.f32 %v4620, %v4586
      %v4622 = vadd.f32 %v4621, %v4587
      %v4623 = vadd.f32 %v4622, %v4588
      %v4624 = vadd.f32 %v4623, %v4589
      %v4625 = vadd.f32 %v4624, %v4590
      %v4626 = vadd.f32 %v4625, %v4591
      %v4627 = vadd.f32 %v4626, %v4592
      %v4628 = vadd.f32 %v4627, %v4593
      %v4629 = vadd.f32 %v4628, %v4594
      %v4630 = vadd.f32 %v4629, %v4595
      %v4631 = vadd.f32 %v4630, %v4596
      %v4632 = vadd.f32 %v4631, %v4597
      %v4633 = vadd.f32 %v4632, %v4598
      %v4634 = vadd.f32 %v4633, %v4599
      %v4635 = vadd.f32 %v4634, %v4600
      %v4636 = vadd.f32 %v4635, %v4601
      %v4637 = vadd.f32 %v4636, %v4602
      %v4638 = vadd.f32 %v4637, %v4603
      %v4639 = vrot.slane %v4638, 4
      %v4640 = vadd.f32 %v4638, %v4639
      %v4641 = vrot.slane %v4640, 2
      %v4642 = vadd.f32 %v4640, %v4641
      %v4643 = vrot.slane %v4642, 1
      %v4644 = vadd.f32 %v4642, %v4643
      %v4645 = vadd.f32 %v4567, 0.0
      %v4646 = vadd.f32 %v4644, 0.0
      %v4647 = vld [vmem:[%s355 + $0x8] sm:$0xe]
      %v4648 = vld [vmem:[%s355 + $0xc] sm:$0xf]
      %v4649 = vld [vmem:[%s355 + $0x10] sm:$0xf]
      %v4650 = vld [vmem:[%s355 + $0x14] sm:$0xf]
      %v4651 = vld [vmem:[%s355 + $0x18] sm:$0xf]
      %v4652 = vld [vmem:[%s355 + $0x1c] sm:$0xf]
      %v4653 = vld [vmem:[%s355 + $0x20] sm:$0xf]
      %v4654 = vld [vmem:[%s355 + $0x24] sm:$0xf]
      %v4655 = vld [vmem:[%s355 + $0x28] sm:$0xf]
      %v4656 = vld [vmem:[%s355 + $0x2c] sm:$0xf]
      %v4657 = vld [vmem:[%s355 + $0x30] sm:$0xf]
      %v4658 = vld [vmem:[%s355 + $0x34] sm:$0xf]
      %v4659 = vld [vmem:[%s355 + $0x38] sm:$0xf]
      %v4660 = vld [vmem:[%s355 + $0x3c] sm:$0xf]
      %v4661 = vld [vmem:[%s355 + $0x40] sm:$0xf]
      %v4662 = vld [vmem:[%s355 + $0x44] sm:$0xf]
      %v4663 = vld [vmem:[%s355 + $0x48] sm:$0xf]
      %v4664 = vld [vmem:[%s355 + $0x4c] sm:$0xf]
      %v4665 = vld [vmem:[%s355 + $0x50] sm:$0xf]
      %v4666 = vld [vmem:[%s355 + $0x54] sm:$0xf]
      %v4667 = vld [vmem:[%s355 + $0x58] sm:$0xf]
      %v4668 = vld [vmem:[%s355 + $0x5c] sm:$0xf]
      %v4669 = vld [vmem:[%s355 + $0x60] sm:$0xf]
      %v4670 = vld [vmem:[%s355 + $0x64] sm:$0xf]
      %v4671 = vld [vmem:[%s355 + $0x68] sm:$0xf]
      %v4672 = vld [vmem:[%s355 + $0x6c] sm:$0xf]
      %v4673 = vld [vmem:[%s355 + $0x70] sm:$0xf]
      %v4674 = vld [vmem:[%s355 + $0x74] sm:$0xf]
      %v4675 = vld [vmem:[%s355 + $0x78] sm:$0xf]
      %v4676 = vld [vmem:[%s355 + $0x7c] sm:$0xf]
      %v4677 = vld [vmem:[%s355 + $0x80] sm:$0xf]
      %v4678 = vld [vmem:[%s355 + $0x84] sm:$0xf]
      %v4679 = vld [vmem:[%s355 + $0x88] sm:$0xf]
      %v4680 = vld [vmem:[%s355 + $0x8c] sm:$0xf]
      %v4681 = vld [vmem:[%s355 + $0x90] sm:$0xf]
      %v4682 = vld [vmem:[%s355 + $0x94] sm:$0xf]
      %v4683 = vld [vmem:[%s355 + $0x98] sm:$0x3]
      %v4684 = vld [vmem:[%s3] sm:$0xf]
      %v4685 = vld [vmem:[%s3 + $0x4] sm:$0xf]
      %v4686 = vld [vmem:[%s3 + $0x8] sm:$0xf]
      %v4687 = vld [vmem:[%s3 + $0xc] sm:$0xf]
      %v4688 = vld [vmem:[%s3 + $0x10] sm:$0xf]
      %v4689 = vld [vmem:[%s3 + $0x14] sm:$0xf]
      %v4690 = vld [vmem:[%s3 + $0x18] sm:$0xf]
      %v4691 = vld [vmem:[%s3 + $0x1c] sm:$0xf]
      %v4692 = vld [vmem:[%s3 + $0x20] sm:$0xf]
      %v4693 = vld [vmem:[%s3 + $0x24] sm:$0xf]
      %v4694 = vld [vmem:[%s3 + $0x28] sm:$0xf]
      %v4695 = vld [vmem:[%s3 + $0x2c] sm:$0xf]
      %v4696 = vld [vmem:[%s3 + $0x30] sm:$0xf]
      %v4697 = vld [vmem:[%s3 + $0x34] sm:$0xf]
      %v4698 = vld [vmem:[%s3 + $0x38] sm:$0xf]
      %v4699 = vld [vmem:[%s3 + $0x3c] sm:$0xf]
      %v4737 = vunpack.c.l.b16 %v4647
      %v4738 = vunpack.c.l.b16 %v4648
      %v4739 = vunpack.c.l.b16 %v4649
      %v4740 = vunpack.c.l.b16 %v4650
      %v4741 = vunpack.c.l.b16 %v4651
      %v4742 = vunpack.c.l.b16 %v4652
      %v4743 = vunpack.c.l.b16 %v4653
      %v4744 = vunpack.c.l.b16 %v4654
      %v4745 = vunpack.c.l.b16 %v4655
      %v4746 = vunpack.c.l.b16 %v4656
      %v4747 = vunpack.c.l.b16 %v4657
      %v4748 = vunpack.c.l.b16 %v4658
      %v4749 = vunpack.c.l.b16 %v4659
      %v4750 = vunpack.c.l.b16 %v4660
      %v4751 = vunpack.c.l.b16 %v4661
      %v4752 = vunpack.c.l.b16 %v4662
      %v4753 = vunpack.c.l.b16 %v4663
      %v4754 = vunpack.c.l.b16 %v4664
      %v4755 = vunpack.c.l.b16 %v4665
      %v4756 = vunpack.c.l.b16 %v4666
      %v4757 = vunpack.c.l.b16 %v4667
      %v4758 = vunpack.c.l.b16 %v4668
      %v4759 = vunpack.c.l.b16 %v4669
      %v4760 = vunpack.c.l.b16 %v4670
      %v4761 = vunpack.c.l.b16 %v4671
      %v4762 = vunpack.c.l.b16 %v4672
      %v4763 = vunpack.c.l.b16 %v4673
      %v4764 = vunpack.c.l.b16 %v4674
      %v4765 = vunpack.c.l.b16 %v4675
      %v4766 = vunpack.c.l.b16 %v4676
      %v4767 = vunpack.c.l.b16 %v4677
      %v4768 = vunpack.c.l.b16 %v4678
      %v4769 = vunpack.c.l.b16 %v4679
      %v4770 = vunpack.c.l.b16 %v4680
      %v4771 = vunpack.c.l.b16 %v4681
      %v4772 = vunpack.c.l.b16 %v4682
      %v4773 = vunpack.c.l.b16 %v4683
      %v4774 = vpack.c.b16 %v4738, %v4737
      %v4775 = vpack.c.b16 %v4740, %v4739
      %v4776 = vpack.c.b16 %v4742, %v4741
      %v4777 = vpack.c.b16 %v4744, %v4743
      %v4778 = vpack.c.b16 %v4746, %v4745
      %v4779 = vpack.c.b16 %v4748, %v4747
      %v4780 = vpack.c.b16 %v4750, %v4749
      %v4781 = vpack.c.b16 %v4752, %v4751
      %v4782 = vpack.c.b16 %v4754, %v4753
      %v4783 = vpack.c.b16 %v4756, %v4755
      %v4784 = vpack.c.b16 %v4758, %v4757
      %v4785 = vpack.c.b16 %v4760, %v4759
      %v4786 = vpack.c.b16 %v4762, %v4761
      %v4787 = vpack.c.b16 %v4764, %v4763
      %v4788 = vpack.c.b16 %v4766, %v4765
      %v4789 = vpack.c.b16 %v4768, %v4767
      %v4790 = vpack.c.b16 %v4770, %v4769
      %v4791 = vpack.c.b16 %v4772, %v4771
      %v4792 = vpack.c.b16 %v4773, %v4773
      %v4794 = vshrl.u32 %v4774, 16
      %v4796 = vrot.slane %v4794, 1
      %v4797 = vshll.u32 %v4774, 16
      %v4799 = vrot.slane %v4797, 2
      %v4800 = vor.u32 %v4796, %v4799
      %v4802 = vshrl.u32 %v4775, 16
      %v4804 = vrot.slane %v4802, 1
      %v4805 = vshll.u32 %v4775, 16
      %v4807 = vrot.slane %v4805, 2
      %v4808 = vor.u32 %v4804, %v4807
      %v4809 = vsel %vm2071, %v4800, %v4808
      %v4811 = vshrl.u32 %v4776, 16
      %v4813 = vrot.slane %v4811, 1
      %v4814 = vshll.u32 %v4776, 16
      %v4816 = vrot.slane %v4814, 2
      %v4817 = vor.u32 %v4813, %v4816
      %v4818 = vsel %vm2071, %v4808, %v4817
      %v4820 = vshrl.u32 %v4777, 16
      %v4822 = vrot.slane %v4820, 1
      %v4823 = vshll.u32 %v4777, 16
      %v4825 = vrot.slane %v4823, 2
      %v4826 = vor.u32 %v4822, %v4825
      %v4827 = vsel %vm2071, %v4817, %v4826
      %v4829 = vshrl.u32 %v4778, 16
      %v4831 = vrot.slane %v4829, 1
      %v4832 = vshll.u32 %v4778, 16
      %v4834 = vrot.slane %v4832, 2
      %v4835 = vor.u32 %v4831, %v4834
      %v4836 = vsel %vm2071, %v4826, %v4835
      %v4838 = vshrl.u32 %v4779, 16
      %v4840 = vrot.slane %v4838, 1
      %v4841 = vshll.u32 %v4779, 16
      %v4843 = vrot.slane %v4841, 2
      %v4844 = vor.u32 %v4840, %v4843
      %v4845 = vsel %vm2071, %v4835, %v4844
      %v4847 = vshrl.u32 %v4780, 16
      %v4849 = vrot.slane %v4847, 1
      %v4850 = vshll.u32 %v4780, 16
      %v4852 = vrot.slane %v4850, 2
      %v4853 = vor.u32 %v4849, %v4852
      %v4854 = vsel %vm2071, %v4844, %v4853
      %v4856 = vshrl.u32 %v4781, 16
      %v4858 = vrot.slane %v4856, 1
      %v4859 = vshll.u32 %v4781, 16
      %v4861 = vrot.slane %v4859, 2
      %v4862 = vor.u32 %v4858, %v4861
      %v4863 = vsel %vm2071, %v4853, %v4862
      %v4865 = vshrl.u32 %v4782, 16
      %v4867 = vrot.slane %v4865, 1
      %v4868 = vshll.u32 %v4782, 16
      %v4870 = vrot.slane %v4868, 2
      %v4871 = vor.u32 %v4867, %v4870
      %v4872 = vsel %vm2071, %v4862, %v4871
      %v4874 = vshrl.u32 %v4783, 16
      %v4876 = vrot.slane %v4874, 1
      %v4877 = vshll.u32 %v4783, 16
      %v4879 = vrot.slane %v4877, 2
      %v4880 = vor.u32 %v4876, %v4879
      %v4881 = vsel %vm2071, %v4871, %v4880
      %v4883 = vshrl.u32 %v4784, 16
      %v4885 = vrot.slane %v4883, 1
      %v4886 = vshll.u32 %v4784, 16
      %v4888 = vrot.slane %v4886, 2
      %v4889 = vor.u32 %v4885, %v4888
      %v4890 = vsel %vm2071, %v4880, %v4889
      %v4892 = vshrl.u32 %v4785, 16
      %v4894 = vrot.slane %v4892, 1
      %v4895 = vshll.u32 %v4785, 16
      %v4897 = vrot.slane %v4895, 2
      %v4898 = vor.u32 %v4894, %v4897
      %v4899 = vsel %vm2071, %v4889, %v4898
      %v4901 = vshrl.u32 %v4786, 16
      %v4903 = vrot.slane %v4901, 1
      %v4904 = vshll.u32 %v4786, 16
      %v4906 = vrot.slane %v4904, 2
      %v4907 = vor.u32 %v4903, %v4906
      %v4908 = vsel %vm2071, %v4898, %v4907
      %v4910 = vshrl.u32 %v4787, 16
      %v4912 = vrot.slane %v4910, 1
      %v4913 = vshll.u32 %v4787, 16
      %v4915 = vrot.slane %v4913, 2
      %v4916 = vor.u32 %v4912, %v4915
      %v4917 = vsel %vm2071, %v4907, %v4916
      %v4919 = vshrl.u32 %v4788, 16
      %v4921 = vrot.slane %v4919, 1
      %v4922 = vshll.u32 %v4788, 16
      %v4924 = vrot.slane %v4922, 2
      %v4925 = vor.u32 %v4921, %v4924
      %v4926 = vsel %vm2071, %v4916, %v4925
      %v4928 = vshrl.u32 %v4789, 16
      %v4930 = vrot.slane %v4928, 1
      %v4931 = vshll.u32 %v4789, 16
      %v4933 = vrot.slane %v4931, 2
      %v4934 = vor.u32 %v4930, %v4933
      %v4935 = vsel %vm2071, %v4925, %v4934
      %v4937 = vshrl.u32 %v4790, 16
      %v4939 = vrot.slane %v4937, 1
      %v4940 = vshll.u32 %v4790, 16
      %v4942 = vrot.slane %v4940, 2
      %v4943 = vor.u32 %v4939, %v4942
      %v4944 = vsel %vm2071, %v4934, %v4943
      %v4946 = vshrl.u32 %v4791, 16
      %v4948 = vrot.slane %v4946, 1
      %v4949 = vshll.u32 %v4791, 16
      %v4951 = vrot.slane %v4949, 2
      %v4952 = vor.u32 %v4948, %v4951
      %v4953 = vsel %vm2071, %v4943, %v4952
      %v4955 = vshrl.u32 %v4792, 16
      %v4957 = vrot.slane %v4955, 1
      %v4958 = vshll.u32 %v4792, 16
      %v4960 = vrot.slane %v4958, 2
      %v4961 = vor.u32 %v4957, %v4960
      %v4962 = vsel %vm2071, %v4952, %v4961
      %v4997 = vunpack.c.l.b16 %v4684
      %v4998 = vunpack.c.l.b16 %v4685
      %v4999 = vunpack.c.l.b16 %v4686
      %v5000 = vunpack.c.l.b16 %v4687
      %v5001 = vunpack.c.l.b16 %v4688
      %v5002 = vunpack.c.l.b16 %v4689
      %v5003 = vunpack.c.l.b16 %v4690
      %v5004 = vunpack.c.l.b16 %v4691
      %v5005 = vunpack.c.l.b16 %v4692
      %v5006 = vunpack.c.l.b16 %v4693
      %v5007 = vunpack.c.l.b16 %v4694
      %v5008 = vunpack.c.l.b16 %v4695
      %v5009 = vunpack.c.l.b16 %v4696
      %v5010 = vunpack.c.l.b16 %v4697
      %v5011 = vunpack.c.l.b16 %v4698
      %v5012 = vunpack.c.l.b16 %v4699
      %v5013 = vpack.c.b16 %v4998, %v4997
      %v5014 = vpack.c.b16 %v5000, %v4999
      %v5015 = vpack.c.b16 %v5002, %v5001
      %v5016 = vpack.c.b16 %v5004, %v5003
      %v5017 = vpack.c.b16 %v5006, %v5005
      %v5018 = vpack.c.b16 %v5008, %v5007
      %v5019 = vpack.c.b16 %v5010, %v5009
      %v5020 = vpack.c.b16 %v5012, %v5011
      %5029 = vmatprep.subr.bf16.mxu0 0
      %5030 = vmatpush1.bf16.msra.mxu0 %v5013
      %5031 = vmatprep.subr.bf16.mxu0 0
      %5032 = vmatpush1.bf16.msra.mxu0 %v5014
      %5033 = vmatprep.subr.bf16.mxu0 0
      %5034 = vmatpush1.bf16.msra.mxu0 %v5015
      %5035 = vmatprep.subr.bf16.mxu0 0
      %5036 = vmatpush1.bf16.msra.mxu0 %v5016
      %5037 = vmatprep.subr.bf16.mxu0 0
      %5038 = vmatpush1.bf16.msra.mxu0 %v5017
      %5039 = vmatprep.subr.bf16.mxu0 0
      %5040 = vmatpush1.bf16.msra.mxu0 %v5018
      %5041 = vmatprep.subr.bf16.mxu0 0
      %5042 = vmatpush1.bf16.msra.mxu0 %v5019
      %5043 = vmatprep.subr.bf16.mxu0 0
      %5044 = vmatpush1.bf16.msra.mxu0 %v5020
      %5045 = vmatprep.subr.bf16.mxu0 0
      %5046 = vmatpush1.bf16.msra.mxu0 0
      %5047 = vmatprep.subr.bf16.mxu0 0
      %5048 = vmatpush1.bf16.msra.mxu0 0
      %5049 = vmatprep.subr.bf16.mxu0 0
      %5050 = vmatpush1.bf16.msra.mxu0 0
      %5051 = vmatprep.subr.bf16.mxu0 0
      %5052 = vmatpush1.bf16.msra.mxu0 0
      %5053 = vmatprep.subr.bf16.mxu0 0
      %5054 = vmatpush1.bf16.msra.mxu0 0
      %5055 = vmatprep.subr.bf16.mxu0 0
      %5056 = vmatpush1.bf16.msra.mxu0 0
      %5057 = vmatprep.subr.bf16.mxu0 0
      %5058 = vmatpush1.bf16.msra.mxu0 0
      %5059 = vmatprep.subr.bf16.mxu0 0
      %5060 = vmatpush1.bf16.msra.mxu0 0
      %5061 = vmatprep.mubr.bf16.mxu0 0
      %5062 = vmatmul.mubr.bf16.gmra.mrb[0].mxu0 %v4809
      %v5063 = vpop.f32.mrb[0].mxu0
      %v5064 = vadd.f32 0.0, %v5063
      %v5065 = vpop.f32.mrb[0].mxu0
      %v5066 = vpop.f32.mrb[0].mxu0
      %v5067 = vadd.f32 0.0, %v5066
      %v5068 = vpop.f32.mrb[0].mxu0
      %5069 = vmatprep.mubr.bf16.mxu0 0
      %5070 = vmatmul.mubr.bf16.gmra.mrb[0].mxu0 %v4818
      %v5071 = vpop.f32.mrb[0].mxu0
      %v5072 = vadd.f32 0.0, %v5071
      %v5073 = vpop.f32.mrb[0].mxu0
      %v5074 = vpop.f32.mrb[0].mxu0
      %v5075 = vadd.f32 0.0, %v5074
      %v5076 = vpop.f32.mrb[0].mxu0
      %5077 = vmatprep.mubr.bf16.mxu0 0
      %5078 = vmatmul.mubr.bf16.gmra.mrb[0].mxu0 %v4827
      %v5079 = vpop.f32.mrb[0].mxu0
      %v5080 = vadd.f32 0.0, %v5079
      %v5081 = vpop.f32.mrb[0].mxu0
      %v5082 = vpop.f32.mrb[0].mxu0
      %v5083 = vadd.f32 0.0, %v5082
      %v5084 = vpop.f32.mrb[0].mxu0
      %5085 = vmatprep.mubr.bf16.mxu0 0
      %5086 = vmatmul.mubr.bf16.gmra.mrb[0].mxu0 %v4836
      %v5087 = vpop.f32.mrb[0].mxu0
      %v5088 = vadd.f32 0.0, %v5087
      %v5089 = vpop.f32.mrb[0].mxu0
      %v5090 = vpop.f32.mrb[0].mxu0
      %v5091 = vadd.f32 0.0, %v5090
      %v5092 = vpop.f32.mrb[0].mxu0
      %5093 = vmatprep.mubr.bf16.mxu0 0
      %5094 = vmatmul.mubr.bf16.gmra.mrb[0].mxu0 %v4845
      %v5095 = vpop.f32.mrb[0].mxu0
      %v5096 = vadd.f32 0.0, %v5095
      %v5097 = vpop.f32.mrb[0].mxu0
      %v5098 = vpop.f32.mrb[0].mxu0
      %v5099 = vadd.f32 0.0, %v5098
      %v5100 = vpop.f32.mrb[0].mxu0
      %5101 = vmatprep.mubr.bf16.mxu0 0
      %5102 = vmatmul.mubr.bf16.gmra.mrb[0].mxu0 %v4854
      %v5103 = vpop.f32.mrb[0].mxu0
      %v5104 = vadd.f32 0.0, %v5103
      %v5105 = vpop.f32.mrb[0].mxu0
      %v5106 = vpop.f32.mrb[0].mxu0
      %v5107 = vadd.f32 0.0, %v5106
      %v5108 = vpop.f32.mrb[0].mxu0
      %5109 = vmatprep.mubr.bf16.mxu0 0
      %5110 = vmatmul.mubr.bf16.gmra.mrb[0].mxu0 %v4863
      %v5111 = vpop.f32.mrb[0].mxu0
      %v5112 = vadd.f32 0.0, %v5111
      %v5113 = vpop.f32.mrb[0].mxu0
      %v5114 = vpop.f32.mrb[0].mxu0
      %v5115 = vadd.f32 0.0, %v5114
      %v5116 = vpop.f32.mrb[0].mxu0
      %5117 = vmatprep.mubr.bf16.mxu0 0
      %5118 = vmatmul.mubr.bf16.gmra.mrb[0].mxu0 %v4872
      %v5119 = vpop.f32.mrb[0].mxu0
      %v5120 = vadd.f32 0.0, %v5119
      %v5121 = vpop.f32.mrb[0].mxu0
      %v5122 = vpop.f32.mrb[0].mxu0
      %v5123 = vadd.f32 0.0, %v5122
      %v5124 = vpop.f32.mrb[0].mxu0
      %5125 = vmatprep.mubr.bf16.mxu0 0
      %5126 = vmatmul.mubr.bf16.gmra.mrb[0].mxu0 %v4881
      %v5127 = vpop.f32.mrb[0].mxu0
      %v5128 = vadd.f32 0.0, %v5127
      %v5129 = vpop.f32.mrb[0].mxu0
      %v5130 = vpop.f32.mrb[0].mxu0
      %v5131 = vadd.f32 0.0, %v5130
      %v5132 = vpop.f32.mrb[0].mxu0
      %5133 = vmatprep.mubr.bf16.mxu0 0
      %5134 = vmatmul.mubr.bf16.gmra.mrb[0].mxu0 %v4890
      %v5135 = vpop.f32.mrb[0].mxu0
      %v5136 = vadd.f32 0.0, %v5135
      %v5137 = vpop.f32.mrb[0].mxu0
      %v5138 = vpop.f32.mrb[0].mxu0
      %v5139 = vadd.f32 0.0, %v5138
      %v5140 = vpop.f32.mrb[0].mxu0
      %5141 = vmatprep.mubr.bf16.mxu0 0
      %5142 = vmatmul.mubr.bf16.gmra.mrb[0].mxu0 %v4899
      %v5143 = vpop.f32.mrb[0].mxu0
      %v5144 = vadd.f32 0.0, %v5143
      %v5145 = vpop.f32.mrb[0].mxu0
      %v5146 = vpop.f32.mrb[0].mxu0
      %v5147 = vadd.f32 0.0, %v5146
      %v5148 = vpop.f32.mrb[0].mxu0
      %5149 = vmatprep.mubr.bf16.mxu0 0
      %5150 = vmatmul.mubr.bf16.gmra.mrb[0].mxu0 %v4908
      %v5151 = vpop.f32.mrb[0].mxu0
      %v5152 = vadd.f32 0.0, %v5151
      %v5153 = vpop.f32.mrb[0].mxu0
      %v5154 = vpop.f32.mrb[0].mxu0
      %v5155 = vadd.f32 0.0, %v5154
      %v5156 = vpop.f32.mrb[0].mxu0
      %5157 = vmatprep.mubr.bf16.mxu0 0
      %5158 = vmatmul.mubr.bf16.gmra.mrb[0].mxu0 %v4917
      %v5159 = vpop.f32.mrb[0].mxu0
      %v5160 = vadd.f32 0.0, %v5159
      %v5161 = vpop.f32.mrb[0].mxu0
      %v5162 = vpop.f32.mrb[0].mxu0
      %v5163 = vadd.f32 0.0, %v5162
      %v5164 = vpop.f32.mrb[0].mxu0
      %5165 = vmatprep.mubr.bf16.mxu0 0
      %5166 = vmatmul.mubr.bf16.gmra.mrb[0].mxu0 %v4926
      %v5167 = vpop.f32.mrb[0].mxu0
      %v5168 = vadd.f32 0.0, %v5167
      %v5169 = vpop.f32.mrb[0].mxu0
      %v5170 = vpop.f32.mrb[0].mxu0
      %v5171 = vadd.f32 0.0, %v5170
      %v5172 = vpop.f32.mrb[0].mxu0
      %5173 = vmatprep.mubr.bf16.mxu0 0
      %5174 = vmatmul.mubr.bf16.gmra.mrb[0].mxu0 %v4935
      %v5175 = vpop.f32.mrb[0].mxu0
      %v5176 = vadd.f32 0.0, %v5175
      %v5177 = vpop.f32.mrb[0].mxu0
      %v5178 = vpop.f32.mrb[0].mxu0
      %v5179 = vadd.f32 0.0, %v5178
      %v5180 = vpop.f32.mrb[0].mxu0
      %5181 = vmatprep.mubr.bf16.mxu0 0
      %5182 = vmatmul.mubr.bf16.gmra.mrb[0].mxu0 %v4944
      %v5183 = vpop.f32.mrb[0].mxu0
      %v5184 = vadd.f32 0.0, %v5183
      %v5185 = vpop.f32.mrb[0].mxu0
      %v5186 = vpop.f32.mrb[0].mxu0
      %v5187 = vadd.f32 0.0, %v5186
      %v5188 = vpop.f32.mrb[0].mxu0
      %5189 = vmatprep.mubr.bf16.mxu0 0
      %5190 = vmatmul.mubr.bf16.gmra.mrb[0].mxu0 %v4953
      %v5191 = vpop.f32.mrb[0].mxu0
      %v5192 = vadd.f32 0.0, %v5191
      %v5193 = vpop.f32.mrb[0].mxu0
      %v5194 = vpop.f32.mrb[0].mxu0
      %v5195 = vadd.f32 0.0, %v5194
      %v5196 = vpop.f32.mrb[0].mxu0
      %5197 = vmatprep.mubr.bf16.mxu0 0
      %5198 = vmatmul.mubr.bf16.gmra.mrb[0].mxu0 %v4962
      %v5199 = vpop.f32.mrb[0].mxu0
      %v5200 = vadd.f32 0.0, %v5199
      %v5201 = vpop.f32.mrb[0].mxu0
      %v5202 = vpop.f32.mrb[0].mxu0
      %v5203 = vadd.f32 0.0, %v5202
      %v5204 = vpop.f32.mrb[0].mxu0
      %5205 = vdwg.mxu0
      %v5206 = vpack.c.bf16 %v5067, %v5064
      %v5207 = vpack.c.bf16 %v5075, %v5072
      %v5208 = vpack.c.bf16 %v5083, %v5080
      %v5209 = vpack.c.bf16 %v5091, %v5088
      %v5210 = vpack.c.bf16 %v5099, %v5096
      %v5211 = vpack.c.bf16 %v5107, %v5104
      %v5212 = vpack.c.bf16 %v5115, %v5112
      %v5213 = vpack.c.bf16 %v5123, %v5120
      %v5214 = vpack.c.bf16 %v5131, %v5128
      %v5215 = vpack.c.bf16 %v5139, %v5136
      %v5216 = vpack.c.bf16 %v5147, %v5144
      %v5217 = vpack.c.bf16 %v5155, %v5152
      %v5218 = vpack.c.bf16 %v5163, %v5160
      %v5219 = vpack.c.bf16 %v5171, %v5168
      %v5220 = vpack.c.bf16 %v5179, %v5176
      %v5221 = vpack.c.bf16 %v5187, %v5184
      %v5222 = vpack.c.bf16 %v5195, %v5192
      %v5223 = vpack.c.bf16 %v5203, %v5200
      %v5242 = vunpack.c.l.b16 %v5206
      %v5243 = vunpack.c.h.b16 %v5206
      %v5244 = vunpack.c.l.b16 %v5207
      %v5245 = vunpack.c.h.b16 %v5207
      %v5246 = vunpack.c.l.b16 %v5208
      %v5247 = vunpack.c.h.b16 %v5208
      %v5248 = vunpack.c.l.b16 %v5209
      %v5249 = vunpack.c.h.b16 %v5209
      %v5250 = vunpack.c.l.b16 %v5210
      %v5251 = vunpack.c.h.b16 %v5210
      %v5252 = vunpack.c.l.b16 %v5211
      %v5253 = vunpack.c.h.b16 %v5211
      %v5254 = vunpack.c.l.b16 %v5212
      %v5255 = vunpack.c.h.b16 %v5212
      %v5256 = vunpack.c.l.b16 %v5213
      %v5257 = vunpack.c.h.b16 %v5213
      %v5258 = vunpack.c.l.b16 %v5214
      %v5259 = vunpack.c.h.b16 %v5214
      %v5260 = vunpack.c.l.b16 %v5215
      %v5261 = vunpack.c.h.b16 %v5215
      %v5262 = vunpack.c.l.b16 %v5216
      %v5263 = vunpack.c.h.b16 %v5216
      %v5264 = vunpack.c.l.b16 %v5217
      %v5265 = vunpack.c.h.b16 %v5217
      %v5266 = vunpack.c.l.b16 %v5218
      %v5267 = vunpack.c.h.b16 %v5218
      %v5268 = vunpack.c.l.b16 %v5219
      %v5269 = vunpack.c.h.b16 %v5219
      %v5270 = vunpack.c.l.b16 %v5220
      %v5271 = vunpack.c.h.b16 %v5220
      %v5272 = vunpack.c.l.b16 %v5221
      %v5273 = vunpack.c.h.b16 %v5221
      %v5274 = vunpack.c.l.b16 %v5222
      %v5275 = vunpack.c.h.b16 %v5222
      %v5276 = vunpack.c.l.b16 %v5223
      %v5277 = vunpack.c.h.b16 %v5223
      %v5278 = vpack.c.b16 %v5242, %v5242
      %v5279 = vpack.c.b16 %v5243, %v5243
      %v5280 = vpack.c.b16 %v5244, %v5244
      %v5281 = vpack.c.b16 %v5245, %v5245
      %v5282 = vpack.c.b16 %v5246, %v5246
      %v5283 = vpack.c.b16 %v5247, %v5247
      %v5284 = vpack.c.b16 %v5248, %v5248
      %v5285 = vpack.c.b16 %v5249, %v5249
      %v5286 = vpack.c.b16 %v5250, %v5250
      %v5287 = vpack.c.b16 %v5251, %v5251
      %v5288 = vpack.c.b16 %v5252, %v5252
      %v5289 = vpack.c.b16 %v5253, %v5253
      %v5290 = vpack.c.b16 %v5254, %v5254
      %v5291 = vpack.c.b16 %v5255, %v5255
      %v5292 = vpack.c.b16 %v5256, %v5256
      %v5293 = vpack.c.b16 %v5257, %v5257
      %v5294 = vpack.c.b16 %v5258, %v5258
      %v5295 = vpack.c.b16 %v5259, %v5259
      %v5296 = vpack.c.b16 %v5260, %v5260
      %v5297 = vpack.c.b16 %v5261, %v5261
      %v5298 = vpack.c.b16 %v5262, %v5262
      %v5299 = vpack.c.b16 %v5263, %v5263
      %v5300 = vpack.c.b16 %v5264, %v5264
      %v5301 = vpack.c.b16 %v5265, %v5265
      %v5302 = vpack.c.b16 %v5266, %v5266
      %v5303 = vpack.c.b16 %v5267, %v5267
      %v5304 = vpack.c.b16 %v5268, %v5268
      %v5305 = vpack.c.b16 %v5269, %v5269
      %v5306 = vpack.c.b16 %v5270, %v5270
      %v5307 = vpack.c.b16 %v5271, %v5271
      %v5308 = vpack.c.b16 %v5272, %v5272
      %v5309 = vpack.c.b16 %v5273, %v5273
      %v5310 = vpack.c.b16 %v5274, %v5274
      %v5311 = vpack.c.b16 %v5275, %v5275
      %v5312 = vpack.c.b16 %v5276, %v5276
      %v5313 = vpack.c.b16 %v5277, %v5277
      %5350 = vst [vmem:[%s371] sm:$0xf] %v5278
      %5351 = vst [vmem:[%s371 + $0x4] sm:$0xf] %v5279
      %5352 = vst [vmem:[%s371 + $0x8] sm:$0xf] %v5280
      %5353 = vst [vmem:[%s371 + $0xc] sm:$0xf] %v5281
      %5354 = vst [vmem:[%s371 + $0x10] sm:$0xf] %v5282
      %5355 = vst [vmem:[%s371 + $0x14] sm:$0xf] %v5283
      %5356 = vst [vmem:[%s371 + $0x18] sm:$0xf] %v5284
      %5357 = vst [vmem:[%s371 + $0x1c] sm:$0xf] %v5285
      %5358 = vst [vmem:[%s371 + $0x20] sm:$0xf] %v5286
      %5359 = vst [vmem:[%s371 + $0x24] sm:$0xf] %v5287
      %5360 = vst [vmem:[%s371 + $0x28] sm:$0xf] %v5288
      %5361 = vst [vmem:[%s371 + $0x2c] sm:$0xf] %v5289
      %5362 = vst [vmem:[%s371 + $0x30] sm:$0xf] %v5290
      %5363 = vst [vmem:[%s371 + $0x34] sm:$0xf] %v5291
      %5364 = vst [vmem:[%s371 + $0x38] sm:$0xf] %v5292
      %5365 = vst [vmem:[%s371 + $0x3c] sm:$0xf] %v5293
      %5366 = vst [vmem:[%s371 + $0x40] sm:$0xf] %v5294
      %5367 = vst [vmem:[%s371 + $0x44] sm:$0xf] %v5295
      %5368 = vst [vmem:[%s371 + $0x48] sm:$0xf] %v5296
      %5369 = vst [vmem:[%s371 + $0x4c] sm:$0xf] %v5297
      %5370 = vst [vmem:[%s371 + $0x50] sm:$0xf] %v5298
      %5371 = vst [vmem:[%s371 + $0x54] sm:$0xf] %v5299
      %5372 = vst [vmem:[%s371 + $0x58] sm:$0xf] %v5300
      %5373 = vst [vmem:[%s371 + $0x5c] sm:$0xf] %v5301
      %5374 = vst [vmem:[%s371 + $0x60] sm:$0xf] %v5302
      %5375 = vst [vmem:[%s371 + $0x64] sm:$0xf] %v5303
      %5376 = vst [vmem:[%s371 + $0x68] sm:$0xf] %v5304
      %5377 = vst [vmem:[%s371 + $0x6c] sm:$0xf] %v5305
      %5378 = vst [vmem:[%s371 + $0x70] sm:$0xf] %v5306
      %5379 = vst [vmem:[%s371 + $0x74] sm:$0xf] %v5307
      %5380 = vst [vmem:[%s371 + $0x78] sm:$0xf] %v5308
      %5381 = vst [vmem:[%s371 + $0x7c] sm:$0xf] %v5309
      %5382 = vst [vmem:[%s371 + $0x80] sm:$0xf] %v5310
      %5383 = vst [vmem:[%s371 + $0x84] sm:$0xf] %v5311
      %5384 = vst [vmem:[%s371 + $0x88] sm:$0xf] %v5312
      %5385 = vst [vmem:[%s371 + $0x8c] sm:$0xf] %v5313
      %v5386 = vsel %vm4455, %v5064, 0.0
      %v5387 = vsel %vm4456, %v5067, 0.0
      %v5388 = vsel %vm4457, %v5072, 0.0
      %v5389 = vsel %vm4458, %v5075, 0.0
      %v5390 = vsel %vm4459, %v5080, 0.0
      %v5391 = vsel %vm4460, %v5083, 0.0
      %v5392 = vsel %vm4461, %v5088, 0.0
      %v5393 = vsel %vm4462, %v5091, 0.0
      %v5394 = vsel %vm4463, %v5096, 0.0
      %v5395 = vsel %vm4464, %v5099, 0.0
      %v5396 = vsel %vm4465, %v5104, 0.0
      %v5397 = vsel %vm4466, %v5107, 0.0
      %v5398 = vsel %vm4467, %v5112, 0.0
      %v5399 = vsel %vm4468, %v5115, 0.0
      %v5400 = vsel %vm4469, %v5120, 0.0
      %v5401 = vsel %vm4470, %v5123, 0.0
      %v5402 = vsel %vm4471, %v5128, 0.0
      %v5403 = vsel %vm4472, %v5131, 0.0
      %v5404 = vsel %vm4473, %v5136, 0.0
      %v5405 = vsel %vm4474, %v5139, 0.0
      %v5406 = vsel %vm4475, %v5144, 0.0
      %v5407 = vsel %vm4476, %v5147, 0.0
      %v5408 = vsel %vm4477, %v5152, 0.0
      %v5409 = vsel %vm4478, %v5155, 0.0
      %v5410 = vsel %vm4479, %v5160, 0.0
      %v5411 = vsel %vm4480, %v5163, 0.0
      %v5412 = vsel %vm4481, %v5168, 0.0
      %v5413 = vsel %vm4482, %v5171, 0.0
      %v5414 = vsel %vm4483, %v5176, 0.0
      %v5415 = vsel %vm4484, %v5179, 0.0
      %v5416 = vsel %vm4485, %v5184, 0.0
      %v5417 = vsel %vm4486, %v5187, 0.0
      %v5418 = vsel %vm4487, %v5192, 0.0
      %v5419 = vsel %vm4488, %v5195, 0.0
      %v5420 = vsel %vm4489, %v5200, 0.0
      %v5421 = vsel %vm4490, %v5203, 0.0
      %v5422 = vadd.f32 %v5386, %v5387
      %v5423 = vadd.f32 %v5422, %v5388
      %v5424 = vadd.f32 %v5423, %v5389
      %v5425 = vadd.f32 %v5424, %v5390
      %v5426 = vadd.f32 %v5425, %v5391
      %v5427 = vadd.f32 %v5426, %v5392
      %v5428 = vadd.f32 %v5427, %v5393
      %v5429 = vadd.f32 %v5428, %v5394
      %v5430 = vadd.f32 %v5429, %v5395
      %v5431 = vadd.f32 %v5430, %v5396
      %v5432 = vadd.f32 %v5431, %v5397
      %v5433 = vadd.f32 %v5432, %v5398
      %v5434 = vadd.f32 %v5433, %v5399
      %v5435 = vadd.f32 %v5434, %v5400
      %v5436 = vadd.f32 %v5435, %v5401
      %v5437 = vadd.f32 %v5436, %v5402
      %v5438 = vadd.f32 %v5437, %v5403
      %v5439 = vadd.f32 %v5438, %v5404
      %v5440 = vadd.f32 %v5439, %v5405
      %v5441 = vadd.f32 %v5440, %v5406
      %v5442 = vadd.f32 %v5441, %v5407
      %v5443 = vadd.f32 %v5442, %v5408
      %v5444 = vadd.f32 %v5443, %v5409
      %v5445 = vadd.f32 %v5444, %v5410
      %v5446 = vadd.f32 %v5445, %v5411
      %v5447 = vadd.f32 %v5446, %v5412
      %v5448 = vadd.f32 %v5447, %v5413
      %v5449 = vadd.f32 %v5448, %v5414
      %v5450 = vadd.f32 %v5449, %v5415
      %v5451 = vadd.f32 %v5450, %v5416
      %v5452 = vadd.f32 %v5451, %v5417
      %v5453 = vadd.f32 %v5452, %v5418
      %v5454 = vadd.f32 %v5453, %v5419
      %v5455 = vadd.f32 %v5454, %v5420
      %v5456 = vadd.f32 %v5455, %v5421
      %v5457 = vrot.slane %v5456, 4
      %v5458 = vadd.f32 %v5456, %v5457
      %v5459 = vrot.slane %v5458, 2
      %v5460 = vadd.f32 %v5458, %v5459
      %v5461 = vrot.slane %v5460, 1
      %v5462 = vadd.f32 %v5460, %v5461
      %v5463 = vmul.f32 %v5386, %v5386
      %v5464 = vmul.f32 %v5387, %v5387
      %v5465 = vmul.f32 %v5388, %v5388
      %v5466 = vmul.f32 %v5389, %v5389
      %v5467 = vmul.f32 %v5390, %v5390
      %v5468 = vmul.f32 %v5391, %v5391
      %v5469 = vmul.f32 %v5392, %v5392
      %v5470 = vmul.f32 %v5393, %v5393
      %v5471 = vmul.f32 %v5394, %v5394
      %v5472 = vmul.f32 %v5395, %v5395
      %v5473 = vmul.f32 %v5396, %v5396
      %v5474 = vmul.f32 %v5397, %v5397
      %v5475 = vmul.f32 %v5398, %v5398
      %v5476 = vmul.f32 %v5399, %v5399
      %v5477 = vmul.f32 %v5400, %v5400
      %v5478 = vmul.f32 %v5401, %v5401
      %v5479 = vmul.f32 %v5402, %v5402
      %v5480 = vmul.f32 %v5403, %v5403
      %v5481 = vmul.f32 %v5404, %v5404
      %v5482 = vmul.f32 %v5405, %v5405
      %v5483 = vmul.f32 %v5406, %v5406
      %v5484 = vmul.f32 %v5407, %v5407
      %v5485 = vmul.f32 %v5408, %v5408
      %v5486 = vmul.f32 %v5409, %v5409
      %v5487 = vmul.f32 %v5410, %v5410
      %v5488 = vmul.f32 %v5411, %v5411
      %v5489 = vmul.f32 %v5412, %v5412
      %v5490 = vmul.f32 %v5413, %v5413
      %v5491 = vmul.f32 %v5414, %v5414
      %v5492 = vmul.f32 %v5415, %v5415
      %v5493 = vmul.f32 %v5416, %v5416
      %v5494 = vmul.f32 %v5417, %v5417
      %v5495 = vmul.f32 %v5418, %v5418
      %v5496 = vmul.f32 %v5419, %v5419
      %v5497 = vmul.f32 %v5420, %v5420
      %v5498 = vmul.f32 %v5421, %v5421
      %v5499 = vadd.f32 %v5463, %v5464
      %v5500 = vadd.f32 %v5499, %v5465
      %v5501 = vadd.f32 %v5500, %v5466
      %v5502 = vadd.f32 %v5501, %v5467
      %v5503 = vadd.f32 %v5502, %v5468
      %v5504 = vadd.f32 %v5503, %v5469
      %v5505 = vadd.f32 %v5504, %v5470
      %v5506 = vadd.f32 %v5505, %v5471
      %v5507 = vadd.f32 %v5506, %v5472
      %v5508 = vadd.f32 %v5507, %v5473
      %v5509 = vadd.f32 %v5508, %v5474
      %v5510 = vadd.f32 %v5509, %v5475
      %v5511 = vadd.f32 %v5510, %v5476
      %v5512 = vadd.f32 %v5511, %v5477
      %v5513 = vadd.f32 %v5512, %v5478
      %v5514 = vadd.f32 %v5513, %v5479
      %v5515 = vadd.f32 %v5514, %v5480
      %v5516 = vadd.f32 %v5515, %v5481
      %v5517 = vadd.f32 %v5516, %v5482
      %v5518 = vadd.f32 %v5517, %v5483
      %v5519 = vadd.f32 %v5518, %v5484
      %v5520 = vadd.f32 %v5519, %v5485
      %v5521 = vadd.f32 %v5520, %v5486
      %v5522 = vadd.f32 %v5521, %v5487
      %v5523 = vadd.f32 %v5522, %v5488
      %v5524 = vadd.f32 %v5523, %v5489
      %v5525 = vadd.f32 %v5524, %v5490
      %v5526 = vadd.f32 %v5525, %v5491
      %v5527 = vadd.f32 %v5526, %v5492
      %v5528 = vadd.f32 %v5527, %v5493
      %v5529 = vadd.f32 %v5528, %v5494
      %v5530 = vadd.f32 %v5529, %v5495
      %v5531 = vadd.f32 %v5530, %v5496
      %v5532 = vadd.f32 %v5531, %v5497
      %v5533 = vadd.f32 %v5532, %v5498
      %v5534 = vrot.slane %v5533, 4
      %v5535 = vadd.f32 %v5533, %v5534
      %v5536 = vrot.slane %v5535, 2
      %v5537 = vadd.f32 %v5535, %v5536
      %v5538 = vrot.slane %v5537, 1
      %v5539 = vadd.f32 %v5537, %v5538
      %v5540 = vadd.f32 %v5462, 0.0
      %v5541 = vadd.f32 %v5539, 0.0
      %5542 = vst [vmem:[%s363] sm:$0x1] %v4645
      %5543 = vst [vmem:[%s366] sm:$0x1] %v4646
      %5544 = vst [vmem:[%s374] sm:$0x1] %v5540
      %5545 = vst [vmem:[%s377] sm:$0x1] %v5541
      %p5546 = scmp.lt.s32.totalorder %s21, 1
      %s5547 = scalar_select %p5546, %s21, 1
      %s5548 = smul.addr %s5547, 36
      %s5549 = smul.addr %s5548, 4
      %s5550 = scalar_lea.vmem %s4, %s5549
      %p5551 = scmp.lt.s32.totalorder %s21, 1
      %s5552 = scalar_select %p5551, %s21, 1
      %s5553 = scalar_lea.vmem %s5, %s5552
      %p5554 = scmp.lt.s32.totalorder %s21, 1
      %s5555 = scalar_select %p5554, %s21, 1
      %s5556 = scalar_lea.vmem %s6, %s5555
      %p5557 = scmp.lt.s32.totalorder %s21, 1
      %s5558 = scalar_select %p5557, %s21, 1
      %s5559 = smul.addr %s5558, 36
      %s5560 = smul.addr %s5559, 4
      %s5561 = scalar_lea.vmem %s7, %s5560
      %p5562 = scmp.lt.s32.totalorder %s21, 1
      %s5563 = scalar_select %p5562, %s21, 1
      %s5564 = scalar_lea.vmem %s8, %s5563
      %p5565 = scmp.lt.s32.totalorder %s21, 1
      %s5566 = scalar_select %p5565, %s21, 1
      %s5567 = scalar_lea.vmem %s9, %s5566
      // Predicated region
      $region37: #{resblock_forward.3} parent=35 // pred_check
        %p5568 = pneg %p128
      $region38: #{resblock_forward.3} parent=35 // pred_check_branch
        %5570 = sbr.rel (%p5568) target = $region40
      $region39: #{resblock_forward.3} parent=35 // pred_region
        _
      $region40: #{resblock_forward.3} parent=35 // pred_fallthru
        _
      // Predicated region
      $region41: #{resblock_forward.3} parent=35 // pred_check
        %p5571 = pneg %p154
      $region42: #{resblock_forward.3} parent=35 // pred_check_branch
        %5573 = sbr.rel (%p5571) target = $region44
      $region43: #{resblock_forward.3} parent=35 // pred_region
        _
      $region44: #{resblock_forward.3} parent=35 // pred_fallthru
        _
      // Predicated region
      $region45: #{resblock_forward.3} parent=35 // pred_check
        %p5574 = pneg %p180
      $region46: #{resblock_forward.3} parent=35 // pred_check_branch
        %5576 = sbr.rel (%p5574) target = $region48
      $region47: #{resblock_forward.3} parent=35 // pred_region
        _
      $region48: #{resblock_forward.3} parent=35 // pred_fallthru
        _
      // Predicated region
      $region49: #{resblock_forward.3} parent=35 // pred_check
        %p5577 = pneg %p206
      $region50: #{resblock_forward.3} parent=35 // pred_check_branch
        %5579 = sbr.rel (%p5577) target = $region52
      $region51: #{resblock_forward.3} parent=35 // pred_region
        _
      $region52: #{resblock_forward.3} parent=35 // pred_fallthru
        _
      // Predicated region
      $region53: #{resblock_forward.3} parent=35 // pred_check
        %p5580 = pneg %p232
      $region54: #{resblock_forward.3} parent=35 // pred_check_branch
        %5582 = sbr.rel (%p5580) target = $region56
      $region55: #{resblock_forward.3} parent=35 // pred_region
        _
      $region56: #{resblock_forward.3} parent=35 // pred_fallthru
        _
      // Predicated region
      $region57: #{resblock_forward.3} parent=35 // pred_check
        %p5583 = pneg %p258
      $region58: #{resblock_forward.3} parent=35 // pred_check_branch
        %5585 = sbr.rel (%p5583) target = $region60
      $region59: #{resblock_forward.3} parent=35 // pred_region
        _
      $region60: #{resblock_forward.3} parent=35 // pred_fallthru
        _
    $region36: #{resblock_forward.3} parent=5 // pred_fallthru
      _
    %p5586 = scmp.le.s32.totalorder 2, %s16
    // Predicated region
    $region61: #{resblock_forward.3} parent=5 // pred_check
      %p5587 = pneg %p5586
    $region62: #{resblock_forward.3} parent=5 // pred_check_branch
      %5589 = sbr.rel (%p5587) target = $region64
    $region63: #{resblock_forward.3} parent=5 // pred_region
      %s5590 = ssub.s32 %s16, 2
      // Predicated region
      $region65: #{resblock_forward.3} parent=63 // pred_check
        %p5591 = pneg %p134
      $region66: #{resblock_forward.3} parent=63 // pred_check_branch
        %5593 = sbr.rel (%p5591) target = $region68
      $region67: #{resblock_forward.3} parent=63 // pred_region
        %p5594 = scmp.lt.s32.totalorder %s22, 1
        %s5595 = scalar_select %p5594, %s22, 1
        %s5596 = smul.addr %s5595, 36
        %s5597 = smul.addr %s5596, 4
        %s5598 = scalar_lea.vmem %s4, %s5597
      $region68: #{resblock_forward.3} parent=63 // pred_fallthru
        _
      // Predicated region
      $region69: #{resblock_forward.3} parent=63 // pred_check
        %p5599 = pneg %p160
      $region70: #{resblock_forward.3} parent=63 // pred_check_branch
        %5601 = sbr.rel (%p5599) target = $region72
      $region71: #{resblock_forward.3} parent=63 // pred_region
        %p5602 = scmp.lt.s32.totalorder %s22, 1
        %s5603 = scalar_select %p5602, %s22, 1
        %s5604 = scalar_lea.vmem %s5, %s5603
      $region72: #{resblock_forward.3} parent=63 // pred_fallthru
        _
      // Predicated region
      $region73: #{resblock_forward.3} parent=63 // pred_check
        %p5605 = pneg %p186
      $region74: #{resblock_forward.3} parent=63 // pred_check_branch
        %5607 = sbr.rel (%p5605) target = $region76
      $region75: #{resblock_forward.3} parent=63 // pred_region
        %p5608 = scmp.lt.s32.totalorder %s22, 1
        %s5609 = scalar_select %p5608, %s22, 1
        %s5610 = scalar_lea.vmem %s6, %s5609
      $region76: #{resblock_forward.3} parent=63 // pred_fallthru
        _
      // Predicated region
      $region77: #{resblock_forward.3} parent=63 // pred_check
        %p5611 = pneg %p212
      $region78: #{resblock_forward.3} parent=63 // pred_check_branch
        %5613 = sbr.rel (%p5611) target = $region80
      $region79: #{resblock_forward.3} parent=63 // pred_region
        %p5614 = scmp.lt.s32.totalorder %s22, 1
        %s5615 = scalar_select %p5614, %s22, 1
        %s5616 = smul.addr %s5615, 36
        %s5617 = smul.addr %s5616, 4
        %s5618 = scalar_lea.vmem %s7, %s5617
      $region80: #{resblock_forward.3} parent=63 // pred_fallthru
        _
      // Predicated region
      $region81: #{resblock_forward.3} parent=63 // pred_check
        %p5619 = pneg %p238
      $region82: #{resblock_forward.3} parent=63 // pred_check_branch
        %5621 = sbr.rel (%p5619) target = $region84
      $region83: #{resblock_forward.3} parent=63 // pred_region
        %p5622 = scmp.lt.s32.totalorder %s22, 1
        %s5623 = scalar_select %p5622, %s22, 1
        %s5624 = scalar_lea.vmem %s8, %s5623
      $region84: #{resblock_forward.3} parent=63 // pred_fallthru
        _
      // Predicated region
      $region85: #{resblock_forward.3} parent=63 // pred_check
        %p5625 = pneg %p264
      $region86: #{resblock_forward.3} parent=63 // pred_check_branch
        %5627 = sbr.rel (%p5625) target = $region88
      $region87: #{resblock_forward.3} parent=63 // pred_region
        %p5628 = scmp.lt.s32.totalorder %s22, 1
        %s5629 = scalar_select %p5628, %s22, 1
        %s5630 = scalar_lea.vmem %s9, %s5629
      $region88: #{resblock_forward.3} parent=63 // pred_fallthru
        _
    $region64: #{resblock_forward.3} parent=5 // pred_fallthru
      _
  $region6: #{resblock_forward.3} parent=0 // loop_footer
    %s20 = sadd.s32 1, %s16
  $region7: #{resblock_forward.3} parent=0 // loop_footer_branch
    %15 = sbr.rel target = $region3
  $region8: #{resblock_forward.3} parent=0 // loop_exit
    _

</llo_original>
